<compile_context>
chip_gen: v7x
topology: tpu7x:2x2x1
jax: 0.10.0
libtpu: 0.0.40
codegen_flags: <defaults>
</compile_context>

<pallas_src>
import jax
import jax.numpy as jnp
from jax.experimental import pallas as pl
from jax.experimental.pallas import tpu as pltpu


def seq2seq_kernel(agent_ref, press_ref, acc_ref,
                   w_e_ag0_ref, w_e_pr0_ref, w_e_h0_ref, b_e0_ref,
                   w_e_x1_ref, w_e_h1_ref, b_e1_ref,
                   w_d_y0_ref, w_d_a0_ref, w_d_h0_ref, b_d0_ref,
                   w_d_x1_ref, w_d_h1_ref, b_d1_ref,
                   w_out_ref, b_out_ref,
                   preds_ref):
    f32 = jnp.float32
    T_in, B, _ = agent_ref.shape
    T_pred = acc_ref.shape[0]
    H4 = w_e_h0_ref.shape[1]
    H = H4 // 4
    out_dim = w_out_ref.shape[1]

    def cell(gates, c):
        # gates: (B, 4H), gate order [i | f | o | g].
        # sigmoid(x) == 0.5*tanh(0.5*x) + 0.5  -> one EUP dispatch covers i, f, o.
        ifo = 0.5 * jnp.tanh(0.5 * gates[:, :3 * H]) + 0.5
        g = jnp.tanh(gates[:, 3 * H:])
        i = ifo[:, :H]
        f = ifo[:, H:2 * H]
        o = ifo[:, 2 * H:]
        c_new = f * c + i * g
        h_new = o * jnp.tanh(c_new)
        return h_new, c_new

    zeros_h = jnp.zeros((B, H), f32)
    h0, c0, h1, c1 = zeros_h, zeros_h, zeros_h, zeros_h

    # ---------------- encoder ----------------
    # Hoisted weight loads + bias broadcasts (broadcast once, reused every step).
    w_e_ag0 = w_e_ag0_ref[...]
    w_e_pr0 = w_e_pr0_ref[...]
    w_e_h0 = w_e_h0_ref[...]
    w_e_x1 = w_e_x1_ref[...]
    w_e_h1 = w_e_h1_ref[...]
    b_e0 = jnp.broadcast_to(b_e0_ref[...], (B, H4))
    b_e1 = jnp.broadcast_to(b_e1_ref[...], (B, H4))

    for t in range(T_in):   # fully unrolled: short, static trip count
        # Input-side projection (encoder_fc folded in) is carry-independent:
        # the scheduler can hoist it under step t-1's gate nonlinearities.
        xg = (jnp.dot(agent_ref[t], w_e_ag0, preferred_element_type=f32)
              + jnp.dot(press_ref[t], w_e_pr0, preferred_element_type=f32)
              + b_e0)
        g0 = xg + jnp.dot(h0, w_e_h0, preferred_element_type=f32)
        h0, c0 = cell(g0, c0)
        g1 = (jnp.dot(h0, w_e_x1, preferred_element_type=f32)
              + jnp.dot(h1, w_e_h1, preferred_element_type=f32)
              + b_e1)
        h1, c1 = cell(g1, c1)

    # ------------- decoder (autoregressive, inference path) -------------
    # TODO(synk): teacher-forcing branch (training=True with target_state) not implemented.
    w_d_y0 = w_d_y0_ref[...]
    w_d_a0 = w_d_a0_ref[...]
    w_d_h0 = w_d_h0_ref[...]
    w_d_x1 = w_d_x1_ref[...]
    w_d_h1 = w_d_h1_ref[...]
    w_out = w_out_ref[...]
    b_d0 = jnp.broadcast_to(b_d0_ref[...], (B, H4))
    b_d1 = jnp.broadcast_to(b_d1_ref[...], (B, H4))
    b_out = jnp.broadcast_to(b_out_ref[...], (B, out_dim))

    y = jnp.zeros((B, out_dim), f32)
    for t in range(T_pred):   # fully unrolled
        xg = jnp.dot(acc_ref[t], w_d_a0, preferred_element_type=f32) + b_d0
        g0 = (xg
              + jnp.dot(y, w_d_y0, preferred_element_type=f32)
              + jnp.dot(h0, w_d_h0, preferred_element_type=f32))
        h0, c0 = cell(g0, c0)
        g1 = (jnp.dot(h0, w_d_x1, preferred_element_type=f32)
              + jnp.dot(h1, w_d_h1, preferred_element_type=f32)
              + b_d1)
        h1, c1 = cell(g1, c1)
        y = jnp.dot(h1, w_out, preferred_element_type=f32) + b_out
        preds_ref[t] = y.astype(preds_ref.dtype)


def seq2seq_forward(past_pressure, past_agent, future_acc, kp):
    B, T_in, _ = past_pressure.shape
    T_pred = future_acc.shape[1]
    out_dim = kp["w_out"].shape[1]

    # Time-major glue (tiny transposes; the concat is folded into the weight split).
    agent_tm = jnp.transpose(past_agent, (1, 0, 2)).astype(jnp.float32)
    press_tm = jnp.transpose(past_pressure, (1, 0, 2)).astype(jnp.float32)
    acc_tm = jnp.transpose(future_acc, (1, 0, 2)).astype(jnp.float32)

    args = (agent_tm, press_tm, acc_tm,
            kp["w_e_ag0"], kp["w_e_pr0"], kp["w_e_h0"], kp["b_e0"],
            kp["w_e_x1"], kp["w_e_h1"], kp["b_e1"],
            kp["w_d_y0"], kp["w_d_a0"], kp["w_d_h0"], kp["b_d0"],
            kp["w_d_x1"], kp["w_d_h1"], kp["b_d1"],
            kp["w_out"], kp["b_out"])

    vmem = pl.BlockSpec(memory_space=pltpu.MemorySpace.VMEM)
    preds_tm = pl.pallas_call(
        seq2seq_kernel,
        out_shape=jax.ShapeDtypeStruct((T_pred, B, out_dim), jnp.float32),
        in_specs=[vmem] * len(args),
        out_specs=vmem,
    )(*args)
    return jnp.transpose(preds_tm, (1, 0, 2))                      # (B, T_pred, 14)


# ---------------- host-side param preparation (exact linear algebra) ----------------
def prepare_kernel_params(p, agent_dim=9):
    """Restack per-gate (4, in, H) weights into lane-dense (in, 4H) matrices in gate
    order [i, f, o, g], and fold encoder_input_fc / decoder_input_fc into the layer-0
    input-side weights and biases.  Done once; bit-for-bit equivalent algebra."""
    def stack_w(w4):   # (4, in, H) [i,f,g,o] -> (in, 4H) [i,f,o,g]
        return jnp.concatenate([w4[0], w4[1], w4[3], w4[2]], axis=1)

    def stack_b(b4):   # (4, 1, H) -> (1, 4H) [i,f,o,g]
        return jnp.concatenate([b4[0], b4[1], b4[3], b4[2]], axis=1)

    kp = {}
    # encoder layer 0: fold encoder_input_fc; split rows into agent / pressure parts
    w_ih0 = stack_w(p["we_ih0"])                       # (H, 4H)
    w_ex0 = p["w_encfc"] @ w_ih0                       # (17, 4H)
    kp["w_e_ag0"] = w_ex0[:agent_dim]                  # (9, 4H)
    kp["w_e_pr0"] = w_ex0[agent_dim:]                  # (8, 4H)
    kp["w_e_h0"] = stack_w(p["we_hh0"])
    kp["b_e0"] = p["b_encfc"] @ w_ih0 + stack_b(p["be0"])
    # encoder layer 1
    kp["w_e_x1"] = stack_w(p["we_ih1"])
    kp["w_e_h1"] = stack_w(p["we_hh1"])
    kp["b_e1"] = stack_b(p["be1"])
    # decoder layer 0: fold decoder_input_fc (split over y / acc inputs)
    w_dih0 = stack_w(p["wd_ih0"])
    kp["w_d_y0"] = p["w_dec_y"] @ w_dih0               # (14, 4H)
    kp["w_d_a0"] = p["w_dec_acc"] @ w_dih0             # (3, 4H)
    kp["w_d_h0"] = stack_w(p["wd_hh0"])
    kp["b_d0"] = p["b_decfc"] @ w_dih0 + stack_b(p["bd0"])
    # decoder layer 1
    kp["w_d_x1"] = stack_w(p["wd_ih1"])
    kp["w_d_h1"] = stack_w(p["wd_hh1"])
    kp["b_d1"] = stack_b(p["bd1"])
    # output projection
    kp["w_out"] = p["w_out"]
    kp["b_out"] = p["b_out"]
    return kp


# --------------------- deterministic parameter construction ---------------------
def init_params(key, input_dim=17, condition_dim=3, output_dim=14, hidden_size=32):
    H = hidden_size
    ks = jax.random.split(key, 12)

    def dense(k, fan_in, fan_out):
        # kaiming_normal(mode='fan_out') analogue
        std = (2.0 / fan_out) ** 0.5
        return jax.random.normal(k, (fan_in, fan_out), jnp.float32) * std

    def lstm_w(k, in_dim, h):
        # xavier-uniform analogue for stacked gate weights (4, in, H) [i,f,g,o]
        limit = (6.0 / (in_dim + h)) ** 0.5
        return jax.random.uniform(k, (4, in_dim, h), jnp.float32, -limit, limit)

    p = {}
    p["w_encfc"] = dense(ks[0], input_dim, H)
    p["b_encfc"] = jnp.zeros((1, H), jnp.float32)
    p["we_ih0"] = lstm_w(ks[1], H, H)
    p["we_hh0"] = lstm_w(ks[2], H, H)
    p["be0"] = jnp.zeros((4, 1, H), jnp.float32)
    p["we_ih1"] = lstm_w(ks[3], H, H)
    p["we_hh1"] = lstm_w(ks[4], H, H)
    p["be1"] = jnp.zeros((4, 1, H), jnp.float32)

    w_decfc = dense(ks[5], output_dim + condition_dim, H)
    p["w_dec_y"] = w_decfc[:output_dim]
    p["w_dec_acc"] = w_decfc[output_dim:]
    p["b_decfc"] = jnp.zeros((1, H), jnp.float32)
    p["wd_ih0"] = lstm_w(ks[6], H, H)
    p["wd_hh0"] = lstm_w(ks[7], H, H)
    p["bd0"] = jnp.zeros((4, 1, H), jnp.float32)
    p["wd_ih1"] = lstm_w(ks[8], H, H)
    p["wd_hh1"] = lstm_w(ks[9], H, H)
    p["bd1"] = jnp.zeros((4, 1, H), jnp.float32)

    p["w_out"] = dense(ks[10], H, output_dim)
    p["b_out"] = jnp.zeros((1, output_dim), jnp.float32)
    return p


# --------------------------- pure-JAX reference ---------------------------
def _cell_ref(x, h, c, w_ih, w_hh, b):
    i = jax.nn.sigmoid(x @ w_ih[0] + h @ w_hh[0] + b[0])
    f = jax.nn.sigmoid(x @ w_ih[1] + h @ w_hh[1] + b[1])
    g = jnp.tanh(x @ w_ih[2] + h @ w_hh[2] + b[2])
    o = jax.nn.sigmoid(x @ w_ih[3] + h @ w_hh[3] + b[3])
    c2 = f * c + i * g
    return o * jnp.tanh(c2), c2


def reference_forward(past_pressure, past_agent, future_acc, p):
    B, T_in, _ = past_pressure.shape
    T_pred = future_acc.shape[1]
    out_dim = p["w_out"].shape[1]
    H = p["w_encfc"].shape[1]
    enc_in = jnp.concatenate([past_agent, past_pressure], axis=-1)
    h0 = c0 = h1 = c1 = jnp.zeros((B, H), jnp.float32)
    for t in range(T_in):
        x = enc_in[:, t, :] @ p["w_encfc"] + p["b_encfc"]
        h0, c0 = _cell_ref(x, h0, c0, p["we_ih0"], p["we_hh0"], p["be0"])
        h1, c1 = _cell_ref(h0, h1, c1, p["we_ih1"], p["we_hh1"], p["be1"])
    y = jnp.zeros((B, out_dim), jnp.float32)
    preds = []
    for t in range(T_pred):
        acc = future_acc[:, t, :]
        x = y @ p["w_dec_y"] + acc @ p["w_dec_acc"] + p["b_decfc"]
        h0, c0 = _cell_ref(x, h0, c0, p["wd_ih0"], p["wd_hh0"], p["bd0"])
        h1, c1 = _cell_ref(h0, h1, c1, p["wd_ih1"], p["wd_hh1"], p["bd1"])
        y = h1 @ p["w_out"] + p["b_out"]
        preds.append(y)
    return jnp.stack(preds, axis=1)


if __name__ == "__main__":
    key = jax.random.PRNGKey(0)
    k1, k2, k3, kp_key = jax.random.split(key, 4)

    # small demo shapes; for real workloads pack independent sequences so B is a
    # multiple of 8 (full sublane occupancy) -- the kernel is batch-size agnostic.
    B, T_in, T_pred, H = 2, 8, 5, 32
    past_pressure = jax.random.normal(k1, (B, T_in, 8), jnp.float32)
    past_agent = jax.random.normal(k2, (B, T_in, 9), jnp.float32)
    future_acc = jax.random.normal(k3, (B, T_pred, 3), jnp.float32)

    params = init_params(kp_key, input_dim=17, condition_dim=3, output_dim=14,
                         hidden_size=H)
    kparams = prepare_kernel_params(params, agent_dim=9)

    preds = seq2seq_forward(past_pressure, past_agent, future_acc, kparams)
    preds = jax.block_until_ready(preds)

    assert preds.shape == (B, T_pred, 14), preds.shape
    ref = reference_forward(past_pressure, past_agent, future_acc, params)
    assert jnp.allclose(preds, ref, rtol=1e-3, atol=1e-3), \
        float(jnp.max(jnp.abs(preds - ref)))

    print("KERNEL_OK")
</pallas_src>

<mosaic_0001>
module attributes {stable_mosaic.version = 11 : i64} {
  func.func @seq2seq_kernel(%arg0: memref<8x2x9xf32, #tpu.memory_space<vmem>>, %arg1: memref<8x2x8xf32, #tpu.memory_space<vmem>>, %arg2: memref<5x2x3xf32, #tpu.memory_space<vmem>>, %arg3: memref<9x128xf32, #tpu.memory_space<vmem>>, %arg4: memref<8x128xf32, #tpu.memory_space<vmem>>, %arg5: memref<32x128xf32, #tpu.memory_space<vmem>>, %arg6: memref<1x128xf32, #tpu.memory_space<vmem>>, %arg7: memref<32x128xf32, #tpu.memory_space<vmem>>, %arg8: memref<32x128xf32, #tpu.memory_space<vmem>>, %arg9: memref<1x128xf32, #tpu.memory_space<vmem>>, %arg10: memref<14x128xf32, #tpu.memory_space<vmem>>, %arg11: memref<3x128xf32, #tpu.memory_space<vmem>>, %arg12: memref<32x128xf32, #tpu.memory_space<vmem>>, %arg13: memref<1x128xf32, #tpu.memory_space<vmem>>, %arg14: memref<32x128xf32, #tpu.memory_space<vmem>>, %arg15: memref<32x128xf32, #tpu.memory_space<vmem>>, %arg16: memref<1x128xf32, #tpu.memory_space<vmem>>, %arg17: memref<32x14xf32, #tpu.memory_space<vmem>>, %arg18: memref<1x14xf32, #tpu.memory_space<vmem>>, %arg19: memref<5x2x14xf32, #tpu.memory_space<vmem>>) attributes {dimension_semantics = [], scalar_prefetch = 0 : i64, scratch_operands = 0 : i64, tpu.core_type = #tpu.core_type<tc>} {
    %cst = arith.constant 0.000000e+00 : f32
    %0 = vector.broadcast %cst : f32 to vector<2x32xf32>
    %c0 = arith.constant 0 : index
    %c0_0 = arith.constant 0 : index
    %1 = vector.load %arg3[%c0, %c0_0] : memref<9x128xf32, #tpu.memory_space<vmem>>, vector<9x128xf32>
    %c0_1 = arith.constant 0 : index
    %c0_2 = arith.constant 0 : index
    %2 = vector.load %arg4[%c0_1, %c0_2] : memref<8x128xf32, #tpu.memory_space<vmem>>, vector<8x128xf32>
    %c0_3 = arith.constant 0 : index
    %c0_4 = arith.constant 0 : index
    %3 = vector.load %arg5[%c0_3, %c0_4] : memref<32x128xf32, #tpu.memory_space<vmem>>, vector<32x128xf32>
    %c0_5 = arith.constant 0 : index
    %c0_6 = arith.constant 0 : index
    %4 = vector.load %arg7[%c0_5, %c0_6] : memref<32x128xf32, #tpu.memory_space<vmem>>, vector<32x128xf32>
    %c0_7 = arith.constant 0 : index
    %c0_8 = arith.constant 0 : index
    %5 = vector.load %arg8[%c0_7, %c0_8] : memref<32x128xf32, #tpu.memory_space<vmem>>, vector<32x128xf32>
    %c0_9 = arith.constant 0 : index
    %c0_10 = arith.constant 0 : index
    %6 = vector.load %arg6[%c0_9, %c0_10] : memref<1x128xf32, #tpu.memory_space<vmem>>, vector<1x128xf32>
    %7 = vector.shape_cast %6 : vector<1x128xf32> to vector<1x128xf32>
    %8 = vector.broadcast %7 : vector<1x128xf32> to vector<2x128xf32>
    %c0_11 = arith.constant 0 : index
    %c0_12 = arith.constant 0 : index
    %9 = vector.load %arg9[%c0_11, %c0_12] : memref<1x128xf32, #tpu.memory_space<vmem>>, vector<1x128xf32>
    %10 = vector.shape_cast %9 : vector<1x128xf32> to vector<1x128xf32>
    %11 = vector.broadcast %10 : vector<1x128xf32> to vector<2x128xf32>
    %c0_13 = arith.constant 0 : index
    %c0_14 = arith.constant 0 : index
    %c0_15 = arith.constant 0 : index
    %12 = vector.load %arg0[%c0_13, %c0_14, %c0_15] : memref<8x2x9xf32, #tpu.memory_space<vmem>>, vector<1x2x9xf32>
    %13 = vector.shape_cast %12 : vector<1x2x9xf32> to vector<2x9xf32>
    %cst_16 = arith.constant dense<0.000000e+00> : vector<2x128xf32>
    %14 = tpu.matmul %13, %1, %cst_16 {dimension_numbers = #tpu.dot_dimension_numbers<[1], [0], [0], [1], [0, 0, 1, 1], [], []>} : vector<2x9xf32>, vector<9x128xf32>, vector<2x128xf32> -> vector<2x128xf32>
    %c0_17 = arith.constant 0 : index
    %c0_18 = arith.constant 0 : index
    %c0_19 = arith.constant 0 : index
    %15 = vector.load %arg1[%c0_17, %c0_18, %c0_19] : memref<8x2x8xf32, #tpu.memory_space<vmem>>, vector<1x2x8xf32>
    %16 = vector.shape_cast %15 : vector<1x2x8xf32> to vector<2x8xf32>
    %cst_20 = arith.constant dense<0.000000e+00> : vector<2x128xf32>
    %17 = tpu.matmul %16, %2, %cst_20 {dimension_numbers = #tpu.dot_dimension_numbers<[1], [0], [0], [1], [0, 0, 1, 1], [], []>} : vector<2x8xf32>, vector<8x128xf32>, vector<2x128xf32> -> vector<2x128xf32>
    %18 = arith.addf %14, %17 : vector<2x128xf32>
    %19 = arith.addf %18, %8 : vector<2x128xf32>
    %cst_21 = arith.constant dense<0.000000e+00> : vector<2x128xf32>
    %20 = tpu.matmul %0, %3, %cst_21 {dimension_numbers = #tpu.dot_dimension_numbers<[1], [0], [0], [1], [0, 0, 1, 1], [], []>} : vector<2x32xf32>, vector<32x128xf32>, vector<2x128xf32> -> vector<2x128xf32>
    %21 = arith.addf %19, %20 : vector<2x128xf32>
    %22 = vector.extract_strided_slice %21 {offsets = [0, 0], sizes = [2, 96], strides = [1, 1]} : vector<2x128xf32> to vector<2x96xf32>
    %cst_22 = arith.constant 5.000000e-01 : f32
    %23 = vector.broadcast %cst_22 : f32 to vector<2x96xf32>
    %24 = arith.mulf %23, %22 : vector<2x96xf32>
    %25 = math.tanh %24 : vector<2x96xf32>
    %cst_23 = arith.constant 5.000000e-01 : f32
    %26 = vector.broadcast %cst_23 : f32 to vector<2x96xf32>
    %27 = arith.mulf %26, %25 : vector<2x96xf32>
    %cst_24 = arith.constant 5.000000e-01 : f32
    %28 = vector.broadcast %cst_24 : f32 to vector<2x96xf32>
    %29 = arith.addf %27, %28 : vector<2x96xf32>
    %30 = vector.extract_strided_slice %21 {offsets = [0, 96], sizes = [2, 32], strides = [1, 1]} : vector<2x128xf32> to vector<2x32xf32>
    %31 = math.tanh %30 : vector<2x32xf32>
    %32 = vector.extract_strided_slice %29 {offsets = [0, 0], sizes = [2, 32], strides = [1, 1]} : vector<2x96xf32> to vector<2x32xf32>
    %33 = vector.extract_strided_slice %29 {offsets = [0, 32], sizes = [2, 32], strides = [1, 1]} : vector<2x96xf32> to vector<2x32xf32>
    %34 = vector.extract_strided_slice %29 {offsets = [0, 64], sizes = [2, 32], strides = [1, 1]} : vector<2x96xf32> to vector<2x32xf32>
    %35 = arith.mulf %33, %0 : vector<2x32xf32>
    %36 = arith.mulf %32, %31 : vector<2x32xf32>
    %37 = arith.addf %35, %36 : vector<2x32xf32>
    %38 = math.tanh %37 : vector<2x32xf32>
    %39 = arith.mulf %34, %38 : vector<2x32xf32>
    %cst_25 = arith.constant dense<0.000000e+00> : vector<2x128xf32>
    %40 = tpu.matmul %39, %4, %cst_25 {dimension_numbers = #tpu.dot_dimension_numbers<[1], [0], [0], [1], [0, 0, 1, 1], [], []>} : vector<2x32xf32>, vector<32x128xf32>, vector<2x128xf32> -> vector<2x128xf32>
    %cst_26 = arith.constant dense<0.000000e+00> : vector<2x128xf32>
    %41 = tpu.matmul %0, %5, %cst_26 {dimension_numbers = #tpu.dot_dimension_numbers<[1], [0], [0], [1], [0, 0, 1, 1], [], []>} : vector<2x32xf32>, vector<32x128xf32>, vector<2x128xf32> -> vector<2x128xf32>
    %42 = arith.addf %40, %41 : vector<2x128xf32>
    %43 = arith.addf %42, %11 : vector<2x128xf32>
    %44 = vector.extract_strided_slice %43 {offsets = [0, 0], sizes = [2, 96], strides = [1, 1]} : vector<2x128xf32> to vector<2x96xf32>
    %cst_27 = arith.constant 5.000000e-01 : f32
    %45 = vector.broadcast %cst_27 : f32 to vector<2x96xf32>
    %46 = arith.mulf %45, %44 : vector<2x96xf32>
    %47 = math.tanh %46 : vector<2x96xf32>
    %cst_28 = arith.constant 5.000000e-01 : f32
    %48 = vector.broadcast %cst_28 : f32 to vector<2x96xf32>
    %49 = arith.mulf %48, %47 : vector<2x96xf32>
    %cst_29 = arith.constant 5.000000e-01 : f32
    %50 = vector.broadcast %cst_29 : f32 to vector<2x96xf32>
    %51 = arith.addf %49, %50 : vector<2x96xf32>
    %52 = vector.extract_strided_slice %43 {offsets = [0, 96], sizes = [2, 32], strides = [1, 1]} : vector<2x128xf32> to vector<2x32xf32>
    %53 = math.tanh %52 : vector<2x32xf32>
    %54 = vector.extract_strided_slice %51 {offsets = [0, 0], sizes = [2, 32], strides = [1, 1]} : vector<2x96xf32> to vector<2x32xf32>
    %55 = vector.extract_strided_slice %51 {offsets = [0, 32], sizes = [2, 32], strides = [1, 1]} : vector<2x96xf32> to vector<2x32xf32>
    %56 = vector.extract_strided_slice %51 {offsets = [0, 64], sizes = [2, 32], strides = [1, 1]} : vector<2x96xf32> to vector<2x32xf32>
    %57 = arith.mulf %55, %0 : vector<2x32xf32>
    %58 = arith.mulf %54, %53 : vector<2x32xf32>
    %59 = arith.addf %57, %58 : vector<2x32xf32>
    %60 = math.tanh %59 : vector<2x32xf32>
    %61 = arith.mulf %56, %60 : vector<2x32xf32>
    %c1 = arith.constant 1 : index
    %c0_30 = arith.constant 0 : index
    %c0_31 = arith.constant 0 : index
    %62 = vector.load %arg0[%c1, %c0_30, %c0_31] : memref<8x2x9xf32, #tpu.memory_space<vmem>>, vector<1x2x9xf32>
    %63 = vector.shape_cast %62 : vector<1x2x9xf32> to vector<2x9xf32>
    %cst_32 = arith.constant dense<0.000000e+00> : vector<2x128xf32>
    %64 = tpu.matmul %63, %1, %cst_32 {dimension_numbers = #tpu.dot_dimension_numbers<[1], [0], [0], [1], [0, 0, 1, 1], [], []>} : vector<2x9xf32>, vector<9x128xf32>, vector<2x128xf32> -> vector<2x128xf32>
    %c1_33 = arith.constant 1 : index
    %c0_34 = arith.constant 0 : index
    %c0_35 = arith.constant 0 : index
    %65 = vector.load %arg1[%c1_33, %c0_34, %c0_35] : memref<8x2x8xf32, #tpu.memory_space<vmem>>, vector<1x2x8xf32>
    %66 = vector.shape_cast %65 : vector<1x2x8xf32> to vector<2x8xf32>
    %cst_36 = arith.constant dense<0.000000e+00> : vector<2x128xf32>
    %67 = tpu.matmul %66, %2, %cst_36 {dimension_numbers = #tpu.dot_dimension_numbers<[1], [0], [0], [1], [0, 0, 1, 1], [], []>} : vector<2x8xf32>, vector<8x128xf32>, vector<2x128xf32> -> vector<2x128xf32>
    %68 = arith.addf %64, %67 : vector<2x128xf32>
    %69 = arith.addf %68, %8 : vector<2x128xf32>
    %cst_37 = arith.constant dense<0.000000e+00> : vector<2x128xf32>
    %70 = tpu.matmul %39, %3, %cst_37 {dimension_numbers = #tpu.dot_dimension_numbers<[1], [0], [0], [1], [0, 0, 1, 1], [], []>} : vector<2x32xf32>, vector<32x128xf32>, vector<2x128xf32> -> vector<2x128xf32>
    %71 = arith.addf %69, %70 : vector<2x128xf32>
    %72 = vector.extract_strided_slice %71 {offsets = [0, 0], sizes = [2, 96], strides = [1, 1]} : vector<2x128xf32> to vector<2x96xf32>
    %cst_38 = arith.constant 5.000000e-01 : f32
    %73 = vector.broadcast %cst_38 : f32 to vector<2x96xf32>
    %74 = arith.mulf %73, %72 : vector<2x96xf32>
    %75 = math.tanh %74 : vector<2x96xf32>
    %cst_39 = arith.constant 5.000000e-01 : f32
    %76 = vector.broadcast %cst_39 : f32 to vector<2x96xf32>
    %77 = arith.mulf %76, %75 : vector<2x96xf32>
    %cst_40 = arith.constant 5.000000e-01 : f32
    %78 = vector.broadcast %cst_40 : f32 to vector<2x96xf32>
    %79 = arith.addf %77, %78 : vector<2x96xf32>
    %80 = vector.extract_strided_slice %71 {offsets = [0, 96], sizes = [2, 32], strides = [1, 1]} : vector<2x128xf32> to vector<2x32xf32>
    %81 = math.tanh %80 : vector<2x32xf32>
    %82 = vector.extract_strided_slice %79 {offsets = [0, 0], sizes = [2, 32], strides = [1, 1]} : vector<2x96xf32> to vector<2x32xf32>
    %83 = vector.extract_strided_slice %79 {offsets = [0, 32], sizes = [2, 32], strides = [1, 1]} : vector<2x96xf32> to vector<2x32xf32>
    %84 = vector.extract_strided_slice %79 {offsets = [0, 64], sizes = [2, 32], strides = [1, 1]} : vector<2x96xf32> to vector<2x32xf32>
    %85 = arith.mulf %83, %37 : vector<2x32xf32>
    %86 = arith.mulf %82, %81 : vector<2x32xf32>
    %87 = arith.addf %85, %86 : vector<2x32xf32>
    %88 = math.tanh %87 : vector<2x32xf32>
    %89 = arith.mulf %84, %88 : vector<2x32xf32>
    %cst_41 = arith.constant dense<0.000000e+00> : vector<2x128xf32>
    %90 = tpu.matmul %89, %4, %cst_41 {dimension_numbers = #tpu.dot_dimension_numbers<[1], [0], [0], [1], [0, 0, 1, 1], [], []>} : vector<2x32xf32>, vector<32x128xf32>, vector<2x128xf32> -> vector<2x128xf32>
    %cst_42 = arith.constant dense<0.000000e+00> : vector<2x128xf32>
    %91 = tpu.matmul %61, %5, %cst_42 {dimension_numbers = #tpu.dot_dimension_numbers<[1], [0], [0], [1], [0, 0, 1, 1], [], []>} : vector<2x32xf32>, vector<32x128xf32>, vector<2x128xf32> -> vector<2x128xf32>
    %92 = arith.addf %90, %91 : vector<2x128xf32>
    %93 = arith.addf %92, %11 : vector<2x128xf32>
    %94 = vector.extract_strided_slice %93 {offsets = [0, 0], sizes = [2, 96], strides = [1, 1]} : vector<2x128xf32> to vector<2x96xf32>
    %cst_43 = arith.constant 5.000000e-01 : f32
    %95 = vector.broadcast %cst_43 : f32 to vector<2x96xf32>
    %96 = arith.mulf %95, %94 : vector<2x96xf32>
    %97 = math.tanh %96 : vector<2x96xf32>
    %cst_44 = arith.constant 5.000000e-01 : f32
    %98 = vector.broadcast %cst_44 : f32 to vector<2x96xf32>
    %99 = arith.mulf %98, %97 : vector<2x96xf32>
    %cst_45 = arith.constant 5.000000e-01 : f32
    %100 = vector.broadcast %cst_45 : f32 to vector<2x96xf32>
    %101 = arith.addf %99, %100 : vector<2x96xf32>
    %102 = vector.extract_strided_slice %93 {offsets = [0, 96], sizes = [2, 32], strides = [1, 1]} : vector<2x128xf32> to vector<2x32xf32>
    %103 = math.tanh %102 : vector<2x32xf32>
    %104 = vector.extract_strided_slice %101 {offsets = [0, 0], sizes = [2, 32], strides = [1, 1]} : vector<2x96xf32> to vector<2x32xf32>
    %105 = vector.extract_strided_slice %101 {offsets = [0, 32], sizes = [2, 32], strides = [1, 1]} : vector<2x96xf32> to vector<2x32xf32>
    %106 = vector.extract_strided_slice %101 {offsets = [0, 64], sizes = [2, 32], strides = [1, 1]} : vector<2x96xf32> to vector<2x32xf32>
    %107 = arith.mulf %105, %59 : vector<2x32xf32>
    %108 = arith.mulf %104, %103 : vector<2x32xf32>
    %109 = arith.addf %107, %108 : vector<2x32xf32>
    %110 = math.tanh %109 : vector<2x32xf32>
    %111 = arith.mulf %106, %110 : vector<2x32xf32>
    %c2 = arith.constant 2 : index
    %c0_46 = arith.constant 0 : index
    %c0_47 = arith.constant 0 : index
    %112 = vector.load %arg0[%c2, %c0_46, %c0_47] : memref<8x2x9xf32, #tpu.memory_space<vmem>>, vector<1x2x9xf32>
    %113 = vector.shape_cast %112 : vector<1x2x9xf32> to vector<2x9xf32>
    %cst_48 = arith.constant dense<0.000000e+00> : vector<2x128xf32>
    %114 = tpu.matmul %113, %1, %cst_48 {dimension_numbers = #tpu.dot_dimension_numbers<[1], [0], [0], [1], [0, 0, 1, 1], [], []>} : vector<2x9xf32>, vector<9x128xf32>, vector<2x128xf32> -> vector<2x128xf32>
    %c2_49 = arith.constant 2 : index
    %c0_50 = arith.constant 0 : index
    %c0_51 = arith.constant 0 : index
    %115 = vector.load %arg1[%c2_49, %c0_50, %c0_51] : memref<8x2x8xf32, #tpu.memory_space<vmem>>, vector<1x2x8xf32>
    %116 = vector.shape_cast %115 : vector<1x2x8xf32> to vector<2x8xf32>
    %cst_52 = arith.constant dense<0.000000e+00> : vector<2x128xf32>
    %117 = tpu.matmul %116, %2, %cst_52 {dimension_numbers = #tpu.dot_dimension_numbers<[1], [0], [0], [1], [0, 0, 1, 1], [], []>} : vector<2x8xf32>, vector<8x128xf32>, vector<2x128xf32> -> vector<2x128xf32>
    %118 = arith.addf %114, %117 : vector<2x128xf32>
    %119 = arith.addf %118, %8 : vector<2x128xf32>
    %cst_53 = arith.constant dense<0.000000e+00> : vector<2x128xf32>
    %120 = tpu.matmul %89, %3, %cst_53 {dimension_numbers = #tpu.dot_dimension_numbers<[1], [0], [0], [1], [0, 0, 1, 1], [], []>} : vector<2x32xf32>, vector<32x128xf32>, vector<2x128xf32> -> vector<2x128xf32>
    %121 = arith.addf %119, %120 : vector<2x128xf32>
    %122 = vector.extract_strided_slice %121 {offsets = [0, 0], sizes = [2, 96], strides = [1, 1]} : vector<2x128xf32> to vector<2x96xf32>
    %cst_54 = arith.constant 5.000000e-01 : f32
    %123 = vector.broadcast %cst_54 : f32 to vector<2x96xf32>
    %124 = arith.mulf %123, %122 : vector<2x96xf32>
    %125 = math.tanh %124 : vector<2x96xf32>
    %cst_55 = arith.constant 5.000000e-01 : f32
    %126 = vector.broadcast %cst_55 : f32 to vector<2x96xf32>
    %127 = arith.mulf %126, %125 : vector<2x96xf32>
    %cst_56 = arith.constant 5.000000e-01 : f32
    %128 = vector.broadcast %cst_56 : f32 to vector<2x96xf32>
    %129 = arith.addf %127, %128 : vector<2x96xf32>
    %130 = vector.extract_strided_slice %121 {offsets = [0, 96], sizes = [2, 32], strides = [1, 1]} : vector<2x128xf32> to vector<2x32xf32>
    %131 = math.tanh %130 : vector<2x32xf32>
    %132 = vector.extract_strided_slice %129 {offsets = [0, 0], sizes = [2, 32], strides = [1, 1]} : vector<2x96xf32> to vector<2x32xf32>
    %133 = vector.extract_strided_slice %129 {offsets = [0, 32], sizes = [2, 32], strides = [1, 1]} : vector<2x96xf32> to vector<2x32xf32>
    %134 = vector.extract_strided_slice %129 {offsets = [0, 64], sizes = [2, 32], strides = [1, 1]} : vector<2x96xf32> to vector<2x32xf32>
    %135 = arith.mulf %133, %87 : vector<2x32xf32>
    %136 = arith.mulf %132, %131 : vector<2x32xf32>
    %137 = arith.addf %135, %136 : vector<2x32xf32>
    %138 = math.tanh %137 : vector<2x32xf32>
    %139 = arith.mulf %134, %138 : vector<2x32xf32>
    %cst_57 = arith.constant dense<0.000000e+00> : vector<2x128xf32>
    %140 = tpu.matmul %139, %4, %cst_57 {dimension_numbers = #tpu.dot_dimension_numbers<[1], [0], [0], [1], [0, 0, 1, 1], [], []>} : vector<2x32xf32>, vector<32x128xf32>, vector<2x128xf32> -> vector<2x128xf32>
    %cst_58 = arith.constant dense<0.000000e+00> : vector<2x128xf32>
    %141 = tpu.matmul %111, %5, %cst_58 {dimension_numbers = #tpu.dot_dimension_numbers<[1], [0], [0], [1], [0, 0, 1, 1], [], []>} : vector<2x32xf32>, vector<32x128xf32>, vector<2x128xf32> -> vector<2x128xf32>
    %142 = arith.addf %140, %141 : vector<2x128xf32>
    %143 = arith.addf %142, %11 : vector<2x128xf32>
    %144 = vector.extract_strided_slice %143 {offsets = [0, 0], sizes = [2, 96], strides = [1, 1]} : vector<2x128xf32> to vector<2x96xf32>
    %cst_59 = arith.constant 5.000000e-01 : f32
    %145 = vector.broadcast %cst_59 : f32 to vector<2x96xf32>
    %146 = arith.mulf %145, %144 : vector<2x96xf32>
    %147 = math.tanh %146 : vector<2x96xf32>
    %cst_60 = arith.constant 5.000000e-01 : f32
    %148 = vector.broadcast %cst_60 : f32 to vector<2x96xf32>
    %149 = arith.mulf %148, %147 : vector<2x96xf32>
    %cst_61 = arith.constant 5.000000e-01 : f32
    %150 = vector.broadcast %cst_61 : f32 to vector<2x96xf32>
    %151 = arith.addf %149, %150 : vector<2x96xf32>
    %152 = vector.extract_strided_slice %143 {offsets = [0, 96], sizes = [2, 32], strides = [1, 1]} : vector<2x128xf32> to vector<2x32xf32>
    %153 = math.tanh %152 : vector<2x32xf32>
    %154 = vector.extract_strided_slice %151 {offsets = [0, 0], sizes = [2, 32], strides = [1, 1]} : vector<2x96xf32> to vector<2x32xf32>
    %155 = vector.extract_strided_slice %151 {offsets = [0, 32], sizes = [2, 32], strides = [1, 1]} : vector<2x96xf32> to vector<2x32xf32>
    %156 = vector.extract_strided_slice %151 {offsets = [0, 64], sizes = [2, 32], strides = [1, 1]} : vector<2x96xf32> to vector<2x32xf32>
    %157 = arith.mulf %155, %109 : vector<2x32xf32>
    %158 = arith.mulf %154, %153 : vector<2x32xf32>
    %159 = arith.addf %157, %158 : vector<2x32xf32>
    %160 = math.tanh %159 : vector<2x32xf32>
    %161 = arith.mulf %156, %160 : vector<2x32xf32>
    %c3 = arith.constant 3 : index
    %c0_62 = arith.constant 0 : index
    %c0_63 = arith.constant 0 : index
    %162 = vector.load %arg0[%c3, %c0_62, %c0_63] : memref<8x2x9xf32, #tpu.memory_space<vmem>>, vector<1x2x9xf32>
    %163 = vector.shape_cast %162 : vector<1x2x9xf32> to vector<2x9xf32>
    %cst_64 = arith.constant dense<0.000000e+00> : vector<2x128xf32>
    %164 = tpu.matmul %163, %1, %cst_64 {dimension_numbers = #tpu.dot_dimension_numbers<[1], [0], [0], [1], [0, 0, 1, 1], [], []>} : vector<2x9xf32>, vector<9x128xf32>, vector<2x128xf32> -> vector<2x128xf32>
    %c3_65 = arith.constant 3 : index
    %c0_66 = arith.constant 0 : index
    %c0_67 = arith.constant 0 : index
    %165 = vector.load %arg1[%c3_65, %c0_66, %c0_67] : memref<8x2x8xf32, #tpu.memory_space<vmem>>, vector<1x2x8xf32>
    %166 = vector.shape_cast %165 : vector<1x2x8xf32> to vector<2x8xf32>
    %cst_68 = arith.constant dense<0.000000e+00> : vector<2x128xf32>
    %167 = tpu.matmul %166, %2, %cst_68 {dimension_numbers = #tpu.dot_dimension_numbers<[1], [0], [0], [1], [0, 0, 1, 1], [], []>} : vector<2x8xf32>, vector<8x128xf32>, vector<2x128xf32> -> vector<2x128xf32>
    %168 = arith.addf %164, %167 : vector<2x128xf32>
    %169 = arith.addf %168, %8 : vector<2x128xf32>
    %cst_69 = arith.constant dense<0.000000e+00> : vector<2x128xf32>
    %170 = tpu.matmul %139, %3, %cst_69 {dimension_numbers = #tpu.dot_dimension_numbers<[1], [0], [0], [1], [0, 0, 1, 1], [], []>} : vector<2x32xf32>, vector<32x128xf32>, vector<2x128xf32> -> vector<2x128xf32>
    %171 = arith.addf %169, %170 : vector<2x128xf32>
    %172 = vector.extract_strided_slice %171 {offsets = [0, 0], sizes = [2, 96], strides = [1, 1]} : vector<2x128xf32> to vector<2x96xf32>
    %cst_70 = arith.constant 5.000000e-01 : f32
    %173 = vector.broadcast %cst_70 : f32 to vector<2x96xf32>
    %174 = arith.mulf %173, %172 : vector<2x96xf32>
    %175 = math.tanh %174 : vector<2x96xf32>
    %cst_71 = arith.constant 5.000000e-01 : f32
    %176 = vector.broadcast %cst_71 : f32 to vector<2x96xf32>
    %177 = arith.mulf %176, %175 : vector<2x96xf32>
    %cst_72 = arith.constant 5.000000e-01 : f32
    %178 = vector.broadcast %cst_72 : f32 to vector<2x96xf32>
    %179 = arith.addf %177, %178 : vector<2x96xf32>
    %180 = vector.extract_strided_slice %171 {offsets = [0, 96], sizes = [2, 32], strides = [1, 1]} : vector<2x128xf32> to vector<2x32xf32>
    %181 = math.tanh %180 : vector<2x32xf32>
    %182 = vector.extract_strided_slice %179 {offsets = [0, 0], sizes = [2, 32], strides = [1, 1]} : vector<2x96xf32> to vector<2x32xf32>
    %183 = vector.extract_strided_slice %179 {offsets = [0, 32], sizes = [2, 32], strides = [1, 1]} : vector<2x96xf32> to vector<2x32xf32>
    %184 = vector.extract_strided_slice %179 {offsets = [0, 64], sizes = [2, 32], strides = [1, 1]} : vector<2x96xf32> to vector<2x32xf32>
    %185 = arith.mulf %183, %137 : vector<2x32xf32>
    %186 = arith.mulf %182, %181 : vector<2x32xf32>
    %187 = arith.addf %185, %186 : vector<2x32xf32>
    %188 = math.tanh %187 : vector<2x32xf32>
    %189 = arith.mulf %184, %188 : vector<2x32xf32>
    %cst_73 = arith.constant dense<0.000000e+00> : vector<2x128xf32>
    %190 = tpu.matmul %189, %4, %cst_73 {dimension_numbers = #tpu.dot_dimension_numbers<[1], [0], [0], [1], [0, 0, 1, 1], [], []>} : vector<2x32xf32>, vector<32x128xf32>, vector<2x128xf32> -> vector<2x128xf32>
    %cst_74 = arith.constant dense<0.000000e+00> : vector<2x128xf32>
    %191 = tpu.matmul %161, %5, %cst_74 {dimension_numbers = #tpu.dot_dimension_numbers<[1], [0], [0], [1], [0, 0, 1, 1], [], []>} : vector<2x32xf32>, vector<32x128xf32>, vector<2x128xf32> -> vector<2x128xf32>
    %192 = arith.addf %190, %191 : vector<2x128xf32>
    %193 = arith.addf %192, %11 : vector<2x128xf32>
    %194 = vector.extract_strided_slice %193 {offsets = [0, 0], sizes = [2, 96], strides = [1, 1]} : vector<2x128xf32> to vector<2x96xf32>
    %cst_75 = arith.constant 5.000000e-01 : f32
    %195 = vector.broadcast %cst_75 : f32 to vector<2x96xf32>
    %196 = arith.mulf %195, %194 : vector<2x96xf32>
    %197 = math.tanh %196 : vector<2x96xf32>
    %cst_76 = arith.constant 5.000000e-01 : f32
    %198 = vector.broadcast %cst_76 : f32 to vector<2x96xf32>
    %199 = arith.mulf %198, %197 : vector<2x96xf32>
    %cst_77 = arith.constant 5.000000e-01 : f32
    %200 = vector.broadcast %cst_77 : f32 to vector<2x96xf32>
    %201 = arith.addf %199, %200 : vector<2x96xf32>
    %202 = vector.extract_strided_slice %193 {offsets = [0, 96], sizes = [2, 32], strides = [1, 1]} : vector<2x128xf32> to vector<2x32xf32>
    %203 = math.tanh %202 : vector<2x32xf32>
    %204 = vector.extract_strided_slice %201 {offsets = [0, 0], sizes = [2, 32], strides = [1, 1]} : vector<2x96xf32> to vector<2x32xf32>
    %205 = vector.extract_strided_slice %201 {offsets = [0, 32], sizes = [2, 32], strides = [1, 1]} : vector<2x96xf32> to vector<2x32xf32>
    %206 = vector.extract_strided_slice %201 {offsets = [0, 64], sizes = [2, 32], strides = [1, 1]} : vector<2x96xf32> to vector<2x32xf32>
    %207 = arith.mulf %205, %159 : vector<2x32xf32>
    %208 = arith.mulf %204, %203 : vector<2x32xf32>
    %209 = arith.addf %207, %208 : vector<2x32xf32>
    %210 = math.tanh %209 : vector<2x32xf32>
    %211 = arith.mulf %206, %210 : vector<2x32xf32>
    %c4 = arith.constant 4 : index
    %c0_78 = arith.constant 0 : index
    %c0_79 = arith.constant 0 : index
    %212 = vector.load %arg0[%c4, %c0_78, %c0_79] : memref<8x2x9xf32, #tpu.memory_space<vmem>>, vector<1x2x9xf32>
    %213 = vector.shape_cast %212 : vector<1x2x9xf32> to vector<2x9xf32>
    %cst_80 = arith.constant dense<0.000000e+00> : vector<2x128xf32>
    %214 = tpu.matmul %213, %1, %cst_80 {dimension_numbers = #tpu.dot_dimension_numbers<[1], [0], [0], [1], [0, 0, 1, 1], [], []>} : vector<2x9xf32>, vector<9x128xf32>, vector<2x128xf32> -> vector<2x128xf32>
    %c4_81 = arith.constant 4 : index
    %c0_82 = arith.constant 0 : index
    %c0_83 = arith.constant 0 : index
    %215 = vector.load %arg1[%c4_81, %c0_82, %c0_83] : memref<8x2x8xf32, #tpu.memory_space<vmem>>, vector<1x2x8xf32>
    %216 = vector.shape_cast %215 : vector<1x2x8xf32> to vector<2x8xf32>
    %cst_84 = arith.constant dense<0.000000e+00> : vector<2x128xf32>
    %217 = tpu.matmul %216, %2, %cst_84 {dimension_numbers = #tpu.dot_dimension_numbers<[1], [0], [0], [1], [0, 0, 1, 1], [], []>} : vector<2x8xf32>, vector<8x128xf32>, vector<2x128xf32> -> vector<2x128xf32>
    %218 = arith.addf %214, %217 : vector<2x128xf32>
    %219 = arith.addf %218, %8 : vector<2x128xf32>
    %cst_85 = arith.constant dense<0.000000e+00> : vector<2x128xf32>
    %220 = tpu.matmul %189, %3, %cst_85 {dimension_numbers = #tpu.dot_dimension_numbers<[1], [0], [0], [1], [0, 0, 1, 1], [], []>} : vector<2x32xf32>, vector<32x128xf32>, vector<2x128xf32> -> vector<2x128xf32>
    %221 = arith.addf %219, %220 : vector<2x128xf32>
    %222 = vector.extract_strided_slice %221 {offsets = [0, 0], sizes = [2, 96], strides = [1, 1]} : vector<2x128xf32> to vector<2x96xf32>
    %cst_86 = arith.constant 5.000000e-01 : f32
    %223 = vector.broadcast %cst_86 : f32 to vector<2x96xf32>
    %224 = arith.mulf %223, %222 : vector<2x96xf32>
    %225 = math.tanh %224 : vector<2x96xf32>
    %cst_87 = arith.constant 5.000000e-01 : f32
    %226 = vector.broadcast %cst_87 : f32 to vector<2x96xf32>
    %227 = arith.mulf %226, %225 : vector<2x96xf32>
    %cst_88 = arith.constant 5.000000e-01 : f32
    %228 = vector.broadcast %cst_88 : f32 to vector<2x96xf32>
    %229 = arith.addf %227, %228 : vector<2x96xf32>
    %230 = vector.extract_strided_slice %221 {offsets = [0, 96], sizes = [2, 32], strides = [1, 1]} : vector<2x128xf32> to vector<2x32xf32>
    %231 = math.tanh %230 : vector<2x32xf32>
    %232 = vector.extract_strided_slice %229 {offsets = [0, 0], sizes = [2, 32], strides = [1, 1]} : vector<2x96xf32> to vector<2x32xf32>
    %233 = vector.extract_strided_slice %229 {offsets = [0, 32], sizes = [2, 32], strides = [1, 1]} : vector<2x96xf32> to vector<2x32xf32>
    %234 = vector.extract_strided_slice %229 {offsets = [0, 64], sizes = [2, 32], strides = [1, 1]} : vector<2x96xf32> to vector<2x32xf32>
    %235 = arith.mulf %233, %187 : vector<2x32xf32>
    %236 = arith.mulf %232, %231 : vector<2x32xf32>
    %237 = arith.addf %235, %236 : vector<2x32xf32>
    %238 = math.tanh %237 : vector<2x32xf32>
    %239 = arith.mulf %234, %238 : vector<2x32xf32>
    %cst_89 = arith.constant dense<0.000000e+00> : vector<2x128xf32>
    %240 = tpu.matmul %239, %4, %cst_89 {dimension_numbers = #tpu.dot_dimension_numbers<[1], [0], [0], [1], [0, 0, 1, 1], [], []>} : vector<2x32xf32>, vector<32x128xf32>, vector<2x128xf32> -> vector<2x128xf32>
    %cst_90 = arith.constant dense<0.000000e+00> : vector<2x128xf32>
    %241 = tpu.matmul %211, %5, %cst_90 {dimension_numbers = #tpu.dot_dimension_numbers<[1], [0], [0], [1], [0, 0, 1, 1], [], []>} : vector<2x32xf32>, vector<32x128xf32>, vector<2x128xf32> -> vector<2x128xf32>
    %242 = arith.addf %240, %241 : vector<2x128xf32>
    %243 = arith.addf %242, %11 : vector<2x128xf32>
    %244 = vector.extract_strided_slice %243 {offsets = [0, 0], sizes = [2, 96], strides = [1, 1]} : vector<2x128xf32> to vector<2x96xf32>
    %cst_91 = arith.constant 5.000000e-01 : f32
    %245 = vector.broadcast %cst_91 : f32 to vector<2x96xf32>
    %246 = arith.mulf %245, %244 : vector<2x96xf32>
    %247 = math.tanh %246 : vector<2x96xf32>
    %cst_92 = arith.constant 5.000000e-01 : f32
    %248 = vector.broadcast %cst_92 : f32 to vector<2x96xf32>
    %249 = arith.mulf %248, %247 : vector<2x96xf32>
    %cst_93 = arith.constant 5.000000e-01 : f32
    %250 = vector.broadcast %cst_93 : f32 to vector<2x96xf32>
    %251 = arith.addf %249, %250 : vector<2x96xf32>
    %252 = vector.extract_strided_slice %243 {offsets = [0, 96], sizes = [2, 32], strides = [1, 1]} : vector<2x128xf32> to vector<2x32xf32>
    %253 = math.tanh %252 : vector<2x32xf32>
    %254 = vector.extract_strided_slice %251 {offsets = [0, 0], sizes = [2, 32], strides = [1, 1]} : vector<2x96xf32> to vector<2x32xf32>
    %255 = vector.extract_strided_slice %251 {offsets = [0, 32], sizes = [2, 32], strides = [1, 1]} : vector<2x96xf32> to vector<2x32xf32>
    %256 = vector.extract_strided_slice %251 {offsets = [0, 64], sizes = [2, 32], strides = [1, 1]} : vector<2x96xf32> to vector<2x32xf32>
    %257 = arith.mulf %255, %209 : vector<2x32xf32>
    %258 = arith.mulf %254, %253 : vector<2x32xf32>
    %259 = arith.addf %257, %258 : vector<2x32xf32>
    %260 = math.tanh %259 : vector<2x32xf32>
    %261 = arith.mulf %256, %260 : vector<2x32xf32>
    %c5 = arith.constant 5 : index
    %c0_94 = arith.constant 0 : index
    %c0_95 = arith.constant 0 : index
    %262 = vector.load %arg0[%c5, %c0_94, %c0_95] : memref<8x2x9xf32, #tpu.memory_space<vmem>>, vector<1x2x9xf32>
    %263 = vector.shape_cast %262 : vector<1x2x9xf32> to vector<2x9xf32>
    %cst_96 = arith.constant dense<0.000000e+00> : vector<2x128xf32>
    %264 = tpu.matmul %263, %1, %cst_96 {dimension_numbers = #tpu.dot_dimension_numbers<[1], [0], [0], [1], [0, 0, 1, 1], [], []>} : vector<2x9xf32>, vector<9x128xf32>, vector<2x128xf32> -> vector<2x128xf32>
    %c5_97 = arith.constant 5 : index
    %c0_98 = arith.constant 0 : index
    %c0_99 = arith.constant 0 : index
    %265 = vector.load %arg1[%c5_97, %c0_98, %c0_99] : memref<8x2x8xf32, #tpu.memory_space<vmem>>, vector<1x2x8xf32>
    %266 = vector.shape_cast %265 : vector<1x2x8xf32> to vector<2x8xf32>
    %cst_100 = arith.constant dense<0.000000e+00> : vector<2x128xf32>
    %267 = tpu.matmul %266, %2, %cst_100 {dimension_numbers = #tpu.dot_dimension_numbers<[1], [0], [0], [1], [0, 0, 1, 1], [], []>} : vector<2x8xf32>, vector<8x128xf32>, vector<2x128xf32> -> vector<2x128xf32>
    %268 = arith.addf %264, %267 : vector<2x128xf32>
    %269 = arith.addf %268, %8 : vector<2x128xf32>
    %cst_101 = arith.constant dense<0.000000e+00> : vector<2x128xf32>
    %270 = tpu.matmul %239, %3, %cst_101 {dimension_numbers = #tpu.dot_dimension_numbers<[1], [0], [0], [1], [0, 0, 1, 1], [], []>} : vector<2x32xf32>, vector<32x128xf32>, vector<2x128xf32> -> vector<2x128xf32>
    %271 = arith.addf %269, %270 : vector<2x128xf32>
    %272 = vector.extract_strided_slice %271 {offsets = [0, 0], sizes = [2, 96], strides = [1, 1]} : vector<2x128xf32> to vector<2x96xf32>
    %cst_102 = arith.constant 5.000000e-01 : f32
    %273 = vector.broadcast %cst_102 : f32 to vector<2x96xf32>
    %274 = arith.mulf %273, %272 : vector<2x96xf32>
    %275 = math.tanh %274 : vector<2x96xf32>
    %cst_103 = arith.constant 5.000000e-01 : f32
    %276 = vector.broadcast %cst_103 : f32 to vector<2x96xf32>
    %277 = arith.mulf %276, %275 : vector<2x96xf32>
    %cst_104 = arith.constant 5.000000e-01 : f32
    %278 = vector.broadcast %cst_104 : f32 to vector<2x96xf32>
    %279 = arith.addf %277, %278 : vector<2x96xf32>
    %280 = vector.extract_strided_slice %271 {offsets = [0, 96], sizes = [2, 32], strides = [1, 1]} : vector<2x128xf32> to vector<2x32xf32>
    %281 = math.tanh %280 : vector<2x32xf32>
    %282 = vector.extract_strided_slice %279 {offsets = [0, 0], sizes = [2, 32], strides = [1, 1]} : vector<2x96xf32> to vector<2x32xf32>
    %283 = vector.extract_strided_slice %279 {offsets = [0, 32], sizes = [2, 32], strides = [1, 1]} : vector<2x96xf32> to vector<2x32xf32>
    %284 = vector.extract_strided_slice %279 {offsets = [0, 64], sizes = [2, 32], strides = [1, 1]} : vector<2x96xf32> to vector<2x32xf32>
    %285 = arith.mulf %283, %237 : vector<2x32xf32>
    %286 = arith.mulf %282, %281 : vector<2x32xf32>
    %287 = arith.addf %285, %286 : vector<2x32xf32>
    %288 = math.tanh %287 : vector<2x32xf32>
    %289 = arith.mulf %284, %288 : vector<2x32xf32>
    %cst_105 = arith.constant dense<0.000000e+00> : vector<2x128xf32>
    %290 = tpu.matmul %289, %4, %cst_105 {dimension_numbers = #tpu.dot_dimension_numbers<[1], [0], [0], [1], [0, 0, 1, 1], [], []>} : vector<2x32xf32>, vector<32x128xf32>, vector<2x128xf32> -> vector<2x128xf32>
    %cst_106 = arith.constant dense<0.000000e+00> : vector<2x128xf32>
    %291 = tpu.matmul %261, %5, %cst_106 {dimension_numbers = #tpu.dot_dimension_numbers<[1], [0], [0], [1], [0, 0, 1, 1], [], []>} : vector<2x32xf32>, vector<32x128xf32>, vector<2x128xf32> -> vector<2x128xf32>
    %292 = arith.addf %290, %291 : vector<2x128xf32>
    %293 = arith.addf %292, %11 : vector<2x128xf32>
    %294 = vector.extract_strided_slice %293 {offsets = [0, 0], sizes = [2, 96], strides = [1, 1]} : vector<2x128xf32> to vector<2x96xf32>
    %cst_107 = arith.constant 5.000000e-01 : f32
    %295 = vector.broadcast %cst_107 : f32 to vector<2x96xf32>
    %296 = arith.mulf %295, %294 : vector<2x96xf32>
    %297 = math.tanh %296 : vector<2x96xf32>
    %cst_108 = arith.constant 5.000000e-01 : f32
    %298 = vector.broadcast %cst_108 : f32 to vector<2x96xf32>
    %299 = arith.mulf %298, %297 : vector<2x96xf32>
    %cst_109 = arith.constant 5.000000e-01 : f32
    %300 = vector.broadcast %cst_109 : f32 to vector<2x96xf32>
    %301 = arith.addf %299, %300 : vector<2x96xf32>
    %302 = vector.extract_strided_slice %293 {offsets = [0, 96], sizes = [2, 32], strides = [1, 1]} : vector<2x128xf32> to vector<2x32xf32>
    %303 = math.tanh %302 : vector<2x32xf32>
    %304 = vector.extract_strided_slice %301 {offsets = [0, 0], sizes = [2, 32], strides = [1, 1]} : vector<2x96xf32> to vector<2x32xf32>
    %305 = vector.extract_strided_slice %301 {offsets = [0, 32], sizes = [2, 32], strides = [1, 1]} : vector<2x96xf32> to vector<2x32xf32>
    %306 = vector.extract_strided_slice %301 {offsets = [0, 64], sizes = [2, 32], strides = [1, 1]} : vector<2x96xf32> to vector<2x32xf32>
    %307 = arith.mulf %305, %259 : vector<2x32xf32>
    %308 = arith.mulf %304, %303 : vector<2x32xf32>
    %309 = arith.addf %307, %308 : vector<2x32xf32>
    %310 = math.tanh %309 : vector<2x32xf32>
    %311 = arith.mulf %306, %310 : vector<2x32xf32>
    %c6 = arith.constant 6 : index
    %c0_110 = arith.constant 0 : index
    %c0_111 = arith.constant 0 : index
    %312 = vector.load %arg0[%c6, %c0_110, %c0_111] : memref<8x2x9xf32, #tpu.memory_space<vmem>>, vector<1x2x9xf32>
    %313 = vector.shape_cast %312 : vector<1x2x9xf32> to vector<2x9xf32>
    %cst_112 = arith.constant dense<0.000000e+00> : vector<2x128xf32>
    %314 = tpu.matmul %313, %1, %cst_112 {dimension_numbers = #tpu.dot_dimension_numbers<[1], [0], [0], [1], [0, 0, 1, 1], [], []>} : vector<2x9xf32>, vector<9x128xf32>, vector<2x128xf32> -> vector<2x128xf32>
    %c6_113 = arith.constant 6 : index
    %c0_114 = arith.constant 0 : index
    %c0_115 = arith.constant 0 : index
    %315 = vector.load %arg1[%c6_113, %c0_114, %c0_115] : memref<8x2x8xf32, #tpu.memory_space<vmem>>, vector<1x2x8xf32>
    %316 = vector.shape_cast %315 : vector<1x2x8xf32> to vector<2x8xf32>
    %cst_116 = arith.constant dense<0.000000e+00> : vector<2x128xf32>
    %317 = tpu.matmul %316, %2, %cst_116 {dimension_numbers = #tpu.dot_dimension_numbers<[1], [0], [0], [1], [0, 0, 1, 1], [], []>} : vector<2x8xf32>, vector<8x128xf32>, vector<2x128xf32> -> vector<2x128xf32>
    %318 = arith.addf %314, %317 : vector<2x128xf32>
    %319 = arith.addf %318, %8 : vector<2x128xf32>
    %cst_117 = arith.constant dense<0.000000e+00> : vector<2x128xf32>
    %320 = tpu.matmul %289, %3, %cst_117 {dimension_numbers = #tpu.dot_dimension_numbers<[1], [0], [0], [1], [0, 0, 1, 1], [], []>} : vector<2x32xf32>, vector<32x128xf32>, vector<2x128xf32> -> vector<2x128xf32>
    %321 = arith.addf %319, %320 : vector<2x128xf32>
    %322 = vector.extract_strided_slice %321 {offsets = [0, 0], sizes = [2, 96], strides = [1, 1]} : vector<2x128xf32> to vector<2x96xf32>
    %cst_118 = arith.constant 5.000000e-01 : f32
    %323 = vector.broadcast %cst_118 : f32 to vector<2x96xf32>
    %324 = arith.mulf %323, %322 : vector<2x96xf32>
    %325 = math.tanh %324 : vector<2x96xf32>
    %cst_119 = arith.constant 5.000000e-01 : f32
    %326 = vector.broadcast %cst_119 : f32 to vector<2x96xf32>
    %327 = arith.mulf %326, %325 : vector<2x96xf32>
    %cst_120 = arith.constant 5.000000e-01 : f32
    %328 = vector.broadcast %cst_120 : f32 to vector<2x96xf32>
    %329 = arith.addf %327, %328 : vector<2x96xf32>
    %330 = vector.extract_strided_slice %321 {offsets = [0, 96], sizes = [2, 32], strides = [1, 1]} : vector<2x128xf32> to vector<2x32xf32>
    %331 = math.tanh %330 : vector<2x32xf32>
    %332 = vector.extract_strided_slice %329 {offsets = [0, 0], sizes = [2, 32], strides = [1, 1]} : vector<2x96xf32> to vector<2x32xf32>
    %333 = vector.extract_strided_slice %329 {offsets = [0, 32], sizes = [2, 32], strides = [1, 1]} : vector<2x96xf32> to vector<2x32xf32>
    %334 = vector.extract_strided_slice %329 {offsets = [0, 64], sizes = [2, 32], strides = [1, 1]} : vector<2x96xf32> to vector<2x32xf32>
    %335 = arith.mulf %333, %287 : vector<2x32xf32>
    %336 = arith.mulf %332, %331 : vector<2x32xf32>
    %337 = arith.addf %335, %336 : vector<2x32xf32>
    %338 = math.tanh %337 : vector<2x32xf32>
    %339 = arith.mulf %334, %338 : vector<2x32xf32>
    %cst_121 = arith.constant dense<0.000000e+00> : vector<2x128xf32>
    %340 = tpu.matmul %339, %4, %cst_121 {dimension_numbers = #tpu.dot_dimension_numbers<[1], [0], [0], [1], [0, 0, 1, 1], [], []>} : vector<2x32xf32>, vector<32x128xf32>, vector<2x128xf32> -> vector<2x128xf32>
    %cst_122 = arith.constant dense<0.000000e+00> : vector<2x128xf32>
    %341 = tpu.matmul %311, %5, %cst_122 {dimension_numbers = #tpu.dot_dimension_numbers<[1], [0], [0], [1], [0, 0, 1, 1], [], []>} : vector<2x32xf32>, vector<32x128xf32>, vector<2x128xf32> -> vector<2x128xf32>
    %342 = arith.addf %340, %341 : vector<2x128xf32>
    %343 = arith.addf %342, %11 : vector<2x128xf32>
    %344 = vector.extract_strided_slice %343 {offsets = [0, 0], sizes = [2, 96], strides = [1, 1]} : vector<2x128xf32> to vector<2x96xf32>
    %cst_123 = arith.constant 5.000000e-01 : f32
    %345 = vector.broadcast %cst_123 : f32 to vector<2x96xf32>
    %346 = arith.mulf %345, %344 : vector<2x96xf32>
    %347 = math.tanh %346 : vector<2x96xf32>
    %cst_124 = arith.constant 5.000000e-01 : f32
    %348 = vector.broadcast %cst_124 : f32 to vector<2x96xf32>
    %349 = arith.mulf %348, %347 : vector<2x96xf32>
    %cst_125 = arith.constant 5.000000e-01 : f32
    %350 = vector.broadcast %cst_125 : f32 to vector<2x96xf32>
    %351 = arith.addf %349, %350 : vector<2x96xf32>
    %352 = vector.extract_strided_slice %343 {offsets = [0, 96], sizes = [2, 32], strides = [1, 1]} : vector<2x128xf32> to vector<2x32xf32>
    %353 = math.tanh %352 : vector<2x32xf32>
    %354 = vector.extract_strided_slice %351 {offsets = [0, 0], sizes = [2, 32], strides = [1, 1]} : vector<2x96xf32> to vector<2x32xf32>
    %355 = vector.extract_strided_slice %351 {offsets = [0, 32], sizes = [2, 32], strides = [1, 1]} : vector<2x96xf32> to vector<2x32xf32>
    %356 = vector.extract_strided_slice %351 {offsets = [0, 64], sizes = [2, 32], strides = [1, 1]} : vector<2x96xf32> to vector<2x32xf32>
    %357 = arith.mulf %355, %309 : vector<2x32xf32>
    %358 = arith.mulf %354, %353 : vector<2x32xf32>
    %359 = arith.addf %357, %358 : vector<2x32xf32>
    %360 = math.tanh %359 : vector<2x32xf32>
    %361 = arith.mulf %356, %360 : vector<2x32xf32>
    %c7 = arith.constant 7 : index
    %c0_126 = arith.constant 0 : index
    %c0_127 = arith.constant 0 : index
    %362 = vector.load %arg0[%c7, %c0_126, %c0_127] : memref<8x2x9xf32, #tpu.memory_space<vmem>>, vector<1x2x9xf32>
    %363 = vector.shape_cast %362 : vector<1x2x9xf32> to vector<2x9xf32>
    %cst_128 = arith.constant dense<0.000000e+00> : vector<2x128xf32>
    %364 = tpu.matmul %363, %1, %cst_128 {dimension_numbers = #tpu.dot_dimension_numbers<[1], [0], [0], [1], [0, 0, 1, 1], [], []>} : vector<2x9xf32>, vector<9x128xf32>, vector<2x128xf32> -> vector<2x128xf32>
    %c7_129 = arith.constant 7 : index
    %c0_130 = arith.constant 0 : index
    %c0_131 = arith.constant 0 : index
    %365 = vector.load %arg1[%c7_129, %c0_130, %c0_131] : memref<8x2x8xf32, #tpu.memory_space<vmem>>, vector<1x2x8xf32>
    %366 = vector.shape_cast %365 : vector<1x2x8xf32> to vector<2x8xf32>
    %cst_132 = arith.constant dense<0.000000e+00> : vector<2x128xf32>
    %367 = tpu.matmul %366, %2, %cst_132 {dimension_numbers = #tpu.dot_dimension_numbers<[1], [0], [0], [1], [0, 0, 1, 1], [], []>} : vector<2x8xf32>, vector<8x128xf32>, vector<2x128xf32> -> vector<2x128xf32>
    %368 = arith.addf %364, %367 : vector<2x128xf32>
    %369 = arith.addf %368, %8 : vector<2x128xf32>
    %cst_133 = arith.constant dense<0.000000e+00> : vector<2x128xf32>
    %370 = tpu.matmul %339, %3, %cst_133 {dimension_numbers = #tpu.dot_dimension_numbers<[1], [0], [0], [1], [0, 0, 1, 1], [], []>} : vector<2x32xf32>, vector<32x128xf32>, vector<2x128xf32> -> vector<2x128xf32>
    %371 = arith.addf %369, %370 : vector<2x128xf32>
    %372 = vector.extract_strided_slice %371 {offsets = [0, 0], sizes = [2, 96], strides = [1, 1]} : vector<2x128xf32> to vector<2x96xf32>
    %cst_134 = arith.constant 5.000000e-01 : f32
    %373 = vector.broadcast %cst_134 : f32 to vector<2x96xf32>
    %374 = arith.mulf %373, %372 : vector<2x96xf32>
    %375 = math.tanh %374 : vector<2x96xf32>
    %cst_135 = arith.constant 5.000000e-01 : f32
    %376 = vector.broadcast %cst_135 : f32 to vector<2x96xf32>
    %377 = arith.mulf %376, %375 : vector<2x96xf32>
    %cst_136 = arith.constant 5.000000e-01 : f32
    %378 = vector.broadcast %cst_136 : f32 to vector<2x96xf32>
    %379 = arith.addf %377, %378 : vector<2x96xf32>
    %380 = vector.extract_strided_slice %371 {offsets = [0, 96], sizes = [2, 32], strides = [1, 1]} : vector<2x128xf32> to vector<2x32xf32>
    %381 = math.tanh %380 : vector<2x32xf32>
    %382 = vector.extract_strided_slice %379 {offsets = [0, 0], sizes = [2, 32], strides = [1, 1]} : vector<2x96xf32> to vector<2x32xf32>
    %383 = vector.extract_strided_slice %379 {offsets = [0, 32], sizes = [2, 32], strides = [1, 1]} : vector<2x96xf32> to vector<2x32xf32>
    %384 = vector.extract_strided_slice %379 {offsets = [0, 64], sizes = [2, 32], strides = [1, 1]} : vector<2x96xf32> to vector<2x32xf32>
    %385 = arith.mulf %383, %337 : vector<2x32xf32>
    %386 = arith.mulf %382, %381 : vector<2x32xf32>
    %387 = arith.addf %385, %386 : vector<2x32xf32>
    %388 = math.tanh %387 : vector<2x32xf32>
    %389 = arith.mulf %384, %388 : vector<2x32xf32>
    %cst_137 = arith.constant dense<0.000000e+00> : vector<2x128xf32>
    %390 = tpu.matmul %389, %4, %cst_137 {dimension_numbers = #tpu.dot_dimension_numbers<[1], [0], [0], [1], [0, 0, 1, 1], [], []>} : vector<2x32xf32>, vector<32x128xf32>, vector<2x128xf32> -> vector<2x128xf32>
    %cst_138 = arith.constant dense<0.000000e+00> : vector<2x128xf32>
    %391 = tpu.matmul %361, %5, %cst_138 {dimension_numbers = #tpu.dot_dimension_numbers<[1], [0], [0], [1], [0, 0, 1, 1], [], []>} : vector<2x32xf32>, vector<32x128xf32>, vector<2x128xf32> -> vector<2x128xf32>
    %392 = arith.addf %390, %391 : vector<2x128xf32>
    %393 = arith.addf %392, %11 : vector<2x128xf32>
    %394 = vector.extract_strided_slice %393 {offsets = [0, 0], sizes = [2, 96], strides = [1, 1]} : vector<2x128xf32> to vector<2x96xf32>
    %cst_139 = arith.constant 5.000000e-01 : f32
    %395 = vector.broadcast %cst_139 : f32 to vector<2x96xf32>
    %396 = arith.mulf %395, %394 : vector<2x96xf32>
    %397 = math.tanh %396 : vector<2x96xf32>
    %cst_140 = arith.constant 5.000000e-01 : f32
    %398 = vector.broadcast %cst_140 : f32 to vector<2x96xf32>
    %399 = arith.mulf %398, %397 : vector<2x96xf32>
    %cst_141 = arith.constant 5.000000e-01 : f32
    %400 = vector.broadcast %cst_141 : f32 to vector<2x96xf32>
    %401 = arith.addf %399, %400 : vector<2x96xf32>
    %402 = vector.extract_strided_slice %393 {offsets = [0, 96], sizes = [2, 32], strides = [1, 1]} : vector<2x128xf32> to vector<2x32xf32>
    %403 = math.tanh %402 : vector<2x32xf32>
    %404 = vector.extract_strided_slice %401 {offsets = [0, 0], sizes = [2, 32], strides = [1, 1]} : vector<2x96xf32> to vector<2x32xf32>
    %405 = vector.extract_strided_slice %401 {offsets = [0, 32], sizes = [2, 32], strides = [1, 1]} : vector<2x96xf32> to vector<2x32xf32>
    %406 = vector.extract_strided_slice %401 {offsets = [0, 64], sizes = [2, 32], strides = [1, 1]} : vector<2x96xf32> to vector<2x32xf32>
    %407 = arith.mulf %405, %359 : vector<2x32xf32>
    %408 = arith.mulf %404, %403 : vector<2x32xf32>
    %409 = arith.addf %407, %408 : vector<2x32xf32>
    %410 = math.tanh %409 : vector<2x32xf32>
    %411 = arith.mulf %406, %410 : vector<2x32xf32>
    %c0_142 = arith.constant 0 : index
    %c0_143 = arith.constant 0 : index
    %412 = vector.load %arg10[%c0_142, %c0_143] : memref<14x128xf32, #tpu.memory_space<vmem>>, vector<14x128xf32>
    %c0_144 = arith.constant 0 : index
    %c0_145 = arith.constant 0 : index
    %413 = vector.load %arg11[%c0_144, %c0_145] : memref<3x128xf32, #tpu.memory_space<vmem>>, vector<3x128xf32>
    %c0_146 = arith.constant 0 : index
    %c0_147 = arith.constant 0 : index
    %414 = vector.load %arg12[%c0_146, %c0_147] : memref<32x128xf32, #tpu.memory_space<vmem>>, vector<32x128xf32>
    %c0_148 = arith.constant 0 : index
    %c0_149 = arith.constant 0 : index
    %415 = vector.load %arg14[%c0_148, %c0_149] : memref<32x128xf32, #tpu.memory_space<vmem>>, vector<32x128xf32>
    %c0_150 = arith.constant 0 : index
    %c0_151 = arith.constant 0 : index
    %416 = vector.load %arg15[%c0_150, %c0_151] : memref<32x128xf32, #tpu.memory_space<vmem>>, vector<32x128xf32>
    %c0_152 = arith.constant 0 : index
    %c0_153 = arith.constant 0 : index
    %417 = vector.load %arg17[%c0_152, %c0_153] : memref<32x14xf32, #tpu.memory_space<vmem>>, vector<32x14xf32>
    %c0_154 = arith.constant 0 : index
    %c0_155 = arith.constant 0 : index
    %418 = vector.load %arg13[%c0_154, %c0_155] : memref<1x128xf32, #tpu.memory_space<vmem>>, vector<1x128xf32>
    %419 = vector.shape_cast %418 : vector<1x128xf32> to vector<1x128xf32>
    %420 = vector.broadcast %419 : vector<1x128xf32> to vector<2x128xf32>
    %c0_156 = arith.constant 0 : index
    %c0_157 = arith.constant 0 : index
    %421 = vector.load %arg16[%c0_156, %c0_157] : memref<1x128xf32, #tpu.memory_space<vmem>>, vector<1x128xf32>
    %422 = vector.shape_cast %421 : vector<1x128xf32> to vector<1x128xf32>
    %423 = vector.broadcast %422 : vector<1x128xf32> to vector<2x128xf32>
    %c0_158 = arith.constant 0 : index
    %c0_159 = arith.constant 0 : index
    %424 = vector.load %arg18[%c0_158, %c0_159] : memref<1x14xf32, #tpu.memory_space<vmem>>, vector<1x14xf32>
    %425 = vector.shape_cast %424 : vector<1x14xf32> to vector<1x14xf32>
    %426 = vector.broadcast %425 : vector<1x14xf32> to vector<2x14xf32>
    %cst_160 = arith.constant 0.000000e+00 : f32
    %427 = vector.broadcast %cst_160 : f32 to vector<2x14xf32>
    %c0_161 = arith.constant 0 : index
    %c0_162 = arith.constant 0 : index
    %c0_163 = arith.constant 0 : index
    %428 = vector.load %arg2[%c0_161, %c0_162, %c0_163] : memref<5x2x3xf32, #tpu.memory_space<vmem>>, vector<1x2x3xf32>
    %429 = vector.shape_cast %428 : vector<1x2x3xf32> to vector<2x3xf32>
    %cst_164 = arith.constant dense<0.000000e+00> : vector<2x128xf32>
    %430 = tpu.matmul %429, %413, %cst_164 {dimension_numbers = #tpu.dot_dimension_numbers<[1], [0], [0], [1], [0, 0, 1, 1], [], []>} : vector<2x3xf32>, vector<3x128xf32>, vector<2x128xf32> -> vector<2x128xf32>
    %431 = arith.addf %430, %420 : vector<2x128xf32>
    %cst_165 = arith.constant dense<0.000000e+00> : vector<2x128xf32>
    %432 = tpu.matmul %427, %412, %cst_165 {dimension_numbers = #tpu.dot_dimension_numbers<[1], [0], [0], [1], [0, 0, 1, 1], [], []>} : vector<2x14xf32>, vector<14x128xf32>, vector<2x128xf32> -> vector<2x128xf32>
    %433 = arith.addf %431, %432 : vector<2x128xf32>
    %cst_166 = arith.constant dense<0.000000e+00> : vector<2x128xf32>
    %434 = tpu.matmul %389, %414, %cst_166 {dimension_numbers = #tpu.dot_dimension_numbers<[1], [0], [0], [1], [0, 0, 1, 1], [], []>} : vector<2x32xf32>, vector<32x128xf32>, vector<2x128xf32> -> vector<2x128xf32>
    %435 = arith.addf %433, %434 : vector<2x128xf32>
    %436 = vector.extract_strided_slice %435 {offsets = [0, 0], sizes = [2, 96], strides = [1, 1]} : vector<2x128xf32> to vector<2x96xf32>
    %cst_167 = arith.constant 5.000000e-01 : f32
    %437 = vector.broadcast %cst_167 : f32 to vector<2x96xf32>
    %438 = arith.mulf %437, %436 : vector<2x96xf32>
    %439 = math.tanh %438 : vector<2x96xf32>
    %cst_168 = arith.constant 5.000000e-01 : f32
    %440 = vector.broadcast %cst_168 : f32 to vector<2x96xf32>
    %441 = arith.mulf %440, %439 : vector<2x96xf32>
    %cst_169 = arith.constant 5.000000e-01 : f32
    %442 = vector.broadcast %cst_169 : f32 to vector<2x96xf32>
    %443 = arith.addf %441, %442 : vector<2x96xf32>
    %444 = vector.extract_strided_slice %435 {offsets = [0, 96], sizes = [2, 32], strides = [1, 1]} : vector<2x128xf32> to vector<2x32xf32>
    %445 = math.tanh %444 : vector<2x32xf32>
    %446 = vector.extract_strided_slice %443 {offsets = [0, 0], sizes = [2, 32], strides = [1, 1]} : vector<2x96xf32> to vector<2x32xf32>
    %447 = vector.extract_strided_slice %443 {offsets = [0, 32], sizes = [2, 32], strides = [1, 1]} : vector<2x96xf32> to vector<2x32xf32>
    %448 = vector.extract_strided_slice %443 {offsets = [0, 64], sizes = [2, 32], strides = [1, 1]} : vector<2x96xf32> to vector<2x32xf32>
    %449 = arith.mulf %447, %387 : vector<2x32xf32>
    %450 = arith.mulf %446, %445 : vector<2x32xf32>
    %451 = arith.addf %449, %450 : vector<2x32xf32>
    %452 = math.tanh %451 : vector<2x32xf32>
    %453 = arith.mulf %448, %452 : vector<2x32xf32>
    %cst_170 = arith.constant dense<0.000000e+00> : vector<2x128xf32>
    %454 = tpu.matmul %453, %415, %cst_170 {dimension_numbers = #tpu.dot_dimension_numbers<[1], [0], [0], [1], [0, 0, 1, 1], [], []>} : vector<2x32xf32>, vector<32x128xf32>, vector<2x128xf32> -> vector<2x128xf32>
    %cst_171 = arith.constant dense<0.000000e+00> : vector<2x128xf32>
    %455 = tpu.matmul %411, %416, %cst_171 {dimension_numbers = #tpu.dot_dimension_numbers<[1], [0], [0], [1], [0, 0, 1, 1], [], []>} : vector<2x32xf32>, vector<32x128xf32>, vector<2x128xf32> -> vector<2x128xf32>
    %456 = arith.addf %454, %455 : vector<2x128xf32>
    %457 = arith.addf %456, %423 : vector<2x128xf32>
    %458 = vector.extract_strided_slice %457 {offsets = [0, 0], sizes = [2, 96], strides = [1, 1]} : vector<2x128xf32> to vector<2x96xf32>
    %cst_172 = arith.constant 5.000000e-01 : f32
    %459 = vector.broadcast %cst_172 : f32 to vector<2x96xf32>
    %460 = arith.mulf %459, %458 : vector<2x96xf32>
    %461 = math.tanh %460 : vector<2x96xf32>
    %cst_173 = arith.constant 5.000000e-01 : f32
    %462 = vector.broadcast %cst_173 : f32 to vector<2x96xf32>
    %463 = arith.mulf %462, %461 : vector<2x96xf32>
    %cst_174 = arith.constant 5.000000e-01 : f32
    %464 = vector.broadcast %cst_174 : f32 to vector<2x96xf32>
    %465 = arith.addf %463, %464 : vector<2x96xf32>
    %466 = vector.extract_strided_slice %457 {offsets = [0, 96], sizes = [2, 32], strides = [1, 1]} : vector<2x128xf32> to vector<2x32xf32>
    %467 = math.tanh %466 : vector<2x32xf32>
    %468 = vector.extract_strided_slice %465 {offsets = [0, 0], sizes = [2, 32], strides = [1, 1]} : vector<2x96xf32> to vector<2x32xf32>
    %469 = vector.extract_strided_slice %465 {offsets = [0, 32], sizes = [2, 32], strides = [1, 1]} : vector<2x96xf32> to vector<2x32xf32>
    %470 = vector.extract_strided_slice %465 {offsets = [0, 64], sizes = [2, 32], strides = [1, 1]} : vector<2x96xf32> to vector<2x32xf32>
    %471 = arith.mulf %469, %409 : vector<2x32xf32>
    %472 = arith.mulf %468, %467 : vector<2x32xf32>
    %473 = arith.addf %471, %472 : vector<2x32xf32>
    %474 = math.tanh %473 : vector<2x32xf32>
    %475 = arith.mulf %470, %474 : vector<2x32xf32>
    %cst_175 = arith.constant dense<0.000000e+00> : vector<2x14xf32>
    %476 = tpu.matmul %475, %417, %cst_175 {dimension_numbers = #tpu.dot_dimension_numbers<[1], [0], [0], [1], [0, 0, 1, 1], [], []>} : vector<2x32xf32>, vector<32x14xf32>, vector<2x14xf32> -> vector<2x14xf32>
    %477 = arith.addf %476, %426 : vector<2x14xf32>
    %c0_176 = arith.constant 0 : index
    %c0_177 = arith.constant 0 : index
    %c0_178 = arith.constant 0 : index
    %478 = vector.load %arg19[%c0_176, %c0_177, %c0_178] : memref<5x2x14xf32, #tpu.memory_space<vmem>>, vector<1x2x14xf32>
    %479 = vector.shape_cast %478 : vector<1x2x14xf32> to vector<2x14xf32>
    %480 = vector.shape_cast %477 : vector<2x14xf32> to vector<1x2x14xf32>
    tpu.vector_store %arg19[%c0_176, %c0_177, %c0_178], %480 {strides = array<i32>} : memref<5x2x14xf32, #tpu.memory_space<vmem>>, vector<1x2x14xf32>,
    %c1_179 = arith.constant 1 : index
    %c0_180 = arith.constant 0 : index
    %c0_181 = arith.constant 0 : index
    %481 = vector.load %arg2[%c1_179, %c0_180, %c0_181] : memref<5x2x3xf32, #tpu.memory_space<vmem>>, vector<1x2x3xf32>
    %482 = vector.shape_cast %481 : vector<1x2x3xf32> to vector<2x3xf32>
    %cst_182 = arith.constant dense<0.000000e+00> : vector<2x128xf32>
    %483 = tpu.matmul %482, %413, %cst_182 {dimension_numbers = #tpu.dot_dimension_numbers<[1], [0], [0], [1], [0, 0, 1, 1], [], []>} : vector<2x3xf32>, vector<3x128xf32>, vector<2x128xf32> -> vector<2x128xf32>
    %484 = arith.addf %483, %420 : vector<2x128xf32>
    %cst_183 = arith.constant dense<0.000000e+00> : vector<2x128xf32>
    %485 = tpu.matmul %477, %412, %cst_183 {dimension_numbers = #tpu.dot_dimension_numbers<[1], [0], [0], [1], [0, 0, 1, 1], [], []>} : vector<2x14xf32>, vector<14x128xf32>, vector<2x128xf32> -> vector<2x128xf32>
    %486 = arith.addf %484, %485 : vector<2x128xf32>
    %cst_184 = arith.constant dense<0.000000e+00> : vector<2x128xf32>
    %487 = tpu.matmul %453, %414, %cst_184 {dimension_numbers = #tpu.dot_dimension_numbers<[1], [0], [0], [1], [0, 0, 1, 1], [], []>} : vector<2x32xf32>, vector<32x128xf32>, vector<2x128xf32> -> vector<2x128xf32>
    %488 = arith.addf %486, %487 : vector<2x128xf32>
    %489 = vector.extract_strided_slice %488 {offsets = [0, 0], sizes = [2, 96], strides = [1, 1]} : vector<2x128xf32> to vector<2x96xf32>
    %cst_185 = arith.constant 5.000000e-01 : f32
    %490 = vector.broadcast %cst_185 : f32 to vector<2x96xf32>
    %491 = arith.mulf %490, %489 : vector<2x96xf32>
    %492 = math.tanh %491 : vector<2x96xf32>
    %cst_186 = arith.constant 5.000000e-01 : f32
    %493 = vector.broadcast %cst_186 : f32 to vector<2x96xf32>
    %494 = arith.mulf %493, %492 : vector<2x96xf32>
    %cst_187 = arith.constant 5.000000e-01 : f32
    %495 = vector.broadcast %cst_187 : f32 to vector<2x96xf32>
    %496 = arith.addf %494, %495 : vector<2x96xf32>
    %497 = vector.extract_strided_slice %488 {offsets = [0, 96], sizes = [2, 32], strides = [1, 1]} : vector<2x128xf32> to vector<2x32xf32>
    %498 = math.tanh %497 : vector<2x32xf32>
    %499 = vector.extract_strided_slice %496 {offsets = [0, 0], sizes = [2, 32], strides = [1, 1]} : vector<2x96xf32> to vector<2x32xf32>
    %500 = vector.extract_strided_slice %496 {offsets = [0, 32], sizes = [2, 32], strides = [1, 1]} : vector<2x96xf32> to vector<2x32xf32>
    %501 = vector.extract_strided_slice %496 {offsets = [0, 64], sizes = [2, 32], strides = [1, 1]} : vector<2x96xf32> to vector<2x32xf32>
    %502 = arith.mulf %500, %451 : vector<2x32xf32>
    %503 = arith.mulf %499, %498 : vector<2x32xf32>
    %504 = arith.addf %502, %503 : vector<2x32xf32>
    %505 = math.tanh %504 : vector<2x32xf32>
    %506 = arith.mulf %501, %505 : vector<2x32xf32>
    %cst_188 = arith.constant dense<0.000000e+00> : vector<2x128xf32>
    %507 = tpu.matmul %506, %415, %cst_188 {dimension_numbers = #tpu.dot_dimension_numbers<[1], [0], [0], [1], [0, 0, 1, 1], [], []>} : vector<2x32xf32>, vector<32x128xf32>, vector<2x128xf32> -> vector<2x128xf32>
    %cst_189 = arith.constant dense<0.000000e+00> : vector<2x128xf32>
    %508 = tpu.matmul %475, %416, %cst_189 {dimension_numbers = #tpu.dot_dimension_numbers<[1], [0], [0], [1], [0, 0, 1, 1], [], []>} : vector<2x32xf32>, vector<32x128xf32>, vector<2x128xf32> -> vector<2x128xf32>
    %509 = arith.addf %507, %508 : vector<2x128xf32>
    %510 = arith.addf %509, %423 : vector<2x128xf32>
    %511 = vector.extract_strided_slice %510 {offsets = [0, 0], sizes = [2, 96], strides = [1, 1]} : vector<2x128xf32> to vector<2x96xf32>
    %cst_190 = arith.constant 5.000000e-01 : f32
    %512 = vector.broadcast %cst_190 : f32 to vector<2x96xf32>
    %513 = arith.mulf %512, %511 : vector<2x96xf32>
    %514 = math.tanh %513 : vector<2x96xf32>
    %cst_191 = arith.constant 5.000000e-01 : f32
    %515 = vector.broadcast %cst_191 : f32 to vector<2x96xf32>
    %516 = arith.mulf %515, %514 : vector<2x96xf32>
    %cst_192 = arith.constant 5.000000e-01 : f32
    %517 = vector.broadcast %cst_192 : f32 to vector<2x96xf32>
    %518 = arith.addf %516, %517 : vector<2x96xf32>
    %519 = vector.extract_strided_slice %510 {offsets = [0, 96], sizes = [2, 32], strides = [1, 1]} : vector<2x128xf32> to vector<2x32xf32>
    %520 = math.tanh %519 : vector<2x32xf32>
    %521 = vector.extract_strided_slice %518 {offsets = [0, 0], sizes = [2, 32], strides = [1, 1]} : vector<2x96xf32> to vector<2x32xf32>
    %522 = vector.extract_strided_slice %518 {offsets = [0, 32], sizes = [2, 32], strides = [1, 1]} : vector<2x96xf32> to vector<2x32xf32>
    %523 = vector.extract_strided_slice %518 {offsets = [0, 64], sizes = [2, 32], strides = [1, 1]} : vector<2x96xf32> to vector<2x32xf32>
    %524 = arith.mulf %522, %473 : vector<2x32xf32>
    %525 = arith.mulf %521, %520 : vector<2x32xf32>
    %526 = arith.addf %524, %525 : vector<2x32xf32>
    %527 = math.tanh %526 : vector<2x32xf32>
    %528 = arith.mulf %523, %527 : vector<2x32xf32>
    %cst_193 = arith.constant dense<0.000000e+00> : vector<2x14xf32>
    %529 = tpu.matmul %528, %417, %cst_193 {dimension_numbers = #tpu.dot_dimension_numbers<[1], [0], [0], [1], [0, 0, 1, 1], [], []>} : vector<2x32xf32>, vector<32x14xf32>, vector<2x14xf32> -> vector<2x14xf32>
    %530 = arith.addf %529, %426 : vector<2x14xf32>
    %c1_194 = arith.constant 1 : index
    %c0_195 = arith.constant 0 : index
    %c0_196 = arith.constant 0 : index
    %531 = vector.load %arg19[%c1_194, %c0_195, %c0_196] : memref<5x2x14xf32, #tpu.memory_space<vmem>>, vector<1x2x14xf32>
    %532 = vector.shape_cast %531 : vector<1x2x14xf32> to vector<2x14xf32>
    %533 = vector.shape_cast %530 : vector<2x14xf32> to vector<1x2x14xf32>
    tpu.vector_store %arg19[%c1_194, %c0_195, %c0_196], %533 {strides = array<i32>} : memref<5x2x14xf32, #tpu.memory_space<vmem>>, vector<1x2x14xf32>,
    %c2_197 = arith.constant 2 : index
    %c0_198 = arith.constant 0 : index
    %c0_199 = arith.constant 0 : index
    %534 = vector.load %arg2[%c2_197, %c0_198, %c0_199] : memref<5x2x3xf32, #tpu.memory_space<vmem>>, vector<1x2x3xf32>
    %535 = vector.shape_cast %534 : vector<1x2x3xf32> to vector<2x3xf32>
    %cst_200 = arith.constant dense<0.000000e+00> : vector<2x128xf32>
    %536 = tpu.matmul %535, %413, %cst_200 {dimension_numbers = #tpu.dot_dimension_numbers<[1], [0], [0], [1], [0, 0, 1, 1], [], []>} : vector<2x3xf32>, vector<3x128xf32>, vector<2x128xf32> -> vector<2x128xf32>
    %537 = arith.addf %536, %420 : vector<2x128xf32>
    %cst_201 = arith.constant dense<0.000000e+00> : vector<2x128xf32>
    %538 = tpu.matmul %530, %412, %cst_201 {dimension_numbers = #tpu.dot_dimension_numbers<[1], [0], [0], [1], [0, 0, 1, 1], [], []>} : vector<2x14xf32>, vector<14x128xf32>, vector<2x128xf32> -> vector<2x128xf32>
    %539 = arith.addf %537, %538 : vector<2x128xf32>
    %cst_202 = arith.constant dense<0.000000e+00> : vector<2x128xf32>
    %540 = tpu.matmul %506, %414, %cst_202 {dimension_numbers = #tpu.dot_dimension_numbers<[1], [0], [0], [1], [0, 0, 1, 1], [], []>} : vector<2x32xf32>, vector<32x128xf32>, vector<2x128xf32> -> vector<2x128xf32>
    %541 = arith.addf %539, %540 : vector<2x128xf32>
    %542 = vector.extract_strided_slice %541 {offsets = [0, 0], sizes = [2, 96], strides = [1, 1]} : vector<2x128xf32> to vector<2x96xf32>
    %cst_203 = arith.constant 5.000000e-01 : f32
    %543 = vector.broadcast %cst_203 : f32 to vector<2x96xf32>
    %544 = arith.mulf %543, %542 : vector<2x96xf32>
    %545 = math.tanh %544 : vector<2x96xf32>
    %cst_204 = arith.constant 5.000000e-01 : f32
    %546 = vector.broadcast %cst_204 : f32 to vector<2x96xf32>
    %547 = arith.mulf %546, %545 : vector<2x96xf32>
    %cst_205 = arith.constant 5.000000e-01 : f32
    %548 = vector.broadcast %cst_205 : f32 to vector<2x96xf32>
    %549 = arith.addf %547, %548 : vector<2x96xf32>
    %550 = vector.extract_strided_slice %541 {offsets = [0, 96], sizes = [2, 32], strides = [1, 1]} : vector<2x128xf32> to vector<2x32xf32>
    %551 = math.tanh %550 : vector<2x32xf32>
    %552 = vector.extract_strided_slice %549 {offsets = [0, 0], sizes = [2, 32], strides = [1, 1]} : vector<2x96xf32> to vector<2x32xf32>
    %553 = vector.extract_strided_slice %549 {offsets = [0, 32], sizes = [2, 32], strides = [1, 1]} : vector<2x96xf32> to vector<2x32xf32>
    %554 = vector.extract_strided_slice %549 {offsets = [0, 64], sizes = [2, 32], strides = [1, 1]} : vector<2x96xf32> to vector<2x32xf32>
    %555 = arith.mulf %553, %504 : vector<2x32xf32>
    %556 = arith.mulf %552, %551 : vector<2x32xf32>
    %557 = arith.addf %555, %556 : vector<2x32xf32>
    %558 = math.tanh %557 : vector<2x32xf32>
    %559 = arith.mulf %554, %558 : vector<2x32xf32>
    %cst_206 = arith.constant dense<0.000000e+00> : vector<2x128xf32>
    %560 = tpu.matmul %559, %415, %cst_206 {dimension_numbers = #tpu.dot_dimension_numbers<[1], [0], [0], [1], [0, 0, 1, 1], [], []>} : vector<2x32xf32>, vector<32x128xf32>, vector<2x128xf32> -> vector<2x128xf32>
    %cst_207 = arith.constant dense<0.000000e+00> : vector<2x128xf32>
    %561 = tpu.matmul %528, %416, %cst_207 {dimension_numbers = #tpu.dot_dimension_numbers<[1], [0], [0], [1], [0, 0, 1, 1], [], []>} : vector<2x32xf32>, vector<32x128xf32>, vector<2x128xf32> -> vector<2x128xf32>
    %562 = arith.addf %560, %561 : vector<2x128xf32>
    %563 = arith.addf %562, %423 : vector<2x128xf32>
    %564 = vector.extract_strided_slice %563 {offsets = [0, 0], sizes = [2, 96], strides = [1, 1]} : vector<2x128xf32> to vector<2x96xf32>
    %cst_208 = arith.constant 5.000000e-01 : f32
    %565 = vector.broadcast %cst_208 : f32 to vector<2x96xf32>
    %566 = arith.mulf %565, %564 : vector<2x96xf32>
    %567 = math.tanh %566 : vector<2x96xf32>
    %cst_209 = arith.constant 5.000000e-01 : f32
    %568 = vector.broadcast %cst_209 : f32 to vector<2x96xf32>
    %569 = arith.mulf %568, %567 : vector<2x96xf32>
    %cst_210 = arith.constant 5.000000e-01 : f32
    %570 = vector.broadcast %cst_210 : f32 to vector<2x96xf32>
    %571 = arith.addf %569, %570 : vector<2x96xf32>
    %572 = vector.extract_strided_slice %563 {offsets = [0, 96], sizes = [2, 32], strides = [1, 1]} : vector<2x128xf32> to vector<2x32xf32>
    %573 = math.tanh %572 : vector<2x32xf32>
    %574 = vector.extract_strided_slice %571 {offsets = [0, 0], sizes = [2, 32], strides = [1, 1]} : vector<2x96xf32> to vector<2x32xf32>
    %575 = vector.extract_strided_slice %571 {offsets = [0, 32], sizes = [2, 32], strides = [1, 1]} : vector<2x96xf32> to vector<2x32xf32>
    %576 = vector.extract_strided_slice %571 {offsets = [0, 64], sizes = [2, 32], strides = [1, 1]} : vector<2x96xf32> to vector<2x32xf32>
    %577 = arith.mulf %575, %526 : vector<2x32xf32>
    %578 = arith.mulf %574, %573 : vector<2x32xf32>
    %579 = arith.addf %577, %578 : vector<2x32xf32>
    %580 = math.tanh %579 : vector<2x32xf32>
    %581 = arith.mulf %576, %580 : vector<2x32xf32>
    %cst_211 = arith.constant dense<0.000000e+00> : vector<2x14xf32>
    %582 = tpu.matmul %581, %417, %cst_211 {dimension_numbers = #tpu.dot_dimension_numbers<[1], [0], [0], [1], [0, 0, 1, 1], [], []>} : vector<2x32xf32>, vector<32x14xf32>, vector<2x14xf32> -> vector<2x14xf32>
    %583 = arith.addf %582, %426 : vector<2x14xf32>
    %c2_212 = arith.constant 2 : index
    %c0_213 = arith.constant 0 : index
    %c0_214 = arith.constant 0 : index
    %584 = vector.load %arg19[%c2_212, %c0_213, %c0_214] : memref<5x2x14xf32, #tpu.memory_space<vmem>>, vector<1x2x14xf32>
    %585 = vector.shape_cast %584 : vector<1x2x14xf32> to vector<2x14xf32>
    %586 = vector.shape_cast %583 : vector<2x14xf32> to vector<1x2x14xf32>
    tpu.vector_store %arg19[%c2_212, %c0_213, %c0_214], %586 {strides = array<i32>} : memref<5x2x14xf32, #tpu.memory_space<vmem>>, vector<1x2x14xf32>,
    %c3_215 = arith.constant 3 : index
    %c0_216 = arith.constant 0 : index
    %c0_217 = arith.constant 0 : index
    %587 = vector.load %arg2[%c3_215, %c0_216, %c0_217] : memref<5x2x3xf32, #tpu.memory_space<vmem>>, vector<1x2x3xf32>
    %588 = vector.shape_cast %587 : vector<1x2x3xf32> to vector<2x3xf32>
    %cst_218 = arith.constant dense<0.000000e+00> : vector<2x128xf32>
    %589 = tpu.matmul %588, %413, %cst_218 {dimension_numbers = #tpu.dot_dimension_numbers<[1], [0], [0], [1], [0, 0, 1, 1], [], []>} : vector<2x3xf32>, vector<3x128xf32>, vector<2x128xf32> -> vector<2x128xf32>
    %590 = arith.addf %589, %420 : vector<2x128xf32>
    %cst_219 = arith.constant dense<0.000000e+00> : vector<2x128xf32>
    %591 = tpu.matmul %583, %412, %cst_219 {dimension_numbers = #tpu.dot_dimension_numbers<[1], [0], [0], [1], [0, 0, 1, 1], [], []>} : vector<2x14xf32>, vector<14x128xf32>, vector<2x128xf32> -> vector<2x128xf32>
    %592 = arith.addf %590, %591 : vector<2x128xf32>
    %cst_220 = arith.constant dense<0.000000e+00> : vector<2x128xf32>
    %593 = tpu.matmul %559, %414, %cst_220 {dimension_numbers = #tpu.dot_dimension_numbers<[1], [0], [0], [1], [0, 0, 1, 1], [], []>} : vector<2x32xf32>, vector<32x128xf32>, vector<2x128xf32> -> vector<2x128xf32>
    %594 = arith.addf %592, %593 : vector<2x128xf32>
    %595 = vector.extract_strided_slice %594 {offsets = [0, 0], sizes = [2, 96], strides = [1, 1]} : vector<2x128xf32> to vector<2x96xf32>
    %cst_221 = arith.constant 5.000000e-01 : f32
    %596 = vector.broadcast %cst_221 : f32 to vector<2x96xf32>
    %597 = arith.mulf %596, %595 : vector<2x96xf32>
    %598 = math.tanh %597 : vector<2x96xf32>
    %cst_222 = arith.constant 5.000000e-01 : f32
    %599 = vector.broadcast %cst_222 : f32 to vector<2x96xf32>
    %600 = arith.mulf %599, %598 : vector<2x96xf32>
    %cst_223 = arith.constant 5.000000e-01 : f32
    %601 = vector.broadcast %cst_223 : f32 to vector<2x96xf32>
    %602 = arith.addf %600, %601 : vector<2x96xf32>
    %603 = vector.extract_strided_slice %594 {offsets = [0, 96], sizes = [2, 32], strides = [1, 1]} : vector<2x128xf32> to vector<2x32xf32>
    %604 = math.tanh %603 : vector<2x32xf32>
    %605 = vector.extract_strided_slice %602 {offsets = [0, 0], sizes = [2, 32], strides = [1, 1]} : vector<2x96xf32> to vector<2x32xf32>
    %606 = vector.extract_strided_slice %602 {offsets = [0, 32], sizes = [2, 32], strides = [1, 1]} : vector<2x96xf32> to vector<2x32xf32>
    %607 = vector.extract_strided_slice %602 {offsets = [0, 64], sizes = [2, 32], strides = [1, 1]} : vector<2x96xf32> to vector<2x32xf32>
    %608 = arith.mulf %606, %557 : vector<2x32xf32>
    %609 = arith.mulf %605, %604 : vector<2x32xf32>
    %610 = arith.addf %608, %609 : vector<2x32xf32>
    %611 = math.tanh %610 : vector<2x32xf32>
    %612 = arith.mulf %607, %611 : vector<2x32xf32>
    %cst_224 = arith.constant dense<0.000000e+00> : vector<2x128xf32>
    %613 = tpu.matmul %612, %415, %cst_224 {dimension_numbers = #tpu.dot_dimension_numbers<[1], [0], [0], [1], [0, 0, 1, 1], [], []>} : vector<2x32xf32>, vector<32x128xf32>, vector<2x128xf32> -> vector<2x128xf32>
    %cst_225 = arith.constant dense<0.000000e+00> : vector<2x128xf32>
    %614 = tpu.matmul %581, %416, %cst_225 {dimension_numbers = #tpu.dot_dimension_numbers<[1], [0], [0], [1], [0, 0, 1, 1], [], []>} : vector<2x32xf32>, vector<32x128xf32>, vector<2x128xf32> -> vector<2x128xf32>
    %615 = arith.addf %613, %614 : vector<2x128xf32>
    %616 = arith.addf %615, %423 : vector<2x128xf32>
    %617 = vector.extract_strided_slice %616 {offsets = [0, 0], sizes = [2, 96], strides = [1, 1]} : vector<2x128xf32> to vector<2x96xf32>
    %cst_226 = arith.constant 5.000000e-01 : f32
    %618 = vector.broadcast %cst_226 : f32 to vector<2x96xf32>
    %619 = arith.mulf %618, %617 : vector<2x96xf32>
    %620 = math.tanh %619 : vector<2x96xf32>
    %cst_227 = arith.constant 5.000000e-01 : f32
    %621 = vector.broadcast %cst_227 : f32 to vector<2x96xf32>
    %622 = arith.mulf %621, %620 : vector<2x96xf32>
    %cst_228 = arith.constant 5.000000e-01 : f32
    %623 = vector.broadcast %cst_228 : f32 to vector<2x96xf32>
    %624 = arith.addf %622, %623 : vector<2x96xf32>
    %625 = vector.extract_strided_slice %616 {offsets = [0, 96], sizes = [2, 32], strides = [1, 1]} : vector<2x128xf32> to vector<2x32xf32>
    %626 = math.tanh %625 : vector<2x32xf32>
    %627 = vector.extract_strided_slice %624 {offsets = [0, 0], sizes = [2, 32], strides = [1, 1]} : vector<2x96xf32> to vector<2x32xf32>
    %628 = vector.extract_strided_slice %624 {offsets = [0, 32], sizes = [2, 32], strides = [1, 1]} : vector<2x96xf32> to vector<2x32xf32>
    %629 = vector.extract_strided_slice %624 {offsets = [0, 64], sizes = [2, 32], strides = [1, 1]} : vector<2x96xf32> to vector<2x32xf32>
    %630 = arith.mulf %628, %579 : vector<2x32xf32>
    %631 = arith.mulf %627, %626 : vector<2x32xf32>
    %632 = arith.addf %630, %631 : vector<2x32xf32>
    %633 = math.tanh %632 : vector<2x32xf32>
    %634 = arith.mulf %629, %633 : vector<2x32xf32>
    %cst_229 = arith.constant dense<0.000000e+00> : vector<2x14xf32>
    %635 = tpu.matmul %634, %417, %cst_229 {dimension_numbers = #tpu.dot_dimension_numbers<[1], [0], [0], [1], [0, 0, 1, 1], [], []>} : vector<2x32xf32>, vector<32x14xf32>, vector<2x14xf32> -> vector<2x14xf32>
    %636 = arith.addf %635, %426 : vector<2x14xf32>
    %c3_230 = arith.constant 3 : index
    %c0_231 = arith.constant 0 : index
    %c0_232 = arith.constant 0 : index
    %637 = vector.load %arg19[%c3_230, %c0_231, %c0_232] : memref<5x2x14xf32, #tpu.memory_space<vmem>>, vector<1x2x14xf32>
    %638 = vector.shape_cast %637 : vector<1x2x14xf32> to vector<2x14xf32>
    %639 = vector.shape_cast %636 : vector<2x14xf32> to vector<1x2x14xf32>
    tpu.vector_store %arg19[%c3_230, %c0_231, %c0_232], %639 {strides = array<i32>} : memref<5x2x14xf32, #tpu.memory_space<vmem>>, vector<1x2x14xf32>,
    %c4_233 = arith.constant 4 : index
    %c0_234 = arith.constant 0 : index
    %c0_235 = arith.constant 0 : index
    %640 = vector.load %arg2[%c4_233, %c0_234, %c0_235] : memref<5x2x3xf32, #tpu.memory_space<vmem>>, vector<1x2x3xf32>
    %641 = vector.shape_cast %640 : vector<1x2x3xf32> to vector<2x3xf32>
    %cst_236 = arith.constant dense<0.000000e+00> : vector<2x128xf32>
    %642 = tpu.matmul %641, %413, %cst_236 {dimension_numbers = #tpu.dot_dimension_numbers<[1], [0], [0], [1], [0, 0, 1, 1], [], []>} : vector<2x3xf32>, vector<3x128xf32>, vector<2x128xf32> -> vector<2x128xf32>
    %643 = arith.addf %642, %420 : vector<2x128xf32>
    %cst_237 = arith.constant dense<0.000000e+00> : vector<2x128xf32>
    %644 = tpu.matmul %636, %412, %cst_237 {dimension_numbers = #tpu.dot_dimension_numbers<[1], [0], [0], [1], [0, 0, 1, 1], [], []>} : vector<2x14xf32>, vector<14x128xf32>, vector<2x128xf32> -> vector<2x128xf32>
    %645 = arith.addf %643, %644 : vector<2x128xf32>
    %cst_238 = arith.constant dense<0.000000e+00> : vector<2x128xf32>
    %646 = tpu.matmul %612, %414, %cst_238 {dimension_numbers = #tpu.dot_dimension_numbers<[1], [0], [0], [1], [0, 0, 1, 1], [], []>} : vector<2x32xf32>, vector<32x128xf32>, vector<2x128xf32> -> vector<2x128xf32>
    %647 = arith.addf %645, %646 : vector<2x128xf32>
    %648 = vector.extract_strided_slice %647 {offsets = [0, 0], sizes = [2, 96], strides = [1, 1]} : vector<2x128xf32> to vector<2x96xf32>
    %cst_239 = arith.constant 5.000000e-01 : f32
    %649 = vector.broadcast %cst_239 : f32 to vector<2x96xf32>
    %650 = arith.mulf %649, %648 : vector<2x96xf32>
    %651 = math.tanh %650 : vector<2x96xf32>
    %cst_240 = arith.constant 5.000000e-01 : f32
    %652 = vector.broadcast %cst_240 : f32 to vector<2x96xf32>
    %653 = arith.mulf %652, %651 : vector<2x96xf32>
    %cst_241 = arith.constant 5.000000e-01 : f32
    %654 = vector.broadcast %cst_241 : f32 to vector<2x96xf32>
    %655 = arith.addf %653, %654 : vector<2x96xf32>
    %656 = vector.extract_strided_slice %647 {offsets = [0, 96], sizes = [2, 32], strides = [1, 1]} : vector<2x128xf32> to vector<2x32xf32>
    %657 = math.tanh %656 : vector<2x32xf32>
    %658 = vector.extract_strided_slice %655 {offsets = [0, 0], sizes = [2, 32], strides = [1, 1]} : vector<2x96xf32> to vector<2x32xf32>
    %659 = vector.extract_strided_slice %655 {offsets = [0, 32], sizes = [2, 32], strides = [1, 1]} : vector<2x96xf32> to vector<2x32xf32>
    %660 = vector.extract_strided_slice %655 {offsets = [0, 64], sizes = [2, 32], strides = [1, 1]} : vector<2x96xf32> to vector<2x32xf32>
    %661 = arith.mulf %659, %610 : vector<2x32xf32>
    %662 = arith.mulf %658, %657 : vector<2x32xf32>
    %663 = arith.addf %661, %662 : vector<2x32xf32>
    %664 = math.tanh %663 : vector<2x32xf32>
    %665 = arith.mulf %660, %664 : vector<2x32xf32>
    %cst_242 = arith.constant dense<0.000000e+00> : vector<2x128xf32>
    %666 = tpu.matmul %665, %415, %cst_242 {dimension_numbers = #tpu.dot_dimension_numbers<[1], [0], [0], [1], [0, 0, 1, 1], [], []>} : vector<2x32xf32>, vector<32x128xf32>, vector<2x128xf32> -> vector<2x128xf32>
    %cst_243 = arith.constant dense<0.000000e+00> : vector<2x128xf32>
    %667 = tpu.matmul %634, %416, %cst_243 {dimension_numbers = #tpu.dot_dimension_numbers<[1], [0], [0], [1], [0, 0, 1, 1], [], []>} : vector<2x32xf32>, vector<32x128xf32>, vector<2x128xf32> -> vector<2x128xf32>
    %668 = arith.addf %666, %667 : vector<2x128xf32>
    %669 = arith.addf %668, %423 : vector<2x128xf32>
    %670 = vector.extract_strided_slice %669 {offsets = [0, 0], sizes = [2, 96], strides = [1, 1]} : vector<2x128xf32> to vector<2x96xf32>
    %cst_244 = arith.constant 5.000000e-01 : f32
    %671 = vector.broadcast %cst_244 : f32 to vector<2x96xf32>
    %672 = arith.mulf %671, %670 : vector<2x96xf32>
    %673 = math.tanh %672 : vector<2x96xf32>
    %cst_245 = arith.constant 5.000000e-01 : f32
    %674 = vector.broadcast %cst_245 : f32 to vector<2x96xf32>
    %675 = arith.mulf %674, %673 : vector<2x96xf32>
    %cst_246 = arith.constant 5.000000e-01 : f32
    %676 = vector.broadcast %cst_246 : f32 to vector<2x96xf32>
    %677 = arith.addf %675, %676 : vector<2x96xf32>
    %678 = vector.extract_strided_slice %669 {offsets = [0, 96], sizes = [2, 32], strides = [1, 1]} : vector<2x128xf32> to vector<2x32xf32>
    %679 = math.tanh %678 : vector<2x32xf32>
    %680 = vector.extract_strided_slice %677 {offsets = [0, 0], sizes = [2, 32], strides = [1, 1]} : vector<2x96xf32> to vector<2x32xf32>
    %681 = vector.extract_strided_slice %677 {offsets = [0, 32], sizes = [2, 32], strides = [1, 1]} : vector<2x96xf32> to vector<2x32xf32>
    %682 = vector.extract_strided_slice %677 {offsets = [0, 64], sizes = [2, 32], strides = [1, 1]} : vector<2x96xf32> to vector<2x32xf32>
    %683 = arith.mulf %681, %632 : vector<2x32xf32>
    %684 = arith.mulf %680, %679 : vector<2x32xf32>
    %685 = arith.addf %683, %684 : vector<2x32xf32>
    %686 = math.tanh %685 : vector<2x32xf32>
    %687 = arith.mulf %682, %686 : vector<2x32xf32>
    %cst_247 = arith.constant dense<0.000000e+00> : vector<2x14xf32>
    %688 = tpu.matmul %687, %417, %cst_247 {dimension_numbers = #tpu.dot_dimension_numbers<[1], [0], [0], [1], [0, 0, 1, 1], [], []>} : vector<2x32xf32>, vector<32x14xf32>, vector<2x14xf32> -> vector<2x14xf32>
    %689 = arith.addf %688, %426 : vector<2x14xf32>
    %c4_248 = arith.constant 4 : index
    %c0_249 = arith.constant 0 : index
    %c0_250 = arith.constant 0 : index
    %690 = vector.load %arg19[%c4_248, %c0_249, %c0_250] : memref<5x2x14xf32, #tpu.memory_space<vmem>>, vector<1x2x14xf32>
    %691 = vector.shape_cast %690 : vector<1x2x14xf32> to vector<2x14xf32>
    %692 = vector.shape_cast %689 : vector<2x14xf32> to vector<1x2x14xf32>
    tpu.vector_store %arg19[%c4_248, %c0_249, %c0_250], %692 {strides = array<i32>} : memref<5x2x14xf32, #tpu.memory_space<vmem>>, vector<1x2x14xf32>,
    return
  }
}

</mosaic_0001>

<llo_original>
// kernel: tpu_custom_call.1
$region0: #{tpu_custom_call.1}
  #allocation0 [shape = 'u32[]', space=smem, size = 0x4, offset = 0x4, fixed_abs, tag = 'smem constant byte address 0x4 - core index']
  #allocation1 [shape = 'u32[144,128]{1,0:T(1,128)}', space=vmem, size = 0x12000, scoped, tag = 'internal scratch']
  %s0 = inlined_call_operand.hbm [shape: f32[8,2,9], index: 0, kind: input, shape index: {}]
  %s1 = inlined_call_operand.hbm [shape: f32[8,2,8], index: 1, kind: input, shape index: {}]
  %s2 = inlined_call_operand.vmem [shape: f32[5,2,3], index: 2, kind: input, shape index: {}]
  %s3 = inlined_call_operand.hbm [shape: f32[9,128], index: 3, kind: input, shape index: {}]
  %s4 = inlined_call_operand.hbm [shape: f32[8,128], index: 4, kind: input, shape index: {}]
  %s5 = inlined_call_operand.vmem [shape: f32[32,128], index: 5, kind: input, shape index: {}]
  %s6 = inlined_call_operand.vmem [shape: f32[1,128], index: 6, kind: input, shape index: {}]
  %s7 = inlined_call_operand.vmem [shape: f32[32,128], index: 7, kind: input, shape index: {}]
  %s8 = inlined_call_operand.hbm [shape: f32[32,128], index: 8, kind: input, shape index: {}]
  %s9 = inlined_call_operand.hbm [shape: f32[1,128], index: 9, kind: input, shape index: {}]
  %s10 = inlined_call_operand.hbm [shape: f32[14,128], index: 10, kind: input, shape index: {}]
  %s11 = inlined_call_operand.hbm [shape: f32[3,128], index: 11, kind: input, shape index: {}]
  %s12 = inlined_call_operand.vmem [shape: f32[32,128], index: 12, kind: input, shape index: {}]
  %s13 = inlined_call_operand.hbm [shape: f32[1,128], index: 13, kind: input, shape index: {}]
  %s14 = inlined_call_operand.hbm [shape: f32[32,128], index: 14, kind: input, shape index: {}]
  %s15 = inlined_call_operand.hbm [shape: f32[32,128], index: 15, kind: input, shape index: {}]
  %s16 = inlined_call_operand.vmem [shape: f32[1,128], index: 16, kind: input, shape index: {}]
  %s17 = inlined_call_operand.vmem [shape: f32[32,14], index: 17, kind: input, shape index: {}]
  %s18 = inlined_call_operand.vmem [shape: f32[1,14], index: 18, kind: input, shape index: {}]
  %s19 = inlined_call_operand.hbm [shape: f32[5,2,14], index: 19, kind: output, shape index: {}]
  %s20 = sld [smem:[#allocation0]]
  $region130: #{tpu_custom_call.1} parent=0
    _
  %s22 = ssub.s32 1, %s20
  %s23 = scalar_select 0, %s22, %s20
  $region1: #{tpu_custom_call.1} parent=0
    #allocation2 [shape = 'u8[8192]{0}', space=vmem, size = 0x2000, scoped, tag = 'input window, operand 0, single buffered']
    #allocation3 [shape = 's32[1]{0}', space=sflag, size = 0x4, scoped, tag = 'scoped memory for tpu_custom_call.1']
    #allocation4 [shape = 's32[1]{0}', space=sflag, size = 0x4, scoped, tag = 'scoped memory for tpu_custom_call.1']
    #allocation5 [shape = 'u8[8192]{0}', space=vmem, size = 0x2000, scoped, tag = 'input window, operand 1, single buffered']
    #allocation6 [shape = 's32[1]{0}', space=sflag, size = 0x4, scoped, tag = 'scoped memory for tpu_custom_call.1']
    #allocation7 [shape = 'u8[8192]{0}', space=vmem, size = 0x2000, scoped, tag = 'input window, operand 3, single buffered']
    #allocation8 [shape = 'u8[4096]{0}', space=vmem, size = 0x1000, scoped, tag = 'input window, operand 4, single buffered']
    #allocation9 [shape = 's32[1]{0}', space=sflag, size = 0x4, scoped, tag = 'scoped memory for tpu_custom_call.1']
    #allocation10 [shape = 'u8[16384]{0}', space=vmem, size = 0x4000, scoped, tag = 'input window, operand 8, single buffered']
    #allocation11 [shape = 'u8[512]{0}', space=vmem, size = 0x400, scoped, tag = 'input window, operand 9, single buffered']
    #allocation12 [shape = 's32[1]{0}', space=sflag, size = 0x4, scoped, tag = 'scoped memory for tpu_custom_call.1']
    #allocation13 [shape = 'u8[8192]{0}', space=vmem, size = 0x2000, scoped, tag = 'input window, operand 10, single buffered']
    #allocation14 [shape = 'u8[2048]{0}', space=vmem, size = 0x800, scoped, tag = 'input window, operand 11, single buffered']
    #allocation15 [shape = 's32[1]{0}', space=sflag, size = 0x4, scoped, tag = 'scoped memory for tpu_custom_call.1']
    #allocation16 [shape = 'u8[512]{0}', space=vmem, size = 0x400, scoped, tag = 'input window, operand 13, single buffered']
    #allocation17 [shape = 'u8[16384]{0}', space=vmem, size = 0x4000, scoped, tag = 'input window, operand 14, single buffered']
    #allocation18 [shape = 's32[1]{0}', space=sflag, size = 0x4, scoped, tag = 'scoped memory for tpu_custom_call.1']
    #allocation19 [shape = 'u8[16384]{0}', space=vmem, size = 0x4000, scoped, tag = 'input window, operand 15, single buffered']
    #allocation20 [shape = 'u8[5120]{0}', space=vmem, size = 0x1400, scoped, tag = 'output window, operand 0, single buffered']
    %24 = vsyncpa [#allocation3], 0
    %25 = vsyncpa [#allocation6], 0
    %26 = vsyncpa [#allocation9], 0
    %27 = vsyncpa [#allocation12], 0
    %28 = vsyncpa [#allocation15], 0
    %29 = vsyncpa [#allocation18], 0
    %30 = vsyncpa [#allocation4], 0
    // Predicated region
    $region2: #{tpu_custom_call.1} parent=1 // pred_check
      _
    $region3: #{tpu_custom_call.1} parent=1 // pred_check_branch
      %32 = sbr.rel (0) target = $region5
    $region4: #{tpu_custom_call.1} parent=1 // pred_region
      %s34 = ssub.s32 256, 256
      %35 = vsyncadd [#allocation3], %s34
      %s36 = sshll.u32 [#allocation2], 4
      %s37 = int_to_ptr.vmem [resolvable:$true] %s36
      %42 = dma.hbm_to_vmem [thread:$0]  %s0, 256, %s37, [#allocation3], 32, 32, 2
    $region5: #{tpu_custom_call.1} parent=1 // pred_fallthru
      _
    // Predicated region
    $region6: #{tpu_custom_call.1} parent=1 // pred_check
      _
    $region7: #{tpu_custom_call.1} parent=1 // pred_check_branch
      %44 = sbr.rel (0) target = $region9
    $region8: #{tpu_custom_call.1} parent=1 // pred_region
      %s46 = ssub.s32 256, 256
      %47 = vsyncadd [#allocation6], %s46
      %s48 = sshll.u32 [#allocation5], 4
      %s49 = int_to_ptr.vmem [resolvable:$true] %s48
      %54 = dma.hbm_to_vmem [thread:$0]  %s1, 256, %s49, [#allocation6], 32, 32, 2
    $region9: #{tpu_custom_call.1} parent=1 // pred_fallthru
      _
    // Predicated region
    $region10: #{tpu_custom_call.1} parent=1 // pred_check
      _
    $region11: #{tpu_custom_call.1} parent=1 // pred_check_branch
      %56 = sbr.rel (0) target = $region13
    $region12: #{tpu_custom_call.1} parent=1 // pred_region
      _
    $region13: #{tpu_custom_call.1} parent=1 // pred_fallthru
      _
    // Predicated region
    $region14: #{tpu_custom_call.1} parent=1 // pred_check
      _
    $region15: #{tpu_custom_call.1} parent=1 // pred_check_branch
      %58 = sbr.rel (0) target = $region17
    $region16: #{tpu_custom_call.1} parent=1 // pred_region
      %s60 = ssub.s32 256, 256
      %61 = vsyncadd [#allocation6], %s60
      %s62 = sshll.u32 [#allocation7], 4
      %s63 = int_to_ptr.vmem [resolvable:$true] %s62
      %68 = dma.hbm_to_vmem [thread:$0]  %s3, 256, %s63, [#allocation6], 128, 128, 8
    $region17: #{tpu_custom_call.1} parent=1 // pred_fallthru
      _
    // Predicated region
    $region18: #{tpu_custom_call.1} parent=1 // pred_check
      _
    $region19: #{tpu_custom_call.1} parent=1 // pred_check_branch
      %70 = sbr.rel (0) target = $region21
    $region20: #{tpu_custom_call.1} parent=1 // pred_region
      %s72 = ssub.s32 128, 128
      %73 = vsyncadd [#allocation9], %s72
      %s75 = sshll.u32 [#allocation8], 4
      %s76 = int_to_ptr.vmem [resolvable:$true] %s75
      %78 = dma.hbm_to_vmem [thread:$0]  %s4, 128, %s76, [#allocation9]
    $region21: #{tpu_custom_call.1} parent=1 // pred_fallthru
      _
    // Predicated region
    $region22: #{tpu_custom_call.1} parent=1 // pred_check
      _
    $region23: #{tpu_custom_call.1} parent=1 // pred_check_branch
      %80 = sbr.rel (0) target = $region25
    $region24: #{tpu_custom_call.1} parent=1 // pred_region
      _
    $region25: #{tpu_custom_call.1} parent=1 // pred_fallthru
      _
    // Predicated region
    $region26: #{tpu_custom_call.1} parent=1 // pred_check
      _
    $region27: #{tpu_custom_call.1} parent=1 // pred_check_branch
      %82 = sbr.rel (0) target = $region29
    $region28: #{tpu_custom_call.1} parent=1 // pred_region
      _
    $region29: #{tpu_custom_call.1} parent=1 // pred_fallthru
      _
    // Predicated region
    $region30: #{tpu_custom_call.1} parent=1 // pred_check
      _
    $region31: #{tpu_custom_call.1} parent=1 // pred_check_branch
      %84 = sbr.rel (0) target = $region33
    $region32: #{tpu_custom_call.1} parent=1 // pred_region
      _
    $region33: #{tpu_custom_call.1} parent=1 // pred_fallthru
      _
    // Predicated region
    $region34: #{tpu_custom_call.1} parent=1 // pred_check
      _
    $region35: #{tpu_custom_call.1} parent=1 // pred_check_branch
      %86 = sbr.rel (0) target = $region37
    $region36: #{tpu_custom_call.1} parent=1 // pred_region
      %s88 = ssub.s32 512, 512
      %89 = vsyncadd [#allocation9], %s88
      %s90 = sshll.u32 [#allocation10], 4
      %s91 = int_to_ptr.vmem [resolvable:$true] %s90
      %96 = dma.hbm_to_vmem [thread:$0]  %s8, 512, %s91, [#allocation9], 128, 128, 8
    $region37: #{tpu_custom_call.1} parent=1 // pred_fallthru
      _
    // Predicated region
    $region38: #{tpu_custom_call.1} parent=1 // pred_check
      _
    $region39: #{tpu_custom_call.1} parent=1 // pred_check_branch
      %98 = sbr.rel (0) target = $region41
    $region40: #{tpu_custom_call.1} parent=1 // pred_region
      %s100 = ssub.s32 16, 16
      %101 = vsyncadd [#allocation12], %s100
      %s103 = sshll.u32 [#allocation11], 4
      %s104 = int_to_ptr.vmem [resolvable:$true] %s103
      %106 = dma.hbm_to_vmem [thread:$0]  %s9, 16, %s104, [#allocation12]
    $region41: #{tpu_custom_call.1} parent=1 // pred_fallthru
      _
    // Predicated region
    $region42: #{tpu_custom_call.1} parent=1 // pred_check
      _
    $region43: #{tpu_custom_call.1} parent=1 // pred_check_branch
      %108 = sbr.rel (0) target = $region45
    $region44: #{tpu_custom_call.1} parent=1 // pred_region
      %s110 = ssub.s32 256, 256
      %111 = vsyncadd [#allocation12], %s110
      %s112 = sshll.u32 [#allocation13], 4
      %s113 = int_to_ptr.vmem [resolvable:$true] %s112
      %118 = dma.hbm_to_vmem [thread:$0]  %s10, 256, %s113, [#allocation12], 128, 128, 8
    $region45: #{tpu_custom_call.1} parent=1 // pred_fallthru
      _
    // Predicated region
    $region46: #{tpu_custom_call.1} parent=1 // pred_check
      _
    $region47: #{tpu_custom_call.1} parent=1 // pred_check_branch
      %120 = sbr.rel (0) target = $region49
    $region48: #{tpu_custom_call.1} parent=1 // pred_region
      %s122 = ssub.s32 64, 64
      %123 = vsyncadd [#allocation15], %s122
      %s125 = sshll.u32 [#allocation14], 4
      %s126 = int_to_ptr.vmem [resolvable:$true] %s125
      %128 = dma.hbm_to_vmem [thread:$0]  %s11, 64, %s126, [#allocation15]
    $region49: #{tpu_custom_call.1} parent=1 // pred_fallthru
      _
    // Predicated region
    $region50: #{tpu_custom_call.1} parent=1 // pred_check
      _
    $region51: #{tpu_custom_call.1} parent=1 // pred_check_branch
      %130 = sbr.rel (0) target = $region53
    $region52: #{tpu_custom_call.1} parent=1 // pred_region
      _
    $region53: #{tpu_custom_call.1} parent=1 // pred_fallthru
      _
    // Predicated region
    $region54: #{tpu_custom_call.1} parent=1 // pred_check
      _
    $region55: #{tpu_custom_call.1} parent=1 // pred_check_branch
      %132 = sbr.rel (0) target = $region57
    $region56: #{tpu_custom_call.1} parent=1 // pred_region
      %s134 = ssub.s32 16, 16
      %135 = vsyncadd [#allocation15], %s134
      %s137 = sshll.u32 [#allocation16], 4
      %s138 = int_to_ptr.vmem [resolvable:$true] %s137
      %140 = dma.hbm_to_vmem [thread:$0]  %s13, 16, %s138, [#allocation15]
    $region57: #{tpu_custom_call.1} parent=1 // pred_fallthru
      _
    // Predicated region
    $region58: #{tpu_custom_call.1} parent=1 // pred_check
      _
    $region59: #{tpu_custom_call.1} parent=1 // pred_check_branch
      %142 = sbr.rel (0) target = $region61
    $region60: #{tpu_custom_call.1} parent=1 // pred_region
      %s144 = ssub.s32 512, 512
      %145 = vsyncadd [#allocation18], %s144
      %s146 = sshll.u32 [#allocation17], 4
      %s147 = int_to_ptr.vmem [resolvable:$true] %s146
      %152 = dma.hbm_to_vmem [thread:$0]  %s14, 512, %s147, [#allocation18], 128, 128, 8
    $region61: #{tpu_custom_call.1} parent=1 // pred_fallthru
      _
    // Predicated region
    $region62: #{tpu_custom_call.1} parent=1 // pred_check
      _
    $region63: #{tpu_custom_call.1} parent=1 // pred_check_branch
      %154 = sbr.rel (0) target = $region65
    $region64: #{tpu_custom_call.1} parent=1 // pred_region
      %s156 = ssub.s32 512, 512
      %157 = vsyncadd [#allocation18], %s156
      %s158 = sshll.u32 [#allocation19], 4
      %s159 = int_to_ptr.vmem [resolvable:$true] %s158
      %164 = dma.hbm_to_vmem [thread:$0]  %s15, 512, %s159, [#allocation18], 128, 128, 8
    $region65: #{tpu_custom_call.1} parent=1 // pred_fallthru
      _
    // Predicated region
    $region66: #{tpu_custom_call.1} parent=1 // pred_check
      _
    $region67: #{tpu_custom_call.1} parent=1 // pred_check_branch
      %166 = sbr.rel (0) target = $region69
    $region68: #{tpu_custom_call.1} parent=1 // pred_region
      _
    $region69: #{tpu_custom_call.1} parent=1 // pred_fallthru
      _
    // Predicated region
    $region70: #{tpu_custom_call.1} parent=1 // pred_check
      _
    $region71: #{tpu_custom_call.1} parent=1 // pred_check_branch
      %168 = sbr.rel (0) target = $region73
    $region72: #{tpu_custom_call.1} parent=1 // pred_region
      _
    $region73: #{tpu_custom_call.1} parent=1 // pred_fallthru
      _
    // Predicated region
    $region74: #{tpu_custom_call.1} parent=1 // pred_check
      _
    $region75: #{tpu_custom_call.1} parent=1 // pred_check_branch
      %170 = sbr.rel (0) target = $region77
    $region76: #{tpu_custom_call.1} parent=1 // pred_region
      _
    $region77: #{tpu_custom_call.1} parent=1 // pred_fallthru
      _
    // Predicated region
    $region78: #{tpu_custom_call.1} parent=1 // pred_check
      _
    $region79: #{tpu_custom_call.1} parent=1 // pred_check_branch
      %172 = sbr.rel (0) target = $region81
    $region80: #{tpu_custom_call.1} parent=1 // pred_region
      %173 = dma.done [#allocation3], 256
    $region81: #{tpu_custom_call.1} parent=1 // pred_fallthru
      _
    // Predicated region
    $region82: #{tpu_custom_call.1} parent=1 // pred_check
      _
    $region83: #{tpu_custom_call.1} parent=1 // pred_check_branch
      %175 = sbr.rel (0) target = $region85
    $region84: #{tpu_custom_call.1} parent=1 // pred_region
      %176 = dma.done [#allocation6], 256
    $region85: #{tpu_custom_call.1} parent=1 // pred_fallthru
      _
    // Predicated region
    $region86: #{tpu_custom_call.1} parent=1 // pred_check
      _
    $region87: #{tpu_custom_call.1} parent=1 // pred_check_branch
      %178 = sbr.rel (0) target = $region89
    $region88: #{tpu_custom_call.1} parent=1 // pred_region
      %179 = dma.done [#allocation6], 256
    $region89: #{tpu_custom_call.1} parent=1 // pred_fallthru
      _
    // Predicated region
    $region90: #{tpu_custom_call.1} parent=1 // pred_check
      _
    $region91: #{tpu_custom_call.1} parent=1 // pred_check_branch
      %181 = sbr.rel (0) target = $region93
    $region92: #{tpu_custom_call.1} parent=1 // pred_region
      %182 = dma.done [#allocation9], 128
    $region93: #{tpu_custom_call.1} parent=1 // pred_fallthru
      _
    // Predicated region
    $region94: #{tpu_custom_call.1} parent=1 // pred_check
      _
    $region95: #{tpu_custom_call.1} parent=1 // pred_check_branch
      %184 = sbr.rel (0) target = $region97
    $region96: #{tpu_custom_call.1} parent=1 // pred_region
      %185 = dma.done [#allocation9], 512
    $region97: #{tpu_custom_call.1} parent=1 // pred_fallthru
      _
    // Predicated region
    $region98: #{tpu_custom_call.1} parent=1 // pred_check
      _
    $region99: #{tpu_custom_call.1} parent=1 // pred_check_branch
      %187 = sbr.rel (0) target = $region101
    $region100: #{tpu_custom_call.1} parent=1 // pred_region
      %188 = dma.done [#allocation12], 16
    $region101: #{tpu_custom_call.1} parent=1 // pred_fallthru
      _
    // Predicated region
    $region102: #{tpu_custom_call.1} parent=1 // pred_check
      _
    $region103: #{tpu_custom_call.1} parent=1 // pred_check_branch
      %190 = sbr.rel (0) target = $region105
    $region104: #{tpu_custom_call.1} parent=1 // pred_region
      %191 = dma.done [#allocation12], 256
    $region105: #{tpu_custom_call.1} parent=1 // pred_fallthru
      _
    // Predicated region
    $region106: #{tpu_custom_call.1} parent=1 // pred_check
      _
    $region107: #{tpu_custom_call.1} parent=1 // pred_check_branch
      %193 = sbr.rel (0) target = $region109
    $region108: #{tpu_custom_call.1} parent=1 // pred_region
      %194 = dma.done [#allocation15], 64
    $region109: #{tpu_custom_call.1} parent=1 // pred_fallthru
      _
    // Predicated region
    $region110: #{tpu_custom_call.1} parent=1 // pred_check
      _
    $region111: #{tpu_custom_call.1} parent=1 // pred_check_branch
      %196 = sbr.rel (0) target = $region113
    $region112: #{tpu_custom_call.1} parent=1 // pred_region
      %197 = dma.done [#allocation15], 16
    $region113: #{tpu_custom_call.1} parent=1 // pred_fallthru
      _
    // Predicated region
    $region114: #{tpu_custom_call.1} parent=1 // pred_check
      _
    $region115: #{tpu_custom_call.1} parent=1 // pred_check_branch
      %199 = sbr.rel (0) target = $region117
    $region116: #{tpu_custom_call.1} parent=1 // pred_region
      %200 = dma.done [#allocation18], 512
    $region117: #{tpu_custom_call.1} parent=1 // pred_fallthru
      _
    // Predicated region
    $region118: #{tpu_custom_call.1} parent=1 // pred_check
      _
    $region119: #{tpu_custom_call.1} parent=1 // pred_check_branch
      %202 = sbr.rel (0) target = $region121
    $region120: #{tpu_custom_call.1} parent=1 // pred_region
      %203 = dma.done [#allocation18], 512
    $region121: #{tpu_custom_call.1} parent=1 // pred_fallthru
      _
    %v204 = vld [vmem:[#allocation7] sm:$0xff]
    %v205 = vld [vmem:[#allocation7 + $0x8] sm:$0x1]
    %v206 = vld [vmem:[#allocation8] sm:$0xff]
    %v207 = vld [vmem:[%s5] sm:$0xff]
    %v208 = vld [vmem:[%s5 + $0x8] sm:$0xff]
    %v209 = vld [vmem:[%s5 + $0x10] sm:$0xff]
    %v210 = vld [vmem:[%s5 + $0x18] sm:$0xff]
    %v211 = vld [vmem:[%s7] sm:$0xff]
    %v212 = vld [vmem:[%s7 + $0x8] sm:$0xff]
    %v213 = vld [vmem:[%s7 + $0x10] sm:$0xff]
    %v214 = vld [vmem:[%s7 + $0x18] sm:$0xff]
    %v215 = vld [vmem:[#allocation10] sm:$0xff]
    %v216 = vld [vmem:[#allocation10 + $0x8] sm:$0xff]
    %v217 = vld [vmem:[#allocation10 + $0x10] sm:$0xff]
    %v218 = vld [vmem:[#allocation10 + $0x18] sm:$0xff]
    %v219 = vld [vmem:[%s6] sm:$0x1]
    %v221 = vlaneseq
    %v222 = vshrl.u32 %v221, 7
    %v223 = vsub.s32 0, %v222
    %v224 = vrot.slane %v219, %v223
    %v226 = vld [vmem:[#allocation11] sm:$0x1]
    %v228 = vlaneseq
    %v229 = vshrl.u32 %v228, 7
    %v230 = vsub.s32 0, %v229
    %v231 = vrot.slane %v226, %v230
    %v233 = vld [vmem:[#allocation2] sm:$0x3]
    %v234 = vld [vmem:[#allocation5] sm:$0x3]
    %vm235 = vcmask 64512
    %v237 = vsel %vm235, %v234, 0
    %239 = vmatprep.subr.mxu0 0.0
    %240 = vmatpush1.msra.mxu0 %v206
    %241 = vmatprep.subr.mxu0 0.0
    %242 = vmatpush1.msra.mxu0 0.0
    %243 = vmatprep.subr.mxu0 0.0
    %244 = vmatpush1.msra.mxu0 0.0
    %245 = vmatprep.subr.mxu0 0.0
    %246 = vmatpush1.msra.mxu0 0.0
    %247 = vmatprep.subr.mxu0 0.0
    %248 = vmatpush1.msra.mxu0 0.0
    %249 = vmatprep.subr.mxu0 0.0
    %250 = vmatpush1.msra.mxu0 0.0
    %251 = vmatprep.subr.mxu0 0.0
    %252 = vmatpush1.msra.mxu0 0.0
    %253 = vmatprep.subr.mxu0 0.0
    %254 = vmatpush1.msra.mxu0 0.0
    %255 = vmatprep.subr.mxu0 0.0
    %256 = vmatpush1.msra.mxu0 0.0
    %257 = vmatprep.subr.mxu0 0.0
    %258 = vmatpush1.msra.mxu0 0.0
    %259 = vmatprep.subr.mxu0 0.0
    %260 = vmatpush1.msra.mxu0 0.0
    %261 = vmatprep.subr.mxu0 0.0
    %262 = vmatpush1.msra.mxu0 0.0
    %263 = vmatprep.subr.mxu0 0.0
    %264 = vmatpush1.msra.mxu0 0.0
    %265 = vmatprep.subr.mxu0 0.0
    %266 = vmatpush1.msra.mxu0 0.0
    %267 = vmatprep.subr.mxu0 0.0
    %268 = vmatpush1.msra.mxu0 0.0
    %269 = vmatprep.subr.mxu0 0.0
    %270 = vmatpush1.msra.mxu0 0.0
    %271 = vmatprep.subr.mxu0 0.0
    %272 = vmatpush1.msra.mxu0 0.0
    %273 = vmatprep.subr.mxu0 0.0
    %274 = vmatpush1.msra.mxu0 0.0
    %275 = vmatprep.subr.mxu0 0.0
    %276 = vmatpush1.msra.mxu0 0.0
    %277 = vmatprep.subr.mxu0 0.0
    %278 = vmatpush1.msra.mxu0 0.0
    %279 = vmatprep.subr.mxu0 0.0
    %280 = vmatpush1.msra.mxu0 0.0
    %281 = vmatprep.subr.mxu0 0.0
    %282 = vmatpush1.msra.mxu0 0.0
    %283 = vmatprep.subr.mxu0 0.0
    %284 = vmatpush1.msra.mxu0 0.0
    %285 = vmatprep.subr.mxu0 0.0
    %286 = vmatpush1.msra.mxu0 0.0
    %287 = vmatprep.subr.mxu0 0.0
    %288 = vmatpush1.msra.mxu0 0.0
    %289 = vmatprep.subr.mxu0 0.0
    %290 = vmatpush1.msra.mxu0 0.0
    %291 = vmatprep.subr.mxu0 0.0
    %292 = vmatpush1.msra.mxu0 0.0
    %293 = vmatprep.subr.mxu0 0.0
    %294 = vmatpush1.msra.mxu0 0.0
    %295 = vmatprep.subr.mxu0 0.0
    %296 = vmatpush1.msra.mxu0 0.0
    %297 = vmatprep.subr.mxu0 0.0
    %298 = vmatpush1.msra.mxu0 0.0
    %299 = vmatprep.subr.mxu0 0.0
    %300 = vmatpush1.msra.mxu0 0.0
    %301 = vmatprep.subr.mxu0 0.0
    %302 = vmatpush1.msra.mxu0 0.0
    %303 = vmatprep.mubr.f32.mxu0 0.0
    %304 = vmatmul.mubr.f32.gmra.mrb[0].mxu0 %v237
    %v305 = vpop.f32.mrb[0].mxu0
    %v306 = vadd.f32 0.0, %v305
    %v307 = vpop.f32.mrb[0].mxu0
    %308 = vdwg.mxu0
    %vm309 = vcmask 72704
    %v311 = vsel %vm309, %v233, 0
    %vm313 = vcmask 1040384
    %v315 = vsel %vm313, %v205, 0
    %317 = vmatprep.subr.mxu0 0.0
    %318 = vmatpush1.msra.mxu0 %v204
    %319 = vmatprep.subr.mxu0 0.0
    %320 = vmatpush1.msra.mxu0 %v315
    %321 = vmatprep.subr.mxu0 0.0
    %322 = vmatpush1.msra.mxu0 0.0
    %323 = vmatprep.subr.mxu0 0.0
    %324 = vmatpush1.msra.mxu0 0.0
    %325 = vmatprep.subr.mxu0 0.0
    %326 = vmatpush1.msra.mxu0 0.0
    %327 = vmatprep.subr.mxu0 0.0
    %328 = vmatpush1.msra.mxu0 0.0
    %329 = vmatprep.subr.mxu0 0.0
    %330 = vmatpush1.msra.mxu0 0.0
    %331 = vmatprep.subr.mxu0 0.0
    %332 = vmatpush1.msra.mxu0 0.0
    %333 = vmatprep.subr.mxu0 0.0
    %334 = vmatpush1.msra.mxu0 0.0
    %335 = vmatprep.subr.mxu0 0.0
    %336 = vmatpush1.msra.mxu0 0.0
    %337 = vmatprep.subr.mxu0 0.0
    %338 = vmatpush1.msra.mxu0 0.0
    %339 = vmatprep.subr.mxu0 0.0
    %340 = vmatpush1.msra.mxu0 0.0
    %341 = vmatprep.subr.mxu0 0.0
    %342 = vmatpush1.msra.mxu0 0.0
    %343 = vmatprep.subr.mxu0 0.0
    %344 = vmatpush1.msra.mxu0 0.0
    %345 = vmatprep.subr.mxu0 0.0
    %346 = vmatpush1.msra.mxu0 0.0
    %347 = vmatprep.subr.mxu0 0.0
    %348 = vmatpush1.msra.mxu0 0.0
    %349 = vmatprep.subr.mxu0 0.0
    %350 = vmatpush1.msra.mxu0 0.0
    %351 = vmatprep.subr.mxu0 0.0
    %352 = vmatpush1.msra.mxu0 0.0
    %353 = vmatprep.subr.mxu0 0.0
    %354 = vmatpush1.msra.mxu0 0.0
    %355 = vmatprep.subr.mxu0 0.0
    %356 = vmatpush1.msra.mxu0 0.0
    %357 = vmatprep.subr.mxu0 0.0
    %358 = vmatpush1.msra.mxu0 0.0
    %359 = vmatprep.subr.mxu0 0.0
    %360 = vmatpush1.msra.mxu0 0.0
    %361 = vmatprep.subr.mxu0 0.0
    %362 = vmatpush1.msra.mxu0 0.0
    %363 = vmatprep.subr.mxu0 0.0
    %364 = vmatpush1.msra.mxu0 0.0
    %365 = vmatprep.subr.mxu0 0.0
    %366 = vmatpush1.msra.mxu0 0.0
    %367 = vmatprep.subr.mxu0 0.0
    %368 = vmatpush1.msra.mxu0 0.0
    %369 = vmatprep.subr.mxu0 0.0
    %370 = vmatpush1.msra.mxu0 0.0
    %371 = vmatprep.subr.mxu0 0.0
    %372 = vmatpush1.msra.mxu0 0.0
    %373 = vmatprep.subr.mxu0 0.0
    %374 = vmatpush1.msra.mxu0 0.0
    %375 = vmatprep.subr.mxu0 0.0
    %376 = vmatpush1.msra.mxu0 0.0
    %377 = vmatprep.subr.mxu0 0.0
    %378 = vmatpush1.msra.mxu0 0.0
    %379 = vmatprep.subr.mxu0 0.0
    %380 = vmatpush1.msra.mxu0 0.0
    %381 = vmatprep.mubr.f32.mxu0 0.0
    %382 = vmatmul.mubr.f32.gmra.mrb[0].mxu0 %v311
    %v383 = vpop.f32.mrb[0].mxu0
    %v384 = vadd.f32 %v306, %v383
    %v385 = vpop.f32.mrb[0].mxu0
    %386 = vdwg.mxu0
    %v387 = vadd.f32 %v384, %v224
    %vm388 = vcmask 261120
    %v390 = vsel %vm388, 0.0, 0
    %392 = vmatprep.subr.mxu0 0.0
    %393 = vmatpush1.msra.mxu0 %v207
    %394 = vmatprep.subr.mxu0 0.0
    %395 = vmatpush1.msra.mxu0 %v208
    %396 = vmatprep.subr.mxu0 0.0
    %397 = vmatpush1.msra.mxu0 %v209
    %398 = vmatprep.subr.mxu0 0.0
    %399 = vmatpush1.msra.mxu0 %v210
    %400 = vmatprep.subr.mxu0 0.0
    %401 = vmatpush1.msra.mxu0 0.0
    %402 = vmatprep.subr.mxu0 0.0
    %403 = vmatpush1.msra.mxu0 0.0
    %404 = vmatprep.subr.mxu0 0.0
    %405 = vmatpush1.msra.mxu0 0.0
    %406 = vmatprep.subr.mxu0 0.0
    %407 = vmatpush1.msra.mxu0 0.0
    %408 = vmatprep.subr.mxu0 0.0
    %409 = vmatpush1.msra.mxu0 0.0
    %410 = vmatprep.subr.mxu0 0.0
    %411 = vmatpush1.msra.mxu0 0.0
    %412 = vmatprep.subr.mxu0 0.0
    %413 = vmatpush1.msra.mxu0 0.0
    %414 = vmatprep.subr.mxu0 0.0
    %415 = vmatpush1.msra.mxu0 0.0
    %416 = vmatprep.subr.mxu0 0.0
    %417 = vmatpush1.msra.mxu0 0.0
    %418 = vmatprep.subr.mxu0 0.0
    %419 = vmatpush1.msra.mxu0 0.0
    %420 = vmatprep.subr.mxu0 0.0
    %421 = vmatpush1.msra.mxu0 0.0
    %422 = vmatprep.subr.mxu0 0.0
    %423 = vmatpush1.msra.mxu0 0.0
    %424 = vmatprep.subr.mxu0 0.0
    %425 = vmatpush1.msra.mxu0 0.0
    %426 = vmatprep.subr.mxu0 0.0
    %427 = vmatpush1.msra.mxu0 0.0
    %428 = vmatprep.subr.mxu0 0.0
    %429 = vmatpush1.msra.mxu0 0.0
    %430 = vmatprep.subr.mxu0 0.0
    %431 = vmatpush1.msra.mxu0 0.0
    %432 = vmatprep.subr.mxu0 0.0
    %433 = vmatpush1.msra.mxu0 0.0
    %434 = vmatprep.subr.mxu0 0.0
    %435 = vmatpush1.msra.mxu0 0.0
    %436 = vmatprep.subr.mxu0 0.0
    %437 = vmatpush1.msra.mxu0 0.0
    %438 = vmatprep.subr.mxu0 0.0
    %439 = vmatpush1.msra.mxu0 0.0
    %440 = vmatprep.subr.mxu0 0.0
    %441 = vmatpush1.msra.mxu0 0.0
    %442 = vmatprep.subr.mxu0 0.0
    %443 = vmatpush1.msra.mxu0 0.0
    %444 = vmatprep.subr.mxu0 0.0
    %445 = vmatpush1.msra.mxu0 0.0
    %446 = vmatprep.subr.mxu0 0.0
    %447 = vmatpush1.msra.mxu0 0.0
    %448 = vmatprep.subr.mxu0 0.0
    %449 = vmatpush1.msra.mxu0 0.0
    %450 = vmatprep.subr.mxu0 0.0
    %451 = vmatpush1.msra.mxu0 0.0
    %452 = vmatprep.subr.mxu0 0.0
    %453 = vmatpush1.msra.mxu0 0.0
    %454 = vmatprep.subr.mxu0 0.0
    %455 = vmatpush1.msra.mxu0 0.0
    %456 = vmatprep.mubr.f32.mxu0 0.0
    %457 = vmatmul.mubr.f32.gmra.mrb[0].mxu0 %v390
    %v458 = vpop.f32.mrb[0].mxu0
    %v459 = vadd.f32 0.0, %v458
    %v460 = vpop.f32.mrb[0].mxu0
    %461 = vdwg.mxu0
    %v462 = vadd.f32 %v387, %v459
    %v463 = vmul.f32 %v462, 0.5
    %v464 = vtanh.pop %v463
    %v465 = vmul.f32 %v464, 0.5
    %v466 = vadd.f32 %v465, 0.5
    %v467 = vtanh.pop %v462
    %v468 = vmul.f32 %v466, 0.0
    %470 = vrot.lane.b32.xlu0 %v467, 32
    %v471 = vpop.permute.xlu0 %470
    %v473 = vmul.f32 %v466, %v471
    %475 = vrot.lane.b32.xlu0 %v473, 32
    %v476 = vpop.permute.xlu0 %475
    %v478 = vadd.f32 %v468, %v476
    %v479 = vtanh.pop %v478
    %481 = vrot.lane.b32.xlu0 %v479, 32
    %v482 = vpop.permute.xlu0 %481
    %v484 = vmul.f32 %v466, %v482
    %485 = vmatprep.subr.mxu0 0.0
    %486 = vmatpush1.msra.mxu0 %v215
    %487 = vmatprep.subr.mxu0 0.0
    %488 = vmatpush1.msra.mxu0 %v216
    %489 = vmatprep.subr.mxu0 0.0
    %490 = vmatpush1.msra.mxu0 %v217
    %491 = vmatprep.subr.mxu0 0.0
    %492 = vmatpush1.msra.mxu0 %v218
    %493 = vmatprep.subr.mxu0 0.0
    %494 = vmatpush1.msra.mxu0 0.0
    %495 = vmatprep.subr.mxu0 0.0
    %496 = vmatpush1.msra.mxu0 0.0
    %497 = vmatprep.subr.mxu0 0.0
    %498 = vmatpush1.msra.mxu0 0.0
    %499 = vmatprep.subr.mxu0 0.0
    %500 = vmatpush1.msra.mxu0 0.0
    %501 = vmatprep.subr.mxu0 0.0
    %502 = vmatpush1.msra.mxu0 0.0
    %503 = vmatprep.subr.mxu0 0.0
    %504 = vmatpush1.msra.mxu0 0.0
    %505 = vmatprep.subr.mxu0 0.0
    %506 = vmatpush1.msra.mxu0 0.0
    %507 = vmatprep.subr.mxu0 0.0
    %508 = vmatpush1.msra.mxu0 0.0
    %509 = vmatprep.subr.mxu0 0.0
    %510 = vmatpush1.msra.mxu0 0.0
    %511 = vmatprep.subr.mxu0 0.0
    %512 = vmatpush1.msra.mxu0 0.0
    %513 = vmatprep.subr.mxu0 0.0
    %514 = vmatpush1.msra.mxu0 0.0
    %515 = vmatprep.subr.mxu0 0.0
    %516 = vmatpush1.msra.mxu0 0.0
    %517 = vmatprep.subr.mxu0 0.0
    %518 = vmatpush1.msra.mxu0 0.0
    %519 = vmatprep.subr.mxu0 0.0
    %520 = vmatpush1.msra.mxu0 0.0
    %521 = vmatprep.subr.mxu0 0.0
    %522 = vmatpush1.msra.mxu0 0.0
    %523 = vmatprep.subr.mxu0 0.0
    %524 = vmatpush1.msra.mxu0 0.0
    %525 = vmatprep.subr.mxu0 0.0
    %526 = vmatpush1.msra.mxu0 0.0
    %527 = vmatprep.subr.mxu0 0.0
    %528 = vmatpush1.msra.mxu0 0.0
    %529 = vmatprep.subr.mxu0 0.0
    %530 = vmatpush1.msra.mxu0 0.0
    %531 = vmatprep.subr.mxu0 0.0
    %532 = vmatpush1.msra.mxu0 0.0
    %533 = vmatprep.subr.mxu0 0.0
    %534 = vmatpush1.msra.mxu0 0.0
    %535 = vmatprep.subr.mxu0 0.0
    %536 = vmatpush1.msra.mxu0 0.0
    %537 = vmatprep.subr.mxu0 0.0
    %538 = vmatpush1.msra.mxu0 0.0
    %539 = vmatprep.subr.mxu0 0.0
    %540 = vmatpush1.msra.mxu0 0.0
    %541 = vmatprep.subr.mxu0 0.0
    %542 = vmatpush1.msra.mxu0 0.0
    %543 = vmatprep.subr.mxu0 0.0
    %544 = vmatpush1.msra.mxu0 0.0
    %545 = vmatprep.subr.mxu0 0.0
    %546 = vmatpush1.msra.mxu0 0.0
    %547 = vmatprep.subr.mxu0 0.0
    %548 = vmatpush1.msra.mxu0 0.0
    %549 = vmatprep.mubr.f32.mxu0 0.0
    %550 = vmatmul.mubr.f32.gmra.mrb[0].mxu0 %v390
    %v551 = vpop.f32.mrb[0].mxu0
    %v552 = vadd.f32 0.0, %v551
    %v553 = vpop.f32.mrb[0].mxu0
    %554 = vdwg.mxu0
    %556 = vrot.lane.b32.xlu0 %v484, 64
    %v557 = vpop.permute.xlu0 %556
    %v558 = vsel %vm388, %v557, 0
    %560 = vmatprep.subr.mxu0 0.0
    %561 = vmatpush1.msra.mxu0 %v211
    %562 = vmatprep.subr.mxu0 0.0
    %563 = vmatpush1.msra.mxu0 %v212
    %564 = vmatprep.subr.mxu0 0.0
    %565 = vmatpush1.msra.mxu0 %v213
    %566 = vmatprep.subr.mxu0 0.0
    %567 = vmatpush1.msra.mxu0 %v214
    %568 = vmatprep.subr.mxu0 0.0
    %569 = vmatpush1.msra.mxu0 0.0
    %570 = vmatprep.subr.mxu0 0.0
    %571 = vmatpush1.msra.mxu0 0.0
    %572 = vmatprep.subr.mxu0 0.0
    %573 = vmatpush1.msra.mxu0 0.0
    %574 = vmatprep.subr.mxu0 0.0
    %575 = vmatpush1.msra.mxu0 0.0
    %576 = vmatprep.subr.mxu0 0.0
    %577 = vmatpush1.msra.mxu0 0.0
    %578 = vmatprep.subr.mxu0 0.0
    %579 = vmatpush1.msra.mxu0 0.0
    %580 = vmatprep.subr.mxu0 0.0
    %581 = vmatpush1.msra.mxu0 0.0
    %582 = vmatprep.subr.mxu0 0.0
    %583 = vmatpush1.msra.mxu0 0.0
    %584 = vmatprep.subr.mxu0 0.0
    %585 = vmatpush1.msra.mxu0 0.0
    %586 = vmatprep.subr.mxu0 0.0
    %587 = vmatpush1.msra.mxu0 0.0
    %588 = vmatprep.subr.mxu0 0.0
    %589 = vmatpush1.msra.mxu0 0.0
    %590 = vmatprep.subr.mxu0 0.0
    %591 = vmatpush1.msra.mxu0 0.0
    %592 = vmatprep.subr.mxu0 0.0
    %593 = vmatpush1.msra.mxu0 0.0
    %594 = vmatprep.subr.mxu0 0.0
    %595 = vmatpush1.msra.mxu0 0.0
    %596 = vmatprep.subr.mxu0 0.0
    %597 = vmatpush1.msra.mxu0 0.0
    %598 = vmatprep.subr.mxu0 0.0
    %599 = vmatpush1.msra.mxu0 0.0
    %600 = vmatprep.subr.mxu0 0.0
    %601 = vmatpush1.msra.mxu0 0.0
    %602 = vmatprep.subr.mxu0 0.0
    %603 = vmatpush1.msra.mxu0 0.0
    %604 = vmatprep.subr.mxu0 0.0
    %605 = vmatpush1.msra.mxu0 0.0
    %606 = vmatprep.subr.mxu0 0.0
    %607 = vmatpush1.msra.mxu0 0.0
    %608 = vmatprep.subr.mxu0 0.0
    %609 = vmatpush1.msra.mxu0 0.0
    %610 = vmatprep.subr.mxu0 0.0
    %611 = vmatpush1.msra.mxu0 0.0
    %612 = vmatprep.subr.mxu0 0.0
    %613 = vmatpush1.msra.mxu0 0.0
    %614 = vmatprep.subr.mxu0 0.0
    %615 = vmatpush1.msra.mxu0 0.0
    %616 = vmatprep.subr.mxu0 0.0
    %617 = vmatpush1.msra.mxu0 0.0
    %618 = vmatprep.subr.mxu0 0.0
    %619 = vmatpush1.msra.mxu0 0.0
    %620 = vmatprep.subr.mxu0 0.0
    %621 = vmatpush1.msra.mxu0 0.0
    %622 = vmatprep.subr.mxu0 0.0
    %623 = vmatpush1.msra.mxu0 0.0
    %624 = vmatprep.mubr.f32.mxu0 0.0
    %625 = vmatmul.mubr.f32.gmra.mrb[0].mxu0 %v558
    %v626 = vpop.f32.mrb[0].mxu0
    %v627 = vadd.f32 %v552, %v626
    %v628 = vpop.f32.mrb[0].mxu0
    %629 = vdwg.mxu0
    %v630 = vadd.f32 %v627, %v231
    %v631 = vmul.f32 %v630, 0.5
    %v632 = vtanh.pop %v631
    %v633 = vmul.f32 %v632, 0.5
    %v634 = vadd.f32 %v633, 0.5
    %v635 = vtanh.pop %v630
    %v636 = vmul.f32 %v634, 0.0
    %638 = vrot.lane.b32.xlu0 %v635, 32
    %v639 = vpop.permute.xlu0 %638
    %v641 = vmul.f32 %v634, %v639
    %643 = vrot.lane.b32.xlu0 %v641, 32
    %v644 = vpop.permute.xlu0 %643
    %v646 = vadd.f32 %v636, %v644
    %v647 = vtanh.pop %v646
    %649 = vrot.lane.b32.xlu0 %v647, 32
    %v650 = vpop.permute.xlu0 %649
    %v652 = vmul.f32 %v634, %v650
    %s653 = scalar_lea.vmem [#allocation2], 2
    %v654 = vld [vmem:[%s653] sm:$0x3]
    %s655 = scalar_lea.vmem [#allocation5], 2
    %v656 = vld [vmem:[%s655] sm:$0x3]
    %v658 = vsel %vm235, %v656, 0
    %660 = vmatprep.subr.mxu0 0.0
    %661 = vmatpush1.msra.mxu0 %v206
    %662 = vmatprep.subr.mxu0 0.0
    %663 = vmatpush1.msra.mxu0 0.0
    %664 = vmatprep.subr.mxu0 0.0
    %665 = vmatpush1.msra.mxu0 0.0
    %666 = vmatprep.subr.mxu0 0.0
    %667 = vmatpush1.msra.mxu0 0.0
    %668 = vmatprep.subr.mxu0 0.0
    %669 = vmatpush1.msra.mxu0 0.0
    %670 = vmatprep.subr.mxu0 0.0
    %671 = vmatpush1.msra.mxu0 0.0
    %672 = vmatprep.subr.mxu0 0.0
    %673 = vmatpush1.msra.mxu0 0.0
    %674 = vmatprep.subr.mxu0 0.0
    %675 = vmatpush1.msra.mxu0 0.0
    %676 = vmatprep.subr.mxu0 0.0
    %677 = vmatpush1.msra.mxu0 0.0
    %678 = vmatprep.subr.mxu0 0.0
    %679 = vmatpush1.msra.mxu0 0.0
    %680 = vmatprep.subr.mxu0 0.0
    %681 = vmatpush1.msra.mxu0 0.0
    %682 = vmatprep.subr.mxu0 0.0
    %683 = vmatpush1.msra.mxu0 0.0
    %684 = vmatprep.subr.mxu0 0.0
    %685 = vmatpush1.msra.mxu0 0.0
    %686 = vmatprep.subr.mxu0 0.0
    %687 = vmatpush1.msra.mxu0 0.0
    %688 = vmatprep.subr.mxu0 0.0
    %689 = vmatpush1.msra.mxu0 0.0
    %690 = vmatprep.subr.mxu0 0.0
    %691 = vmatpush1.msra.mxu0 0.0
    %692 = vmatprep.subr.mxu0 0.0
    %693 = vmatpush1.msra.mxu0 0.0
    %694 = vmatprep.subr.mxu0 0.0
    %695 = vmatpush1.msra.mxu0 0.0
    %696 = vmatprep.subr.mxu0 0.0
    %697 = vmatpush1.msra.mxu0 0.0
    %698 = vmatprep.subr.mxu0 0.0
    %699 = vmatpush1.msra.mxu0 0.0
    %700 = vmatprep.subr.mxu0 0.0
    %701 = vmatpush1.msra.mxu0 0.0
    %702 = vmatprep.subr.mxu0 0.0
    %703 = vmatpush1.msra.mxu0 0.0
    %704 = vmatprep.subr.mxu0 0.0
    %705 = vmatpush1.msra.mxu0 0.0
    %706 = vmatprep.subr.mxu0 0.0
    %707 = vmatpush1.msra.mxu0 0.0
    %708 = vmatprep.subr.mxu0 0.0
    %709 = vmatpush1.msra.mxu0 0.0
    %710 = vmatprep.subr.mxu0 0.0
    %711 = vmatpush1.msra.mxu0 0.0
    %712 = vmatprep.subr.mxu0 0.0
    %713 = vmatpush1.msra.mxu0 0.0
    %714 = vmatprep.subr.mxu0 0.0
    %715 = vmatpush1.msra.mxu0 0.0
    %716 = vmatprep.subr.mxu0 0.0
    %717 = vmatpush1.msra.mxu0 0.0
    %718 = vmatprep.subr.mxu0 0.0
    %719 = vmatpush1.msra.mxu0 0.0
    %720 = vmatprep.subr.mxu0 0.0
    %721 = vmatpush1.msra.mxu0 0.0
    %722 = vmatprep.subr.mxu0 0.0
    %723 = vmatpush1.msra.mxu0 0.0
    %724 = vmatprep.mubr.f32.mxu0 0.0
    %725 = vmatmul.mubr.f32.gmra.mrb[0].mxu0 %v658
    %v726 = vpop.f32.mrb[0].mxu0
    %v727 = vadd.f32 0.0, %v726
    %v728 = vpop.f32.mrb[0].mxu0
    %729 = vdwg.mxu0
    %v731 = vsel %vm309, %v654, 0
    %733 = vmatprep.subr.mxu0 0.0
    %734 = vmatpush1.msra.mxu0 %v204
    %735 = vmatprep.subr.mxu0 0.0
    %736 = vmatpush1.msra.mxu0 %v315
    %737 = vmatprep.subr.mxu0 0.0
    %738 = vmatpush1.msra.mxu0 0.0
    %739 = vmatprep.subr.mxu0 0.0
    %740 = vmatpush1.msra.mxu0 0.0
    %741 = vmatprep.subr.mxu0 0.0
    %742 = vmatpush1.msra.mxu0 0.0
    %743 = vmatprep.subr.mxu0 0.0
    %744 = vmatpush1.msra.mxu0 0.0
    %745 = vmatprep.subr.mxu0 0.0
    %746 = vmatpush1.msra.mxu0 0.0
    %747 = vmatprep.subr.mxu0 0.0
    %748 = vmatpush1.msra.mxu0 0.0
    %749 = vmatprep.subr.mxu0 0.0
    %750 = vmatpush1.msra.mxu0 0.0
    %751 = vmatprep.subr.mxu0 0.0
    %752 = vmatpush1.msra.mxu0 0.0
    %753 = vmatprep.subr.mxu0 0.0
    %754 = vmatpush1.msra.mxu0 0.0
    %755 = vmatprep.subr.mxu0 0.0
    %756 = vmatpush1.msra.mxu0 0.0
    %757 = vmatprep.subr.mxu0 0.0
    %758 = vmatpush1.msra.mxu0 0.0
    %759 = vmatprep.subr.mxu0 0.0
    %760 = vmatpush1.msra.mxu0 0.0
    %761 = vmatprep.subr.mxu0 0.0
    %762 = vmatpush1.msra.mxu0 0.0
    %763 = vmatprep.subr.mxu0 0.0
    %764 = vmatpush1.msra.mxu0 0.0
    %765 = vmatprep.subr.mxu0 0.0
    %766 = vmatpush1.msra.mxu0 0.0
    %767 = vmatprep.subr.mxu0 0.0
    %768 = vmatpush1.msra.mxu0 0.0
    %769 = vmatprep.subr.mxu0 0.0
    %770 = vmatpush1.msra.mxu0 0.0
    %771 = vmatprep.subr.mxu0 0.0
    %772 = vmatpush1.msra.mxu0 0.0
    %773 = vmatprep.subr.mxu0 0.0
    %774 = vmatpush1.msra.mxu0 0.0
    %775 = vmatprep.subr.mxu0 0.0
    %776 = vmatpush1.msra.mxu0 0.0
    %777 = vmatprep.subr.mxu0 0.0
    %778 = vmatpush1.msra.mxu0 0.0
    %779 = vmatprep.subr.mxu0 0.0
    %780 = vmatpush1.msra.mxu0 0.0
    %781 = vmatprep.subr.mxu0 0.0
    %782 = vmatpush1.msra.mxu0 0.0
    %783 = vmatprep.subr.mxu0 0.0
    %784 = vmatpush1.msra.mxu0 0.0
    %785 = vmatprep.subr.mxu0 0.0
    %786 = vmatpush1.msra.mxu0 0.0
    %787 = vmatprep.subr.mxu0 0.0
    %788 = vmatpush1.msra.mxu0 0.0
    %789 = vmatprep.subr.mxu0 0.0
    %790 = vmatpush1.msra.mxu0 0.0
    %791 = vmatprep.subr.mxu0 0.0
    %792 = vmatpush1.msra.mxu0 0.0
    %793 = vmatprep.subr.mxu0 0.0
    %794 = vmatpush1.msra.mxu0 0.0
    %795 = vmatprep.subr.mxu0 0.0
    %796 = vmatpush1.msra.mxu0 0.0
    %797 = vmatprep.mubr.f32.mxu0 0.0
    %798 = vmatmul.mubr.f32.gmra.mrb[0].mxu0 %v731
    %v799 = vpop.f32.mrb[0].mxu0
    %v800 = vadd.f32 %v727, %v799
    %v801 = vpop.f32.mrb[0].mxu0
    %802 = vdwg.mxu0
    %v803 = vadd.f32 %v800, %v224
    %804 = vmatprep.subr.mxu0 0.0
    %805 = vmatpush1.msra.mxu0 %v207
    %806 = vmatprep.subr.mxu0 0.0
    %807 = vmatpush1.msra.mxu0 %v208
    %808 = vmatprep.subr.mxu0 0.0
    %809 = vmatpush1.msra.mxu0 %v209
    %810 = vmatprep.subr.mxu0 0.0
    %811 = vmatpush1.msra.mxu0 %v210
    %812 = vmatprep.subr.mxu0 0.0
    %813 = vmatpush1.msra.mxu0 0.0
    %814 = vmatprep.subr.mxu0 0.0
    %815 = vmatpush1.msra.mxu0 0.0
    %816 = vmatprep.subr.mxu0 0.0
    %817 = vmatpush1.msra.mxu0 0.0
    %818 = vmatprep.subr.mxu0 0.0
    %819 = vmatpush1.msra.mxu0 0.0
    %820 = vmatprep.subr.mxu0 0.0
    %821 = vmatpush1.msra.mxu0 0.0
    %822 = vmatprep.subr.mxu0 0.0
    %823 = vmatpush1.msra.mxu0 0.0
    %824 = vmatprep.subr.mxu0 0.0
    %825 = vmatpush1.msra.mxu0 0.0
    %826 = vmatprep.subr.mxu0 0.0
    %827 = vmatpush1.msra.mxu0 0.0
    %828 = vmatprep.subr.mxu0 0.0
    %829 = vmatpush1.msra.mxu0 0.0
    %830 = vmatprep.subr.mxu0 0.0
    %831 = vmatpush1.msra.mxu0 0.0
    %832 = vmatprep.subr.mxu0 0.0
    %833 = vmatpush1.msra.mxu0 0.0
    %834 = vmatprep.subr.mxu0 0.0
    %835 = vmatpush1.msra.mxu0 0.0
    %836 = vmatprep.subr.mxu0 0.0
    %837 = vmatpush1.msra.mxu0 0.0
    %838 = vmatprep.subr.mxu0 0.0
    %839 = vmatpush1.msra.mxu0 0.0
    %840 = vmatprep.subr.mxu0 0.0
    %841 = vmatpush1.msra.mxu0 0.0
    %842 = vmatprep.subr.mxu0 0.0
    %843 = vmatpush1.msra.mxu0 0.0
    %844 = vmatprep.subr.mxu0 0.0
    %845 = vmatpush1.msra.mxu0 0.0
    %846 = vmatprep.subr.mxu0 0.0
    %847 = vmatpush1.msra.mxu0 0.0
    %848 = vmatprep.subr.mxu0 0.0
    %849 = vmatpush1.msra.mxu0 0.0
    %850 = vmatprep.subr.mxu0 0.0
    %851 = vmatpush1.msra.mxu0 0.0
    %852 = vmatprep.subr.mxu0 0.0
    %853 = vmatpush1.msra.mxu0 0.0
    %854 = vmatprep.subr.mxu0 0.0
    %855 = vmatpush1.msra.mxu0 0.0
    %856 = vmatprep.subr.mxu0 0.0
    %857 = vmatpush1.msra.mxu0 0.0
    %858 = vmatprep.subr.mxu0 0.0
    %859 = vmatpush1.msra.mxu0 0.0
    %860 = vmatprep.subr.mxu0 0.0
    %861 = vmatpush1.msra.mxu0 0.0
    %862 = vmatprep.subr.mxu0 0.0
    %863 = vmatpush1.msra.mxu0 0.0
    %864 = vmatprep.subr.mxu0 0.0
    %865 = vmatpush1.msra.mxu0 0.0
    %866 = vmatprep.subr.mxu0 0.0
    %867 = vmatpush1.msra.mxu0 0.0
    %868 = vmatprep.mubr.f32.mxu0 0.0
    %869 = vmatmul.mubr.f32.gmra.mrb[0].mxu0 %v558
    %v870 = vpop.f32.mrb[0].mxu0
    %v871 = vadd.f32 0.0, %v870
    %v872 = vpop.f32.mrb[0].mxu0
    %873 = vdwg.mxu0
    %v874 = vadd.f32 %v803, %v871
    %v875 = vmul.f32 %v874, 0.5
    %v876 = vtanh.pop %v875
    %v877 = vmul.f32 %v876, 0.5
    %v878 = vadd.f32 %v877, 0.5
    %v879 = vtanh.pop %v874
    %v880 = vmul.f32 %v878, %v478
    %882 = vrot.lane.b32.xlu0 %v879, 32
    %v883 = vpop.permute.xlu0 %882
    %v885 = vmul.f32 %v878, %v883
    %887 = vrot.lane.b32.xlu0 %v885, 32
    %v888 = vpop.permute.xlu0 %887
    %v890 = vadd.f32 %v880, %v888
    %v891 = vtanh.pop %v890
    %893 = vrot.lane.b32.xlu0 %v891, 32
    %v894 = vpop.permute.xlu0 %893
    %v896 = vmul.f32 %v878, %v894
    %898 = vrot.lane.b32.xlu0 %v652, 64
    %v899 = vpop.permute.xlu0 %898
    %v900 = vsel %vm388, %v899, 0
    %902 = vmatprep.subr.mxu0 0.0
    %903 = vmatpush1.msra.mxu0 %v215
    %904 = vmatprep.subr.mxu0 0.0
    %905 = vmatpush1.msra.mxu0 %v216
    %906 = vmatprep.subr.mxu0 0.0
    %907 = vmatpush1.msra.mxu0 %v217
    %908 = vmatprep.subr.mxu0 0.0
    %909 = vmatpush1.msra.mxu0 %v218
    %910 = vmatprep.subr.mxu0 0.0
    %911 = vmatpush1.msra.mxu0 0.0
    %912 = vmatprep.subr.mxu0 0.0
    %913 = vmatpush1.msra.mxu0 0.0
    %914 = vmatprep.subr.mxu0 0.0
    %915 = vmatpush1.msra.mxu0 0.0
    %916 = vmatprep.subr.mxu0 0.0
    %917 = vmatpush1.msra.mxu0 0.0
    %918 = vmatprep.subr.mxu0 0.0
    %919 = vmatpush1.msra.mxu0 0.0
    %920 = vmatprep.subr.mxu0 0.0
    %921 = vmatpush1.msra.mxu0 0.0
    %922 = vmatprep.subr.mxu0 0.0
    %923 = vmatpush1.msra.mxu0 0.0
    %924 = vmatprep.subr.mxu0 0.0
    %925 = vmatpush1.msra.mxu0 0.0
    %926 = vmatprep.subr.mxu0 0.0
    %927 = vmatpush1.msra.mxu0 0.0
    %928 = vmatprep.subr.mxu0 0.0
    %929 = vmatpush1.msra.mxu0 0.0
    %930 = vmatprep.subr.mxu0 0.0
    %931 = vmatpush1.msra.mxu0 0.0
    %932 = vmatprep.subr.mxu0 0.0
    %933 = vmatpush1.msra.mxu0 0.0
    %934 = vmatprep.subr.mxu0 0.0
    %935 = vmatpush1.msra.mxu0 0.0
    %936 = vmatprep.subr.mxu0 0.0
    %937 = vmatpush1.msra.mxu0 0.0
    %938 = vmatprep.subr.mxu0 0.0
    %939 = vmatpush1.msra.mxu0 0.0
    %940 = vmatprep.subr.mxu0 0.0
    %941 = vmatpush1.msra.mxu0 0.0
    %942 = vmatprep.subr.mxu0 0.0
    %943 = vmatpush1.msra.mxu0 0.0
    %944 = vmatprep.subr.mxu0 0.0
    %945 = vmatpush1.msra.mxu0 0.0
    %946 = vmatprep.subr.mxu0 0.0
    %947 = vmatpush1.msra.mxu0 0.0
    %948 = vmatprep.subr.mxu0 0.0
    %949 = vmatpush1.msra.mxu0 0.0
    %950 = vmatprep.subr.mxu0 0.0
    %951 = vmatpush1.msra.mxu0 0.0
    %952 = vmatprep.subr.mxu0 0.0
    %953 = vmatpush1.msra.mxu0 0.0
    %954 = vmatprep.subr.mxu0 0.0
    %955 = vmatpush1.msra.mxu0 0.0
    %956 = vmatprep.subr.mxu0 0.0
    %957 = vmatpush1.msra.mxu0 0.0
    %958 = vmatprep.subr.mxu0 0.0
    %959 = vmatpush1.msra.mxu0 0.0
    %960 = vmatprep.subr.mxu0 0.0
    %961 = vmatpush1.msra.mxu0 0.0
    %962 = vmatprep.subr.mxu0 0.0
    %963 = vmatpush1.msra.mxu0 0.0
    %964 = vmatprep.subr.mxu0 0.0
    %965 = vmatpush1.msra.mxu0 0.0
    %966 = vmatprep.mubr.f32.mxu0 0.0
    %967 = vmatmul.mubr.f32.gmra.mrb[0].mxu0 %v900
    %v968 = vpop.f32.mrb[0].mxu0
    %v969 = vadd.f32 0.0, %v968
    %v970 = vpop.f32.mrb[0].mxu0
    %971 = vdwg.mxu0
    %973 = vrot.lane.b32.xlu0 %v896, 64
    %v974 = vpop.permute.xlu0 %973
    %v975 = vsel %vm388, %v974, 0
    %977 = vmatprep.subr.mxu0 0.0
    %978 = vmatpush1.msra.mxu0 %v211
    %979 = vmatprep.subr.mxu0 0.0
    %980 = vmatpush1.msra.mxu0 %v212
    %981 = vmatprep.subr.mxu0 0.0
    %982 = vmatpush1.msra.mxu0 %v213
    %983 = vmatprep.subr.mxu0 0.0
    %984 = vmatpush1.msra.mxu0 %v214
    %985 = vmatprep.subr.mxu0 0.0
    %986 = vmatpush1.msra.mxu0 0.0
    %987 = vmatprep.subr.mxu0 0.0
    %988 = vmatpush1.msra.mxu0 0.0
    %989 = vmatprep.subr.mxu0 0.0
    %990 = vmatpush1.msra.mxu0 0.0
    %991 = vmatprep.subr.mxu0 0.0
    %992 = vmatpush1.msra.mxu0 0.0
    %993 = vmatprep.subr.mxu0 0.0
    %994 = vmatpush1.msra.mxu0 0.0
    %995 = vmatprep.subr.mxu0 0.0
    %996 = vmatpush1.msra.mxu0 0.0
    %997 = vmatprep.subr.mxu0 0.0
    %998 = vmatpush1.msra.mxu0 0.0
    %999 = vmatprep.subr.mxu0 0.0
    %1000 = vmatpush1.msra.mxu0 0.0
    %1001 = vmatprep.subr.mxu0 0.0
    %1002 = vmatpush1.msra.mxu0 0.0
    %1003 = vmatprep.subr.mxu0 0.0
    %1004 = vmatpush1.msra.mxu0 0.0
    %1005 = vmatprep.subr.mxu0 0.0
    %1006 = vmatpush1.msra.mxu0 0.0
    %1007 = vmatprep.subr.mxu0 0.0
    %1008 = vmatpush1.msra.mxu0 0.0
    %1009 = vmatprep.subr.mxu0 0.0
    %1010 = vmatpush1.msra.mxu0 0.0
    %1011 = vmatprep.subr.mxu0 0.0
    %1012 = vmatpush1.msra.mxu0 0.0
    %1013 = vmatprep.subr.mxu0 0.0
    %1014 = vmatpush1.msra.mxu0 0.0
    %1015 = vmatprep.subr.mxu0 0.0
    %1016 = vmatpush1.msra.mxu0 0.0
    %1017 = vmatprep.subr.mxu0 0.0
    %1018 = vmatpush1.msra.mxu0 0.0
    %1019 = vmatprep.subr.mxu0 0.0
    %1020 = vmatpush1.msra.mxu0 0.0
    %1021 = vmatprep.subr.mxu0 0.0
    %1022 = vmatpush1.msra.mxu0 0.0
    %1023 = vmatprep.subr.mxu0 0.0
    %1024 = vmatpush1.msra.mxu0 0.0
    %1025 = vmatprep.subr.mxu0 0.0
    %1026 = vmatpush1.msra.mxu0 0.0
    %1027 = vmatprep.subr.mxu0 0.0
    %1028 = vmatpush1.msra.mxu0 0.0
    %1029 = vmatprep.subr.mxu0 0.0
    %1030 = vmatpush1.msra.mxu0 0.0
    %1031 = vmatprep.subr.mxu0 0.0
    %1032 = vmatpush1.msra.mxu0 0.0
    %1033 = vmatprep.subr.mxu0 0.0
    %1034 = vmatpush1.msra.mxu0 0.0
    %1035 = vmatprep.subr.mxu0 0.0
    %1036 = vmatpush1.msra.mxu0 0.0
    %1037 = vmatprep.subr.mxu0 0.0
    %1038 = vmatpush1.msra.mxu0 0.0
    %1039 = vmatprep.subr.mxu0 0.0
    %1040 = vmatpush1.msra.mxu0 0.0
    %1041 = vmatprep.mubr.f32.mxu0 0.0
    %1042 = vmatmul.mubr.f32.gmra.mrb[0].mxu0 %v975
    %v1043 = vpop.f32.mrb[0].mxu0
    %v1044 = vadd.f32 %v969, %v1043
    %v1045 = vpop.f32.mrb[0].mxu0
    %1046 = vdwg.mxu0
    %v1047 = vadd.f32 %v1044, %v231
    %v1048 = vmul.f32 %v1047, 0.5
    %v1049 = vtanh.pop %v1048
    %v1050 = vmul.f32 %v1049, 0.5
    %v1051 = vadd.f32 %v1050, 0.5
    %v1052 = vtanh.pop %v1047
    %v1053 = vmul.f32 %v1051, %v646
    %1055 = vrot.lane.b32.xlu0 %v1052, 32
    %v1056 = vpop.permute.xlu0 %1055
    %v1058 = vmul.f32 %v1051, %v1056
    %1060 = vrot.lane.b32.xlu0 %v1058, 32
    %v1061 = vpop.permute.xlu0 %1060
    %v1063 = vadd.f32 %v1053, %v1061
    %v1064 = vtanh.pop %v1063
    %1066 = vrot.lane.b32.xlu0 %v1064, 32
    %v1067 = vpop.permute.xlu0 %1066
    %v1069 = vmul.f32 %v1051, %v1067
    %s1070 = scalar_lea.vmem [#allocation2], 4
    %v1071 = vld [vmem:[%s1070] sm:$0x3]
    %s1072 = scalar_lea.vmem [#allocation5], 4
    %v1073 = vld [vmem:[%s1072] sm:$0x3]
    %v1075 = vsel %vm235, %v1073, 0
    %1077 = vmatprep.subr.mxu0 0.0
    %1078 = vmatpush1.msra.mxu0 %v206
    %1079 = vmatprep.subr.mxu0 0.0
    %1080 = vmatpush1.msra.mxu0 0.0
    %1081 = vmatprep.subr.mxu0 0.0
    %1082 = vmatpush1.msra.mxu0 0.0
    %1083 = vmatprep.subr.mxu0 0.0
    %1084 = vmatpush1.msra.mxu0 0.0
    %1085 = vmatprep.subr.mxu0 0.0
    %1086 = vmatpush1.msra.mxu0 0.0
    %1087 = vmatprep.subr.mxu0 0.0
    %1088 = vmatpush1.msra.mxu0 0.0
    %1089 = vmatprep.subr.mxu0 0.0
    %1090 = vmatpush1.msra.mxu0 0.0
    %1091 = vmatprep.subr.mxu0 0.0
    %1092 = vmatpush1.msra.mxu0 0.0
    %1093 = vmatprep.subr.mxu0 0.0
    %1094 = vmatpush1.msra.mxu0 0.0
    %1095 = vmatprep.subr.mxu0 0.0
    %1096 = vmatpush1.msra.mxu0 0.0
    %1097 = vmatprep.subr.mxu0 0.0
    %1098 = vmatpush1.msra.mxu0 0.0
    %1099 = vmatprep.subr.mxu0 0.0
    %1100 = vmatpush1.msra.mxu0 0.0
    %1101 = vmatprep.subr.mxu0 0.0
    %1102 = vmatpush1.msra.mxu0 0.0
    %1103 = vmatprep.subr.mxu0 0.0
    %1104 = vmatpush1.msra.mxu0 0.0
    %1105 = vmatprep.subr.mxu0 0.0
    %1106 = vmatpush1.msra.mxu0 0.0
    %1107 = vmatprep.subr.mxu0 0.0
    %1108 = vmatpush1.msra.mxu0 0.0
    %1109 = vmatprep.subr.mxu0 0.0
    %1110 = vmatpush1.msra.mxu0 0.0
    %1111 = vmatprep.subr.mxu0 0.0
    %1112 = vmatpush1.msra.mxu0 0.0
    %1113 = vmatprep.subr.mxu0 0.0
    %1114 = vmatpush1.msra.mxu0 0.0
    %1115 = vmatprep.subr.mxu0 0.0
    %1116 = vmatpush1.msra.mxu0 0.0
    %1117 = vmatprep.subr.mxu0 0.0
    %1118 = vmatpush1.msra.mxu0 0.0
    %1119 = vmatprep.subr.mxu0 0.0
    %1120 = vmatpush1.msra.mxu0 0.0
    %1121 = vmatprep.subr.mxu0 0.0
    %1122 = vmatpush1.msra.mxu0 0.0
    %1123 = vmatprep.subr.mxu0 0.0
    %1124 = vmatpush1.msra.mxu0 0.0
    %1125 = vmatprep.subr.mxu0 0.0
    %1126 = vmatpush1.msra.mxu0 0.0
    %1127 = vmatprep.subr.mxu0 0.0
    %1128 = vmatpush1.msra.mxu0 0.0
    %1129 = vmatprep.subr.mxu0 0.0
    %1130 = vmatpush1.msra.mxu0 0.0
    %1131 = vmatprep.subr.mxu0 0.0
    %1132 = vmatpush1.msra.mxu0 0.0
    %1133 = vmatprep.subr.mxu0 0.0
    %1134 = vmatpush1.msra.mxu0 0.0
    %1135 = vmatprep.subr.mxu0 0.0
    %1136 = vmatpush1.msra.mxu0 0.0
    %1137 = vmatprep.subr.mxu0 0.0
    %1138 = vmatpush1.msra.mxu0 0.0
    %1139 = vmatprep.subr.mxu0 0.0
    %1140 = vmatpush1.msra.mxu0 0.0
    %1141 = vmatprep.mubr.f32.mxu0 0.0
    %1142 = vmatmul.mubr.f32.gmra.mrb[0].mxu0 %v1075
    %v1143 = vpop.f32.mrb[0].mxu0
    %v1144 = vadd.f32 0.0, %v1143
    %v1145 = vpop.f32.mrb[0].mxu0
    %1146 = vdwg.mxu0
    %v1148 = vsel %vm309, %v1071, 0
    %1150 = vmatprep.subr.mxu0 0.0
    %1151 = vmatpush1.msra.mxu0 %v204
    %1152 = vmatprep.subr.mxu0 0.0
    %1153 = vmatpush1.msra.mxu0 %v315
    %1154 = vmatprep.subr.mxu0 0.0
    %1155 = vmatpush1.msra.mxu0 0.0
    %1156 = vmatprep.subr.mxu0 0.0
    %1157 = vmatpush1.msra.mxu0 0.0
    %1158 = vmatprep.subr.mxu0 0.0
    %1159 = vmatpush1.msra.mxu0 0.0
    %1160 = vmatprep.subr.mxu0 0.0
    %1161 = vmatpush1.msra.mxu0 0.0
    %1162 = vmatprep.subr.mxu0 0.0
    %1163 = vmatpush1.msra.mxu0 0.0
    %1164 = vmatprep.subr.mxu0 0.0
    %1165 = vmatpush1.msra.mxu0 0.0
    %1166 = vmatprep.subr.mxu0 0.0
    %1167 = vmatpush1.msra.mxu0 0.0
    %1168 = vmatprep.subr.mxu0 0.0
    %1169 = vmatpush1.msra.mxu0 0.0
    %1170 = vmatprep.subr.mxu0 0.0
    %1171 = vmatpush1.msra.mxu0 0.0
    %1172 = vmatprep.subr.mxu0 0.0
    %1173 = vmatpush1.msra.mxu0 0.0
    %1174 = vmatprep.subr.mxu0 0.0
    %1175 = vmatpush1.msra.mxu0 0.0
    %1176 = vmatprep.subr.mxu0 0.0
    %1177 = vmatpush1.msra.mxu0 0.0
    %1178 = vmatprep.subr.mxu0 0.0
    %1179 = vmatpush1.msra.mxu0 0.0
    %1180 = vmatprep.subr.mxu0 0.0
    %1181 = vmatpush1.msra.mxu0 0.0
    %1182 = vmatprep.subr.mxu0 0.0
    %1183 = vmatpush1.msra.mxu0 0.0
    %1184 = vmatprep.subr.mxu0 0.0
    %1185 = vmatpush1.msra.mxu0 0.0
    %1186 = vmatprep.subr.mxu0 0.0
    %1187 = vmatpush1.msra.mxu0 0.0
    %1188 = vmatprep.subr.mxu0 0.0
    %1189 = vmatpush1.msra.mxu0 0.0
    %1190 = vmatprep.subr.mxu0 0.0
    %1191 = vmatpush1.msra.mxu0 0.0
    %1192 = vmatprep.subr.mxu0 0.0
    %1193 = vmatpush1.msra.mxu0 0.0
    %1194 = vmatprep.subr.mxu0 0.0
    %1195 = vmatpush1.msra.mxu0 0.0
    %1196 = vmatprep.subr.mxu0 0.0
    %1197 = vmatpush1.msra.mxu0 0.0
    %1198 = vmatprep.subr.mxu0 0.0
    %1199 = vmatpush1.msra.mxu0 0.0
    %1200 = vmatprep.subr.mxu0 0.0
    %1201 = vmatpush1.msra.mxu0 0.0
    %1202 = vmatprep.subr.mxu0 0.0
    %1203 = vmatpush1.msra.mxu0 0.0
    %1204 = vmatprep.subr.mxu0 0.0
    %1205 = vmatpush1.msra.mxu0 0.0
    %1206 = vmatprep.subr.mxu0 0.0
    %1207 = vmatpush1.msra.mxu0 0.0
    %1208 = vmatprep.subr.mxu0 0.0
    %1209 = vmatpush1.msra.mxu0 0.0
    %1210 = vmatprep.subr.mxu0 0.0
    %1211 = vmatpush1.msra.mxu0 0.0
    %1212 = vmatprep.subr.mxu0 0.0
    %1213 = vmatpush1.msra.mxu0 0.0
    %1214 = vmatprep.mubr.f32.mxu0 0.0
    %1215 = vmatmul.mubr.f32.gmra.mrb[0].mxu0 %v1148
    %v1216 = vpop.f32.mrb[0].mxu0
    %v1217 = vadd.f32 %v1144, %v1216
    %v1218 = vpop.f32.mrb[0].mxu0
    %1219 = vdwg.mxu0
    %v1220 = vadd.f32 %v1217, %v224
    %1221 = vmatprep.subr.mxu0 0.0
    %1222 = vmatpush1.msra.mxu0 %v207
    %1223 = vmatprep.subr.mxu0 0.0
    %1224 = vmatpush1.msra.mxu0 %v208
    %1225 = vmatprep.subr.mxu0 0.0
    %1226 = vmatpush1.msra.mxu0 %v209
    %1227 = vmatprep.subr.mxu0 0.0
    %1228 = vmatpush1.msra.mxu0 %v210
    %1229 = vmatprep.subr.mxu0 0.0
    %1230 = vmatpush1.msra.mxu0 0.0
    %1231 = vmatprep.subr.mxu0 0.0
    %1232 = vmatpush1.msra.mxu0 0.0
    %1233 = vmatprep.subr.mxu0 0.0
    %1234 = vmatpush1.msra.mxu0 0.0
    %1235 = vmatprep.subr.mxu0 0.0
    %1236 = vmatpush1.msra.mxu0 0.0
    %1237 = vmatprep.subr.mxu0 0.0
    %1238 = vmatpush1.msra.mxu0 0.0
    %1239 = vmatprep.subr.mxu0 0.0
    %1240 = vmatpush1.msra.mxu0 0.0
    %1241 = vmatprep.subr.mxu0 0.0
    %1242 = vmatpush1.msra.mxu0 0.0
    %1243 = vmatprep.subr.mxu0 0.0
    %1244 = vmatpush1.msra.mxu0 0.0
    %1245 = vmatprep.subr.mxu0 0.0
    %1246 = vmatpush1.msra.mxu0 0.0
    %1247 = vmatprep.subr.mxu0 0.0
    %1248 = vmatpush1.msra.mxu0 0.0
    %1249 = vmatprep.subr.mxu0 0.0
    %1250 = vmatpush1.msra.mxu0 0.0
    %1251 = vmatprep.subr.mxu0 0.0
    %1252 = vmatpush1.msra.mxu0 0.0
    %1253 = vmatprep.subr.mxu0 0.0
    %1254 = vmatpush1.msra.mxu0 0.0
    %1255 = vmatprep.subr.mxu0 0.0
    %1256 = vmatpush1.msra.mxu0 0.0
    %1257 = vmatprep.subr.mxu0 0.0
    %1258 = vmatpush1.msra.mxu0 0.0
    %1259 = vmatprep.subr.mxu0 0.0
    %1260 = vmatpush1.msra.mxu0 0.0
    %1261 = vmatprep.subr.mxu0 0.0
    %1262 = vmatpush1.msra.mxu0 0.0
    %1263 = vmatprep.subr.mxu0 0.0
    %1264 = vmatpush1.msra.mxu0 0.0
    %1265 = vmatprep.subr.mxu0 0.0
    %1266 = vmatpush1.msra.mxu0 0.0
    %1267 = vmatprep.subr.mxu0 0.0
    %1268 = vmatpush1.msra.mxu0 0.0
    %1269 = vmatprep.subr.mxu0 0.0
    %1270 = vmatpush1.msra.mxu0 0.0
    %1271 = vmatprep.subr.mxu0 0.0
    %1272 = vmatpush1.msra.mxu0 0.0
    %1273 = vmatprep.subr.mxu0 0.0
    %1274 = vmatpush1.msra.mxu0 0.0
    %1275 = vmatprep.subr.mxu0 0.0
    %1276 = vmatpush1.msra.mxu0 0.0
    %1277 = vmatprep.subr.mxu0 0.0
    %1278 = vmatpush1.msra.mxu0 0.0
    %1279 = vmatprep.subr.mxu0 0.0
    %1280 = vmatpush1.msra.mxu0 0.0
    %1281 = vmatprep.subr.mxu0 0.0
    %1282 = vmatpush1.msra.mxu0 0.0
    %1283 = vmatprep.subr.mxu0 0.0
    %1284 = vmatpush1.msra.mxu0 0.0
    %1285 = vmatprep.mubr.f32.mxu0 0.0
    %1286 = vmatmul.mubr.f32.gmra.mrb[0].mxu0 %v975
    %v1287 = vpop.f32.mrb[0].mxu0
    %v1288 = vadd.f32 0.0, %v1287
    %v1289 = vpop.f32.mrb[0].mxu0
    %1290 = vdwg.mxu0
    %v1291 = vadd.f32 %v1220, %v1288
    %v1292 = vmul.f32 %v1291, 0.5
    %v1293 = vtanh.pop %v1292
    %v1294 = vmul.f32 %v1293, 0.5
    %v1295 = vadd.f32 %v1294, 0.5
    %v1296 = vtanh.pop %v1291
    %v1297 = vmul.f32 %v1295, %v890
    %1299 = vrot.lane.b32.xlu0 %v1296, 32
    %v1300 = vpop.permute.xlu0 %1299
    %v1302 = vmul.f32 %v1295, %v1300
    %1304 = vrot.lane.b32.xlu0 %v1302, 32
    %v1305 = vpop.permute.xlu0 %1304
    %v1307 = vadd.f32 %v1297, %v1305
    %v1308 = vtanh.pop %v1307
    %1310 = vrot.lane.b32.xlu0 %v1308, 32
    %v1311 = vpop.permute.xlu0 %1310
    %v1313 = vmul.f32 %v1295, %v1311
    %1315 = vrot.lane.b32.xlu0 %v1069, 64
    %v1316 = vpop.permute.xlu0 %1315
    %v1317 = vsel %vm388, %v1316, 0
    %1319 = vmatprep.subr.mxu0 0.0
    %1320 = vmatpush1.msra.mxu0 %v215
    %1321 = vmatprep.subr.mxu0 0.0
    %1322 = vmatpush1.msra.mxu0 %v216
    %1323 = vmatprep.subr.mxu0 0.0
    %1324 = vmatpush1.msra.mxu0 %v217
    %1325 = vmatprep.subr.mxu0 0.0
    %1326 = vmatpush1.msra.mxu0 %v218
    %1327 = vmatprep.subr.mxu0 0.0
    %1328 = vmatpush1.msra.mxu0 0.0
    %1329 = vmatprep.subr.mxu0 0.0
    %1330 = vmatpush1.msra.mxu0 0.0
    %1331 = vmatprep.subr.mxu0 0.0
    %1332 = vmatpush1.msra.mxu0 0.0
    %1333 = vmatprep.subr.mxu0 0.0
    %1334 = vmatpush1.msra.mxu0 0.0
    %1335 = vmatprep.subr.mxu0 0.0
    %1336 = vmatpush1.msra.mxu0 0.0
    %1337 = vmatprep.subr.mxu0 0.0
    %1338 = vmatpush1.msra.mxu0 0.0
    %1339 = vmatprep.subr.mxu0 0.0
    %1340 = vmatpush1.msra.mxu0 0.0
    %1341 = vmatprep.subr.mxu0 0.0
    %1342 = vmatpush1.msra.mxu0 0.0
    %1343 = vmatprep.subr.mxu0 0.0
    %1344 = vmatpush1.msra.mxu0 0.0
    %1345 = vmatprep.subr.mxu0 0.0
    %1346 = vmatpush1.msra.mxu0 0.0
    %1347 = vmatprep.subr.mxu0 0.0
    %1348 = vmatpush1.msra.mxu0 0.0
    %1349 = vmatprep.subr.mxu0 0.0
    %1350 = vmatpush1.msra.mxu0 0.0
    %1351 = vmatprep.subr.mxu0 0.0
    %1352 = vmatpush1.msra.mxu0 0.0
    %1353 = vmatprep.subr.mxu0 0.0
    %1354 = vmatpush1.msra.mxu0 0.0
    %1355 = vmatprep.subr.mxu0 0.0
    %1356 = vmatpush1.msra.mxu0 0.0
    %1357 = vmatprep.subr.mxu0 0.0
    %1358 = vmatpush1.msra.mxu0 0.0
    %1359 = vmatprep.subr.mxu0 0.0
    %1360 = vmatpush1.msra.mxu0 0.0
    %1361 = vmatprep.subr.mxu0 0.0
    %1362 = vmatpush1.msra.mxu0 0.0
    %1363 = vmatprep.subr.mxu0 0.0
    %1364 = vmatpush1.msra.mxu0 0.0
    %1365 = vmatprep.subr.mxu0 0.0
    %1366 = vmatpush1.msra.mxu0 0.0
    %1367 = vmatprep.subr.mxu0 0.0
    %1368 = vmatpush1.msra.mxu0 0.0
    %1369 = vmatprep.subr.mxu0 0.0
    %1370 = vmatpush1.msra.mxu0 0.0
    %1371 = vmatprep.subr.mxu0 0.0
    %1372 = vmatpush1.msra.mxu0 0.0
    %1373 = vmatprep.subr.mxu0 0.0
    %1374 = vmatpush1.msra.mxu0 0.0
    %1375 = vmatprep.subr.mxu0 0.0
    %1376 = vmatpush1.msra.mxu0 0.0
    %1377 = vmatprep.subr.mxu0 0.0
    %1378 = vmatpush1.msra.mxu0 0.0
    %1379 = vmatprep.subr.mxu0 0.0
    %1380 = vmatpush1.msra.mxu0 0.0
    %1381 = vmatprep.subr.mxu0 0.0
    %1382 = vmatpush1.msra.mxu0 0.0
    %1383 = vmatprep.mubr.f32.mxu0 0.0
    %1384 = vmatmul.mubr.f32.gmra.mrb[0].mxu0 %v1317
    %v1385 = vpop.f32.mrb[0].mxu0
    %v1386 = vadd.f32 0.0, %v1385
    %v1387 = vpop.f32.mrb[0].mxu0
    %1388 = vdwg.mxu0
    %1390 = vrot.lane.b32.xlu0 %v1313, 64
    %v1391 = vpop.permute.xlu0 %1390
    %v1392 = vsel %vm388, %v1391, 0
    %1394 = vmatprep.subr.mxu0 0.0
    %1395 = vmatpush1.msra.mxu0 %v211
    %1396 = vmatprep.subr.mxu0 0.0
    %1397 = vmatpush1.msra.mxu0 %v212
    %1398 = vmatprep.subr.mxu0 0.0
    %1399 = vmatpush1.msra.mxu0 %v213
    %1400 = vmatprep.subr.mxu0 0.0
    %1401 = vmatpush1.msra.mxu0 %v214
    %1402 = vmatprep.subr.mxu0 0.0
    %1403 = vmatpush1.msra.mxu0 0.0
    %1404 = vmatprep.subr.mxu0 0.0
    %1405 = vmatpush1.msra.mxu0 0.0
    %1406 = vmatprep.subr.mxu0 0.0
    %1407 = vmatpush1.msra.mxu0 0.0
    %1408 = vmatprep.subr.mxu0 0.0
    %1409 = vmatpush1.msra.mxu0 0.0
    %1410 = vmatprep.subr.mxu0 0.0
    %1411 = vmatpush1.msra.mxu0 0.0
    %1412 = vmatprep.subr.mxu0 0.0
    %1413 = vmatpush1.msra.mxu0 0.0
    %1414 = vmatprep.subr.mxu0 0.0
    %1415 = vmatpush1.msra.mxu0 0.0
    %1416 = vmatprep.subr.mxu0 0.0
    %1417 = vmatpush1.msra.mxu0 0.0
    %1418 = vmatprep.subr.mxu0 0.0
    %1419 = vmatpush1.msra.mxu0 0.0
    %1420 = vmatprep.subr.mxu0 0.0
    %1421 = vmatpush1.msra.mxu0 0.0
    %1422 = vmatprep.subr.mxu0 0.0
    %1423 = vmatpush1.msra.mxu0 0.0
    %1424 = vmatprep.subr.mxu0 0.0
    %1425 = vmatpush1.msra.mxu0 0.0
    %1426 = vmatprep.subr.mxu0 0.0
    %1427 = vmatpush1.msra.mxu0 0.0
    %1428 = vmatprep.subr.mxu0 0.0
    %1429 = vmatpush1.msra.mxu0 0.0
    %1430 = vmatprep.subr.mxu0 0.0
    %1431 = vmatpush1.msra.mxu0 0.0
    %1432 = vmatprep.subr.mxu0 0.0
    %1433 = vmatpush1.msra.mxu0 0.0
    %1434 = vmatprep.subr.mxu0 0.0
    %1435 = vmatpush1.msra.mxu0 0.0
    %1436 = vmatprep.subr.mxu0 0.0
    %1437 = vmatpush1.msra.mxu0 0.0
    %1438 = vmatprep.subr.mxu0 0.0
    %1439 = vmatpush1.msra.mxu0 0.0
    %1440 = vmatprep.subr.mxu0 0.0
    %1441 = vmatpush1.msra.mxu0 0.0
    %1442 = vmatprep.subr.mxu0 0.0
    %1443 = vmatpush1.msra.mxu0 0.0
    %1444 = vmatprep.subr.mxu0 0.0
    %1445 = vmatpush1.msra.mxu0 0.0
    %1446 = vmatprep.subr.mxu0 0.0
    %1447 = vmatpush1.msra.mxu0 0.0
    %1448 = vmatprep.subr.mxu0 0.0
    %1449 = vmatpush1.msra.mxu0 0.0
    %1450 = vmatprep.subr.mxu0 0.0
    %1451 = vmatpush1.msra.mxu0 0.0
    %1452 = vmatprep.subr.mxu0 0.0
    %1453 = vmatpush1.msra.mxu0 0.0
    %1454 = vmatprep.subr.mxu0 0.0
    %1455 = vmatpush1.msra.mxu0 0.0
    %1456 = vmatprep.subr.mxu0 0.0
    %1457 = vmatpush1.msra.mxu0 0.0
    %1458 = vmatprep.mubr.f32.mxu0 0.0
    %1459 = vmatmul.mubr.f32.gmra.mrb[0].mxu0 %v1392
    %v1460 = vpop.f32.mrb[0].mxu0
    %v1461 = vadd.f32 %v1386, %v1460
    %v1462 = vpop.f32.mrb[0].mxu0
    %1463 = vdwg.mxu0
    %v1464 = vadd.f32 %v1461, %v231
    %v1465 = vmul.f32 %v1464, 0.5
    %v1466 = vtanh.pop %v1465
    %v1467 = vmul.f32 %v1466, 0.5
    %v1468 = vadd.f32 %v1467, 0.5
    %v1469 = vtanh.pop %v1464
    %v1470 = vmul.f32 %v1468, %v1063
    %1472 = vrot.lane.b32.xlu0 %v1469, 32
    %v1473 = vpop.permute.xlu0 %1472
    %v1475 = vmul.f32 %v1468, %v1473
    %1477 = vrot.lane.b32.xlu0 %v1475, 32
    %v1478 = vpop.permute.xlu0 %1477
    %v1480 = vadd.f32 %v1470, %v1478
    %v1481 = vtanh.pop %v1480
    %1483 = vrot.lane.b32.xlu0 %v1481, 32
    %v1484 = vpop.permute.xlu0 %1483
    %v1486 = vmul.f32 %v1468, %v1484
    %s1487 = scalar_lea.vmem [#allocation2], 6
    %v1488 = vld [vmem:[%s1487] sm:$0x3]
    %s1489 = scalar_lea.vmem [#allocation5], 6
    %v1490 = vld [vmem:[%s1489] sm:$0x3]
    %v1492 = vsel %vm235, %v1490, 0
    %1494 = vmatprep.subr.mxu0 0.0
    %1495 = vmatpush1.msra.mxu0 %v206
    %1496 = vmatprep.subr.mxu0 0.0
    %1497 = vmatpush1.msra.mxu0 0.0
    %1498 = vmatprep.subr.mxu0 0.0
    %1499 = vmatpush1.msra.mxu0 0.0
    %1500 = vmatprep.subr.mxu0 0.0
    %1501 = vmatpush1.msra.mxu0 0.0
    %1502 = vmatprep.subr.mxu0 0.0
    %1503 = vmatpush1.msra.mxu0 0.0
    %1504 = vmatprep.subr.mxu0 0.0
    %1505 = vmatpush1.msra.mxu0 0.0
    %1506 = vmatprep.subr.mxu0 0.0
    %1507 = vmatpush1.msra.mxu0 0.0
    %1508 = vmatprep.subr.mxu0 0.0
    %1509 = vmatpush1.msra.mxu0 0.0
    %1510 = vmatprep.subr.mxu0 0.0
    %1511 = vmatpush1.msra.mxu0 0.0
    %1512 = vmatprep.subr.mxu0 0.0
    %1513 = vmatpush1.msra.mxu0 0.0
    %1514 = vmatprep.subr.mxu0 0.0
    %1515 = vmatpush1.msra.mxu0 0.0
    %1516 = vmatprep.subr.mxu0 0.0
    %1517 = vmatpush1.msra.mxu0 0.0
    %1518 = vmatprep.subr.mxu0 0.0
    %1519 = vmatpush1.msra.mxu0 0.0
    %1520 = vmatprep.subr.mxu0 0.0
    %1521 = vmatpush1.msra.mxu0 0.0
    %1522 = vmatprep.subr.mxu0 0.0
    %1523 = vmatpush1.msra.mxu0 0.0
    %1524 = vmatprep.subr.mxu0 0.0
    %1525 = vmatpush1.msra.mxu0 0.0
    %1526 = vmatprep.subr.mxu0 0.0
    %1527 = vmatpush1.msra.mxu0 0.0
    %1528 = vmatprep.subr.mxu0 0.0
    %1529 = vmatpush1.msra.mxu0 0.0
    %1530 = vmatprep.subr.mxu0 0.0
    %1531 = vmatpush1.msra.mxu0 0.0
    %1532 = vmatprep.subr.mxu0 0.0
    %1533 = vmatpush1.msra.mxu0 0.0
    %1534 = vmatprep.subr.mxu0 0.0
    %1535 = vmatpush1.msra.mxu0 0.0
    %1536 = vmatprep.subr.mxu0 0.0
    %1537 = vmatpush1.msra.mxu0 0.0
    %1538 = vmatprep.subr.mxu0 0.0
    %1539 = vmatpush1.msra.mxu0 0.0
    %1540 = vmatprep.subr.mxu0 0.0
    %1541 = vmatpush1.msra.mxu0 0.0
    %1542 = vmatprep.subr.mxu0 0.0
    %1543 = vmatpush1.msra.mxu0 0.0
    %1544 = vmatprep.subr.mxu0 0.0
    %1545 = vmatpush1.msra.mxu0 0.0
    %1546 = vmatprep.subr.mxu0 0.0
    %1547 = vmatpush1.msra.mxu0 0.0
    %1548 = vmatprep.subr.mxu0 0.0
    %1549 = vmatpush1.msra.mxu0 0.0
    %1550 = vmatprep.subr.mxu0 0.0
    %1551 = vmatpush1.msra.mxu0 0.0
    %1552 = vmatprep.subr.mxu0 0.0
    %1553 = vmatpush1.msra.mxu0 0.0
    %1554 = vmatprep.subr.mxu0 0.0
    %1555 = vmatpush1.msra.mxu0 0.0
    %1556 = vmatprep.subr.mxu0 0.0
    %1557 = vmatpush1.msra.mxu0 0.0
    %1558 = vmatprep.mubr.f32.mxu0 0.0
    %1559 = vmatmul.mubr.f32.gmra.mrb[0].mxu0 %v1492
    %v1560 = vpop.f32.mrb[0].mxu0
    %v1561 = vadd.f32 0.0, %v1560
    %v1562 = vpop.f32.mrb[0].mxu0
    %1563 = vdwg.mxu0
    %v1565 = vsel %vm309, %v1488, 0
    %1567 = vmatprep.subr.mxu0 0.0
    %1568 = vmatpush1.msra.mxu0 %v204
    %1569 = vmatprep.subr.mxu0 0.0
    %1570 = vmatpush1.msra.mxu0 %v315
    %1571 = vmatprep.subr.mxu0 0.0
    %1572 = vmatpush1.msra.mxu0 0.0
    %1573 = vmatprep.subr.mxu0 0.0
    %1574 = vmatpush1.msra.mxu0 0.0
    %1575 = vmatprep.subr.mxu0 0.0
    %1576 = vmatpush1.msra.mxu0 0.0
    %1577 = vmatprep.subr.mxu0 0.0
    %1578 = vmatpush1.msra.mxu0 0.0
    %1579 = vmatprep.subr.mxu0 0.0
    %1580 = vmatpush1.msra.mxu0 0.0
    %1581 = vmatprep.subr.mxu0 0.0
    %1582 = vmatpush1.msra.mxu0 0.0
    %1583 = vmatprep.subr.mxu0 0.0
    %1584 = vmatpush1.msra.mxu0 0.0
    %1585 = vmatprep.subr.mxu0 0.0
    %1586 = vmatpush1.msra.mxu0 0.0
    %1587 = vmatprep.subr.mxu0 0.0
    %1588 = vmatpush1.msra.mxu0 0.0
    %1589 = vmatprep.subr.mxu0 0.0
    %1590 = vmatpush1.msra.mxu0 0.0
    %1591 = vmatprep.subr.mxu0 0.0
    %1592 = vmatpush1.msra.mxu0 0.0
    %1593 = vmatprep.subr.mxu0 0.0
    %1594 = vmatpush1.msra.mxu0 0.0
    %1595 = vmatprep.subr.mxu0 0.0
    %1596 = vmatpush1.msra.mxu0 0.0
    %1597 = vmatprep.subr.mxu0 0.0
    %1598 = vmatpush1.msra.mxu0 0.0
    %1599 = vmatprep.subr.mxu0 0.0
    %1600 = vmatpush1.msra.mxu0 0.0
    %1601 = vmatprep.subr.mxu0 0.0
    %1602 = vmatpush1.msra.mxu0 0.0
    %1603 = vmatprep.subr.mxu0 0.0
    %1604 = vmatpush1.msra.mxu0 0.0
    %1605 = vmatprep.subr.mxu0 0.0
    %1606 = vmatpush1.msra.mxu0 0.0
    %1607 = vmatprep.subr.mxu0 0.0
    %1608 = vmatpush1.msra.mxu0 0.0
    %1609 = vmatprep.subr.mxu0 0.0
    %1610 = vmatpush1.msra.mxu0 0.0
    %1611 = vmatprep.subr.mxu0 0.0
    %1612 = vmatpush1.msra.mxu0 0.0
    %1613 = vmatprep.subr.mxu0 0.0
    %1614 = vmatpush1.msra.mxu0 0.0
    %1615 = vmatprep.subr.mxu0 0.0
    %1616 = vmatpush1.msra.mxu0 0.0
    %1617 = vmatprep.subr.mxu0 0.0
    %1618 = vmatpush1.msra.mxu0 0.0
    %1619 = vmatprep.subr.mxu0 0.0
    %1620 = vmatpush1.msra.mxu0 0.0
    %1621 = vmatprep.subr.mxu0 0.0
    %1622 = vmatpush1.msra.mxu0 0.0
    %1623 = vmatprep.subr.mxu0 0.0
    %1624 = vmatpush1.msra.mxu0 0.0
    %1625 = vmatprep.subr.mxu0 0.0
    %1626 = vmatpush1.msra.mxu0 0.0
    %1627 = vmatprep.subr.mxu0 0.0
    %1628 = vmatpush1.msra.mxu0 0.0
    %1629 = vmatprep.subr.mxu0 0.0
    %1630 = vmatpush1.msra.mxu0 0.0
    %1631 = vmatprep.mubr.f32.mxu0 0.0
    %1632 = vmatmul.mubr.f32.gmra.mrb[0].mxu0 %v1565
    %v1633 = vpop.f32.mrb[0].mxu0
    %v1634 = vadd.f32 %v1561, %v1633
    %v1635 = vpop.f32.mrb[0].mxu0
    %1636 = vdwg.mxu0
    %v1637 = vadd.f32 %v1634, %v224
    %1638 = vmatprep.subr.mxu0 0.0
    %1639 = vmatpush1.msra.mxu0 %v207
    %1640 = vmatprep.subr.mxu0 0.0
    %1641 = vmatpush1.msra.mxu0 %v208
    %1642 = vmatprep.subr.mxu0 0.0
    %1643 = vmatpush1.msra.mxu0 %v209
    %1644 = vmatprep.subr.mxu0 0.0
    %1645 = vmatpush1.msra.mxu0 %v210
    %1646 = vmatprep.subr.mxu0 0.0
    %1647 = vmatpush1.msra.mxu0 0.0
    %1648 = vmatprep.subr.mxu0 0.0
    %1649 = vmatpush1.msra.mxu0 0.0
    %1650 = vmatprep.subr.mxu0 0.0
    %1651 = vmatpush1.msra.mxu0 0.0
    %1652 = vmatprep.subr.mxu0 0.0
    %1653 = vmatpush1.msra.mxu0 0.0
    %1654 = vmatprep.subr.mxu0 0.0
    %1655 = vmatpush1.msra.mxu0 0.0
    %1656 = vmatprep.subr.mxu0 0.0
    %1657 = vmatpush1.msra.mxu0 0.0
    %1658 = vmatprep.subr.mxu0 0.0
    %1659 = vmatpush1.msra.mxu0 0.0
    %1660 = vmatprep.subr.mxu0 0.0
    %1661 = vmatpush1.msra.mxu0 0.0
    %1662 = vmatprep.subr.mxu0 0.0
    %1663 = vmatpush1.msra.mxu0 0.0
    %1664 = vmatprep.subr.mxu0 0.0
    %1665 = vmatpush1.msra.mxu0 0.0
    %1666 = vmatprep.subr.mxu0 0.0
    %1667 = vmatpush1.msra.mxu0 0.0
    %1668 = vmatprep.subr.mxu0 0.0
    %1669 = vmatpush1.msra.mxu0 0.0
    %1670 = vmatprep.subr.mxu0 0.0
    %1671 = vmatpush1.msra.mxu0 0.0
    %1672 = vmatprep.subr.mxu0 0.0
    %1673 = vmatpush1.msra.mxu0 0.0
    %1674 = vmatprep.subr.mxu0 0.0
    %1675 = vmatpush1.msra.mxu0 0.0
    %1676 = vmatprep.subr.mxu0 0.0
    %1677 = vmatpush1.msra.mxu0 0.0
    %1678 = vmatprep.subr.mxu0 0.0
    %1679 = vmatpush1.msra.mxu0 0.0
    %1680 = vmatprep.subr.mxu0 0.0
    %1681 = vmatpush1.msra.mxu0 0.0
    %1682 = vmatprep.subr.mxu0 0.0
    %1683 = vmatpush1.msra.mxu0 0.0
    %1684 = vmatprep.subr.mxu0 0.0
    %1685 = vmatpush1.msra.mxu0 0.0
    %1686 = vmatprep.subr.mxu0 0.0
    %1687 = vmatpush1.msra.mxu0 0.0
    %1688 = vmatprep.subr.mxu0 0.0
    %1689 = vmatpush1.msra.mxu0 0.0
    %1690 = vmatprep.subr.mxu0 0.0
    %1691 = vmatpush1.msra.mxu0 0.0
    %1692 = vmatprep.subr.mxu0 0.0
    %1693 = vmatpush1.msra.mxu0 0.0
    %1694 = vmatprep.subr.mxu0 0.0
    %1695 = vmatpush1.msra.mxu0 0.0
    %1696 = vmatprep.subr.mxu0 0.0
    %1697 = vmatpush1.msra.mxu0 0.0
    %1698 = vmatprep.subr.mxu0 0.0
    %1699 = vmatpush1.msra.mxu0 0.0
    %1700 = vmatprep.subr.mxu0 0.0
    %1701 = vmatpush1.msra.mxu0 0.0
    %1702 = vmatprep.mubr.f32.mxu0 0.0
    %1703 = vmatmul.mubr.f32.gmra.mrb[0].mxu0 %v1392
    %v1704 = vpop.f32.mrb[0].mxu0
    %v1705 = vadd.f32 0.0, %v1704
    %v1706 = vpop.f32.mrb[0].mxu0
    %1707 = vdwg.mxu0
    %v1708 = vadd.f32 %v1637, %v1705
    %v1709 = vmul.f32 %v1708, 0.5
    %v1710 = vtanh.pop %v1709
    %v1711 = vmul.f32 %v1710, 0.5
    %v1712 = vadd.f32 %v1711, 0.5
    %v1713 = vtanh.pop %v1708
    %v1714 = vmul.f32 %v1712, %v1307
    %1716 = vrot.lane.b32.xlu0 %v1713, 32
    %v1717 = vpop.permute.xlu0 %1716
    %v1719 = vmul.f32 %v1712, %v1717
    %1721 = vrot.lane.b32.xlu0 %v1719, 32
    %v1722 = vpop.permute.xlu0 %1721
    %v1724 = vadd.f32 %v1714, %v1722
    %v1725 = vtanh.pop %v1724
    %1727 = vrot.lane.b32.xlu0 %v1725, 32
    %v1728 = vpop.permute.xlu0 %1727
    %v1730 = vmul.f32 %v1712, %v1728
    %1732 = vrot.lane.b32.xlu0 %v1486, 64
    %v1733 = vpop.permute.xlu0 %1732
    %v1734 = vsel %vm388, %v1733, 0
    %1736 = vmatprep.subr.mxu0 0.0
    %1737 = vmatpush1.msra.mxu0 %v215
    %1738 = vmatprep.subr.mxu0 0.0
    %1739 = vmatpush1.msra.mxu0 %v216
    %1740 = vmatprep.subr.mxu0 0.0
    %1741 = vmatpush1.msra.mxu0 %v217
    %1742 = vmatprep.subr.mxu0 0.0
    %1743 = vmatpush1.msra.mxu0 %v218
    %1744 = vmatprep.subr.mxu0 0.0
    %1745 = vmatpush1.msra.mxu0 0.0
    %1746 = vmatprep.subr.mxu0 0.0
    %1747 = vmatpush1.msra.mxu0 0.0
    %1748 = vmatprep.subr.mxu0 0.0
    %1749 = vmatpush1.msra.mxu0 0.0
    %1750 = vmatprep.subr.mxu0 0.0
    %1751 = vmatpush1.msra.mxu0 0.0
    %1752 = vmatprep.subr.mxu0 0.0
    %1753 = vmatpush1.msra.mxu0 0.0
    %1754 = vmatprep.subr.mxu0 0.0
    %1755 = vmatpush1.msra.mxu0 0.0
    %1756 = vmatprep.subr.mxu0 0.0
    %1757 = vmatpush1.msra.mxu0 0.0
    %1758 = vmatprep.subr.mxu0 0.0
    %1759 = vmatpush1.msra.mxu0 0.0
    %1760 = vmatprep.subr.mxu0 0.0
    %1761 = vmatpush1.msra.mxu0 0.0
    %1762 = vmatprep.subr.mxu0 0.0
    %1763 = vmatpush1.msra.mxu0 0.0
    %1764 = vmatprep.subr.mxu0 0.0
    %1765 = vmatpush1.msra.mxu0 0.0
    %1766 = vmatprep.subr.mxu0 0.0
    %1767 = vmatpush1.msra.mxu0 0.0
    %1768 = vmatprep.subr.mxu0 0.0
    %1769 = vmatpush1.msra.mxu0 0.0
    %1770 = vmatprep.subr.mxu0 0.0
    %1771 = vmatpush1.msra.mxu0 0.0
    %1772 = vmatprep.subr.mxu0 0.0
    %1773 = vmatpush1.msra.mxu0 0.0
    %1774 = vmatprep.subr.mxu0 0.0
    %1775 = vmatpush1.msra.mxu0 0.0
    %1776 = vmatprep.subr.mxu0 0.0
    %1777 = vmatpush1.msra.mxu0 0.0
    %1778 = vmatprep.subr.mxu0 0.0
    %1779 = vmatpush1.msra.mxu0 0.0
    %1780 = vmatprep.subr.mxu0 0.0
    %1781 = vmatpush1.msra.mxu0 0.0
    %1782 = vmatprep.subr.mxu0 0.0
    %1783 = vmatpush1.msra.mxu0 0.0
    %1784 = vmatprep.subr.mxu0 0.0
    %1785 = vmatpush1.msra.mxu0 0.0
    %1786 = vmatprep.subr.mxu0 0.0
    %1787 = vmatpush1.msra.mxu0 0.0
    %1788 = vmatprep.subr.mxu0 0.0
    %1789 = vmatpush1.msra.mxu0 0.0
    %1790 = vmatprep.subr.mxu0 0.0
    %1791 = vmatpush1.msra.mxu0 0.0
    %1792 = vmatprep.subr.mxu0 0.0
    %1793 = vmatpush1.msra.mxu0 0.0
    %1794 = vmatprep.subr.mxu0 0.0
    %1795 = vmatpush1.msra.mxu0 0.0
    %1796 = vmatprep.subr.mxu0 0.0
    %1797 = vmatpush1.msra.mxu0 0.0
    %1798 = vmatprep.subr.mxu0 0.0
    %1799 = vmatpush1.msra.mxu0 0.0
    %1800 = vmatprep.mubr.f32.mxu0 0.0
    %1801 = vmatmul.mubr.f32.gmra.mrb[0].mxu0 %v1734
    %v1802 = vpop.f32.mrb[0].mxu0
    %v1803 = vadd.f32 0.0, %v1802
    %v1804 = vpop.f32.mrb[0].mxu0
    %1805 = vdwg.mxu0
    %1807 = vrot.lane.b32.xlu0 %v1730, 64
    %v1808 = vpop.permute.xlu0 %1807
    %v1809 = vsel %vm388, %v1808, 0
    %1811 = vmatprep.subr.mxu0 0.0
    %1812 = vmatpush1.msra.mxu0 %v211
    %1813 = vmatprep.subr.mxu0 0.0
    %1814 = vmatpush1.msra.mxu0 %v212
    %1815 = vmatprep.subr.mxu0 0.0
    %1816 = vmatpush1.msra.mxu0 %v213
    %1817 = vmatprep.subr.mxu0 0.0
    %1818 = vmatpush1.msra.mxu0 %v214
    %1819 = vmatprep.subr.mxu0 0.0
    %1820 = vmatpush1.msra.mxu0 0.0
    %1821 = vmatprep.subr.mxu0 0.0
    %1822 = vmatpush1.msra.mxu0 0.0
    %1823 = vmatprep.subr.mxu0 0.0
    %1824 = vmatpush1.msra.mxu0 0.0
    %1825 = vmatprep.subr.mxu0 0.0
    %1826 = vmatpush1.msra.mxu0 0.0
    %1827 = vmatprep.subr.mxu0 0.0
    %1828 = vmatpush1.msra.mxu0 0.0
    %1829 = vmatprep.subr.mxu0 0.0
    %1830 = vmatpush1.msra.mxu0 0.0
    %1831 = vmatprep.subr.mxu0 0.0
    %1832 = vmatpush1.msra.mxu0 0.0
    %1833 = vmatprep.subr.mxu0 0.0
    %1834 = vmatpush1.msra.mxu0 0.0
    %1835 = vmatprep.subr.mxu0 0.0
    %1836 = vmatpush1.msra.mxu0 0.0
    %1837 = vmatprep.subr.mxu0 0.0
    %1838 = vmatpush1.msra.mxu0 0.0
    %1839 = vmatprep.subr.mxu0 0.0
    %1840 = vmatpush1.msra.mxu0 0.0
    %1841 = vmatprep.subr.mxu0 0.0
    %1842 = vmatpush1.msra.mxu0 0.0
    %1843 = vmatprep.subr.mxu0 0.0
    %1844 = vmatpush1.msra.mxu0 0.0
    %1845 = vmatprep.subr.mxu0 0.0
    %1846 = vmatpush1.msra.mxu0 0.0
    %1847 = vmatprep.subr.mxu0 0.0
    %1848 = vmatpush1.msra.mxu0 0.0
    %1849 = vmatprep.subr.mxu0 0.0
    %1850 = vmatpush1.msra.mxu0 0.0
    %1851 = vmatprep.subr.mxu0 0.0
    %1852 = vmatpush1.msra.mxu0 0.0
    %1853 = vmatprep.subr.mxu0 0.0
    %1854 = vmatpush1.msra.mxu0 0.0
    %1855 = vmatprep.subr.mxu0 0.0
    %1856 = vmatpush1.msra.mxu0 0.0
    %1857 = vmatprep.subr.mxu0 0.0
    %1858 = vmatpush1.msra.mxu0 0.0
    %1859 = vmatprep.subr.mxu0 0.0
    %1860 = vmatpush1.msra.mxu0 0.0
    %1861 = vmatprep.subr.mxu0 0.0
    %1862 = vmatpush1.msra.mxu0 0.0
    %1863 = vmatprep.subr.mxu0 0.0
    %1864 = vmatpush1.msra.mxu0 0.0
    %1865 = vmatprep.subr.mxu0 0.0
    %1866 = vmatpush1.msra.mxu0 0.0
    %1867 = vmatprep.subr.mxu0 0.0
    %1868 = vmatpush1.msra.mxu0 0.0
    %1869 = vmatprep.subr.mxu0 0.0
    %1870 = vmatpush1.msra.mxu0 0.0
    %1871 = vmatprep.subr.mxu0 0.0
    %1872 = vmatpush1.msra.mxu0 0.0
    %1873 = vmatprep.subr.mxu0 0.0
    %1874 = vmatpush1.msra.mxu0 0.0
    %1875 = vmatprep.mubr.f32.mxu0 0.0
    %1876 = vmatmul.mubr.f32.gmra.mrb[0].mxu0 %v1809
    %v1877 = vpop.f32.mrb[0].mxu0
    %v1878 = vadd.f32 %v1803, %v1877
    %v1879 = vpop.f32.mrb[0].mxu0
    %1880 = vdwg.mxu0
    %v1881 = vadd.f32 %v1878, %v231
    %v1882 = vmul.f32 %v1881, 0.5
    %v1883 = vtanh.pop %v1882
    %v1884 = vmul.f32 %v1883, 0.5
    %v1885 = vadd.f32 %v1884, 0.5
    %v1886 = vtanh.pop %v1881
    %v1887 = vmul.f32 %v1885, %v1480
    %1889 = vrot.lane.b32.xlu0 %v1886, 32
    %v1890 = vpop.permute.xlu0 %1889
    %v1892 = vmul.f32 %v1885, %v1890
    %1894 = vrot.lane.b32.xlu0 %v1892, 32
    %v1895 = vpop.permute.xlu0 %1894
    %v1897 = vadd.f32 %v1887, %v1895
    %v1898 = vtanh.pop %v1897
    %1900 = vrot.lane.b32.xlu0 %v1898, 32
    %v1901 = vpop.permute.xlu0 %1900
    %v1903 = vmul.f32 %v1885, %v1901
    %s1904 = scalar_lea.vmem [#allocation2], 8
    %v1905 = vld [vmem:[%s1904] sm:$0x3]
    %s1906 = scalar_lea.vmem [#allocation5], 8
    %v1907 = vld [vmem:[%s1906] sm:$0x3]
    %v1909 = vsel %vm235, %v1907, 0
    %1911 = vmatprep.subr.mxu0 0.0
    %1912 = vmatpush1.msra.mxu0 %v206
    %1913 = vmatprep.subr.mxu0 0.0
    %1914 = vmatpush1.msra.mxu0 0.0
    %1915 = vmatprep.subr.mxu0 0.0
    %1916 = vmatpush1.msra.mxu0 0.0
    %1917 = vmatprep.subr.mxu0 0.0
    %1918 = vmatpush1.msra.mxu0 0.0
    %1919 = vmatprep.subr.mxu0 0.0
    %1920 = vmatpush1.msra.mxu0 0.0
    %1921 = vmatprep.subr.mxu0 0.0
    %1922 = vmatpush1.msra.mxu0 0.0
    %1923 = vmatprep.subr.mxu0 0.0
    %1924 = vmatpush1.msra.mxu0 0.0
    %1925 = vmatprep.subr.mxu0 0.0
    %1926 = vmatpush1.msra.mxu0 0.0
    %1927 = vmatprep.subr.mxu0 0.0
    %1928 = vmatpush1.msra.mxu0 0.0
    %1929 = vmatprep.subr.mxu0 0.0
    %1930 = vmatpush1.msra.mxu0 0.0
    %1931 = vmatprep.subr.mxu0 0.0
    %1932 = vmatpush1.msra.mxu0 0.0
    %1933 = vmatprep.subr.mxu0 0.0
    %1934 = vmatpush1.msra.mxu0 0.0
    %1935 = vmatprep.subr.mxu0 0.0
    %1936 = vmatpush1.msra.mxu0 0.0
    %1937 = vmatprep.subr.mxu0 0.0
    %1938 = vmatpush1.msra.mxu0 0.0
    %1939 = vmatprep.subr.mxu0 0.0
    %1940 = vmatpush1.msra.mxu0 0.0
    %1941 = vmatprep.subr.mxu0 0.0
    %1942 = vmatpush1.msra.mxu0 0.0
    %1943 = vmatprep.subr.mxu0 0.0
    %1944 = vmatpush1.msra.mxu0 0.0
    %1945 = vmatprep.subr.mxu0 0.0
    %1946 = vmatpush1.msra.mxu0 0.0
    %1947 = vmatprep.subr.mxu0 0.0
    %1948 = vmatpush1.msra.mxu0 0.0
    %1949 = vmatprep.subr.mxu0 0.0
    %1950 = vmatpush1.msra.mxu0 0.0
    %1951 = vmatprep.subr.mxu0 0.0
    %1952 = vmatpush1.msra.mxu0 0.0
    %1953 = vmatprep.subr.mxu0 0.0
    %1954 = vmatpush1.msra.mxu0 0.0
    %1955 = vmatprep.subr.mxu0 0.0
    %1956 = vmatpush1.msra.mxu0 0.0
    %1957 = vmatprep.subr.mxu0 0.0
    %1958 = vmatpush1.msra.mxu0 0.0
    %1959 = vmatprep.subr.mxu0 0.0
    %1960 = vmatpush1.msra.mxu0 0.0
    %1961 = vmatprep.subr.mxu0 0.0
    %1962 = vmatpush1.msra.mxu0 0.0
    %1963 = vmatprep.subr.mxu0 0.0
    %1964 = vmatpush1.msra.mxu0 0.0
    %1965 = vmatprep.subr.mxu0 0.0
    %1966 = vmatpush1.msra.mxu0 0.0
    %1967 = vmatprep.subr.mxu0 0.0
    %1968 = vmatpush1.msra.mxu0 0.0
    %1969 = vmatprep.subr.mxu0 0.0
    %1970 = vmatpush1.msra.mxu0 0.0
    %1971 = vmatprep.subr.mxu0 0.0
    %1972 = vmatpush1.msra.mxu0 0.0
    %1973 = vmatprep.subr.mxu0 0.0
    %1974 = vmatpush1.msra.mxu0 0.0
    %1975 = vmatprep.mubr.f32.mxu0 0.0
    %1976 = vmatmul.mubr.f32.gmra.mrb[0].mxu0 %v1909
    %v1977 = vpop.f32.mrb[0].mxu0
    %v1978 = vadd.f32 0.0, %v1977
    %v1979 = vpop.f32.mrb[0].mxu0
    %1980 = vdwg.mxu0
    %v1982 = vsel %vm309, %v1905, 0
    %1984 = vmatprep.subr.mxu0 0.0
    %1985 = vmatpush1.msra.mxu0 %v204
    %1986 = vmatprep.subr.mxu0 0.0
    %1987 = vmatpush1.msra.mxu0 %v315
    %1988 = vmatprep.subr.mxu0 0.0
    %1989 = vmatpush1.msra.mxu0 0.0
    %1990 = vmatprep.subr.mxu0 0.0
    %1991 = vmatpush1.msra.mxu0 0.0
    %1992 = vmatprep.subr.mxu0 0.0
    %1993 = vmatpush1.msra.mxu0 0.0
    %1994 = vmatprep.subr.mxu0 0.0
    %1995 = vmatpush1.msra.mxu0 0.0
    %1996 = vmatprep.subr.mxu0 0.0
    %1997 = vmatpush1.msra.mxu0 0.0
    %1998 = vmatprep.subr.mxu0 0.0
    %1999 = vmatpush1.msra.mxu0 0.0
    %2000 = vmatprep.subr.mxu0 0.0
    %2001 = vmatpush1.msra.mxu0 0.0
    %2002 = vmatprep.subr.mxu0 0.0
    %2003 = vmatpush1.msra.mxu0 0.0
    %2004 = vmatprep.subr.mxu0 0.0
    %2005 = vmatpush1.msra.mxu0 0.0
    %2006 = vmatprep.subr.mxu0 0.0
    %2007 = vmatpush1.msra.mxu0 0.0
    %2008 = vmatprep.subr.mxu0 0.0
    %2009 = vmatpush1.msra.mxu0 0.0
    %2010 = vmatprep.subr.mxu0 0.0
    %2011 = vmatpush1.msra.mxu0 0.0
    %2012 = vmatprep.subr.mxu0 0.0
    %2013 = vmatpush1.msra.mxu0 0.0
    %2014 = vmatprep.subr.mxu0 0.0
    %2015 = vmatpush1.msra.mxu0 0.0
    %2016 = vmatprep.subr.mxu0 0.0
    %2017 = vmatpush1.msra.mxu0 0.0
    %2018 = vmatprep.subr.mxu0 0.0
    %2019 = vmatpush1.msra.mxu0 0.0
    %2020 = vmatprep.subr.mxu0 0.0
    %2021 = vmatpush1.msra.mxu0 0.0
    %2022 = vmatprep.subr.mxu0 0.0
    %2023 = vmatpush1.msra.mxu0 0.0
    %2024 = vmatprep.subr.mxu0 0.0
    %2025 = vmatpush1.msra.mxu0 0.0
    %2026 = vmatprep.subr.mxu0 0.0
    %2027 = vmatpush1.msra.mxu0 0.0
    %2028 = vmatprep.subr.mxu0 0.0
    %2029 = vmatpush1.msra.mxu0 0.0
    %2030 = vmatprep.subr.mxu0 0.0
    %2031 = vmatpush1.msra.mxu0 0.0
    %2032 = vmatprep.subr.mxu0 0.0
    %2033 = vmatpush1.msra.mxu0 0.0
    %2034 = vmatprep.subr.mxu0 0.0
    %2035 = vmatpush1.msra.mxu0 0.0
    %2036 = vmatprep.subr.mxu0 0.0
    %2037 = vmatpush1.msra.mxu0 0.0
    %2038 = vmatprep.subr.mxu0 0.0
    %2039 = vmatpush1.msra.mxu0 0.0
    %2040 = vmatprep.subr.mxu0 0.0
    %2041 = vmatpush1.msra.mxu0 0.0
    %2042 = vmatprep.subr.mxu0 0.0
    %2043 = vmatpush1.msra.mxu0 0.0
    %2044 = vmatprep.subr.mxu0 0.0
    %2045 = vmatpush1.msra.mxu0 0.0
    %2046 = vmatprep.subr.mxu0 0.0
    %2047 = vmatpush1.msra.mxu0 0.0
    %2048 = vmatprep.mubr.f32.mxu0 0.0
    %2049 = vmatmul.mubr.f32.gmra.mrb[0].mxu0 %v1982
    %v2050 = vpop.f32.mrb[0].mxu0
    %v2051 = vadd.f32 %v1978, %v2050
    %v2052 = vpop.f32.mrb[0].mxu0
    %2053 = vdwg.mxu0
    %v2054 = vadd.f32 %v2051, %v224
    %2055 = vmatprep.subr.mxu0 0.0
    %2056 = vmatpush1.msra.mxu0 %v207
    %2057 = vmatprep.subr.mxu0 0.0
    %2058 = vmatpush1.msra.mxu0 %v208
    %2059 = vmatprep.subr.mxu0 0.0
    %2060 = vmatpush1.msra.mxu0 %v209
    %2061 = vmatprep.subr.mxu0 0.0
    %2062 = vmatpush1.msra.mxu0 %v210
    %2063 = vmatprep.subr.mxu0 0.0
    %2064 = vmatpush1.msra.mxu0 0.0
    %2065 = vmatprep.subr.mxu0 0.0
    %2066 = vmatpush1.msra.mxu0 0.0
    %2067 = vmatprep.subr.mxu0 0.0
    %2068 = vmatpush1.msra.mxu0 0.0
    %2069 = vmatprep.subr.mxu0 0.0
    %2070 = vmatpush1.msra.mxu0 0.0
    %2071 = vmatprep.subr.mxu0 0.0
    %2072 = vmatpush1.msra.mxu0 0.0
    %2073 = vmatprep.subr.mxu0 0.0
    %2074 = vmatpush1.msra.mxu0 0.0
    %2075 = vmatprep.subr.mxu0 0.0
    %2076 = vmatpush1.msra.mxu0 0.0
    %2077 = vmatprep.subr.mxu0 0.0
    %2078 = vmatpush1.msra.mxu0 0.0
    %2079 = vmatprep.subr.mxu0 0.0
    %2080 = vmatpush1.msra.mxu0 0.0
    %2081 = vmatprep.subr.mxu0 0.0
    %2082 = vmatpush1.msra.mxu0 0.0
    %2083 = vmatprep.subr.mxu0 0.0
    %2084 = vmatpush1.msra.mxu0 0.0
    %2085 = vmatprep.subr.mxu0 0.0
    %2086 = vmatpush1.msra.mxu0 0.0
    %2087 = vmatprep.subr.mxu0 0.0
    %2088 = vmatpush1.msra.mxu0 0.0
    %2089 = vmatprep.subr.mxu0 0.0
    %2090 = vmatpush1.msra.mxu0 0.0
    %2091 = vmatprep.subr.mxu0 0.0
    %2092 = vmatpush1.msra.mxu0 0.0
    %2093 = vmatprep.subr.mxu0 0.0
    %2094 = vmatpush1.msra.mxu0 0.0
    %2095 = vmatprep.subr.mxu0 0.0
    %2096 = vmatpush1.msra.mxu0 0.0
    %2097 = vmatprep.subr.mxu0 0.0
    %2098 = vmatpush1.msra.mxu0 0.0
    %2099 = vmatprep.subr.mxu0 0.0
    %2100 = vmatpush1.msra.mxu0 0.0
    %2101 = vmatprep.subr.mxu0 0.0
    %2102 = vmatpush1.msra.mxu0 0.0
    %2103 = vmatprep.subr.mxu0 0.0
    %2104 = vmatpush1.msra.mxu0 0.0
    %2105 = vmatprep.subr.mxu0 0.0
    %2106 = vmatpush1.msra.mxu0 0.0
    %2107 = vmatprep.subr.mxu0 0.0
    %2108 = vmatpush1.msra.mxu0 0.0
    %2109 = vmatprep.subr.mxu0 0.0
    %2110 = vmatpush1.msra.mxu0 0.0
    %2111 = vmatprep.subr.mxu0 0.0
    %2112 = vmatpush1.msra.mxu0 0.0
    %2113 = vmatprep.subr.mxu0 0.0
    %2114 = vmatpush1.msra.mxu0 0.0
    %2115 = vmatprep.subr.mxu0 0.0
    %2116 = vmatpush1.msra.mxu0 0.0
    %2117 = vmatprep.subr.mxu0 0.0
    %2118 = vmatpush1.msra.mxu0 0.0
    %2119 = vmatprep.mubr.f32.mxu0 0.0
    %2120 = vmatmul.mubr.f32.gmra.mrb[0].mxu0 %v1809
    %v2121 = vpop.f32.mrb[0].mxu0
    %v2122 = vadd.f32 0.0, %v2121
    %v2123 = vpop.f32.mrb[0].mxu0
    %2124 = vdwg.mxu0
    %v2125 = vadd.f32 %v2054, %v2122
    %v2126 = vmul.f32 %v2125, 0.5
    %v2127 = vtanh.pop %v2126
    %v2128 = vmul.f32 %v2127, 0.5
    %v2129 = vadd.f32 %v2128, 0.5
    %v2130 = vtanh.pop %v2125
    %v2131 = vmul.f32 %v2129, %v1724
    %2133 = vrot.lane.b32.xlu0 %v2130, 32
    %v2134 = vpop.permute.xlu0 %2133
    %v2136 = vmul.f32 %v2129, %v2134
    %2138 = vrot.lane.b32.xlu0 %v2136, 32
    %v2139 = vpop.permute.xlu0 %2138
    %v2141 = vadd.f32 %v2131, %v2139
    %v2142 = vtanh.pop %v2141
    %2144 = vrot.lane.b32.xlu0 %v2142, 32
    %v2145 = vpop.permute.xlu0 %2144
    %v2147 = vmul.f32 %v2129, %v2145
    %2149 = vrot.lane.b32.xlu0 %v1903, 64
    %v2150 = vpop.permute.xlu0 %2149
    %v2151 = vsel %vm388, %v2150, 0
    %2153 = vmatprep.subr.mxu0 0.0
    %2154 = vmatpush1.msra.mxu0 %v215
    %2155 = vmatprep.subr.mxu0 0.0
    %2156 = vmatpush1.msra.mxu0 %v216
    %2157 = vmatprep.subr.mxu0 0.0
    %2158 = vmatpush1.msra.mxu0 %v217
    %2159 = vmatprep.subr.mxu0 0.0
    %2160 = vmatpush1.msra.mxu0 %v218
    %2161 = vmatprep.subr.mxu0 0.0
    %2162 = vmatpush1.msra.mxu0 0.0
    %2163 = vmatprep.subr.mxu0 0.0
    %2164 = vmatpush1.msra.mxu0 0.0
    %2165 = vmatprep.subr.mxu0 0.0
    %2166 = vmatpush1.msra.mxu0 0.0
    %2167 = vmatprep.subr.mxu0 0.0
    %2168 = vmatpush1.msra.mxu0 0.0
    %2169 = vmatprep.subr.mxu0 0.0
    %2170 = vmatpush1.msra.mxu0 0.0
    %2171 = vmatprep.subr.mxu0 0.0
    %2172 = vmatpush1.msra.mxu0 0.0
    %2173 = vmatprep.subr.mxu0 0.0
    %2174 = vmatpush1.msra.mxu0 0.0
    %2175 = vmatprep.subr.mxu0 0.0
    %2176 = vmatpush1.msra.mxu0 0.0
    %2177 = vmatprep.subr.mxu0 0.0
    %2178 = vmatpush1.msra.mxu0 0.0
    %2179 = vmatprep.subr.mxu0 0.0
    %2180 = vmatpush1.msra.mxu0 0.0
    %2181 = vmatprep.subr.mxu0 0.0
    %2182 = vmatpush1.msra.mxu0 0.0
    %2183 = vmatprep.subr.mxu0 0.0
    %2184 = vmatpush1.msra.mxu0 0.0
    %2185 = vmatprep.subr.mxu0 0.0
    %2186 = vmatpush1.msra.mxu0 0.0
    %2187 = vmatprep.subr.mxu0 0.0
    %2188 = vmatpush1.msra.mxu0 0.0
    %2189 = vmatprep.subr.mxu0 0.0
    %2190 = vmatpush1.msra.mxu0 0.0
    %2191 = vmatprep.subr.mxu0 0.0
    %2192 = vmatpush1.msra.mxu0 0.0
    %2193 = vmatprep.subr.mxu0 0.0
    %2194 = vmatpush1.msra.mxu0 0.0
    %2195 = vmatprep.subr.mxu0 0.0
    %2196 = vmatpush1.msra.mxu0 0.0
    %2197 = vmatprep.subr.mxu0 0.0
    %2198 = vmatpush1.msra.mxu0 0.0
    %2199 = vmatprep.subr.mxu0 0.0
    %2200 = vmatpush1.msra.mxu0 0.0
    %2201 = vmatprep.subr.mxu0 0.0
    %2202 = vmatpush1.msra.mxu0 0.0
    %2203 = vmatprep.subr.mxu0 0.0
    %2204 = vmatpush1.msra.mxu0 0.0
    %2205 = vmatprep.subr.mxu0 0.0
    %2206 = vmatpush1.msra.mxu0 0.0
    %2207 = vmatprep.subr.mxu0 0.0
    %2208 = vmatpush1.msra.mxu0 0.0
    %2209 = vmatprep.subr.mxu0 0.0
    %2210 = vmatpush1.msra.mxu0 0.0
    %2211 = vmatprep.subr.mxu0 0.0
    %2212 = vmatpush1.msra.mxu0 0.0
    %2213 = vmatprep.subr.mxu0 0.0
    %2214 = vmatpush1.msra.mxu0 0.0
    %2215 = vmatprep.subr.mxu0 0.0
    %2216 = vmatpush1.msra.mxu0 0.0
    %2217 = vmatprep.mubr.f32.mxu0 0.0
    %2218 = vmatmul.mubr.f32.gmra.mrb[0].mxu0 %v2151
    %v2219 = vpop.f32.mrb[0].mxu0
    %v2220 = vadd.f32 0.0, %v2219
    %v2221 = vpop.f32.mrb[0].mxu0
    %2222 = vdwg.mxu0
    %2224 = vrot.lane.b32.xlu0 %v2147, 64
    %v2225 = vpop.permute.xlu0 %2224
    %v2226 = vsel %vm388, %v2225, 0
    %2228 = vmatprep.subr.mxu0 0.0
    %2229 = vmatpush1.msra.mxu0 %v211
    %2230 = vmatprep.subr.mxu0 0.0
    %2231 = vmatpush1.msra.mxu0 %v212
    %2232 = vmatprep.subr.mxu0 0.0
    %2233 = vmatpush1.msra.mxu0 %v213
    %2234 = vmatprep.subr.mxu0 0.0
    %2235 = vmatpush1.msra.mxu0 %v214
    %2236 = vmatprep.subr.mxu0 0.0
    %2237 = vmatpush1.msra.mxu0 0.0
    %2238 = vmatprep.subr.mxu0 0.0
    %2239 = vmatpush1.msra.mxu0 0.0
    %2240 = vmatprep.subr.mxu0 0.0
    %2241 = vmatpush1.msra.mxu0 0.0
    %2242 = vmatprep.subr.mxu0 0.0
    %2243 = vmatpush1.msra.mxu0 0.0
    %2244 = vmatprep.subr.mxu0 0.0
    %2245 = vmatpush1.msra.mxu0 0.0
    %2246 = vmatprep.subr.mxu0 0.0
    %2247 = vmatpush1.msra.mxu0 0.0
    %2248 = vmatprep.subr.mxu0 0.0
    %2249 = vmatpush1.msra.mxu0 0.0
    %2250 = vmatprep.subr.mxu0 0.0
    %2251 = vmatpush1.msra.mxu0 0.0
    %2252 = vmatprep.subr.mxu0 0.0
    %2253 = vmatpush1.msra.mxu0 0.0
    %2254 = vmatprep.subr.mxu0 0.0
    %2255 = vmatpush1.msra.mxu0 0.0
    %2256 = vmatprep.subr.mxu0 0.0
    %2257 = vmatpush1.msra.mxu0 0.0
    %2258 = vmatprep.subr.mxu0 0.0
    %2259 = vmatpush1.msra.mxu0 0.0
    %2260 = vmatprep.subr.mxu0 0.0
    %2261 = vmatpush1.msra.mxu0 0.0
    %2262 = vmatprep.subr.mxu0 0.0
    %2263 = vmatpush1.msra.mxu0 0.0
    %2264 = vmatprep.subr.mxu0 0.0
    %2265 = vmatpush1.msra.mxu0 0.0
    %2266 = vmatprep.subr.mxu0 0.0
    %2267 = vmatpush1.msra.mxu0 0.0
    %2268 = vmatprep.subr.mxu0 0.0
    %2269 = vmatpush1.msra.mxu0 0.0
    %2270 = vmatprep.subr.mxu0 0.0
    %2271 = vmatpush1.msra.mxu0 0.0
    %2272 = vmatprep.subr.mxu0 0.0
    %2273 = vmatpush1.msra.mxu0 0.0
    %2274 = vmatprep.subr.mxu0 0.0
    %2275 = vmatpush1.msra.mxu0 0.0
    %2276 = vmatprep.subr.mxu0 0.0
    %2277 = vmatpush1.msra.mxu0 0.0
    %2278 = vmatprep.subr.mxu0 0.0
    %2279 = vmatpush1.msra.mxu0 0.0
    %2280 = vmatprep.subr.mxu0 0.0
    %2281 = vmatpush1.msra.mxu0 0.0
    %2282 = vmatprep.subr.mxu0 0.0
    %2283 = vmatpush1.msra.mxu0 0.0
    %2284 = vmatprep.subr.mxu0 0.0
    %2285 = vmatpush1.msra.mxu0 0.0
    %2286 = vmatprep.subr.mxu0 0.0
    %2287 = vmatpush1.msra.mxu0 0.0
    %2288 = vmatprep.subr.mxu0 0.0
    %2289 = vmatpush1.msra.mxu0 0.0
    %2290 = vmatprep.subr.mxu0 0.0
    %2291 = vmatpush1.msra.mxu0 0.0
    %2292 = vmatprep.mubr.f32.mxu0 0.0
    %2293 = vmatmul.mubr.f32.gmra.mrb[0].mxu0 %v2226
    %v2294 = vpop.f32.mrb[0].mxu0
    %v2295 = vadd.f32 %v2220, %v2294
    %v2296 = vpop.f32.mrb[0].mxu0
    %2297 = vdwg.mxu0
    %v2298 = vadd.f32 %v2295, %v231
    %v2299 = vmul.f32 %v2298, 0.5
    %v2300 = vtanh.pop %v2299
    %v2301 = vmul.f32 %v2300, 0.5
    %v2302 = vadd.f32 %v2301, 0.5
    %v2303 = vtanh.pop %v2298
    %v2304 = vmul.f32 %v2302, %v1897
    %2306 = vrot.lane.b32.xlu0 %v2303, 32
    %v2307 = vpop.permute.xlu0 %2306
    %v2309 = vmul.f32 %v2302, %v2307
    %2311 = vrot.lane.b32.xlu0 %v2309, 32
    %v2312 = vpop.permute.xlu0 %2311
    %v2314 = vadd.f32 %v2304, %v2312
    %v2315 = vtanh.pop %v2314
    %2317 = vrot.lane.b32.xlu0 %v2315, 32
    %v2318 = vpop.permute.xlu0 %2317
    %v2320 = vmul.f32 %v2302, %v2318
    %s2321 = scalar_lea.vmem [#allocation2], 10
    %v2322 = vld [vmem:[%s2321] sm:$0x3]
    %s2323 = scalar_lea.vmem [#allocation5], 10
    %v2324 = vld [vmem:[%s2323] sm:$0x3]
    %v2326 = vsel %vm235, %v2324, 0
    %2328 = vmatprep.subr.mxu0 0.0
    %2329 = vmatpush1.msra.mxu0 %v206
    %2330 = vmatprep.subr.mxu0 0.0
    %2331 = vmatpush1.msra.mxu0 0.0
    %2332 = vmatprep.subr.mxu0 0.0
    %2333 = vmatpush1.msra.mxu0 0.0
    %2334 = vmatprep.subr.mxu0 0.0
    %2335 = vmatpush1.msra.mxu0 0.0
    %2336 = vmatprep.subr.mxu0 0.0
    %2337 = vmatpush1.msra.mxu0 0.0
    %2338 = vmatprep.subr.mxu0 0.0
    %2339 = vmatpush1.msra.mxu0 0.0
    %2340 = vmatprep.subr.mxu0 0.0
    %2341 = vmatpush1.msra.mxu0 0.0
    %2342 = vmatprep.subr.mxu0 0.0
    %2343 = vmatpush1.msra.mxu0 0.0
    %2344 = vmatprep.subr.mxu0 0.0
    %2345 = vmatpush1.msra.mxu0 0.0
    %2346 = vmatprep.subr.mxu0 0.0
    %2347 = vmatpush1.msra.mxu0 0.0
    %2348 = vmatprep.subr.mxu0 0.0
    %2349 = vmatpush1.msra.mxu0 0.0
    %2350 = vmatprep.subr.mxu0 0.0
    %2351 = vmatpush1.msra.mxu0 0.0
    %2352 = vmatprep.subr.mxu0 0.0
    %2353 = vmatpush1.msra.mxu0 0.0
    %2354 = vmatprep.subr.mxu0 0.0
    %2355 = vmatpush1.msra.mxu0 0.0
    %2356 = vmatprep.subr.mxu0 0.0
    %2357 = vmatpush1.msra.mxu0 0.0
    %2358 = vmatprep.subr.mxu0 0.0
    %2359 = vmatpush1.msra.mxu0 0.0
    %2360 = vmatprep.subr.mxu0 0.0
    %2361 = vmatpush1.msra.mxu0 0.0
    %2362 = vmatprep.subr.mxu0 0.0
    %2363 = vmatpush1.msra.mxu0 0.0
    %2364 = vmatprep.subr.mxu0 0.0
    %2365 = vmatpush1.msra.mxu0 0.0
    %2366 = vmatprep.subr.mxu0 0.0
    %2367 = vmatpush1.msra.mxu0 0.0
    %2368 = vmatprep.subr.mxu0 0.0
    %2369 = vmatpush1.msra.mxu0 0.0
    %2370 = vmatprep.subr.mxu0 0.0
    %2371 = vmatpush1.msra.mxu0 0.0
    %2372 = vmatprep.subr.mxu0 0.0
    %2373 = vmatpush1.msra.mxu0 0.0
    %2374 = vmatprep.subr.mxu0 0.0
    %2375 = vmatpush1.msra.mxu0 0.0
    %2376 = vmatprep.subr.mxu0 0.0
    %2377 = vmatpush1.msra.mxu0 0.0
    %2378 = vmatprep.subr.mxu0 0.0
    %2379 = vmatpush1.msra.mxu0 0.0
    %2380 = vmatprep.subr.mxu0 0.0
    %2381 = vmatpush1.msra.mxu0 0.0
    %2382 = vmatprep.subr.mxu0 0.0
    %2383 = vmatpush1.msra.mxu0 0.0
    %2384 = vmatprep.subr.mxu0 0.0
    %2385 = vmatpush1.msra.mxu0 0.0
    %2386 = vmatprep.subr.mxu0 0.0
    %2387 = vmatpush1.msra.mxu0 0.0
    %2388 = vmatprep.subr.mxu0 0.0
    %2389 = vmatpush1.msra.mxu0 0.0
    %2390 = vmatprep.subr.mxu0 0.0
    %2391 = vmatpush1.msra.mxu0 0.0
    %2392 = vmatprep.mubr.f32.mxu0 0.0
    %2393 = vmatmul.mubr.f32.gmra.mrb[0].mxu0 %v2326
    %v2394 = vpop.f32.mrb[0].mxu0
    %v2395 = vadd.f32 0.0, %v2394
    %v2396 = vpop.f32.mrb[0].mxu0
    %2397 = vdwg.mxu0
    %v2399 = vsel %vm309, %v2322, 0
    %2401 = vmatprep.subr.mxu0 0.0
    %2402 = vmatpush1.msra.mxu0 %v204
    %2403 = vmatprep.subr.mxu0 0.0
    %2404 = vmatpush1.msra.mxu0 %v315
    %2405 = vmatprep.subr.mxu0 0.0
    %2406 = vmatpush1.msra.mxu0 0.0
    %2407 = vmatprep.subr.mxu0 0.0
    %2408 = vmatpush1.msra.mxu0 0.0
    %2409 = vmatprep.subr.mxu0 0.0
    %2410 = vmatpush1.msra.mxu0 0.0
    %2411 = vmatprep.subr.mxu0 0.0
    %2412 = vmatpush1.msra.mxu0 0.0
    %2413 = vmatprep.subr.mxu0 0.0
    %2414 = vmatpush1.msra.mxu0 0.0
    %2415 = vmatprep.subr.mxu0 0.0
    %2416 = vmatpush1.msra.mxu0 0.0
    %2417 = vmatprep.subr.mxu0 0.0
    %2418 = vmatpush1.msra.mxu0 0.0
    %2419 = vmatprep.subr.mxu0 0.0
    %2420 = vmatpush1.msra.mxu0 0.0
    %2421 = vmatprep.subr.mxu0 0.0
    %2422 = vmatpush1.msra.mxu0 0.0
    %2423 = vmatprep.subr.mxu0 0.0
    %2424 = vmatpush1.msra.mxu0 0.0
    %2425 = vmatprep.subr.mxu0 0.0
    %2426 = vmatpush1.msra.mxu0 0.0
    %2427 = vmatprep.subr.mxu0 0.0
    %2428 = vmatpush1.msra.mxu0 0.0
    %2429 = vmatprep.subr.mxu0 0.0
    %2430 = vmatpush1.msra.mxu0 0.0
    %2431 = vmatprep.subr.mxu0 0.0
    %2432 = vmatpush1.msra.mxu0 0.0
    %2433 = vmatprep.subr.mxu0 0.0
    %2434 = vmatpush1.msra.mxu0 0.0
    %2435 = vmatprep.subr.mxu0 0.0
    %2436 = vmatpush1.msra.mxu0 0.0
    %2437 = vmatprep.subr.mxu0 0.0
    %2438 = vmatpush1.msra.mxu0 0.0
    %2439 = vmatprep.subr.mxu0 0.0
    %2440 = vmatpush1.msra.mxu0 0.0
    %2441 = vmatprep.subr.mxu0 0.0
    %2442 = vmatpush1.msra.mxu0 0.0
    %2443 = vmatprep.subr.mxu0 0.0
    %2444 = vmatpush1.msra.mxu0 0.0
    %2445 = vmatprep.subr.mxu0 0.0
    %2446 = vmatpush1.msra.mxu0 0.0
    %2447 = vmatprep.subr.mxu0 0.0
    %2448 = vmatpush1.msra.mxu0 0.0
    %2449 = vmatprep.subr.mxu0 0.0
    %2450 = vmatpush1.msra.mxu0 0.0
    %2451 = vmatprep.subr.mxu0 0.0
    %2452 = vmatpush1.msra.mxu0 0.0
    %2453 = vmatprep.subr.mxu0 0.0
    %2454 = vmatpush1.msra.mxu0 0.0
    %2455 = vmatprep.subr.mxu0 0.0
    %2456 = vmatpush1.msra.mxu0 0.0
    %2457 = vmatprep.subr.mxu0 0.0
    %2458 = vmatpush1.msra.mxu0 0.0
    %2459 = vmatprep.subr.mxu0 0.0
    %2460 = vmatpush1.msra.mxu0 0.0
    %2461 = vmatprep.subr.mxu0 0.0
    %2462 = vmatpush1.msra.mxu0 0.0
    %2463 = vmatprep.subr.mxu0 0.0
    %2464 = vmatpush1.msra.mxu0 0.0
    %2465 = vmatprep.mubr.f32.mxu0 0.0
    %2466 = vmatmul.mubr.f32.gmra.mrb[0].mxu0 %v2399
    %v2467 = vpop.f32.mrb[0].mxu0
    %v2468 = vadd.f32 %v2395, %v2467
    %v2469 = vpop.f32.mrb[0].mxu0
    %2470 = vdwg.mxu0
    %v2471 = vadd.f32 %v2468, %v224
    %2472 = vmatprep.subr.mxu0 0.0
    %2473 = vmatpush1.msra.mxu0 %v207
    %2474 = vmatprep.subr.mxu0 0.0
    %2475 = vmatpush1.msra.mxu0 %v208
    %2476 = vmatprep.subr.mxu0 0.0
    %2477 = vmatpush1.msra.mxu0 %v209
    %2478 = vmatprep.subr.mxu0 0.0
    %2479 = vmatpush1.msra.mxu0 %v210
    %2480 = vmatprep.subr.mxu0 0.0
    %2481 = vmatpush1.msra.mxu0 0.0
    %2482 = vmatprep.subr.mxu0 0.0
    %2483 = vmatpush1.msra.mxu0 0.0
    %2484 = vmatprep.subr.mxu0 0.0
    %2485 = vmatpush1.msra.mxu0 0.0
    %2486 = vmatprep.subr.mxu0 0.0
    %2487 = vmatpush1.msra.mxu0 0.0
    %2488 = vmatprep.subr.mxu0 0.0
    %2489 = vmatpush1.msra.mxu0 0.0
    %2490 = vmatprep.subr.mxu0 0.0
    %2491 = vmatpush1.msra.mxu0 0.0
    %2492 = vmatprep.subr.mxu0 0.0
    %2493 = vmatpush1.msra.mxu0 0.0
    %2494 = vmatprep.subr.mxu0 0.0
    %2495 = vmatpush1.msra.mxu0 0.0
    %2496 = vmatprep.subr.mxu0 0.0
    %2497 = vmatpush1.msra.mxu0 0.0
    %2498 = vmatprep.subr.mxu0 0.0
    %2499 = vmatpush1.msra.mxu0 0.0
    %2500 = vmatprep.subr.mxu0 0.0
    %2501 = vmatpush1.msra.mxu0 0.0
    %2502 = vmatprep.subr.mxu0 0.0
    %2503 = vmatpush1.msra.mxu0 0.0
    %2504 = vmatprep.subr.mxu0 0.0
    %2505 = vmatpush1.msra.mxu0 0.0
    %2506 = vmatprep.subr.mxu0 0.0
    %2507 = vmatpush1.msra.mxu0 0.0
    %2508 = vmatprep.subr.mxu0 0.0
    %2509 = vmatpush1.msra.mxu0 0.0
    %2510 = vmatprep.subr.mxu0 0.0
    %2511 = vmatpush1.msra.mxu0 0.0
    %2512 = vmatprep.subr.mxu0 0.0
    %2513 = vmatpush1.msra.mxu0 0.0
    %2514 = vmatprep.subr.mxu0 0.0
    %2515 = vmatpush1.msra.mxu0 0.0
    %2516 = vmatprep.subr.mxu0 0.0
    %2517 = vmatpush1.msra.mxu0 0.0
    %2518 = vmatprep.subr.mxu0 0.0
    %2519 = vmatpush1.msra.mxu0 0.0
    %2520 = vmatprep.subr.mxu0 0.0
    %2521 = vmatpush1.msra.mxu0 0.0
    %2522 = vmatprep.subr.mxu0 0.0
    %2523 = vmatpush1.msra.mxu0 0.0
    %2524 = vmatprep.subr.mxu0 0.0
    %2525 = vmatpush1.msra.mxu0 0.0
    %2526 = vmatprep.subr.mxu0 0.0
    %2527 = vmatpush1.msra.mxu0 0.0
    %2528 = vmatprep.subr.mxu0 0.0
    %2529 = vmatpush1.msra.mxu0 0.0
    %2530 = vmatprep.subr.mxu0 0.0
    %2531 = vmatpush1.msra.mxu0 0.0
    %2532 = vmatprep.subr.mxu0 0.0
    %2533 = vmatpush1.msra.mxu0 0.0
    %2534 = vmatprep.subr.mxu0 0.0
    %2535 = vmatpush1.msra.mxu0 0.0
    %2536 = vmatprep.mubr.f32.mxu0 0.0
    %2537 = vmatmul.mubr.f32.gmra.mrb[0].mxu0 %v2226
    %v2538 = vpop.f32.mrb[0].mxu0
    %v2539 = vadd.f32 0.0, %v2538
    %v2540 = vpop.f32.mrb[0].mxu0
    %2541 = vdwg.mxu0
    %v2542 = vadd.f32 %v2471, %v2539
    %v2543 = vmul.f32 %v2542, 0.5
    %v2544 = vtanh.pop %v2543
    %v2545 = vmul.f32 %v2544, 0.5
    %v2546 = vadd.f32 %v2545, 0.5
    %v2547 = vtanh.pop %v2542
    %v2548 = vmul.f32 %v2546, %v2141
    %2550 = vrot.lane.b32.xlu0 %v2547, 32
    %v2551 = vpop.permute.xlu0 %2550
    %v2553 = vmul.f32 %v2546, %v2551
    %2555 = vrot.lane.b32.xlu0 %v2553, 32
    %v2556 = vpop.permute.xlu0 %2555
    %v2558 = vadd.f32 %v2548, %v2556
    %v2559 = vtanh.pop %v2558
    %2561 = vrot.lane.b32.xlu0 %v2559, 32
    %v2562 = vpop.permute.xlu0 %2561
    %v2564 = vmul.f32 %v2546, %v2562
    %2566 = vrot.lane.b32.xlu0 %v2320, 64
    %v2567 = vpop.permute.xlu0 %2566
    %v2568 = vsel %vm388, %v2567, 0
    %2570 = vmatprep.subr.mxu0 0.0
    %2571 = vmatpush1.msra.mxu0 %v215
    %2572 = vmatprep.subr.mxu0 0.0
    %2573 = vmatpush1.msra.mxu0 %v216
    %2574 = vmatprep.subr.mxu0 0.0
    %2575 = vmatpush1.msra.mxu0 %v217
    %2576 = vmatprep.subr.mxu0 0.0
    %2577 = vmatpush1.msra.mxu0 %v218
    %2578 = vmatprep.subr.mxu0 0.0
    %2579 = vmatpush1.msra.mxu0 0.0
    %2580 = vmatprep.subr.mxu0 0.0
    %2581 = vmatpush1.msra.mxu0 0.0
    %2582 = vmatprep.subr.mxu0 0.0
    %2583 = vmatpush1.msra.mxu0 0.0
    %2584 = vmatprep.subr.mxu0 0.0
    %2585 = vmatpush1.msra.mxu0 0.0
    %2586 = vmatprep.subr.mxu0 0.0
    %2587 = vmatpush1.msra.mxu0 0.0
    %2588 = vmatprep.subr.mxu0 0.0
    %2589 = vmatpush1.msra.mxu0 0.0
    %2590 = vmatprep.subr.mxu0 0.0
    %2591 = vmatpush1.msra.mxu0 0.0
    %2592 = vmatprep.subr.mxu0 0.0
    %2593 = vmatpush1.msra.mxu0 0.0
    %2594 = vmatprep.subr.mxu0 0.0
    %2595 = vmatpush1.msra.mxu0 0.0
    %2596 = vmatprep.subr.mxu0 0.0
    %2597 = vmatpush1.msra.mxu0 0.0
    %2598 = vmatprep.subr.mxu0 0.0
    %2599 = vmatpush1.msra.mxu0 0.0
    %2600 = vmatprep.subr.mxu0 0.0
    %2601 = vmatpush1.msra.mxu0 0.0
    %2602 = vmatprep.subr.mxu0 0.0
    %2603 = vmatpush1.msra.mxu0 0.0
    %2604 = vmatprep.subr.mxu0 0.0
    %2605 = vmatpush1.msra.mxu0 0.0
    %2606 = vmatprep.subr.mxu0 0.0
    %2607 = vmatpush1.msra.mxu0 0.0
    %2608 = vmatprep.subr.mxu0 0.0
    %2609 = vmatpush1.msra.mxu0 0.0
    %2610 = vmatprep.subr.mxu0 0.0
    %2611 = vmatpush1.msra.mxu0 0.0
    %2612 = vmatprep.subr.mxu0 0.0
    %2613 = vmatpush1.msra.mxu0 0.0
    %2614 = vmatprep.subr.mxu0 0.0
    %2615 = vmatpush1.msra.mxu0 0.0
    %2616 = vmatprep.subr.mxu0 0.0
    %2617 = vmatpush1.msra.mxu0 0.0
    %2618 = vmatprep.subr.mxu0 0.0
    %2619 = vmatpush1.msra.mxu0 0.0
    %2620 = vmatprep.subr.mxu0 0.0
    %2621 = vmatpush1.msra.mxu0 0.0
    %2622 = vmatprep.subr.mxu0 0.0
    %2623 = vmatpush1.msra.mxu0 0.0
    %2624 = vmatprep.subr.mxu0 0.0
    %2625 = vmatpush1.msra.mxu0 0.0
    %2626 = vmatprep.subr.mxu0 0.0
    %2627 = vmatpush1.msra.mxu0 0.0
    %2628 = vmatprep.subr.mxu0 0.0
    %2629 = vmatpush1.msra.mxu0 0.0
    %2630 = vmatprep.subr.mxu0 0.0
    %2631 = vmatpush1.msra.mxu0 0.0
    %2632 = vmatprep.subr.mxu0 0.0
    %2633 = vmatpush1.msra.mxu0 0.0
    %2634 = vmatprep.mubr.f32.mxu0 0.0
    %2635 = vmatmul.mubr.f32.gmra.mrb[0].mxu0 %v2568
    %v2636 = vpop.f32.mrb[0].mxu0
    %v2637 = vadd.f32 0.0, %v2636
    %v2638 = vpop.f32.mrb[0].mxu0
    %2639 = vdwg.mxu0
    %2641 = vrot.lane.b32.xlu0 %v2564, 64
    %v2642 = vpop.permute.xlu0 %2641
    %v2643 = vsel %vm388, %v2642, 0
    %2645 = vmatprep.subr.mxu0 0.0
    %2646 = vmatpush1.msra.mxu0 %v211
    %2647 = vmatprep.subr.mxu0 0.0
    %2648 = vmatpush1.msra.mxu0 %v212
    %2649 = vmatprep.subr.mxu0 0.0
    %2650 = vmatpush1.msra.mxu0 %v213
    %2651 = vmatprep.subr.mxu0 0.0
    %2652 = vmatpush1.msra.mxu0 %v214
    %2653 = vmatprep.subr.mxu0 0.0
    %2654 = vmatpush1.msra.mxu0 0.0
    %2655 = vmatprep.subr.mxu0 0.0
    %2656 = vmatpush1.msra.mxu0 0.0
    %2657 = vmatprep.subr.mxu0 0.0
    %2658 = vmatpush1.msra.mxu0 0.0
    %2659 = vmatprep.subr.mxu0 0.0
    %2660 = vmatpush1.msra.mxu0 0.0
    %2661 = vmatprep.subr.mxu0 0.0
    %2662 = vmatpush1.msra.mxu0 0.0
    %2663 = vmatprep.subr.mxu0 0.0
    %2664 = vmatpush1.msra.mxu0 0.0
    %2665 = vmatprep.subr.mxu0 0.0
    %2666 = vmatpush1.msra.mxu0 0.0
    %2667 = vmatprep.subr.mxu0 0.0
    %2668 = vmatpush1.msra.mxu0 0.0
    %2669 = vmatprep.subr.mxu0 0.0
    %2670 = vmatpush1.msra.mxu0 0.0
    %2671 = vmatprep.subr.mxu0 0.0
    %2672 = vmatpush1.msra.mxu0 0.0
    %2673 = vmatprep.subr.mxu0 0.0
    %2674 = vmatpush1.msra.mxu0 0.0
    %2675 = vmatprep.subr.mxu0 0.0
    %2676 = vmatpush1.msra.mxu0 0.0
    %2677 = vmatprep.subr.mxu0 0.0
    %2678 = vmatpush1.msra.mxu0 0.0
    %2679 = vmatprep.subr.mxu0 0.0
    %2680 = vmatpush1.msra.mxu0 0.0
    %2681 = vmatprep.subr.mxu0 0.0
    %2682 = vmatpush1.msra.mxu0 0.0
    %2683 = vmatprep.subr.mxu0 0.0
    %2684 = vmatpush1.msra.mxu0 0.0
    %2685 = vmatprep.subr.mxu0 0.0
    %2686 = vmatpush1.msra.mxu0 0.0
    %2687 = vmatprep.subr.mxu0 0.0
    %2688 = vmatpush1.msra.mxu0 0.0
    %2689 = vmatprep.subr.mxu0 0.0
    %2690 = vmatpush1.msra.mxu0 0.0
    %2691 = vmatprep.subr.mxu0 0.0
    %2692 = vmatpush1.msra.mxu0 0.0
    %2693 = vmatprep.subr.mxu0 0.0
    %2694 = vmatpush1.msra.mxu0 0.0
    %2695 = vmatprep.subr.mxu0 0.0
    %2696 = vmatpush1.msra.mxu0 0.0
    %2697 = vmatprep.subr.mxu0 0.0
    %2698 = vmatpush1.msra.mxu0 0.0
    %2699 = vmatprep.subr.mxu0 0.0
    %2700 = vmatpush1.msra.mxu0 0.0
    %2701 = vmatprep.subr.mxu0 0.0
    %2702 = vmatpush1.msra.mxu0 0.0
    %2703 = vmatprep.subr.mxu0 0.0
    %2704 = vmatpush1.msra.mxu0 0.0
    %2705 = vmatprep.subr.mxu0 0.0
    %2706 = vmatpush1.msra.mxu0 0.0
    %2707 = vmatprep.subr.mxu0 0.0
    %2708 = vmatpush1.msra.mxu0 0.0
    %2709 = vmatprep.mubr.f32.mxu0 0.0
    %2710 = vmatmul.mubr.f32.gmra.mrb[0].mxu0 %v2643
    %v2711 = vpop.f32.mrb[0].mxu0
    %v2712 = vadd.f32 %v2637, %v2711
    %v2713 = vpop.f32.mrb[0].mxu0
    %2714 = vdwg.mxu0
    %v2715 = vadd.f32 %v2712, %v231
    %v2716 = vmul.f32 %v2715, 0.5
    %v2717 = vtanh.pop %v2716
    %v2718 = vmul.f32 %v2717, 0.5
    %v2719 = vadd.f32 %v2718, 0.5
    %v2720 = vtanh.pop %v2715
    %v2721 = vmul.f32 %v2719, %v2314
    %2723 = vrot.lane.b32.xlu0 %v2720, 32
    %v2724 = vpop.permute.xlu0 %2723
    %v2726 = vmul.f32 %v2719, %v2724
    %2728 = vrot.lane.b32.xlu0 %v2726, 32
    %v2729 = vpop.permute.xlu0 %2728
    %v2731 = vadd.f32 %v2721, %v2729
    %v2732 = vtanh.pop %v2731
    %2734 = vrot.lane.b32.xlu0 %v2732, 32
    %v2735 = vpop.permute.xlu0 %2734
    %v2737 = vmul.f32 %v2719, %v2735
    %s2738 = scalar_lea.vmem [#allocation2], 12
    %v2739 = vld [vmem:[%s2738] sm:$0x3]
    %s2740 = scalar_lea.vmem [#allocation5], 12
    %v2741 = vld [vmem:[%s2740] sm:$0x3]
    %v2743 = vsel %vm235, %v2741, 0
    %2745 = vmatprep.subr.mxu0 0.0
    %2746 = vmatpush1.msra.mxu0 %v206
    %2747 = vmatprep.subr.mxu0 0.0
    %2748 = vmatpush1.msra.mxu0 0.0
    %2749 = vmatprep.subr.mxu0 0.0
    %2750 = vmatpush1.msra.mxu0 0.0
    %2751 = vmatprep.subr.mxu0 0.0
    %2752 = vmatpush1.msra.mxu0 0.0
    %2753 = vmatprep.subr.mxu0 0.0
    %2754 = vmatpush1.msra.mxu0 0.0
    %2755 = vmatprep.subr.mxu0 0.0
    %2756 = vmatpush1.msra.mxu0 0.0
    %2757 = vmatprep.subr.mxu0 0.0
    %2758 = vmatpush1.msra.mxu0 0.0
    %2759 = vmatprep.subr.mxu0 0.0
    %2760 = vmatpush1.msra.mxu0 0.0
    %2761 = vmatprep.subr.mxu0 0.0
    %2762 = vmatpush1.msra.mxu0 0.0
    %2763 = vmatprep.subr.mxu0 0.0
    %2764 = vmatpush1.msra.mxu0 0.0
    %2765 = vmatprep.subr.mxu0 0.0
    %2766 = vmatpush1.msra.mxu0 0.0
    %2767 = vmatprep.subr.mxu0 0.0
    %2768 = vmatpush1.msra.mxu0 0.0
    %2769 = vmatprep.subr.mxu0 0.0
    %2770 = vmatpush1.msra.mxu0 0.0
    %2771 = vmatprep.subr.mxu0 0.0
    %2772 = vmatpush1.msra.mxu0 0.0
    %2773 = vmatprep.subr.mxu0 0.0
    %2774 = vmatpush1.msra.mxu0 0.0
    %2775 = vmatprep.subr.mxu0 0.0
    %2776 = vmatpush1.msra.mxu0 0.0
    %2777 = vmatprep.subr.mxu0 0.0
    %2778 = vmatpush1.msra.mxu0 0.0
    %2779 = vmatprep.subr.mxu0 0.0
    %2780 = vmatpush1.msra.mxu0 0.0
    %2781 = vmatprep.subr.mxu0 0.0
    %2782 = vmatpush1.msra.mxu0 0.0
    %2783 = vmatprep.subr.mxu0 0.0
    %2784 = vmatpush1.msra.mxu0 0.0
    %2785 = vmatprep.subr.mxu0 0.0
    %2786 = vmatpush1.msra.mxu0 0.0
    %2787 = vmatprep.subr.mxu0 0.0
    %2788 = vmatpush1.msra.mxu0 0.0
    %2789 = vmatprep.subr.mxu0 0.0
    %2790 = vmatpush1.msra.mxu0 0.0
    %2791 = vmatprep.subr.mxu0 0.0
    %2792 = vmatpush1.msra.mxu0 0.0
    %2793 = vmatprep.subr.mxu0 0.0
    %2794 = vmatpush1.msra.mxu0 0.0
    %2795 = vmatprep.subr.mxu0 0.0
    %2796 = vmatpush1.msra.mxu0 0.0
    %2797 = vmatprep.subr.mxu0 0.0
    %2798 = vmatpush1.msra.mxu0 0.0
    %2799 = vmatprep.subr.mxu0 0.0
    %2800 = vmatpush1.msra.mxu0 0.0
    %2801 = vmatprep.subr.mxu0 0.0
    %2802 = vmatpush1.msra.mxu0 0.0
    %2803 = vmatprep.subr.mxu0 0.0
    %2804 = vmatpush1.msra.mxu0 0.0
    %2805 = vmatprep.subr.mxu0 0.0
    %2806 = vmatpush1.msra.mxu0 0.0
    %2807 = vmatprep.subr.mxu0 0.0
    %2808 = vmatpush1.msra.mxu0 0.0
    %2809 = vmatprep.mubr.f32.mxu0 0.0
    %2810 = vmatmul.mubr.f32.gmra.mrb[0].mxu0 %v2743
    %v2811 = vpop.f32.mrb[0].mxu0
    %v2812 = vadd.f32 0.0, %v2811
    %v2813 = vpop.f32.mrb[0].mxu0
    %2814 = vdwg.mxu0
    %v2816 = vsel %vm309, %v2739, 0
    %2818 = vmatprep.subr.mxu0 0.0
    %2819 = vmatpush1.msra.mxu0 %v204
    %2820 = vmatprep.subr.mxu0 0.0
    %2821 = vmatpush1.msra.mxu0 %v315
    %2822 = vmatprep.subr.mxu0 0.0
    %2823 = vmatpush1.msra.mxu0 0.0
    %2824 = vmatprep.subr.mxu0 0.0
    %2825 = vmatpush1.msra.mxu0 0.0
    %2826 = vmatprep.subr.mxu0 0.0
    %2827 = vmatpush1.msra.mxu0 0.0
    %2828 = vmatprep.subr.mxu0 0.0
    %2829 = vmatpush1.msra.mxu0 0.0
    %2830 = vmatprep.subr.mxu0 0.0
    %2831 = vmatpush1.msra.mxu0 0.0
    %2832 = vmatprep.subr.mxu0 0.0
    %2833 = vmatpush1.msra.mxu0 0.0
    %2834 = vmatprep.subr.mxu0 0.0
    %2835 = vmatpush1.msra.mxu0 0.0
    %2836 = vmatprep.subr.mxu0 0.0
    %2837 = vmatpush1.msra.mxu0 0.0
    %2838 = vmatprep.subr.mxu0 0.0
    %2839 = vmatpush1.msra.mxu0 0.0
    %2840 = vmatprep.subr.mxu0 0.0
    %2841 = vmatpush1.msra.mxu0 0.0
    %2842 = vmatprep.subr.mxu0 0.0
    %2843 = vmatpush1.msra.mxu0 0.0
    %2844 = vmatprep.subr.mxu0 0.0
    %2845 = vmatpush1.msra.mxu0 0.0
    %2846 = vmatprep.subr.mxu0 0.0
    %2847 = vmatpush1.msra.mxu0 0.0
    %2848 = vmatprep.subr.mxu0 0.0
    %2849 = vmatpush1.msra.mxu0 0.0
    %2850 = vmatprep.subr.mxu0 0.0
    %2851 = vmatpush1.msra.mxu0 0.0
    %2852 = vmatprep.subr.mxu0 0.0
    %2853 = vmatpush1.msra.mxu0 0.0
    %2854 = vmatprep.subr.mxu0 0.0
    %2855 = vmatpush1.msra.mxu0 0.0
    %2856 = vmatprep.subr.mxu0 0.0
    %2857 = vmatpush1.msra.mxu0 0.0
    %2858 = vmatprep.subr.mxu0 0.0
    %2859 = vmatpush1.msra.mxu0 0.0
    %2860 = vmatprep.subr.mxu0 0.0
    %2861 = vmatpush1.msra.mxu0 0.0
    %2862 = vmatprep.subr.mxu0 0.0
    %2863 = vmatpush1.msra.mxu0 0.0
    %2864 = vmatprep.subr.mxu0 0.0
    %2865 = vmatpush1.msra.mxu0 0.0
    %2866 = vmatprep.subr.mxu0 0.0
    %2867 = vmatpush1.msra.mxu0 0.0
    %2868 = vmatprep.subr.mxu0 0.0
    %2869 = vmatpush1.msra.mxu0 0.0
    %2870 = vmatprep.subr.mxu0 0.0
    %2871 = vmatpush1.msra.mxu0 0.0
    %2872 = vmatprep.subr.mxu0 0.0
    %2873 = vmatpush1.msra.mxu0 0.0
    %2874 = vmatprep.subr.mxu0 0.0
    %2875 = vmatpush1.msra.mxu0 0.0
    %2876 = vmatprep.subr.mxu0 0.0
    %2877 = vmatpush1.msra.mxu0 0.0
    %2878 = vmatprep.subr.mxu0 0.0
    %2879 = vmatpush1.msra.mxu0 0.0
    %2880 = vmatprep.subr.mxu0 0.0
    %2881 = vmatpush1.msra.mxu0 0.0
    %2882 = vmatprep.mubr.f32.mxu0 0.0
    %2883 = vmatmul.mubr.f32.gmra.mrb[0].mxu0 %v2816
    %v2884 = vpop.f32.mrb[0].mxu0
    %v2885 = vadd.f32 %v2812, %v2884
    %v2886 = vpop.f32.mrb[0].mxu0
    %2887 = vdwg.mxu0
    %v2888 = vadd.f32 %v2885, %v224
    %2889 = vmatprep.subr.mxu0 0.0
    %2890 = vmatpush1.msra.mxu0 %v207
    %2891 = vmatprep.subr.mxu0 0.0
    %2892 = vmatpush1.msra.mxu0 %v208
    %2893 = vmatprep.subr.mxu0 0.0
    %2894 = vmatpush1.msra.mxu0 %v209
    %2895 = vmatprep.subr.mxu0 0.0
    %2896 = vmatpush1.msra.mxu0 %v210
    %2897 = vmatprep.subr.mxu0 0.0
    %2898 = vmatpush1.msra.mxu0 0.0
    %2899 = vmatprep.subr.mxu0 0.0
    %2900 = vmatpush1.msra.mxu0 0.0
    %2901 = vmatprep.subr.mxu0 0.0
    %2902 = vmatpush1.msra.mxu0 0.0
    %2903 = vmatprep.subr.mxu0 0.0
    %2904 = vmatpush1.msra.mxu0 0.0
    %2905 = vmatprep.subr.mxu0 0.0
    %2906 = vmatpush1.msra.mxu0 0.0
    %2907 = vmatprep.subr.mxu0 0.0
    %2908 = vmatpush1.msra.mxu0 0.0
    %2909 = vmatprep.subr.mxu0 0.0
    %2910 = vmatpush1.msra.mxu0 0.0
    %2911 = vmatprep.subr.mxu0 0.0
    %2912 = vmatpush1.msra.mxu0 0.0
    %2913 = vmatprep.subr.mxu0 0.0
    %2914 = vmatpush1.msra.mxu0 0.0
    %2915 = vmatprep.subr.mxu0 0.0
    %2916 = vmatpush1.msra.mxu0 0.0
    %2917 = vmatprep.subr.mxu0 0.0
    %2918 = vmatpush1.msra.mxu0 0.0
    %2919 = vmatprep.subr.mxu0 0.0
    %2920 = vmatpush1.msra.mxu0 0.0
    %2921 = vmatprep.subr.mxu0 0.0
    %2922 = vmatpush1.msra.mxu0 0.0
    %2923 = vmatprep.subr.mxu0 0.0
    %2924 = vmatpush1.msra.mxu0 0.0
    %2925 = vmatprep.subr.mxu0 0.0
    %2926 = vmatpush1.msra.mxu0 0.0
    %2927 = vmatprep.subr.mxu0 0.0
    %2928 = vmatpush1.msra.mxu0 0.0
    %2929 = vmatprep.subr.mxu0 0.0
    %2930 = vmatpush1.msra.mxu0 0.0
    %2931 = vmatprep.subr.mxu0 0.0
    %2932 = vmatpush1.msra.mxu0 0.0
    %2933 = vmatprep.subr.mxu0 0.0
    %2934 = vmatpush1.msra.mxu0 0.0
    %2935 = vmatprep.subr.mxu0 0.0
    %2936 = vmatpush1.msra.mxu0 0.0
    %2937 = vmatprep.subr.mxu0 0.0
    %2938 = vmatpush1.msra.mxu0 0.0
    %2939 = vmatprep.subr.mxu0 0.0
    %2940 = vmatpush1.msra.mxu0 0.0
    %2941 = vmatprep.subr.mxu0 0.0
    %2942 = vmatpush1.msra.mxu0 0.0
    %2943 = vmatprep.subr.mxu0 0.0
    %2944 = vmatpush1.msra.mxu0 0.0
    %2945 = vmatprep.subr.mxu0 0.0
    %2946 = vmatpush1.msra.mxu0 0.0
    %2947 = vmatprep.subr.mxu0 0.0
    %2948 = vmatpush1.msra.mxu0 0.0
    %2949 = vmatprep.subr.mxu0 0.0
    %2950 = vmatpush1.msra.mxu0 0.0
    %2951 = vmatprep.subr.mxu0 0.0
    %2952 = vmatpush1.msra.mxu0 0.0
    %2953 = vmatprep.mubr.f32.mxu0 0.0
    %2954 = vmatmul.mubr.f32.gmra.mrb[0].mxu0 %v2643
    %v2955 = vpop.f32.mrb[0].mxu0
    %v2956 = vadd.f32 0.0, %v2955
    %v2957 = vpop.f32.mrb[0].mxu0
    %2958 = vdwg.mxu0
    %v2959 = vadd.f32 %v2888, %v2956
    %v2960 = vmul.f32 %v2959, 0.5
    %v2961 = vtanh.pop %v2960
    %v2962 = vmul.f32 %v2961, 0.5
    %v2963 = vadd.f32 %v2962, 0.5
    %v2964 = vtanh.pop %v2959
    %v2965 = vmul.f32 %v2963, %v2558
    %2967 = vrot.lane.b32.xlu0 %v2964, 32
    %v2968 = vpop.permute.xlu0 %2967
    %v2970 = vmul.f32 %v2963, %v2968
    %2972 = vrot.lane.b32.xlu0 %v2970, 32
    %v2973 = vpop.permute.xlu0 %2972
    %v2975 = vadd.f32 %v2965, %v2973
    %v2976 = vtanh.pop %v2975
    %2978 = vrot.lane.b32.xlu0 %v2976, 32
    %v2979 = vpop.permute.xlu0 %2978
    %v2981 = vmul.f32 %v2963, %v2979
    %2983 = vrot.lane.b32.xlu0 %v2737, 64
    %v2984 = vpop.permute.xlu0 %2983
    %v2985 = vsel %vm388, %v2984, 0
    %2987 = vmatprep.subr.mxu0 0.0
    %2988 = vmatpush1.msra.mxu0 %v215
    %2989 = vmatprep.subr.mxu0 0.0
    %2990 = vmatpush1.msra.mxu0 %v216
    %2991 = vmatprep.subr.mxu0 0.0
    %2992 = vmatpush1.msra.mxu0 %v217
    %2993 = vmatprep.subr.mxu0 0.0
    %2994 = vmatpush1.msra.mxu0 %v218
    %2995 = vmatprep.subr.mxu0 0.0
    %2996 = vmatpush1.msra.mxu0 0.0
    %2997 = vmatprep.subr.mxu0 0.0
    %2998 = vmatpush1.msra.mxu0 0.0
    %2999 = vmatprep.subr.mxu0 0.0
    %3000 = vmatpush1.msra.mxu0 0.0
    %3001 = vmatprep.subr.mxu0 0.0
    %3002 = vmatpush1.msra.mxu0 0.0
    %3003 = vmatprep.subr.mxu0 0.0
    %3004 = vmatpush1.msra.mxu0 0.0
    %3005 = vmatprep.subr.mxu0 0.0
    %3006 = vmatpush1.msra.mxu0 0.0
    %3007 = vmatprep.subr.mxu0 0.0
    %3008 = vmatpush1.msra.mxu0 0.0
    %3009 = vmatprep.subr.mxu0 0.0
    %3010 = vmatpush1.msra.mxu0 0.0
    %3011 = vmatprep.subr.mxu0 0.0
    %3012 = vmatpush1.msra.mxu0 0.0
    %3013 = vmatprep.subr.mxu0 0.0
    %3014 = vmatpush1.msra.mxu0 0.0
    %3015 = vmatprep.subr.mxu0 0.0
    %3016 = vmatpush1.msra.mxu0 0.0
    %3017 = vmatprep.subr.mxu0 0.0
    %3018 = vmatpush1.msra.mxu0 0.0
    %3019 = vmatprep.subr.mxu0 0.0
    %3020 = vmatpush1.msra.mxu0 0.0
    %3021 = vmatprep.subr.mxu0 0.0
    %3022 = vmatpush1.msra.mxu0 0.0
    %3023 = vmatprep.subr.mxu0 0.0
    %3024 = vmatpush1.msra.mxu0 0.0
    %3025 = vmatprep.subr.mxu0 0.0
    %3026 = vmatpush1.msra.mxu0 0.0
    %3027 = vmatprep.subr.mxu0 0.0
    %3028 = vmatpush1.msra.mxu0 0.0
    %3029 = vmatprep.subr.mxu0 0.0
    %3030 = vmatpush1.msra.mxu0 0.0
    %3031 = vmatprep.subr.mxu0 0.0
    %3032 = vmatpush1.msra.mxu0 0.0
    %3033 = vmatprep.subr.mxu0 0.0
    %3034 = vmatpush1.msra.mxu0 0.0
    %3035 = vmatprep.subr.mxu0 0.0
    %3036 = vmatpush1.msra.mxu0 0.0
    %3037 = vmatprep.subr.mxu0 0.0
    %3038 = vmatpush1.msra.mxu0 0.0
    %3039 = vmatprep.subr.mxu0 0.0
    %3040 = vmatpush1.msra.mxu0 0.0
    %3041 = vmatprep.subr.mxu0 0.0
    %3042 = vmatpush1.msra.mxu0 0.0
    %3043 = vmatprep.subr.mxu0 0.0
    %3044 = vmatpush1.msra.mxu0 0.0
    %3045 = vmatprep.subr.mxu0 0.0
    %3046 = vmatpush1.msra.mxu0 0.0
    %3047 = vmatprep.subr.mxu0 0.0
    %3048 = vmatpush1.msra.mxu0 0.0
    %3049 = vmatprep.subr.mxu0 0.0
    %3050 = vmatpush1.msra.mxu0 0.0
    %3051 = vmatprep.mubr.f32.mxu0 0.0
    %3052 = vmatmul.mubr.f32.gmra.mrb[0].mxu0 %v2985
    %v3053 = vpop.f32.mrb[0].mxu0
    %v3054 = vadd.f32 0.0, %v3053
    %v3055 = vpop.f32.mrb[0].mxu0
    %3056 = vdwg.mxu0
    %3058 = vrot.lane.b32.xlu0 %v2981, 64
    %v3059 = vpop.permute.xlu0 %3058
    %v3060 = vsel %vm388, %v3059, 0
    %3062 = vmatprep.subr.mxu0 0.0
    %3063 = vmatpush1.msra.mxu0 %v211
    %3064 = vmatprep.subr.mxu0 0.0
    %3065 = vmatpush1.msra.mxu0 %v212
    %3066 = vmatprep.subr.mxu0 0.0
    %3067 = vmatpush1.msra.mxu0 %v213
    %3068 = vmatprep.subr.mxu0 0.0
    %3069 = vmatpush1.msra.mxu0 %v214
    %3070 = vmatprep.subr.mxu0 0.0
    %3071 = vmatpush1.msra.mxu0 0.0
    %3072 = vmatprep.subr.mxu0 0.0
    %3073 = vmatpush1.msra.mxu0 0.0
    %3074 = vmatprep.subr.mxu0 0.0
    %3075 = vmatpush1.msra.mxu0 0.0
    %3076 = vmatprep.subr.mxu0 0.0
    %3077 = vmatpush1.msra.mxu0 0.0
    %3078 = vmatprep.subr.mxu0 0.0
    %3079 = vmatpush1.msra.mxu0 0.0
    %3080 = vmatprep.subr.mxu0 0.0
    %3081 = vmatpush1.msra.mxu0 0.0
    %3082 = vmatprep.subr.mxu0 0.0
    %3083 = vmatpush1.msra.mxu0 0.0
    %3084 = vmatprep.subr.mxu0 0.0
    %3085 = vmatpush1.msra.mxu0 0.0
    %3086 = vmatprep.subr.mxu0 0.0
    %3087 = vmatpush1.msra.mxu0 0.0
    %3088 = vmatprep.subr.mxu0 0.0
    %3089 = vmatpush1.msra.mxu0 0.0
    %3090 = vmatprep.subr.mxu0 0.0
    %3091 = vmatpush1.msra.mxu0 0.0
    %3092 = vmatprep.subr.mxu0 0.0
    %3093 = vmatpush1.msra.mxu0 0.0
    %3094 = vmatprep.subr.mxu0 0.0
    %3095 = vmatpush1.msra.mxu0 0.0
    %3096 = vmatprep.subr.mxu0 0.0
    %3097 = vmatpush1.msra.mxu0 0.0
    %3098 = vmatprep.subr.mxu0 0.0
    %3099 = vmatpush1.msra.mxu0 0.0
    %3100 = vmatprep.subr.mxu0 0.0
    %3101 = vmatpush1.msra.mxu0 0.0
    %3102 = vmatprep.subr.mxu0 0.0
    %3103 = vmatpush1.msra.mxu0 0.0
    %3104 = vmatprep.subr.mxu0 0.0
    %3105 = vmatpush1.msra.mxu0 0.0
    %3106 = vmatprep.subr.mxu0 0.0
    %3107 = vmatpush1.msra.mxu0 0.0
    %3108 = vmatprep.subr.mxu0 0.0
    %3109 = vmatpush1.msra.mxu0 0.0
    %3110 = vmatprep.subr.mxu0 0.0
    %3111 = vmatpush1.msra.mxu0 0.0
    %3112 = vmatprep.subr.mxu0 0.0
    %3113 = vmatpush1.msra.mxu0 0.0
    %3114 = vmatprep.subr.mxu0 0.0
    %3115 = vmatpush1.msra.mxu0 0.0
    %3116 = vmatprep.subr.mxu0 0.0
    %3117 = vmatpush1.msra.mxu0 0.0
    %3118 = vmatprep.subr.mxu0 0.0
    %3119 = vmatpush1.msra.mxu0 0.0
    %3120 = vmatprep.subr.mxu0 0.0
    %3121 = vmatpush1.msra.mxu0 0.0
    %3122 = vmatprep.subr.mxu0 0.0
    %3123 = vmatpush1.msra.mxu0 0.0
    %3124 = vmatprep.subr.mxu0 0.0
    %3125 = vmatpush1.msra.mxu0 0.0
    %3126 = vmatprep.mubr.f32.mxu0 0.0
    %3127 = vmatmul.mubr.f32.gmra.mrb[0].mxu0 %v3060
    %v3128 = vpop.f32.mrb[0].mxu0
    %v3129 = vadd.f32 %v3054, %v3128
    %v3130 = vpop.f32.mrb[0].mxu0
    %3131 = vdwg.mxu0
    %v3132 = vadd.f32 %v3129, %v231
    %v3133 = vmul.f32 %v3132, 0.5
    %v3134 = vtanh.pop %v3133
    %v3135 = vmul.f32 %v3134, 0.5
    %v3136 = vadd.f32 %v3135, 0.5
    %v3137 = vtanh.pop %v3132
    %v3138 = vmul.f32 %v3136, %v2731
    %3140 = vrot.lane.b32.xlu0 %v3137, 32
    %v3141 = vpop.permute.xlu0 %3140
    %v3143 = vmul.f32 %v3136, %v3141
    %3145 = vrot.lane.b32.xlu0 %v3143, 32
    %v3146 = vpop.permute.xlu0 %3145
    %v3148 = vadd.f32 %v3138, %v3146
    %v3149 = vtanh.pop %v3148
    %3151 = vrot.lane.b32.xlu0 %v3149, 32
    %v3152 = vpop.permute.xlu0 %3151
    %v3154 = vmul.f32 %v3136, %v3152
    %s3155 = scalar_lea.vmem [#allocation2], 14
    %v3156 = vld [vmem:[%s3155] sm:$0x3]
    %s3157 = scalar_lea.vmem [#allocation5], 14
    %v3158 = vld [vmem:[%s3157] sm:$0x3]
    %v3160 = vsel %vm235, %v3158, 0
    %3162 = vmatprep.subr.mxu0 0.0
    %3163 = vmatpush1.msra.mxu0 %v206
    %3164 = vmatprep.subr.mxu0 0.0
    %3165 = vmatpush1.msra.mxu0 0.0
    %3166 = vmatprep.subr.mxu0 0.0
    %3167 = vmatpush1.msra.mxu0 0.0
    %3168 = vmatprep.subr.mxu0 0.0
    %3169 = vmatpush1.msra.mxu0 0.0
    %3170 = vmatprep.subr.mxu0 0.0
    %3171 = vmatpush1.msra.mxu0 0.0
    %3172 = vmatprep.subr.mxu0 0.0
    %3173 = vmatpush1.msra.mxu0 0.0
    %3174 = vmatprep.subr.mxu0 0.0
    %3175 = vmatpush1.msra.mxu0 0.0
    %3176 = vmatprep.subr.mxu0 0.0
    %3177 = vmatpush1.msra.mxu0 0.0
    %3178 = vmatprep.subr.mxu0 0.0
    %3179 = vmatpush1.msra.mxu0 0.0
    %3180 = vmatprep.subr.mxu0 0.0
    %3181 = vmatpush1.msra.mxu0 0.0
    %3182 = vmatprep.subr.mxu0 0.0
    %3183 = vmatpush1.msra.mxu0 0.0
    %3184 = vmatprep.subr.mxu0 0.0
    %3185 = vmatpush1.msra.mxu0 0.0
    %3186 = vmatprep.subr.mxu0 0.0
    %3187 = vmatpush1.msra.mxu0 0.0
    %3188 = vmatprep.subr.mxu0 0.0
    %3189 = vmatpush1.msra.mxu0 0.0
    %3190 = vmatprep.subr.mxu0 0.0
    %3191 = vmatpush1.msra.mxu0 0.0
    %3192 = vmatprep.subr.mxu0 0.0
    %3193 = vmatpush1.msra.mxu0 0.0
    %3194 = vmatprep.subr.mxu0 0.0
    %3195 = vmatpush1.msra.mxu0 0.0
    %3196 = vmatprep.subr.mxu0 0.0
    %3197 = vmatpush1.msra.mxu0 0.0
    %3198 = vmatprep.subr.mxu0 0.0
    %3199 = vmatpush1.msra.mxu0 0.0
    %3200 = vmatprep.subr.mxu0 0.0
    %3201 = vmatpush1.msra.mxu0 0.0
    %3202 = vmatprep.subr.mxu0 0.0
    %3203 = vmatpush1.msra.mxu0 0.0
    %3204 = vmatprep.subr.mxu0 0.0
    %3205 = vmatpush1.msra.mxu0 0.0
    %3206 = vmatprep.subr.mxu0 0.0
    %3207 = vmatpush1.msra.mxu0 0.0
    %3208 = vmatprep.subr.mxu0 0.0
    %3209 = vmatpush1.msra.mxu0 0.0
    %3210 = vmatprep.subr.mxu0 0.0
    %3211 = vmatpush1.msra.mxu0 0.0
    %3212 = vmatprep.subr.mxu0 0.0
    %3213 = vmatpush1.msra.mxu0 0.0
    %3214 = vmatprep.subr.mxu0 0.0
    %3215 = vmatpush1.msra.mxu0 0.0
    %3216 = vmatprep.subr.mxu0 0.0
    %3217 = vmatpush1.msra.mxu0 0.0
    %3218 = vmatprep.subr.mxu0 0.0
    %3219 = vmatpush1.msra.mxu0 0.0
    %3220 = vmatprep.subr.mxu0 0.0
    %3221 = vmatpush1.msra.mxu0 0.0
    %3222 = vmatprep.subr.mxu0 0.0
    %3223 = vmatpush1.msra.mxu0 0.0
    %3224 = vmatprep.subr.mxu0 0.0
    %3225 = vmatpush1.msra.mxu0 0.0
    %3226 = vmatprep.mubr.f32.mxu0 0.0
    %3227 = vmatmul.mubr.f32.gmra.mrb[0].mxu0 %v3160
    %v3228 = vpop.f32.mrb[0].mxu0
    %v3229 = vadd.f32 0.0, %v3228
    %v3230 = vpop.f32.mrb[0].mxu0
    %3231 = vdwg.mxu0
    %v3233 = vsel %vm309, %v3156, 0
    %3235 = vmatprep.subr.mxu0 0.0
    %3236 = vmatpush1.msra.mxu0 %v204
    %3237 = vmatprep.subr.mxu0 0.0
    %3238 = vmatpush1.msra.mxu0 %v315
    %3239 = vmatprep.subr.mxu0 0.0
    %3240 = vmatpush1.msra.mxu0 0.0
    %3241 = vmatprep.subr.mxu0 0.0
    %3242 = vmatpush1.msra.mxu0 0.0
    %3243 = vmatprep.subr.mxu0 0.0
    %3244 = vmatpush1.msra.mxu0 0.0
    %3245 = vmatprep.subr.mxu0 0.0
    %3246 = vmatpush1.msra.mxu0 0.0
    %3247 = vmatprep.subr.mxu0 0.0
    %3248 = vmatpush1.msra.mxu0 0.0
    %3249 = vmatprep.subr.mxu0 0.0
    %3250 = vmatpush1.msra.mxu0 0.0
    %3251 = vmatprep.subr.mxu0 0.0
    %3252 = vmatpush1.msra.mxu0 0.0
    %3253 = vmatprep.subr.mxu0 0.0
    %3254 = vmatpush1.msra.mxu0 0.0
    %3255 = vmatprep.subr.mxu0 0.0
    %3256 = vmatpush1.msra.mxu0 0.0
    %3257 = vmatprep.subr.mxu0 0.0
    %3258 = vmatpush1.msra.mxu0 0.0
    %3259 = vmatprep.subr.mxu0 0.0
    %3260 = vmatpush1.msra.mxu0 0.0
    %3261 = vmatprep.subr.mxu0 0.0
    %3262 = vmatpush1.msra.mxu0 0.0
    %3263 = vmatprep.subr.mxu0 0.0
    %3264 = vmatpush1.msra.mxu0 0.0
    %3265 = vmatprep.subr.mxu0 0.0
    %3266 = vmatpush1.msra.mxu0 0.0
    %3267 = vmatprep.subr.mxu0 0.0
    %3268 = vmatpush1.msra.mxu0 0.0
    %3269 = vmatprep.subr.mxu0 0.0
    %3270 = vmatpush1.msra.mxu0 0.0
    %3271 = vmatprep.subr.mxu0 0.0
    %3272 = vmatpush1.msra.mxu0 0.0
    %3273 = vmatprep.subr.mxu0 0.0
    %3274 = vmatpush1.msra.mxu0 0.0
    %3275 = vmatprep.subr.mxu0 0.0
    %3276 = vmatpush1.msra.mxu0 0.0
    %3277 = vmatprep.subr.mxu0 0.0
    %3278 = vmatpush1.msra.mxu0 0.0
    %3279 = vmatprep.subr.mxu0 0.0
    %3280 = vmatpush1.msra.mxu0 0.0
    %3281 = vmatprep.subr.mxu0 0.0
    %3282 = vmatpush1.msra.mxu0 0.0
    %3283 = vmatprep.subr.mxu0 0.0
    %3284 = vmatpush1.msra.mxu0 0.0
    %3285 = vmatprep.subr.mxu0 0.0
    %3286 = vmatpush1.msra.mxu0 0.0
    %3287 = vmatprep.subr.mxu0 0.0
    %3288 = vmatpush1.msra.mxu0 0.0
    %3289 = vmatprep.subr.mxu0 0.0
    %3290 = vmatpush1.msra.mxu0 0.0
    %3291 = vmatprep.subr.mxu0 0.0
    %3292 = vmatpush1.msra.mxu0 0.0
    %3293 = vmatprep.subr.mxu0 0.0
    %3294 = vmatpush1.msra.mxu0 0.0
    %3295 = vmatprep.subr.mxu0 0.0
    %3296 = vmatpush1.msra.mxu0 0.0
    %3297 = vmatprep.subr.mxu0 0.0
    %3298 = vmatpush1.msra.mxu0 0.0
    %3299 = vmatprep.mubr.f32.mxu0 0.0
    %3300 = vmatmul.mubr.f32.gmra.mrb[0].mxu0 %v3233
    %v3301 = vpop.f32.mrb[0].mxu0
    %v3302 = vadd.f32 %v3229, %v3301
    %v3303 = vpop.f32.mrb[0].mxu0
    %3304 = vdwg.mxu0
    %v3305 = vadd.f32 %v3302, %v224
    %3306 = vmatprep.subr.mxu0 0.0
    %3307 = vmatpush1.msra.mxu0 %v207
    %3308 = vmatprep.subr.mxu0 0.0
    %3309 = vmatpush1.msra.mxu0 %v208
    %3310 = vmatprep.subr.mxu0 0.0
    %3311 = vmatpush1.msra.mxu0 %v209
    %3312 = vmatprep.subr.mxu0 0.0
    %3313 = vmatpush1.msra.mxu0 %v210
    %3314 = vmatprep.subr.mxu0 0.0
    %3315 = vmatpush1.msra.mxu0 0.0
    %3316 = vmatprep.subr.mxu0 0.0
    %3317 = vmatpush1.msra.mxu0 0.0
    %3318 = vmatprep.subr.mxu0 0.0
    %3319 = vmatpush1.msra.mxu0 0.0
    %3320 = vmatprep.subr.mxu0 0.0
    %3321 = vmatpush1.msra.mxu0 0.0
    %3322 = vmatprep.subr.mxu0 0.0
    %3323 = vmatpush1.msra.mxu0 0.0
    %3324 = vmatprep.subr.mxu0 0.0
    %3325 = vmatpush1.msra.mxu0 0.0
    %3326 = vmatprep.subr.mxu0 0.0
    %3327 = vmatpush1.msra.mxu0 0.0
    %3328 = vmatprep.subr.mxu0 0.0
    %3329 = vmatpush1.msra.mxu0 0.0
    %3330 = vmatprep.subr.mxu0 0.0
    %3331 = vmatpush1.msra.mxu0 0.0
    %3332 = vmatprep.subr.mxu0 0.0
    %3333 = vmatpush1.msra.mxu0 0.0
    %3334 = vmatprep.subr.mxu0 0.0
    %3335 = vmatpush1.msra.mxu0 0.0
    %3336 = vmatprep.subr.mxu0 0.0
    %3337 = vmatpush1.msra.mxu0 0.0
    %3338 = vmatprep.subr.mxu0 0.0
    %3339 = vmatpush1.msra.mxu0 0.0
    %3340 = vmatprep.subr.mxu0 0.0
    %3341 = vmatpush1.msra.mxu0 0.0
    %3342 = vmatprep.subr.mxu0 0.0
    %3343 = vmatpush1.msra.mxu0 0.0
    %3344 = vmatprep.subr.mxu0 0.0
    %3345 = vmatpush1.msra.mxu0 0.0
    %3346 = vmatprep.subr.mxu0 0.0
    %3347 = vmatpush1.msra.mxu0 0.0
    %3348 = vmatprep.subr.mxu0 0.0
    %3349 = vmatpush1.msra.mxu0 0.0
    %3350 = vmatprep.subr.mxu0 0.0
    %3351 = vmatpush1.msra.mxu0 0.0
    %3352 = vmatprep.subr.mxu0 0.0
    %3353 = vmatpush1.msra.mxu0 0.0
    %3354 = vmatprep.subr.mxu0 0.0
    %3355 = vmatpush1.msra.mxu0 0.0
    %3356 = vmatprep.subr.mxu0 0.0
    %3357 = vmatpush1.msra.mxu0 0.0
    %3358 = vmatprep.subr.mxu0 0.0
    %3359 = vmatpush1.msra.mxu0 0.0
    %3360 = vmatprep.subr.mxu0 0.0
    %3361 = vmatpush1.msra.mxu0 0.0
    %3362 = vmatprep.subr.mxu0 0.0
    %3363 = vmatpush1.msra.mxu0 0.0
    %3364 = vmatprep.subr.mxu0 0.0
    %3365 = vmatpush1.msra.mxu0 0.0
    %3366 = vmatprep.subr.mxu0 0.0
    %3367 = vmatpush1.msra.mxu0 0.0
    %3368 = vmatprep.subr.mxu0 0.0
    %3369 = vmatpush1.msra.mxu0 0.0
    %3370 = vmatprep.mubr.f32.mxu0 0.0
    %3371 = vmatmul.mubr.f32.gmra.mrb[0].mxu0 %v3060
    %v3372 = vpop.f32.mrb[0].mxu0
    %v3373 = vadd.f32 0.0, %v3372
    %v3374 = vpop.f32.mrb[0].mxu0
    %3375 = vdwg.mxu0
    %v3376 = vadd.f32 %v3305, %v3373
    %v3377 = vmul.f32 %v3376, 0.5
    %v3378 = vtanh.pop %v3377
    %v3379 = vmul.f32 %v3378, 0.5
    %v3380 = vadd.f32 %v3379, 0.5
    %v3381 = vtanh.pop %v3376
    %v3382 = vmul.f32 %v3380, %v2975
    %3384 = vrot.lane.b32.xlu0 %v3381, 32
    %v3385 = vpop.permute.xlu0 %3384
    %v3387 = vmul.f32 %v3380, %v3385
    %3389 = vrot.lane.b32.xlu0 %v3387, 32
    %v3390 = vpop.permute.xlu0 %3389
    %v3392 = vadd.f32 %v3382, %v3390
    %v3393 = vtanh.pop %v3392
    %3395 = vrot.lane.b32.xlu0 %v3393, 32
    %v3396 = vpop.permute.xlu0 %3395
    %v3398 = vmul.f32 %v3380, %v3396
    %3400 = vrot.lane.b32.xlu0 %v3154, 64
    %v3401 = vpop.permute.xlu0 %3400
    %v3402 = vsel %vm388, %v3401, 0
    %3404 = vmatprep.subr.mxu0 0.0
    %3405 = vmatpush1.msra.mxu0 %v215
    %3406 = vmatprep.subr.mxu0 0.0
    %3407 = vmatpush1.msra.mxu0 %v216
    %3408 = vmatprep.subr.mxu0 0.0
    %3409 = vmatpush1.msra.mxu0 %v217
    %3410 = vmatprep.subr.mxu0 0.0
    %3411 = vmatpush1.msra.mxu0 %v218
    %3412 = vmatprep.subr.mxu0 0.0
    %3413 = vmatpush1.msra.mxu0 0.0
    %3414 = vmatprep.subr.mxu0 0.0
    %3415 = vmatpush1.msra.mxu0 0.0
    %3416 = vmatprep.subr.mxu0 0.0
    %3417 = vmatpush1.msra.mxu0 0.0
    %3418 = vmatprep.subr.mxu0 0.0
    %3419 = vmatpush1.msra.mxu0 0.0
    %3420 = vmatprep.subr.mxu0 0.0
    %3421 = vmatpush1.msra.mxu0 0.0
    %3422 = vmatprep.subr.mxu0 0.0
    %3423 = vmatpush1.msra.mxu0 0.0
    %3424 = vmatprep.subr.mxu0 0.0
    %3425 = vmatpush1.msra.mxu0 0.0
    %3426 = vmatprep.subr.mxu0 0.0
    %3427 = vmatpush1.msra.mxu0 0.0
    %3428 = vmatprep.subr.mxu0 0.0
    %3429 = vmatpush1.msra.mxu0 0.0
    %3430 = vmatprep.subr.mxu0 0.0
    %3431 = vmatpush1.msra.mxu0 0.0
    %3432 = vmatprep.subr.mxu0 0.0
    %3433 = vmatpush1.msra.mxu0 0.0
    %3434 = vmatprep.subr.mxu0 0.0
    %3435 = vmatpush1.msra.mxu0 0.0
    %3436 = vmatprep.subr.mxu0 0.0
    %3437 = vmatpush1.msra.mxu0 0.0
    %3438 = vmatprep.subr.mxu0 0.0
    %3439 = vmatpush1.msra.mxu0 0.0
    %3440 = vmatprep.subr.mxu0 0.0
    %3441 = vmatpush1.msra.mxu0 0.0
    %3442 = vmatprep.subr.mxu0 0.0
    %3443 = vmatpush1.msra.mxu0 0.0
    %3444 = vmatprep.subr.mxu0 0.0
    %3445 = vmatpush1.msra.mxu0 0.0
    %3446 = vmatprep.subr.mxu0 0.0
    %3447 = vmatpush1.msra.mxu0 0.0
    %3448 = vmatprep.subr.mxu0 0.0
    %3449 = vmatpush1.msra.mxu0 0.0
    %3450 = vmatprep.subr.mxu0 0.0
    %3451 = vmatpush1.msra.mxu0 0.0
    %3452 = vmatprep.subr.mxu0 0.0
    %3453 = vmatpush1.msra.mxu0 0.0
    %3454 = vmatprep.subr.mxu0 0.0
    %3455 = vmatpush1.msra.mxu0 0.0
    %3456 = vmatprep.subr.mxu0 0.0
    %3457 = vmatpush1.msra.mxu0 0.0
    %3458 = vmatprep.subr.mxu0 0.0
    %3459 = vmatpush1.msra.mxu0 0.0
    %3460 = vmatprep.subr.mxu0 0.0
    %3461 = vmatpush1.msra.mxu0 0.0
    %3462 = vmatprep.subr.mxu0 0.0
    %3463 = vmatpush1.msra.mxu0 0.0
    %3464 = vmatprep.subr.mxu0 0.0
    %3465 = vmatpush1.msra.mxu0 0.0
    %3466 = vmatprep.subr.mxu0 0.0
    %3467 = vmatpush1.msra.mxu0 0.0
    %3468 = vmatprep.mubr.f32.mxu0 0.0
    %3469 = vmatmul.mubr.f32.gmra.mrb[0].mxu0 %v3402
    %v3470 = vpop.f32.mrb[0].mxu0
    %v3471 = vadd.f32 0.0, %v3470
    %v3472 = vpop.f32.mrb[0].mxu0
    %3473 = vdwg.mxu0
    %3475 = vrot.lane.b32.xlu0 %v3398, 64
    %v3476 = vpop.permute.xlu0 %3475
    %v3477 = vsel %vm388, %v3476, 0
    %3479 = vmatprep.subr.mxu0 0.0
    %3480 = vmatpush1.msra.mxu0 %v211
    %3481 = vmatprep.subr.mxu0 0.0
    %3482 = vmatpush1.msra.mxu0 %v212
    %3483 = vmatprep.subr.mxu0 0.0
    %3484 = vmatpush1.msra.mxu0 %v213
    %3485 = vmatprep.subr.mxu0 0.0
    %3486 = vmatpush1.msra.mxu0 %v214
    %3487 = vmatprep.subr.mxu0 0.0
    %3488 = vmatpush1.msra.mxu0 0.0
    %3489 = vmatprep.subr.mxu0 0.0
    %3490 = vmatpush1.msra.mxu0 0.0
    %3491 = vmatprep.subr.mxu0 0.0
    %3492 = vmatpush1.msra.mxu0 0.0
    %3493 = vmatprep.subr.mxu0 0.0
    %3494 = vmatpush1.msra.mxu0 0.0
    %3495 = vmatprep.subr.mxu0 0.0
    %3496 = vmatpush1.msra.mxu0 0.0
    %3497 = vmatprep.subr.mxu0 0.0
    %3498 = vmatpush1.msra.mxu0 0.0
    %3499 = vmatprep.subr.mxu0 0.0
    %3500 = vmatpush1.msra.mxu0 0.0
    %3501 = vmatprep.subr.mxu0 0.0
    %3502 = vmatpush1.msra.mxu0 0.0
    %3503 = vmatprep.subr.mxu0 0.0
    %3504 = vmatpush1.msra.mxu0 0.0
    %3505 = vmatprep.subr.mxu0 0.0
    %3506 = vmatpush1.msra.mxu0 0.0
    %3507 = vmatprep.subr.mxu0 0.0
    %3508 = vmatpush1.msra.mxu0 0.0
    %3509 = vmatprep.subr.mxu0 0.0
    %3510 = vmatpush1.msra.mxu0 0.0
    %3511 = vmatprep.subr.mxu0 0.0
    %3512 = vmatpush1.msra.mxu0 0.0
    %3513 = vmatprep.subr.mxu0 0.0
    %3514 = vmatpush1.msra.mxu0 0.0
    %3515 = vmatprep.subr.mxu0 0.0
    %3516 = vmatpush1.msra.mxu0 0.0
    %3517 = vmatprep.subr.mxu0 0.0
    %3518 = vmatpush1.msra.mxu0 0.0
    %3519 = vmatprep.subr.mxu0 0.0
    %3520 = vmatpush1.msra.mxu0 0.0
    %3521 = vmatprep.subr.mxu0 0.0
    %3522 = vmatpush1.msra.mxu0 0.0
    %3523 = vmatprep.subr.mxu0 0.0
    %3524 = vmatpush1.msra.mxu0 0.0
    %3525 = vmatprep.subr.mxu0 0.0
    %3526 = vmatpush1.msra.mxu0 0.0
    %3527 = vmatprep.subr.mxu0 0.0
    %3528 = vmatpush1.msra.mxu0 0.0
    %3529 = vmatprep.subr.mxu0 0.0
    %3530 = vmatpush1.msra.mxu0 0.0
    %3531 = vmatprep.subr.mxu0 0.0
    %3532 = vmatpush1.msra.mxu0 0.0
    %3533 = vmatprep.subr.mxu0 0.0
    %3534 = vmatpush1.msra.mxu0 0.0
    %3535 = vmatprep.subr.mxu0 0.0
    %3536 = vmatpush1.msra.mxu0 0.0
    %3537 = vmatprep.subr.mxu0 0.0
    %3538 = vmatpush1.msra.mxu0 0.0
    %3539 = vmatprep.subr.mxu0 0.0
    %3540 = vmatpush1.msra.mxu0 0.0
    %3541 = vmatprep.subr.mxu0 0.0
    %3542 = vmatpush1.msra.mxu0 0.0
    %3543 = vmatprep.mubr.f32.mxu0 0.0
    %3544 = vmatmul.mubr.f32.gmra.mrb[0].mxu0 %v3477
    %v3545 = vpop.f32.mrb[0].mxu0
    %v3546 = vadd.f32 %v3471, %v3545
    %v3547 = vpop.f32.mrb[0].mxu0
    %3548 = vdwg.mxu0
    %v3549 = vadd.f32 %v3546, %v231
    %v3550 = vmul.f32 %v3549, 0.5
    %v3551 = vtanh.pop %v3550
    %v3552 = vmul.f32 %v3551, 0.5
    %v3553 = vadd.f32 %v3552, 0.5
    %v3554 = vtanh.pop %v3549
    %v3555 = vmul.f32 %v3553, %v3148
    %3557 = vrot.lane.b32.xlu0 %v3554, 32
    %v3558 = vpop.permute.xlu0 %3557
    %v3560 = vmul.f32 %v3553, %v3558
    %3562 = vrot.lane.b32.xlu0 %v3560, 32
    %v3563 = vpop.permute.xlu0 %3562
    %v3565 = vadd.f32 %v3555, %v3563
    %v3566 = vtanh.pop %v3565
    %3568 = vrot.lane.b32.xlu0 %v3566, 32
    %v3569 = vpop.permute.xlu0 %3568
    %v3571 = vmul.f32 %v3553, %v3569
    %v3572 = vld [vmem:[#allocation13] sm:$0xff]
    %v3573 = vld [vmem:[#allocation13 + $0x8] sm:$0x3f]
    %v3574 = vld [vmem:[#allocation14] sm:$0x7]
    %v3575 = vld [vmem:[%s12] sm:$0xff]
    %v3576 = vld [vmem:[%s12 + $0x8] sm:$0xff]
    %v3577 = vld [vmem:[%s12 + $0x10] sm:$0xff]
    %v3578 = vld [vmem:[%s12 + $0x18] sm:$0xff]
    %v3579 = vld [vmem:[#allocation17] sm:$0xff]
    %v3580 = vld [vmem:[#allocation17 + $0x8] sm:$0xff]
    %v3581 = vld [vmem:[#allocation17 + $0x10] sm:$0xff]
    %v3582 = vld [vmem:[#allocation17 + $0x18] sm:$0xff]
    %v3583 = vld [vmem:[#allocation19] sm:$0xff]
    %v3584 = vld [vmem:[#allocation19 + $0x8] sm:$0xff]
    %v3585 = vld [vmem:[#allocation19 + $0x10] sm:$0xff]
    %v3586 = vld [vmem:[#allocation19 + $0x18] sm:$0xff]
    %v3587 = vld [vmem:[%s17] sm:$0xff]
    %v3588 = vld [vmem:[%s17 + $0x8] sm:$0xff]
    %v3589 = vld [vmem:[%s17 + $0x10] sm:$0xff]
    %v3590 = vld [vmem:[%s17 + $0x18] sm:$0xff]
    %v3591 = vld [vmem:[#allocation16] sm:$0x1]
    %v3593 = vlaneseq
    %v3594 = vshrl.u32 %v3593, 7
    %v3595 = vsub.s32 0, %v3594
    %v3596 = vrot.slane %v3591, %v3595
    %v3598 = vld [vmem:[%s16] sm:$0x1]
    %v3600 = vlaneseq
    %v3601 = vshrl.u32 %v3600, 7
    %v3602 = vsub.s32 0, %v3601
    %v3603 = vrot.slane %v3598, %v3602
    %v3605 = vld [vmem:[%s18] sm:$0x1]
    %v3607 = vlaneseq
    %v3608 = vshrl.u32 %v3607, 7
    %v3609 = vsub.s32 0, %v3608
    %v3610 = vrot.slane %v3605, %v3609
    %v3612 = vld [vmem:[%s2] sm:$0x3]
    %vm3613 = vcmask 23552
    %v3615 = vsel %vm3613, %v3612, 0
    %vm3617 = vcmask 1042432
    %v3619 = vsel %vm3617, %v3574, 0
    %3621 = vmatprep.subr.mxu0 0.0
    %3622 = vmatpush1.msra.mxu0 %v3619
    %3623 = vmatprep.subr.mxu0 0.0
    %3624 = vmatpush1.msra.mxu0 0.0
    %3625 = vmatprep.subr.mxu0 0.0
    %3626 = vmatpush1.msra.mxu0 0.0
    %3627 = vmatprep.subr.mxu0 0.0
    %3628 = vmatpush1.msra.mxu0 0.0
    %3629 = vmatprep.subr.mxu0 0.0
    %3630 = vmatpush1.msra.mxu0 0.0
    %3631 = vmatprep.subr.mxu0 0.0
    %3632 = vmatpush1.msra.mxu0 0.0
    %3633 = vmatprep.subr.mxu0 0.0
    %3634 = vmatpush1.msra.mxu0 0.0
    %3635 = vmatprep.subr.mxu0 0.0
    %3636 = vmatpush1.msra.mxu0 0.0
    %3637 = vmatprep.subr.mxu0 0.0
    %3638 = vmatpush1.msra.mxu0 0.0
    %3639 = vmatprep.subr.mxu0 0.0
    %3640 = vmatpush1.msra.mxu0 0.0
    %3641 = vmatprep.subr.mxu0 0.0
    %3642 = vmatpush1.msra.mxu0 0.0
    %3643 = vmatprep.subr.mxu0 0.0
    %3644 = vmatpush1.msra.mxu0 0.0
    %3645 = vmatprep.subr.mxu0 0.0
    %3646 = vmatpush1.msra.mxu0 0.0
    %3647 = vmatprep.subr.mxu0 0.0
    %3648 = vmatpush1.msra.mxu0 0.0
    %3649 = vmatprep.subr.mxu0 0.0
    %3650 = vmatpush1.msra.mxu0 0.0
    %3651 = vmatprep.subr.mxu0 0.0
    %3652 = vmatpush1.msra.mxu0 0.0
    %3653 = vmatprep.subr.mxu0 0.0
    %3654 = vmatpush1.msra.mxu0 0.0
    %3655 = vmatprep.subr.mxu0 0.0
    %3656 = vmatpush1.msra.mxu0 0.0
    %3657 = vmatprep.subr.mxu0 0.0
    %3658 = vmatpush1.msra.mxu0 0.0
    %3659 = vmatprep.subr.mxu0 0.0
    %3660 = vmatpush1.msra.mxu0 0.0
    %3661 = vmatprep.subr.mxu0 0.0
    %3662 = vmatpush1.msra.mxu0 0.0
    %3663 = vmatprep.subr.mxu0 0.0
    %3664 = vmatpush1.msra.mxu0 0.0
    %3665 = vmatprep.subr.mxu0 0.0
    %3666 = vmatpush1.msra.mxu0 0.0
    %3667 = vmatprep.subr.mxu0 0.0
    %3668 = vmatpush1.msra.mxu0 0.0
    %3669 = vmatprep.subr.mxu0 0.0
    %3670 = vmatpush1.msra.mxu0 0.0
    %3671 = vmatprep.subr.mxu0 0.0
    %3672 = vmatpush1.msra.mxu0 0.0
    %3673 = vmatprep.subr.mxu0 0.0
    %3674 = vmatpush1.msra.mxu0 0.0
    %3675 = vmatprep.subr.mxu0 0.0
    %3676 = vmatpush1.msra.mxu0 0.0
    %3677 = vmatprep.subr.mxu0 0.0
    %3678 = vmatpush1.msra.mxu0 0.0
    %3679 = vmatprep.subr.mxu0 0.0
    %3680 = vmatpush1.msra.mxu0 0.0
    %3681 = vmatprep.subr.mxu0 0.0
    %3682 = vmatpush1.msra.mxu0 0.0
    %3683 = vmatprep.subr.mxu0 0.0
    %3684 = vmatpush1.msra.mxu0 0.0
    %3685 = vmatprep.mubr.f32.mxu0 0.0
    %3686 = vmatmul.mubr.f32.gmra.mrb[0].mxu0 %v3615
    %v3687 = vpop.f32.mrb[0].mxu0
    %v3688 = vadd.f32 %v3596, %v3687
    %v3689 = vpop.f32.mrb[0].mxu0
    %3690 = vdwg.mxu0
    %vm3691 = vcmask 113664
    %v3692 = vsel %vm3691, 0.0, 0
    %vm3694 = vcmask 1045504
    %v3696 = vsel %vm3694, %v3573, 0
    %3698 = vmatprep.subr.mxu0 0.0
    %3699 = vmatpush1.msra.mxu0 %v3572
    %3700 = vmatprep.subr.mxu0 0.0
    %3701 = vmatpush1.msra.mxu0 %v3696
    %3702 = vmatprep.subr.mxu0 0.0
    %3703 = vmatpush1.msra.mxu0 0.0
    %3704 = vmatprep.subr.mxu0 0.0
    %3705 = vmatpush1.msra.mxu0 0.0
    %3706 = vmatprep.subr.mxu0 0.0
    %3707 = vmatpush1.msra.mxu0 0.0
    %3708 = vmatprep.subr.mxu0 0.0
    %3709 = vmatpush1.msra.mxu0 0.0
    %3710 = vmatprep.subr.mxu0 0.0
    %3711 = vmatpush1.msra.mxu0 0.0
    %3712 = vmatprep.subr.mxu0 0.0
    %3713 = vmatpush1.msra.mxu0 0.0
    %3714 = vmatprep.subr.mxu0 0.0
    %3715 = vmatpush1.msra.mxu0 0.0
    %3716 = vmatprep.subr.mxu0 0.0
    %3717 = vmatpush1.msra.mxu0 0.0
    %3718 = vmatprep.subr.mxu0 0.0
    %3719 = vmatpush1.msra.mxu0 0.0
    %3720 = vmatprep.subr.mxu0 0.0
    %3721 = vmatpush1.msra.mxu0 0.0
    %3722 = vmatprep.subr.mxu0 0.0
    %3723 = vmatpush1.msra.mxu0 0.0
    %3724 = vmatprep.subr.mxu0 0.0
    %3725 = vmatpush1.msra.mxu0 0.0
    %3726 = vmatprep.subr.mxu0 0.0
    %3727 = vmatpush1.msra.mxu0 0.0
    %3728 = vmatprep.subr.mxu0 0.0
    %3729 = vmatpush1.msra.mxu0 0.0
    %3730 = vmatprep.subr.mxu0 0.0
    %3731 = vmatpush1.msra.mxu0 0.0
    %3732 = vmatprep.subr.mxu0 0.0
    %3733 = vmatpush1.msra.mxu0 0.0
    %3734 = vmatprep.subr.mxu0 0.0
    %3735 = vmatpush1.msra.mxu0 0.0
    %3736 = vmatprep.subr.mxu0 0.0
    %3737 = vmatpush1.msra.mxu0 0.0
    %3738 = vmatprep.subr.mxu0 0.0
    %3739 = vmatpush1.msra.mxu0 0.0
    %3740 = vmatprep.subr.mxu0 0.0
    %3741 = vmatpush1.msra.mxu0 0.0
    %3742 = vmatprep.subr.mxu0 0.0
    %3743 = vmatpush1.msra.mxu0 0.0
    %3744 = vmatprep.subr.mxu0 0.0
    %3745 = vmatpush1.msra.mxu0 0.0
    %3746 = vmatprep.subr.mxu0 0.0
    %3747 = vmatpush1.msra.mxu0 0.0
    %3748 = vmatprep.subr.mxu0 0.0
    %3749 = vmatpush1.msra.mxu0 0.0
    %3750 = vmatprep.subr.mxu0 0.0
    %3751 = vmatpush1.msra.mxu0 0.0
    %3752 = vmatprep.subr.mxu0 0.0
    %3753 = vmatpush1.msra.mxu0 0.0
    %3754 = vmatprep.subr.mxu0 0.0
    %3755 = vmatpush1.msra.mxu0 0.0
    %3756 = vmatprep.subr.mxu0 0.0
    %3757 = vmatpush1.msra.mxu0 0.0
    %3758 = vmatprep.subr.mxu0 0.0
    %3759 = vmatpush1.msra.mxu0 0.0
    %3760 = vmatprep.subr.mxu0 0.0
    %3761 = vmatpush1.msra.mxu0 0.0
    %3762 = vmatprep.mubr.f32.mxu0 0.0
    %3763 = vmatmul.mubr.f32.gmra.mrb[0].mxu0 %v3692
    %v3764 = vpop.f32.mrb[0].mxu0
    %v3765 = vadd.f32 0.0, %v3764
    %v3766 = vpop.f32.mrb[0].mxu0
    %3767 = vdwg.mxu0
    %v3768 = vadd.f32 %v3688, %v3765
    %3769 = vmatprep.subr.mxu0 0.0
    %3770 = vmatpush1.msra.mxu0 %v3575
    %3771 = vmatprep.subr.mxu0 0.0
    %3772 = vmatpush1.msra.mxu0 %v3576
    %3773 = vmatprep.subr.mxu0 0.0
    %3774 = vmatpush1.msra.mxu0 %v3577
    %3775 = vmatprep.subr.mxu0 0.0
    %3776 = vmatpush1.msra.mxu0 %v3578
    %3777 = vmatprep.subr.mxu0 0.0
    %3778 = vmatpush1.msra.mxu0 0.0
    %3779 = vmatprep.subr.mxu0 0.0
    %3780 = vmatpush1.msra.mxu0 0.0
    %3781 = vmatprep.subr.mxu0 0.0
    %3782 = vmatpush1.msra.mxu0 0.0
    %3783 = vmatprep.subr.mxu0 0.0
    %3784 = vmatpush1.msra.mxu0 0.0
    %3785 = vmatprep.subr.mxu0 0.0
    %3786 = vmatpush1.msra.mxu0 0.0
    %3787 = vmatprep.subr.mxu0 0.0
    %3788 = vmatpush1.msra.mxu0 0.0
    %3789 = vmatprep.subr.mxu0 0.0
    %3790 = vmatpush1.msra.mxu0 0.0
    %3791 = vmatprep.subr.mxu0 0.0
    %3792 = vmatpush1.msra.mxu0 0.0
    %3793 = vmatprep.subr.mxu0 0.0
    %3794 = vmatpush1.msra.mxu0 0.0
    %3795 = vmatprep.subr.mxu0 0.0
    %3796 = vmatpush1.msra.mxu0 0.0
    %3797 = vmatprep.subr.mxu0 0.0
    %3798 = vmatpush1.msra.mxu0 0.0
    %3799 = vmatprep.subr.mxu0 0.0
    %3800 = vmatpush1.msra.mxu0 0.0
    %3801 = vmatprep.subr.mxu0 0.0
    %3802 = vmatpush1.msra.mxu0 0.0
    %3803 = vmatprep.subr.mxu0 0.0
    %3804 = vmatpush1.msra.mxu0 0.0
    %3805 = vmatprep.subr.mxu0 0.0
    %3806 = vmatpush1.msra.mxu0 0.0
    %3807 = vmatprep.subr.mxu0 0.0
    %3808 = vmatpush1.msra.mxu0 0.0
    %3809 = vmatprep.subr.mxu0 0.0
    %3810 = vmatpush1.msra.mxu0 0.0
    %3811 = vmatprep.subr.mxu0 0.0
    %3812 = vmatpush1.msra.mxu0 0.0
    %3813 = vmatprep.subr.mxu0 0.0
    %3814 = vmatpush1.msra.mxu0 0.0
    %3815 = vmatprep.subr.mxu0 0.0
    %3816 = vmatpush1.msra.mxu0 0.0
    %3817 = vmatprep.subr.mxu0 0.0
    %3818 = vmatpush1.msra.mxu0 0.0
    %3819 = vmatprep.subr.mxu0 0.0
    %3820 = vmatpush1.msra.mxu0 0.0
    %3821 = vmatprep.subr.mxu0 0.0
    %3822 = vmatpush1.msra.mxu0 0.0
    %3823 = vmatprep.subr.mxu0 0.0
    %3824 = vmatpush1.msra.mxu0 0.0
    %3825 = vmatprep.subr.mxu0 0.0
    %3826 = vmatpush1.msra.mxu0 0.0
    %3827 = vmatprep.subr.mxu0 0.0
    %3828 = vmatpush1.msra.mxu0 0.0
    %3829 = vmatprep.subr.mxu0 0.0
    %3830 = vmatpush1.msra.mxu0 0.0
    %3831 = vmatprep.subr.mxu0 0.0
    %3832 = vmatpush1.msra.mxu0 0.0
    %3833 = vmatprep.mubr.f32.mxu0 0.0
    %3834 = vmatmul.mubr.f32.gmra.mrb[0].mxu0 %v3477
    %v3835 = vpop.f32.mrb[0].mxu0
    %v3836 = vadd.f32 0.0, %v3835
    %v3837 = vpop.f32.mrb[0].mxu0
    %3838 = vdwg.mxu0
    %v3839 = vadd.f32 %v3768, %v3836
    %v3840 = vmul.f32 %v3839, 0.5
    %v3841 = vtanh.pop %v3840
    %v3842 = vmul.f32 %v3841, 0.5
    %v3843 = vadd.f32 %v3842, 0.5
    %v3844 = vtanh.pop %v3839
    %v3845 = vmul.f32 %v3843, %v3392
    %3847 = vrot.lane.b32.xlu0 %v3844, 32
    %v3848 = vpop.permute.xlu0 %3847
    %v3850 = vmul.f32 %v3843, %v3848
    %3852 = vrot.lane.b32.xlu0 %v3850, 32
    %v3853 = vpop.permute.xlu0 %3852
    %v3855 = vadd.f32 %v3845, %v3853
    %v3856 = vtanh.pop %v3855
    %3858 = vrot.lane.b32.xlu0 %v3856, 32
    %v3859 = vpop.permute.xlu0 %3858
    %v3861 = vmul.f32 %v3843, %v3859
    %3863 = vrot.lane.b32.xlu0 %v3571, 64
    %v3864 = vpop.permute.xlu0 %3863
    %v3865 = vsel %vm388, %v3864, 0
    %3867 = vmatprep.subr.mxu0 0.0
    %3868 = vmatpush1.msra.mxu0 %v3583
    %3869 = vmatprep.subr.mxu0 0.0
    %3870 = vmatpush1.msra.mxu0 %v3584
    %3871 = vmatprep.subr.mxu0 0.0
    %3872 = vmatpush1.msra.mxu0 %v3585
    %3873 = vmatprep.subr.mxu0 0.0
    %3874 = vmatpush1.msra.mxu0 %v3586
    %3875 = vmatprep.subr.mxu0 0.0
    %3876 = vmatpush1.msra.mxu0 0.0
    %3877 = vmatprep.subr.mxu0 0.0
    %3878 = vmatpush1.msra.mxu0 0.0
    %3879 = vmatprep.subr.mxu0 0.0
    %3880 = vmatpush1.msra.mxu0 0.0
    %3881 = vmatprep.subr.mxu0 0.0
    %3882 = vmatpush1.msra.mxu0 0.0
    %3883 = vmatprep.subr.mxu0 0.0
    %3884 = vmatpush1.msra.mxu0 0.0
    %3885 = vmatprep.subr.mxu0 0.0
    %3886 = vmatpush1.msra.mxu0 0.0
    %3887 = vmatprep.subr.mxu0 0.0
    %3888 = vmatpush1.msra.mxu0 0.0
    %3889 = vmatprep.subr.mxu0 0.0
    %3890 = vmatpush1.msra.mxu0 0.0
    %3891 = vmatprep.subr.mxu0 0.0
    %3892 = vmatpush1.msra.mxu0 0.0
    %3893 = vmatprep.subr.mxu0 0.0
    %3894 = vmatpush1.msra.mxu0 0.0
    %3895 = vmatprep.subr.mxu0 0.0
    %3896 = vmatpush1.msra.mxu0 0.0
    %3897 = vmatprep.subr.mxu0 0.0
    %3898 = vmatpush1.msra.mxu0 0.0
    %3899 = vmatprep.subr.mxu0 0.0
    %3900 = vmatpush1.msra.mxu0 0.0
    %3901 = vmatprep.subr.mxu0 0.0
    %3902 = vmatpush1.msra.mxu0 0.0
    %3903 = vmatprep.subr.mxu0 0.0
    %3904 = vmatpush1.msra.mxu0 0.0
    %3905 = vmatprep.subr.mxu0 0.0
    %3906 = vmatpush1.msra.mxu0 0.0
    %3907 = vmatprep.subr.mxu0 0.0
    %3908 = vmatpush1.msra.mxu0 0.0
    %3909 = vmatprep.subr.mxu0 0.0
    %3910 = vmatpush1.msra.mxu0 0.0
    %3911 = vmatprep.subr.mxu0 0.0
    %3912 = vmatpush1.msra.mxu0 0.0
    %3913 = vmatprep.subr.mxu0 0.0
    %3914 = vmatpush1.msra.mxu0 0.0
    %3915 = vmatprep.subr.mxu0 0.0
    %3916 = vmatpush1.msra.mxu0 0.0
    %3917 = vmatprep.subr.mxu0 0.0
    %3918 = vmatpush1.msra.mxu0 0.0
    %3919 = vmatprep.subr.mxu0 0.0
    %3920 = vmatpush1.msra.mxu0 0.0
    %3921 = vmatprep.subr.mxu0 0.0
    %3922 = vmatpush1.msra.mxu0 0.0
    %3923 = vmatprep.subr.mxu0 0.0
    %3924 = vmatpush1.msra.mxu0 0.0
    %3925 = vmatprep.subr.mxu0 0.0
    %3926 = vmatpush1.msra.mxu0 0.0
    %3927 = vmatprep.subr.mxu0 0.0
    %3928 = vmatpush1.msra.mxu0 0.0
    %3929 = vmatprep.subr.mxu0 0.0
    %3930 = vmatpush1.msra.mxu0 0.0
    %3931 = vmatprep.mubr.f32.mxu0 0.0
    %3932 = vmatmul.mubr.f32.gmra.mrb[0].mxu0 %v3865
    %v3933 = vpop.f32.mrb[0].mxu0
    %v3934 = vadd.f32 0.0, %v3933
    %v3935 = vpop.f32.mrb[0].mxu0
    %3936 = vdwg.mxu0
    %3938 = vrot.lane.b32.xlu0 %v3861, 64
    %v3939 = vpop.permute.xlu0 %3938
    %v3940 = vsel %vm388, %v3939, 0
    %3942 = vmatprep.subr.mxu0 0.0
    %3943 = vmatpush1.msra.mxu0 %v3579
    %3944 = vmatprep.subr.mxu0 0.0
    %3945 = vmatpush1.msra.mxu0 %v3580
    %3946 = vmatprep.subr.mxu0 0.0
    %3947 = vmatpush1.msra.mxu0 %v3581
    %3948 = vmatprep.subr.mxu0 0.0
    %3949 = vmatpush1.msra.mxu0 %v3582
    %3950 = vmatprep.subr.mxu0 0.0
    %3951 = vmatpush1.msra.mxu0 0.0
    %3952 = vmatprep.subr.mxu0 0.0
    %3953 = vmatpush1.msra.mxu0 0.0
    %3954 = vmatprep.subr.mxu0 0.0
    %3955 = vmatpush1.msra.mxu0 0.0
    %3956 = vmatprep.subr.mxu0 0.0
    %3957 = vmatpush1.msra.mxu0 0.0
    %3958 = vmatprep.subr.mxu0 0.0
    %3959 = vmatpush1.msra.mxu0 0.0
    %3960 = vmatprep.subr.mxu0 0.0
    %3961 = vmatpush1.msra.mxu0 0.0
    %3962 = vmatprep.subr.mxu0 0.0
    %3963 = vmatpush1.msra.mxu0 0.0
    %3964 = vmatprep.subr.mxu0 0.0
    %3965 = vmatpush1.msra.mxu0 0.0
    %3966 = vmatprep.subr.mxu0 0.0
    %3967 = vmatpush1.msra.mxu0 0.0
    %3968 = vmatprep.subr.mxu0 0.0
    %3969 = vmatpush1.msra.mxu0 0.0
    %3970 = vmatprep.subr.mxu0 0.0
    %3971 = vmatpush1.msra.mxu0 0.0
    %3972 = vmatprep.subr.mxu0 0.0
    %3973 = vmatpush1.msra.mxu0 0.0
    %3974 = vmatprep.subr.mxu0 0.0
    %3975 = vmatpush1.msra.mxu0 0.0
    %3976 = vmatprep.subr.mxu0 0.0
    %3977 = vmatpush1.msra.mxu0 0.0
    %3978 = vmatprep.subr.mxu0 0.0
    %3979 = vmatpush1.msra.mxu0 0.0
    %3980 = vmatprep.subr.mxu0 0.0
    %3981 = vmatpush1.msra.mxu0 0.0
    %3982 = vmatprep.subr.mxu0 0.0
    %3983 = vmatpush1.msra.mxu0 0.0
    %3984 = vmatprep.subr.mxu0 0.0
    %3985 = vmatpush1.msra.mxu0 0.0
    %3986 = vmatprep.subr.mxu0 0.0
    %3987 = vmatpush1.msra.mxu0 0.0
    %3988 = vmatprep.subr.mxu0 0.0
    %3989 = vmatpush1.msra.mxu0 0.0
    %3990 = vmatprep.subr.mxu0 0.0
    %3991 = vmatpush1.msra.mxu0 0.0
    %3992 = vmatprep.subr.mxu0 0.0
    %3993 = vmatpush1.msra.mxu0 0.0
    %3994 = vmatprep.subr.mxu0 0.0
    %3995 = vmatpush1.msra.mxu0 0.0
    %3996 = vmatprep.subr.mxu0 0.0
    %3997 = vmatpush1.msra.mxu0 0.0
    %3998 = vmatprep.subr.mxu0 0.0
    %3999 = vmatpush1.msra.mxu0 0.0
    %4000 = vmatprep.subr.mxu0 0.0
    %4001 = vmatpush1.msra.mxu0 0.0
    %4002 = vmatprep.subr.mxu0 0.0
    %4003 = vmatpush1.msra.mxu0 0.0
    %4004 = vmatprep.subr.mxu0 0.0
    %4005 = vmatpush1.msra.mxu0 0.0
    %4006 = vmatprep.mubr.f32.mxu0 0.0
    %4007 = vmatmul.mubr.f32.gmra.mrb[0].mxu0 %v3940
    %v4008 = vpop.f32.mrb[0].mxu0
    %v4009 = vadd.f32 %v3934, %v4008
    %v4010 = vpop.f32.mrb[0].mxu0
    %4011 = vdwg.mxu0
    %v4012 = vadd.f32 %v4009, %v3603
    %v4013 = vmul.f32 %v4012, 0.5
    %v4014 = vtanh.pop %v4013
    %v4015 = vmul.f32 %v4014, 0.5
    %v4016 = vadd.f32 %v4015, 0.5
    %v4017 = vtanh.pop %v4012
    %v4018 = vmul.f32 %v4016, %v3565
    %4020 = vrot.lane.b32.xlu0 %v4017, 32
    %v4021 = vpop.permute.xlu0 %4020
    %v4023 = vmul.f32 %v4016, %v4021
    %4025 = vrot.lane.b32.xlu0 %v4023, 32
    %v4026 = vpop.permute.xlu0 %4025
    %v4028 = vadd.f32 %v4018, %v4026
    %v4029 = vtanh.pop %v4028
    %4031 = vrot.lane.b32.xlu0 %v4029, 32
    %v4032 = vpop.permute.xlu0 %4031
    %v4034 = vmul.f32 %v4016, %v4032
    %4036 = vrot.lane.b32.xlu0 %v4034, 64
    %v4037 = vpop.permute.xlu0 %4036
    %v4038 = vsel %vm388, %v4037, 0
    %4040 = vmatprep.subr.mxu0 0.0
    %4041 = vmatpush1.msra.mxu0 %v3587
    %4042 = vmatprep.subr.mxu0 0.0
    %4043 = vmatpush1.msra.mxu0 %v3588
    %4044 = vmatprep.subr.mxu0 0.0
    %4045 = vmatpush1.msra.mxu0 %v3589
    %4046 = vmatprep.subr.mxu0 0.0
    %4047 = vmatpush1.msra.mxu0 %v3590
    %4048 = vmatprep.subr.mxu0 0.0
    %4049 = vmatpush1.msra.mxu0 0.0
    %4050 = vmatprep.subr.mxu0 0.0
    %4051 = vmatpush1.msra.mxu0 0.0
    %4052 = vmatprep.subr.mxu0 0.0
    %4053 = vmatpush1.msra.mxu0 0.0
    %4054 = vmatprep.subr.mxu0 0.0
    %4055 = vmatpush1.msra.mxu0 0.0
    %4056 = vmatprep.subr.mxu0 0.0
    %4057 = vmatpush1.msra.mxu0 0.0
    %4058 = vmatprep.subr.mxu0 0.0
    %4059 = vmatpush1.msra.mxu0 0.0
    %4060 = vmatprep.subr.mxu0 0.0
    %4061 = vmatpush1.msra.mxu0 0.0
    %4062 = vmatprep.subr.mxu0 0.0
    %4063 = vmatpush1.msra.mxu0 0.0
    %4064 = vmatprep.subr.mxu0 0.0
    %4065 = vmatpush1.msra.mxu0 0.0
    %4066 = vmatprep.subr.mxu0 0.0
    %4067 = vmatpush1.msra.mxu0 0.0
    %4068 = vmatprep.subr.mxu0 0.0
    %4069 = vmatpush1.msra.mxu0 0.0
    %4070 = vmatprep.subr.mxu0 0.0
    %4071 = vmatpush1.msra.mxu0 0.0
    %4072 = vmatprep.subr.mxu0 0.0
    %4073 = vmatpush1.msra.mxu0 0.0
    %4074 = vmatprep.subr.mxu0 0.0
    %4075 = vmatpush1.msra.mxu0 0.0
    %4076 = vmatprep.subr.mxu0 0.0
    %4077 = vmatpush1.msra.mxu0 0.0
    %4078 = vmatprep.subr.mxu0 0.0
    %4079 = vmatpush1.msra.mxu0 0.0
    %4080 = vmatprep.subr.mxu0 0.0
    %4081 = vmatpush1.msra.mxu0 0.0
    %4082 = vmatprep.subr.mxu0 0.0
    %4083 = vmatpush1.msra.mxu0 0.0
    %4084 = vmatprep.subr.mxu0 0.0
    %4085 = vmatpush1.msra.mxu0 0.0
    %4086 = vmatprep.subr.mxu0 0.0
    %4087 = vmatpush1.msra.mxu0 0.0
    %4088 = vmatprep.subr.mxu0 0.0
    %4089 = vmatpush1.msra.mxu0 0.0
    %4090 = vmatprep.subr.mxu0 0.0
    %4091 = vmatpush1.msra.mxu0 0.0
    %4092 = vmatprep.subr.mxu0 0.0
    %4093 = vmatpush1.msra.mxu0 0.0
    %4094 = vmatprep.subr.mxu0 0.0
    %4095 = vmatpush1.msra.mxu0 0.0
    %4096 = vmatprep.subr.mxu0 0.0
    %4097 = vmatpush1.msra.mxu0 0.0
    %4098 = vmatprep.subr.mxu0 0.0
    %4099 = vmatpush1.msra.mxu0 0.0
    %4100 = vmatprep.subr.mxu0 0.0
    %4101 = vmatpush1.msra.mxu0 0.0
    %4102 = vmatprep.subr.mxu0 0.0
    %4103 = vmatpush1.msra.mxu0 0.0
    %4104 = vmatprep.mubr.f32.mxu0 0.0
    %4105 = vmatmul.mubr.f32.gmra.mrb[0].mxu0 %v4038
    %v4106 = vpop.f32.mrb[0].mxu0
    %v4107 = vadd.f32 %v3610, %v4106
    %v4108 = vpop.f32.mrb[0].mxu0
    %4109 = vdwg.mxu0
    %vm4110 = vcmask 107520
    %4111 = vst.msk [vmem:[#allocation20] sm:$0x3] %vm4110, %v4107
    %s4112 = scalar_lea.vmem %s2, 2
    %v4113 = vld [vmem:[%s4112] sm:$0x3]
    %v4115 = vsel %vm3613, %v4113, 0
    %4117 = vmatprep.subr.mxu0 0.0
    %4118 = vmatpush1.msra.mxu0 %v3619
    %4119 = vmatprep.subr.mxu0 0.0
    %4120 = vmatpush1.msra.mxu0 0.0
    %4121 = vmatprep.subr.mxu0 0.0
    %4122 = vmatpush1.msra.mxu0 0.0
    %4123 = vmatprep.subr.mxu0 0.0
    %4124 = vmatpush1.msra.mxu0 0.0
    %4125 = vmatprep.subr.mxu0 0.0
    %4126 = vmatpush1.msra.mxu0 0.0
    %4127 = vmatprep.subr.mxu0 0.0
    %4128 = vmatpush1.msra.mxu0 0.0
    %4129 = vmatprep.subr.mxu0 0.0
    %4130 = vmatpush1.msra.mxu0 0.0
    %4131 = vmatprep.subr.mxu0 0.0
    %4132 = vmatpush1.msra.mxu0 0.0
    %4133 = vmatprep.subr.mxu0 0.0
    %4134 = vmatpush1.msra.mxu0 0.0
    %4135 = vmatprep.subr.mxu0 0.0
    %4136 = vmatpush1.msra.mxu0 0.0
    %4137 = vmatprep.subr.mxu0 0.0
    %4138 = vmatpush1.msra.mxu0 0.0
    %4139 = vmatprep.subr.mxu0 0.0
    %4140 = vmatpush1.msra.mxu0 0.0
    %4141 = vmatprep.subr.mxu0 0.0
    %4142 = vmatpush1.msra.mxu0 0.0
    %4143 = vmatprep.subr.mxu0 0.0
    %4144 = vmatpush1.msra.mxu0 0.0
    %4145 = vmatprep.subr.mxu0 0.0
    %4146 = vmatpush1.msra.mxu0 0.0
    %4147 = vmatprep.subr.mxu0 0.0
    %4148 = vmatpush1.msra.mxu0 0.0
    %4149 = vmatprep.subr.mxu0 0.0
    %4150 = vmatpush1.msra.mxu0 0.0
    %4151 = vmatprep.subr.mxu0 0.0
    %4152 = vmatpush1.msra.mxu0 0.0
    %4153 = vmatprep.subr.mxu0 0.0
    %4154 = vmatpush1.msra.mxu0 0.0
    %4155 = vmatprep.subr.mxu0 0.0
    %4156 = vmatpush1.msra.mxu0 0.0
    %4157 = vmatprep.subr.mxu0 0.0
    %4158 = vmatpush1.msra.mxu0 0.0
    %4159 = vmatprep.subr.mxu0 0.0
    %4160 = vmatpush1.msra.mxu0 0.0
    %4161 = vmatprep.subr.mxu0 0.0
    %4162 = vmatpush1.msra.mxu0 0.0
    %4163 = vmatprep.subr.mxu0 0.0
    %4164 = vmatpush1.msra.mxu0 0.0
    %4165 = vmatprep.subr.mxu0 0.0
    %4166 = vmatpush1.msra.mxu0 0.0
    %4167 = vmatprep.subr.mxu0 0.0
    %4168 = vmatpush1.msra.mxu0 0.0
    %4169 = vmatprep.subr.mxu0 0.0
    %4170 = vmatpush1.msra.mxu0 0.0
    %4171 = vmatprep.subr.mxu0 0.0
    %4172 = vmatpush1.msra.mxu0 0.0
    %4173 = vmatprep.subr.mxu0 0.0
    %4174 = vmatpush1.msra.mxu0 0.0
    %4175 = vmatprep.subr.mxu0 0.0
    %4176 = vmatpush1.msra.mxu0 0.0
    %4177 = vmatprep.subr.mxu0 0.0
    %4178 = vmatpush1.msra.mxu0 0.0
    %4179 = vmatprep.subr.mxu0 0.0
    %4180 = vmatpush1.msra.mxu0 0.0
    %4181 = vmatprep.mubr.f32.mxu0 0.0
    %4182 = vmatmul.mubr.f32.gmra.mrb[0].mxu0 %v4115
    %v4183 = vpop.f32.mrb[0].mxu0
    %v4184 = vadd.f32 %v3596, %v4183
    %v4185 = vpop.f32.mrb[0].mxu0
    %4186 = vdwg.mxu0
    %v4188 = vsel %vm3691, %v4107, 0
    %4190 = vmatprep.subr.mxu0 0.0
    %4191 = vmatpush1.msra.mxu0 %v3572
    %4192 = vmatprep.subr.mxu0 0.0
    %4193 = vmatpush1.msra.mxu0 %v3696
    %4194 = vmatprep.subr.mxu0 0.0
    %4195 = vmatpush1.msra.mxu0 0.0
    %4196 = vmatprep.subr.mxu0 0.0
    %4197 = vmatpush1.msra.mxu0 0.0
    %4198 = vmatprep.subr.mxu0 0.0
    %4199 = vmatpush1.msra.mxu0 0.0
    %4200 = vmatprep.subr.mxu0 0.0
    %4201 = vmatpush1.msra.mxu0 0.0
    %4202 = vmatprep.subr.mxu0 0.0
    %4203 = vmatpush1.msra.mxu0 0.0
    %4204 = vmatprep.subr.mxu0 0.0
    %4205 = vmatpush1.msra.mxu0 0.0
    %4206 = vmatprep.subr.mxu0 0.0
    %4207 = vmatpush1.msra.mxu0 0.0
    %4208 = vmatprep.subr.mxu0 0.0
    %4209 = vmatpush1.msra.mxu0 0.0
    %4210 = vmatprep.subr.mxu0 0.0
    %4211 = vmatpush1.msra.mxu0 0.0
    %4212 = vmatprep.subr.mxu0 0.0
    %4213 = vmatpush1.msra.mxu0 0.0
    %4214 = vmatprep.subr.mxu0 0.0
    %4215 = vmatpush1.msra.mxu0 0.0
    %4216 = vmatprep.subr.mxu0 0.0
    %4217 = vmatpush1.msra.mxu0 0.0
    %4218 = vmatprep.subr.mxu0 0.0
    %4219 = vmatpush1.msra.mxu0 0.0
    %4220 = vmatprep.subr.mxu0 0.0
    %4221 = vmatpush1.msra.mxu0 0.0
    %4222 = vmatprep.subr.mxu0 0.0
    %4223 = vmatpush1.msra.mxu0 0.0
    %4224 = vmatprep.subr.mxu0 0.0
    %4225 = vmatpush1.msra.mxu0 0.0
    %4226 = vmatprep.subr.mxu0 0.0
    %4227 = vmatpush1.msra.mxu0 0.0
    %4228 = vmatprep.subr.mxu0 0.0
    %4229 = vmatpush1.msra.mxu0 0.0
    %4230 = vmatprep.subr.mxu0 0.0
    %4231 = vmatpush1.msra.mxu0 0.0
    %4232 = vmatprep.subr.mxu0 0.0
    %4233 = vmatpush1.msra.mxu0 0.0
    %4234 = vmatprep.subr.mxu0 0.0
    %4235 = vmatpush1.msra.mxu0 0.0
    %4236 = vmatprep.subr.mxu0 0.0
    %4237 = vmatpush1.msra.mxu0 0.0
    %4238 = vmatprep.subr.mxu0 0.0
    %4239 = vmatpush1.msra.mxu0 0.0
    %4240 = vmatprep.subr.mxu0 0.0
    %4241 = vmatpush1.msra.mxu0 0.0
    %4242 = vmatprep.subr.mxu0 0.0
    %4243 = vmatpush1.msra.mxu0 0.0
    %4244 = vmatprep.subr.mxu0 0.0
    %4245 = vmatpush1.msra.mxu0 0.0
    %4246 = vmatprep.subr.mxu0 0.0
    %4247 = vmatpush1.msra.mxu0 0.0
    %4248 = vmatprep.subr.mxu0 0.0
    %4249 = vmatpush1.msra.mxu0 0.0
    %4250 = vmatprep.subr.mxu0 0.0
    %4251 = vmatpush1.msra.mxu0 0.0
    %4252 = vmatprep.subr.mxu0 0.0
    %4253 = vmatpush1.msra.mxu0 0.0
    %4254 = vmatprep.mubr.f32.mxu0 0.0
    %4255 = vmatmul.mubr.f32.gmra.mrb[0].mxu0 %v4188
    %v4256 = vpop.f32.mrb[0].mxu0
    %v4257 = vadd.f32 0.0, %v4256
    %v4258 = vpop.f32.mrb[0].mxu0
    %4259 = vdwg.mxu0
    %v4260 = vadd.f32 %v4184, %v4257
    %4261 = vmatprep.subr.mxu0 0.0
    %4262 = vmatpush1.msra.mxu0 %v3575
    %4263 = vmatprep.subr.mxu0 0.0
    %4264 = vmatpush1.msra.mxu0 %v3576
    %4265 = vmatprep.subr.mxu0 0.0
    %4266 = vmatpush1.msra.mxu0 %v3577
    %4267 = vmatprep.subr.mxu0 0.0
    %4268 = vmatpush1.msra.mxu0 %v3578
    %4269 = vmatprep.subr.mxu0 0.0
    %4270 = vmatpush1.msra.mxu0 0.0
    %4271 = vmatprep.subr.mxu0 0.0
    %4272 = vmatpush1.msra.mxu0 0.0
    %4273 = vmatprep.subr.mxu0 0.0
    %4274 = vmatpush1.msra.mxu0 0.0
    %4275 = vmatprep.subr.mxu0 0.0
    %4276 = vmatpush1.msra.mxu0 0.0
    %4277 = vmatprep.subr.mxu0 0.0
    %4278 = vmatpush1.msra.mxu0 0.0
    %4279 = vmatprep.subr.mxu0 0.0
    %4280 = vmatpush1.msra.mxu0 0.0
    %4281 = vmatprep.subr.mxu0 0.0
    %4282 = vmatpush1.msra.mxu0 0.0
    %4283 = vmatprep.subr.mxu0 0.0
    %4284 = vmatpush1.msra.mxu0 0.0
    %4285 = vmatprep.subr.mxu0 0.0
    %4286 = vmatpush1.msra.mxu0 0.0
    %4287 = vmatprep.subr.mxu0 0.0
    %4288 = vmatpush1.msra.mxu0 0.0
    %4289 = vmatprep.subr.mxu0 0.0
    %4290 = vmatpush1.msra.mxu0 0.0
    %4291 = vmatprep.subr.mxu0 0.0
    %4292 = vmatpush1.msra.mxu0 0.0
    %4293 = vmatprep.subr.mxu0 0.0
    %4294 = vmatpush1.msra.mxu0 0.0
    %4295 = vmatprep.subr.mxu0 0.0
    %4296 = vmatpush1.msra.mxu0 0.0
    %4297 = vmatprep.subr.mxu0 0.0
    %4298 = vmatpush1.msra.mxu0 0.0
    %4299 = vmatprep.subr.mxu0 0.0
    %4300 = vmatpush1.msra.mxu0 0.0
    %4301 = vmatprep.subr.mxu0 0.0
    %4302 = vmatpush1.msra.mxu0 0.0
    %4303 = vmatprep.subr.mxu0 0.0
    %4304 = vmatpush1.msra.mxu0 0.0
    %4305 = vmatprep.subr.mxu0 0.0
    %4306 = vmatpush1.msra.mxu0 0.0
    %4307 = vmatprep.subr.mxu0 0.0
    %4308 = vmatpush1.msra.mxu0 0.0
    %4309 = vmatprep.subr.mxu0 0.0
    %4310 = vmatpush1.msra.mxu0 0.0
    %4311 = vmatprep.subr.mxu0 0.0
    %4312 = vmatpush1.msra.mxu0 0.0
    %4313 = vmatprep.subr.mxu0 0.0
    %4314 = vmatpush1.msra.mxu0 0.0
    %4315 = vmatprep.subr.mxu0 0.0
    %4316 = vmatpush1.msra.mxu0 0.0
    %4317 = vmatprep.subr.mxu0 0.0
    %4318 = vmatpush1.msra.mxu0 0.0
    %4319 = vmatprep.subr.mxu0 0.0
    %4320 = vmatpush1.msra.mxu0 0.0
    %4321 = vmatprep.subr.mxu0 0.0
    %4322 = vmatpush1.msra.mxu0 0.0
    %4323 = vmatprep.subr.mxu0 0.0
    %4324 = vmatpush1.msra.mxu0 0.0
    %4325 = vmatprep.mubr.f32.mxu0 0.0
    %4326 = vmatmul.mubr.f32.gmra.mrb[0].mxu0 %v3940
    %v4327 = vpop.f32.mrb[0].mxu0
    %v4328 = vadd.f32 0.0, %v4327
    %v4329 = vpop.f32.mrb[0].mxu0
    %4330 = vdwg.mxu0
    %v4331 = vadd.f32 %v4260, %v4328
    %v4332 = vmul.f32 %v4331, 0.5
    %v4333 = vtanh.pop %v4332
    %v4334 = vmul.f32 %v4333, 0.5
    %v4335 = vadd.f32 %v4334, 0.5
    %v4336 = vtanh.pop %v4331
    %v4337 = vmul.f32 %v4335, %v3855
    %4339 = vrot.lane.b32.xlu0 %v4336, 32
    %v4340 = vpop.permute.xlu0 %4339
    %v4342 = vmul.f32 %v4335, %v4340
    %4344 = vrot.lane.b32.xlu0 %v4342, 32
    %v4345 = vpop.permute.xlu0 %4344
    %v4347 = vadd.f32 %v4337, %v4345
    %v4348 = vtanh.pop %v4347
    %4350 = vrot.lane.b32.xlu0 %v4348, 32
    %v4351 = vpop.permute.xlu0 %4350
    %v4353 = vmul.f32 %v4335, %v4351
    %4354 = vmatprep.subr.mxu0 0.0
    %4355 = vmatpush1.msra.mxu0 %v3583
    %4356 = vmatprep.subr.mxu0 0.0
    %4357 = vmatpush1.msra.mxu0 %v3584
    %4358 = vmatprep.subr.mxu0 0.0
    %4359 = vmatpush1.msra.mxu0 %v3585
    %4360 = vmatprep.subr.mxu0 0.0
    %4361 = vmatpush1.msra.mxu0 %v3586
    %4362 = vmatprep.subr.mxu0 0.0
    %4363 = vmatpush1.msra.mxu0 0.0
    %4364 = vmatprep.subr.mxu0 0.0
    %4365 = vmatpush1.msra.mxu0 0.0
    %4366 = vmatprep.subr.mxu0 0.0
    %4367 = vmatpush1.msra.mxu0 0.0
    %4368 = vmatprep.subr.mxu0 0.0
    %4369 = vmatpush1.msra.mxu0 0.0
    %4370 = vmatprep.subr.mxu0 0.0
    %4371 = vmatpush1.msra.mxu0 0.0
    %4372 = vmatprep.subr.mxu0 0.0
    %4373 = vmatpush1.msra.mxu0 0.0
    %4374 = vmatprep.subr.mxu0 0.0
    %4375 = vmatpush1.msra.mxu0 0.0
    %4376 = vmatprep.subr.mxu0 0.0
    %4377 = vmatpush1.msra.mxu0 0.0
    %4378 = vmatprep.subr.mxu0 0.0
    %4379 = vmatpush1.msra.mxu0 0.0
    %4380 = vmatprep.subr.mxu0 0.0
    %4381 = vmatpush1.msra.mxu0 0.0
    %4382 = vmatprep.subr.mxu0 0.0
    %4383 = vmatpush1.msra.mxu0 0.0
    %4384 = vmatprep.subr.mxu0 0.0
    %4385 = vmatpush1.msra.mxu0 0.0
    %4386 = vmatprep.subr.mxu0 0.0
    %4387 = vmatpush1.msra.mxu0 0.0
    %4388 = vmatprep.subr.mxu0 0.0
    %4389 = vmatpush1.msra.mxu0 0.0
    %4390 = vmatprep.subr.mxu0 0.0
    %4391 = vmatpush1.msra.mxu0 0.0
    %4392 = vmatprep.subr.mxu0 0.0
    %4393 = vmatpush1.msra.mxu0 0.0
    %4394 = vmatprep.subr.mxu0 0.0
    %4395 = vmatpush1.msra.mxu0 0.0
    %4396 = vmatprep.subr.mxu0 0.0
    %4397 = vmatpush1.msra.mxu0 0.0
    %4398 = vmatprep.subr.mxu0 0.0
    %4399 = vmatpush1.msra.mxu0 0.0
    %4400 = vmatprep.subr.mxu0 0.0
    %4401 = vmatpush1.msra.mxu0 0.0
    %4402 = vmatprep.subr.mxu0 0.0
    %4403 = vmatpush1.msra.mxu0 0.0
    %4404 = vmatprep.subr.mxu0 0.0
    %4405 = vmatpush1.msra.mxu0 0.0
    %4406 = vmatprep.subr.mxu0 0.0
    %4407 = vmatpush1.msra.mxu0 0.0
    %4408 = vmatprep.subr.mxu0 0.0
    %4409 = vmatpush1.msra.mxu0 0.0
    %4410 = vmatprep.subr.mxu0 0.0
    %4411 = vmatpush1.msra.mxu0 0.0
    %4412 = vmatprep.subr.mxu0 0.0
    %4413 = vmatpush1.msra.mxu0 0.0
    %4414 = vmatprep.subr.mxu0 0.0
    %4415 = vmatpush1.msra.mxu0 0.0
    %4416 = vmatprep.subr.mxu0 0.0
    %4417 = vmatpush1.msra.mxu0 0.0
    %4418 = vmatprep.mubr.f32.mxu0 0.0
    %4419 = vmatmul.mubr.f32.gmra.mrb[0].mxu0 %v4038
    %v4420 = vpop.f32.mrb[0].mxu0
    %v4421 = vadd.f32 0.0, %v4420
    %v4422 = vpop.f32.mrb[0].mxu0
    %4423 = vdwg.mxu0
    %4425 = vrot.lane.b32.xlu0 %v4353, 64
    %v4426 = vpop.permute.xlu0 %4425
    %v4427 = vsel %vm388, %v4426, 0
    %4429 = vmatprep.subr.mxu0 0.0
    %4430 = vmatpush1.msra.mxu0 %v3579
    %4431 = vmatprep.subr.mxu0 0.0
    %4432 = vmatpush1.msra.mxu0 %v3580
    %4433 = vmatprep.subr.mxu0 0.0
    %4434 = vmatpush1.msra.mxu0 %v3581
    %4435 = vmatprep.subr.mxu0 0.0
    %4436 = vmatpush1.msra.mxu0 %v3582
    %4437 = vmatprep.subr.mxu0 0.0
    %4438 = vmatpush1.msra.mxu0 0.0
    %4439 = vmatprep.subr.mxu0 0.0
    %4440 = vmatpush1.msra.mxu0 0.0
    %4441 = vmatprep.subr.mxu0 0.0
    %4442 = vmatpush1.msra.mxu0 0.0
    %4443 = vmatprep.subr.mxu0 0.0
    %4444 = vmatpush1.msra.mxu0 0.0
    %4445 = vmatprep.subr.mxu0 0.0
    %4446 = vmatpush1.msra.mxu0 0.0
    %4447 = vmatprep.subr.mxu0 0.0
    %4448 = vmatpush1.msra.mxu0 0.0
    %4449 = vmatprep.subr.mxu0 0.0
    %4450 = vmatpush1.msra.mxu0 0.0
    %4451 = vmatprep.subr.mxu0 0.0
    %4452 = vmatpush1.msra.mxu0 0.0
    %4453 = vmatprep.subr.mxu0 0.0
    %4454 = vmatpush1.msra.mxu0 0.0
    %4455 = vmatprep.subr.mxu0 0.0
    %4456 = vmatpush1.msra.mxu0 0.0
    %4457 = vmatprep.subr.mxu0 0.0
    %4458 = vmatpush1.msra.mxu0 0.0
    %4459 = vmatprep.subr.mxu0 0.0
    %4460 = vmatpush1.msra.mxu0 0.0
    %4461 = vmatprep.subr.mxu0 0.0
    %4462 = vmatpush1.msra.mxu0 0.0
    %4463 = vmatprep.subr.mxu0 0.0
    %4464 = vmatpush1.msra.mxu0 0.0
    %4465 = vmatprep.subr.mxu0 0.0
    %4466 = vmatpush1.msra.mxu0 0.0
    %4467 = vmatprep.subr.mxu0 0.0
    %4468 = vmatpush1.msra.mxu0 0.0
    %4469 = vmatprep.subr.mxu0 0.0
    %4470 = vmatpush1.msra.mxu0 0.0
    %4471 = vmatprep.subr.mxu0 0.0
    %4472 = vmatpush1.msra.mxu0 0.0
    %4473 = vmatprep.subr.mxu0 0.0
    %4474 = vmatpush1.msra.mxu0 0.0
    %4475 = vmatprep.subr.mxu0 0.0
    %4476 = vmatpush1.msra.mxu0 0.0
    %4477 = vmatprep.subr.mxu0 0.0
    %4478 = vmatpush1.msra.mxu0 0.0
    %4479 = vmatprep.subr.mxu0 0.0
    %4480 = vmatpush1.msra.mxu0 0.0
    %4481 = vmatprep.subr.mxu0 0.0
    %4482 = vmatpush1.msra.mxu0 0.0
    %4483 = vmatprep.subr.mxu0 0.0
    %4484 = vmatpush1.msra.mxu0 0.0
    %4485 = vmatprep.subr.mxu0 0.0
    %4486 = vmatpush1.msra.mxu0 0.0
    %4487 = vmatprep.subr.mxu0 0.0
    %4488 = vmatpush1.msra.mxu0 0.0
    %4489 = vmatprep.subr.mxu0 0.0
    %4490 = vmatpush1.msra.mxu0 0.0
    %4491 = vmatprep.subr.mxu0 0.0
    %4492 = vmatpush1.msra.mxu0 0.0
    %4493 = vmatprep.mubr.f32.mxu0 0.0
    %4494 = vmatmul.mubr.f32.gmra.mrb[0].mxu0 %v4427
    %v4495 = vpop.f32.mrb[0].mxu0
    %v4496 = vadd.f32 %v4421, %v4495
    %v4497 = vpop.f32.mrb[0].mxu0
    %4498 = vdwg.mxu0
    %v4499 = vadd.f32 %v4496, %v3603
    %v4500 = vmul.f32 %v4499, 0.5
    %v4501 = vtanh.pop %v4500
    %v4502 = vmul.f32 %v4501, 0.5
    %v4503 = vadd.f32 %v4502, 0.5
    %v4504 = vtanh.pop %v4499
    %v4505 = vmul.f32 %v4503, %v4028
    %4507 = vrot.lane.b32.xlu0 %v4504, 32
    %v4508 = vpop.permute.xlu0 %4507
    %v4510 = vmul.f32 %v4503, %v4508
    %4512 = vrot.lane.b32.xlu0 %v4510, 32
    %v4513 = vpop.permute.xlu0 %4512
    %v4515 = vadd.f32 %v4505, %v4513
    %v4516 = vtanh.pop %v4515
    %4518 = vrot.lane.b32.xlu0 %v4516, 32
    %v4519 = vpop.permute.xlu0 %4518
    %v4521 = vmul.f32 %v4503, %v4519
    %4523 = vrot.lane.b32.xlu0 %v4521, 64
    %v4524 = vpop.permute.xlu0 %4523
    %v4525 = vsel %vm388, %v4524, 0
    %4527 = vmatprep.subr.mxu0 0.0
    %4528 = vmatpush1.msra.mxu0 %v3587
    %4529 = vmatprep.subr.mxu0 0.0
    %4530 = vmatpush1.msra.mxu0 %v3588
    %4531 = vmatprep.subr.mxu0 0.0
    %4532 = vmatpush1.msra.mxu0 %v3589
    %4533 = vmatprep.subr.mxu0 0.0
    %4534 = vmatpush1.msra.mxu0 %v3590
    %4535 = vmatprep.subr.mxu0 0.0
    %4536 = vmatpush1.msra.mxu0 0.0
    %4537 = vmatprep.subr.mxu0 0.0
    %4538 = vmatpush1.msra.mxu0 0.0
    %4539 = vmatprep.subr.mxu0 0.0
    %4540 = vmatpush1.msra.mxu0 0.0
    %4541 = vmatprep.subr.mxu0 0.0
    %4542 = vmatpush1.msra.mxu0 0.0
    %4543 = vmatprep.subr.mxu0 0.0
    %4544 = vmatpush1.msra.mxu0 0.0
    %4545 = vmatprep.subr.mxu0 0.0
    %4546 = vmatpush1.msra.mxu0 0.0
    %4547 = vmatprep.subr.mxu0 0.0
    %4548 = vmatpush1.msra.mxu0 0.0
    %4549 = vmatprep.subr.mxu0 0.0
    %4550 = vmatpush1.msra.mxu0 0.0
    %4551 = vmatprep.subr.mxu0 0.0
    %4552 = vmatpush1.msra.mxu0 0.0
    %4553 = vmatprep.subr.mxu0 0.0
    %4554 = vmatpush1.msra.mxu0 0.0
    %4555 = vmatprep.subr.mxu0 0.0
    %4556 = vmatpush1.msra.mxu0 0.0
    %4557 = vmatprep.subr.mxu0 0.0
    %4558 = vmatpush1.msra.mxu0 0.0
    %4559 = vmatprep.subr.mxu0 0.0
    %4560 = vmatpush1.msra.mxu0 0.0
    %4561 = vmatprep.subr.mxu0 0.0
    %4562 = vmatpush1.msra.mxu0 0.0
    %4563 = vmatprep.subr.mxu0 0.0
    %4564 = vmatpush1.msra.mxu0 0.0
    %4565 = vmatprep.subr.mxu0 0.0
    %4566 = vmatpush1.msra.mxu0 0.0
    %4567 = vmatprep.subr.mxu0 0.0
    %4568 = vmatpush1.msra.mxu0 0.0
    %4569 = vmatprep.subr.mxu0 0.0
    %4570 = vmatpush1.msra.mxu0 0.0
    %4571 = vmatprep.subr.mxu0 0.0
    %4572 = vmatpush1.msra.mxu0 0.0
    %4573 = vmatprep.subr.mxu0 0.0
    %4574 = vmatpush1.msra.mxu0 0.0
    %4575 = vmatprep.subr.mxu0 0.0
    %4576 = vmatpush1.msra.mxu0 0.0
    %4577 = vmatprep.subr.mxu0 0.0
    %4578 = vmatpush1.msra.mxu0 0.0
    %4579 = vmatprep.subr.mxu0 0.0
    %4580 = vmatpush1.msra.mxu0 0.0
    %4581 = vmatprep.subr.mxu0 0.0
    %4582 = vmatpush1.msra.mxu0 0.0
    %4583 = vmatprep.subr.mxu0 0.0
    %4584 = vmatpush1.msra.mxu0 0.0
    %4585 = vmatprep.subr.mxu0 0.0
    %4586 = vmatpush1.msra.mxu0 0.0
    %4587 = vmatprep.subr.mxu0 0.0
    %4588 = vmatpush1.msra.mxu0 0.0
    %4589 = vmatprep.subr.mxu0 0.0
    %4590 = vmatpush1.msra.mxu0 0.0
    %4591 = vmatprep.mubr.f32.mxu0 0.0
    %4592 = vmatmul.mubr.f32.gmra.mrb[0].mxu0 %v4525
    %v4593 = vpop.f32.mrb[0].mxu0
    %v4594 = vadd.f32 %v3610, %v4593
    %v4595 = vpop.f32.mrb[0].mxu0
    %4596 = vdwg.mxu0
    %s4597 = scalar_lea.vmem [#allocation20], 2
    %4598 = vst.msk [vmem:[%s4597] sm:$0x3] %vm4110, %v4594
    %s4599 = scalar_lea.vmem %s2, 4
    %v4600 = vld [vmem:[%s4599] sm:$0x3]
    %v4602 = vsel %vm3613, %v4600, 0
    %4604 = vmatprep.subr.mxu0 0.0
    %4605 = vmatpush1.msra.mxu0 %v3619
    %4606 = vmatprep.subr.mxu0 0.0
    %4607 = vmatpush1.msra.mxu0 0.0
    %4608 = vmatprep.subr.mxu0 0.0
    %4609 = vmatpush1.msra.mxu0 0.0
    %4610 = vmatprep.subr.mxu0 0.0
    %4611 = vmatpush1.msra.mxu0 0.0
    %4612 = vmatprep.subr.mxu0 0.0
    %4613 = vmatpush1.msra.mxu0 0.0
    %4614 = vmatprep.subr.mxu0 0.0
    %4615 = vmatpush1.msra.mxu0 0.0
    %4616 = vmatprep.subr.mxu0 0.0
    %4617 = vmatpush1.msra.mxu0 0.0
    %4618 = vmatprep.subr.mxu0 0.0
    %4619 = vmatpush1.msra.mxu0 0.0
    %4620 = vmatprep.subr.mxu0 0.0
    %4621 = vmatpush1.msra.mxu0 0.0
    %4622 = vmatprep.subr.mxu0 0.0
    %4623 = vmatpush1.msra.mxu0 0.0
    %4624 = vmatprep.subr.mxu0 0.0
    %4625 = vmatpush1.msra.mxu0 0.0
    %4626 = vmatprep.subr.mxu0 0.0
    %4627 = vmatpush1.msra.mxu0 0.0
    %4628 = vmatprep.subr.mxu0 0.0
    %4629 = vmatpush1.msra.mxu0 0.0
    %4630 = vmatprep.subr.mxu0 0.0
    %4631 = vmatpush1.msra.mxu0 0.0
    %4632 = vmatprep.subr.mxu0 0.0
    %4633 = vmatpush1.msra.mxu0 0.0
    %4634 = vmatprep.subr.mxu0 0.0
    %4635 = vmatpush1.msra.mxu0 0.0
    %4636 = vmatprep.subr.mxu0 0.0
    %4637 = vmatpush1.msra.mxu0 0.0
    %4638 = vmatprep.subr.mxu0 0.0
    %4639 = vmatpush1.msra.mxu0 0.0
    %4640 = vmatprep.subr.mxu0 0.0
    %4641 = vmatpush1.msra.mxu0 0.0
    %4642 = vmatprep.subr.mxu0 0.0
    %4643 = vmatpush1.msra.mxu0 0.0
    %4644 = vmatprep.subr.mxu0 0.0
    %4645 = vmatpush1.msra.mxu0 0.0
    %4646 = vmatprep.subr.mxu0 0.0
    %4647 = vmatpush1.msra.mxu0 0.0
    %4648 = vmatprep.subr.mxu0 0.0
    %4649 = vmatpush1.msra.mxu0 0.0
    %4650 = vmatprep.subr.mxu0 0.0
    %4651 = vmatpush1.msra.mxu0 0.0
    %4652 = vmatprep.subr.mxu0 0.0
    %4653 = vmatpush1.msra.mxu0 0.0
    %4654 = vmatprep.subr.mxu0 0.0
    %4655 = vmatpush1.msra.mxu0 0.0
    %4656 = vmatprep.subr.mxu0 0.0
    %4657 = vmatpush1.msra.mxu0 0.0
    %4658 = vmatprep.subr.mxu0 0.0
    %4659 = vmatpush1.msra.mxu0 0.0
    %4660 = vmatprep.subr.mxu0 0.0
    %4661 = vmatpush1.msra.mxu0 0.0
    %4662 = vmatprep.subr.mxu0 0.0
    %4663 = vmatpush1.msra.mxu0 0.0
    %4664 = vmatprep.subr.mxu0 0.0
    %4665 = vmatpush1.msra.mxu0 0.0
    %4666 = vmatprep.subr.mxu0 0.0
    %4667 = vmatpush1.msra.mxu0 0.0
    %4668 = vmatprep.mubr.f32.mxu0 0.0
    %4669 = vmatmul.mubr.f32.gmra.mrb[0].mxu0 %v4602
    %v4670 = vpop.f32.mrb[0].mxu0
    %v4671 = vadd.f32 %v3596, %v4670
    %v4672 = vpop.f32.mrb[0].mxu0
    %4673 = vdwg.mxu0
    %v4675 = vsel %vm3691, %v4594, 0
    %4677 = vmatprep.subr.mxu0 0.0
    %4678 = vmatpush1.msra.mxu0 %v3572
    %4679 = vmatprep.subr.mxu0 0.0
    %4680 = vmatpush1.msra.mxu0 %v3696
    %4681 = vmatprep.subr.mxu0 0.0
    %4682 = vmatpush1.msra.mxu0 0.0
    %4683 = vmatprep.subr.mxu0 0.0
    %4684 = vmatpush1.msra.mxu0 0.0
    %4685 = vmatprep.subr.mxu0 0.0
    %4686 = vmatpush1.msra.mxu0 0.0
    %4687 = vmatprep.subr.mxu0 0.0
    %4688 = vmatpush1.msra.mxu0 0.0
    %4689 = vmatprep.subr.mxu0 0.0
    %4690 = vmatpush1.msra.mxu0 0.0
    %4691 = vmatprep.subr.mxu0 0.0
    %4692 = vmatpush1.msra.mxu0 0.0
    %4693 = vmatprep.subr.mxu0 0.0
    %4694 = vmatpush1.msra.mxu0 0.0
    %4695 = vmatprep.subr.mxu0 0.0
    %4696 = vmatpush1.msra.mxu0 0.0
    %4697 = vmatprep.subr.mxu0 0.0
    %4698 = vmatpush1.msra.mxu0 0.0
    %4699 = vmatprep.subr.mxu0 0.0
    %4700 = vmatpush1.msra.mxu0 0.0
    %4701 = vmatprep.subr.mxu0 0.0
    %4702 = vmatpush1.msra.mxu0 0.0
    %4703 = vmatprep.subr.mxu0 0.0
    %4704 = vmatpush1.msra.mxu0 0.0
    %4705 = vmatprep.subr.mxu0 0.0
    %4706 = vmatpush1.msra.mxu0 0.0
    %4707 = vmatprep.subr.mxu0 0.0
    %4708 = vmatpush1.msra.mxu0 0.0
    %4709 = vmatprep.subr.mxu0 0.0
    %4710 = vmatpush1.msra.mxu0 0.0
    %4711 = vmatprep.subr.mxu0 0.0
    %4712 = vmatpush1.msra.mxu0 0.0
    %4713 = vmatprep.subr.mxu0 0.0
    %4714 = vmatpush1.msra.mxu0 0.0
    %4715 = vmatprep.subr.mxu0 0.0
    %4716 = vmatpush1.msra.mxu0 0.0
    %4717 = vmatprep.subr.mxu0 0.0
    %4718 = vmatpush1.msra.mxu0 0.0
    %4719 = vmatprep.subr.mxu0 0.0
    %4720 = vmatpush1.msra.mxu0 0.0
    %4721 = vmatprep.subr.mxu0 0.0
    %4722 = vmatpush1.msra.mxu0 0.0
    %4723 = vmatprep.subr.mxu0 0.0
    %4724 = vmatpush1.msra.mxu0 0.0
    %4725 = vmatprep.subr.mxu0 0.0
    %4726 = vmatpush1.msra.mxu0 0.0
    %4727 = vmatprep.subr.mxu0 0.0
    %4728 = vmatpush1.msra.mxu0 0.0
    %4729 = vmatprep.subr.mxu0 0.0
    %4730 = vmatpush1.msra.mxu0 0.0
    %4731 = vmatprep.subr.mxu0 0.0
    %4732 = vmatpush1.msra.mxu0 0.0
    %4733 = vmatprep.subr.mxu0 0.0
    %4734 = vmatpush1.msra.mxu0 0.0
    %4735 = vmatprep.subr.mxu0 0.0
    %4736 = vmatpush1.msra.mxu0 0.0
    %4737 = vmatprep.subr.mxu0 0.0
    %4738 = vmatpush1.msra.mxu0 0.0
    %4739 = vmatprep.subr.mxu0 0.0
    %4740 = vmatpush1.msra.mxu0 0.0
    %4741 = vmatprep.mubr.f32.mxu0 0.0
    %4742 = vmatmul.mubr.f32.gmra.mrb[0].mxu0 %v4675
    %v4743 = vpop.f32.mrb[0].mxu0
    %v4744 = vadd.f32 0.0, %v4743
    %v4745 = vpop.f32.mrb[0].mxu0
    %4746 = vdwg.mxu0
    %v4747 = vadd.f32 %v4671, %v4744
    %4748 = vmatprep.subr.mxu0 0.0
    %4749 = vmatpush1.msra.mxu0 %v3575
    %4750 = vmatprep.subr.mxu0 0.0
    %4751 = vmatpush1.msra.mxu0 %v3576
    %4752 = vmatprep.subr.mxu0 0.0
    %4753 = vmatpush1.msra.mxu0 %v3577
    %4754 = vmatprep.subr.mxu0 0.0
    %4755 = vmatpush1.msra.mxu0 %v3578
    %4756 = vmatprep.subr.mxu0 0.0
    %4757 = vmatpush1.msra.mxu0 0.0
    %4758 = vmatprep.subr.mxu0 0.0
    %4759 = vmatpush1.msra.mxu0 0.0
    %4760 = vmatprep.subr.mxu0 0.0
    %4761 = vmatpush1.msra.mxu0 0.0
    %4762 = vmatprep.subr.mxu0 0.0
    %4763 = vmatpush1.msra.mxu0 0.0
    %4764 = vmatprep.subr.mxu0 0.0
    %4765 = vmatpush1.msra.mxu0 0.0
    %4766 = vmatprep.subr.mxu0 0.0
    %4767 = vmatpush1.msra.mxu0 0.0
    %4768 = vmatprep.subr.mxu0 0.0
    %4769 = vmatpush1.msra.mxu0 0.0
    %4770 = vmatprep.subr.mxu0 0.0
    %4771 = vmatpush1.msra.mxu0 0.0
    %4772 = vmatprep.subr.mxu0 0.0
    %4773 = vmatpush1.msra.mxu0 0.0
    %4774 = vmatprep.subr.mxu0 0.0
    %4775 = vmatpush1.msra.mxu0 0.0
    %4776 = vmatprep.subr.mxu0 0.0
    %4777 = vmatpush1.msra.mxu0 0.0
    %4778 = vmatprep.subr.mxu0 0.0
    %4779 = vmatpush1.msra.mxu0 0.0
    %4780 = vmatprep.subr.mxu0 0.0
    %4781 = vmatpush1.msra.mxu0 0.0
    %4782 = vmatprep.subr.mxu0 0.0
    %4783 = vmatpush1.msra.mxu0 0.0
    %4784 = vmatprep.subr.mxu0 0.0
    %4785 = vmatpush1.msra.mxu0 0.0
    %4786 = vmatprep.subr.mxu0 0.0
    %4787 = vmatpush1.msra.mxu0 0.0
    %4788 = vmatprep.subr.mxu0 0.0
    %4789 = vmatpush1.msra.mxu0 0.0
    %4790 = vmatprep.subr.mxu0 0.0
    %4791 = vmatpush1.msra.mxu0 0.0
    %4792 = vmatprep.subr.mxu0 0.0
    %4793 = vmatpush1.msra.mxu0 0.0
    %4794 = vmatprep.subr.mxu0 0.0
    %4795 = vmatpush1.msra.mxu0 0.0
    %4796 = vmatprep.subr.mxu0 0.0
    %4797 = vmatpush1.msra.mxu0 0.0
    %4798 = vmatprep.subr.mxu0 0.0
    %4799 = vmatpush1.msra.mxu0 0.0
    %4800 = vmatprep.subr.mxu0 0.0
    %4801 = vmatpush1.msra.mxu0 0.0
    %4802 = vmatprep.subr.mxu0 0.0
    %4803 = vmatpush1.msra.mxu0 0.0
    %4804 = vmatprep.subr.mxu0 0.0
    %4805 = vmatpush1.msra.mxu0 0.0
    %4806 = vmatprep.subr.mxu0 0.0
    %4807 = vmatpush1.msra.mxu0 0.0
    %4808 = vmatprep.subr.mxu0 0.0
    %4809 = vmatpush1.msra.mxu0 0.0
    %4810 = vmatprep.subr.mxu0 0.0
    %4811 = vmatpush1.msra.mxu0 0.0
    %4812 = vmatprep.mubr.f32.mxu0 0.0
    %4813 = vmatmul.mubr.f32.gmra.mrb[0].mxu0 %v4427
    %v4814 = vpop.f32.mrb[0].mxu0
    %v4815 = vadd.f32 0.0, %v4814
    %v4816 = vpop.f32.mrb[0].mxu0
    %4817 = vdwg.mxu0
    %v4818 = vadd.f32 %v4747, %v4815
    %v4819 = vmul.f32 %v4818, 0.5
    %v4820 = vtanh.pop %v4819
    %v4821 = vmul.f32 %v4820, 0.5
    %v4822 = vadd.f32 %v4821, 0.5
    %v4823 = vtanh.pop %v4818
    %v4824 = vmul.f32 %v4822, %v4347
    %4826 = vrot.lane.b32.xlu0 %v4823, 32
    %v4827 = vpop.permute.xlu0 %4826
    %v4829 = vmul.f32 %v4822, %v4827
    %4831 = vrot.lane.b32.xlu0 %v4829, 32
    %v4832 = vpop.permute.xlu0 %4831
    %v4834 = vadd.f32 %v4824, %v4832
    %v4835 = vtanh.pop %v4834
    %4837 = vrot.lane.b32.xlu0 %v4835, 32
    %v4838 = vpop.permute.xlu0 %4837
    %v4840 = vmul.f32 %v4822, %v4838
    %4841 = vmatprep.subr.mxu0 0.0
    %4842 = vmatpush1.msra.mxu0 %v3583
    %4843 = vmatprep.subr.mxu0 0.0
    %4844 = vmatpush1.msra.mxu0 %v3584
    %4845 = vmatprep.subr.mxu0 0.0
    %4846 = vmatpush1.msra.mxu0 %v3585
    %4847 = vmatprep.subr.mxu0 0.0
    %4848 = vmatpush1.msra.mxu0 %v3586
    %4849 = vmatprep.subr.mxu0 0.0
    %4850 = vmatpush1.msra.mxu0 0.0
    %4851 = vmatprep.subr.mxu0 0.0
    %4852 = vmatpush1.msra.mxu0 0.0
    %4853 = vmatprep.subr.mxu0 0.0
    %4854 = vmatpush1.msra.mxu0 0.0
    %4855 = vmatprep.subr.mxu0 0.0
    %4856 = vmatpush1.msra.mxu0 0.0
    %4857 = vmatprep.subr.mxu0 0.0
    %4858 = vmatpush1.msra.mxu0 0.0
    %4859 = vmatprep.subr.mxu0 0.0
    %4860 = vmatpush1.msra.mxu0 0.0
    %4861 = vmatprep.subr.mxu0 0.0
    %4862 = vmatpush1.msra.mxu0 0.0
    %4863 = vmatprep.subr.mxu0 0.0
    %4864 = vmatpush1.msra.mxu0 0.0
    %4865 = vmatprep.subr.mxu0 0.0
    %4866 = vmatpush1.msra.mxu0 0.0
    %4867 = vmatprep.subr.mxu0 0.0
    %4868 = vmatpush1.msra.mxu0 0.0
    %4869 = vmatprep.subr.mxu0 0.0
    %4870 = vmatpush1.msra.mxu0 0.0
    %4871 = vmatprep.subr.mxu0 0.0
    %4872 = vmatpush1.msra.mxu0 0.0
    %4873 = vmatprep.subr.mxu0 0.0
    %4874 = vmatpush1.msra.mxu0 0.0
    %4875 = vmatprep.subr.mxu0 0.0
    %4876 = vmatpush1.msra.mxu0 0.0
    %4877 = vmatprep.subr.mxu0 0.0
    %4878 = vmatpush1.msra.mxu0 0.0
    %4879 = vmatprep.subr.mxu0 0.0
    %4880 = vmatpush1.msra.mxu0 0.0
    %4881 = vmatprep.subr.mxu0 0.0
    %4882 = vmatpush1.msra.mxu0 0.0
    %4883 = vmatprep.subr.mxu0 0.0
    %4884 = vmatpush1.msra.mxu0 0.0
    %4885 = vmatprep.subr.mxu0 0.0
    %4886 = vmatpush1.msra.mxu0 0.0
    %4887 = vmatprep.subr.mxu0 0.0
    %4888 = vmatpush1.msra.mxu0 0.0
    %4889 = vmatprep.subr.mxu0 0.0
    %4890 = vmatpush1.msra.mxu0 0.0
    %4891 = vmatprep.subr.mxu0 0.0
    %4892 = vmatpush1.msra.mxu0 0.0
    %4893 = vmatprep.subr.mxu0 0.0
    %4894 = vmatpush1.msra.mxu0 0.0
    %4895 = vmatprep.subr.mxu0 0.0
    %4896 = vmatpush1.msra.mxu0 0.0
    %4897 = vmatprep.subr.mxu0 0.0
    %4898 = vmatpush1.msra.mxu0 0.0
    %4899 = vmatprep.subr.mxu0 0.0
    %4900 = vmatpush1.msra.mxu0 0.0
    %4901 = vmatprep.subr.mxu0 0.0
    %4902 = vmatpush1.msra.mxu0 0.0
    %4903 = vmatprep.subr.mxu0 0.0
    %4904 = vmatpush1.msra.mxu0 0.0
    %4905 = vmatprep.mubr.f32.mxu0 0.0
    %4906 = vmatmul.mubr.f32.gmra.mrb[0].mxu0 %v4525
    %v4907 = vpop.f32.mrb[0].mxu0
    %v4908 = vadd.f32 0.0, %v4907
    %v4909 = vpop.f32.mrb[0].mxu0
    %4910 = vdwg.mxu0
    %4912 = vrot.lane.b32.xlu0 %v4840, 64
    %v4913 = vpop.permute.xlu0 %4912
    %v4914 = vsel %vm388, %v4913, 0
    %4916 = vmatprep.subr.mxu0 0.0
    %4917 = vmatpush1.msra.mxu0 %v3579
    %4918 = vmatprep.subr.mxu0 0.0
    %4919 = vmatpush1.msra.mxu0 %v3580
    %4920 = vmatprep.subr.mxu0 0.0
    %4921 = vmatpush1.msra.mxu0 %v3581
    %4922 = vmatprep.subr.mxu0 0.0
    %4923 = vmatpush1.msra.mxu0 %v3582
    %4924 = vmatprep.subr.mxu0 0.0
    %4925 = vmatpush1.msra.mxu0 0.0
    %4926 = vmatprep.subr.mxu0 0.0
    %4927 = vmatpush1.msra.mxu0 0.0
    %4928 = vmatprep.subr.mxu0 0.0
    %4929 = vmatpush1.msra.mxu0 0.0
    %4930 = vmatprep.subr.mxu0 0.0
    %4931 = vmatpush1.msra.mxu0 0.0
    %4932 = vmatprep.subr.mxu0 0.0
    %4933 = vmatpush1.msra.mxu0 0.0
    %4934 = vmatprep.subr.mxu0 0.0
    %4935 = vmatpush1.msra.mxu0 0.0
    %4936 = vmatprep.subr.mxu0 0.0
    %4937 = vmatpush1.msra.mxu0 0.0
    %4938 = vmatprep.subr.mxu0 0.0
    %4939 = vmatpush1.msra.mxu0 0.0
    %4940 = vmatprep.subr.mxu0 0.0
    %4941 = vmatpush1.msra.mxu0 0.0
    %4942 = vmatprep.subr.mxu0 0.0
    %4943 = vmatpush1.msra.mxu0 0.0
    %4944 = vmatprep.subr.mxu0 0.0
    %4945 = vmatpush1.msra.mxu0 0.0
    %4946 = vmatprep.subr.mxu0 0.0
    %4947 = vmatpush1.msra.mxu0 0.0
    %4948 = vmatprep.subr.mxu0 0.0
    %4949 = vmatpush1.msra.mxu0 0.0
    %4950 = vmatprep.subr.mxu0 0.0
    %4951 = vmatpush1.msra.mxu0 0.0
    %4952 = vmatprep.subr.mxu0 0.0
    %4953 = vmatpush1.msra.mxu0 0.0
    %4954 = vmatprep.subr.mxu0 0.0
    %4955 = vmatpush1.msra.mxu0 0.0
    %4956 = vmatprep.subr.mxu0 0.0
    %4957 = vmatpush1.msra.mxu0 0.0
    %4958 = vmatprep.subr.mxu0 0.0
    %4959 = vmatpush1.msra.mxu0 0.0
    %4960 = vmatprep.subr.mxu0 0.0
    %4961 = vmatpush1.msra.mxu0 0.0
    %4962 = vmatprep.subr.mxu0 0.0
    %4963 = vmatpush1.msra.mxu0 0.0
    %4964 = vmatprep.subr.mxu0 0.0
    %4965 = vmatpush1.msra.mxu0 0.0
    %4966 = vmatprep.subr.mxu0 0.0
    %4967 = vmatpush1.msra.mxu0 0.0
    %4968 = vmatprep.subr.mxu0 0.0
    %4969 = vmatpush1.msra.mxu0 0.0
    %4970 = vmatprep.subr.mxu0 0.0
    %4971 = vmatpush1.msra.mxu0 0.0
    %4972 = vmatprep.subr.mxu0 0.0
    %4973 = vmatpush1.msra.mxu0 0.0
    %4974 = vmatprep.subr.mxu0 0.0
    %4975 = vmatpush1.msra.mxu0 0.0
    %4976 = vmatprep.subr.mxu0 0.0
    %4977 = vmatpush1.msra.mxu0 0.0
    %4978 = vmatprep.subr.mxu0 0.0
    %4979 = vmatpush1.msra.mxu0 0.0
    %4980 = vmatprep.mubr.f32.mxu0 0.0
    %4981 = vmatmul.mubr.f32.gmra.mrb[0].mxu0 %v4914
    %v4982 = vpop.f32.mrb[0].mxu0
    %v4983 = vadd.f32 %v4908, %v4982
    %v4984 = vpop.f32.mrb[0].mxu0
    %4985 = vdwg.mxu0
    %v4986 = vadd.f32 %v4983, %v3603
    %v4987 = vmul.f32 %v4986, 0.5
    %v4988 = vtanh.pop %v4987
    %v4989 = vmul.f32 %v4988, 0.5
    %v4990 = vadd.f32 %v4989, 0.5
    %v4991 = vtanh.pop %v4986
    %v4992 = vmul.f32 %v4990, %v4515
    %4994 = vrot.lane.b32.xlu0 %v4991, 32
    %v4995 = vpop.permute.xlu0 %4994
    %v4997 = vmul.f32 %v4990, %v4995
    %4999 = vrot.lane.b32.xlu0 %v4997, 32
    %v5000 = vpop.permute.xlu0 %4999
    %v5002 = vadd.f32 %v4992, %v5000
    %v5003 = vtanh.pop %v5002
    %5005 = vrot.lane.b32.xlu0 %v5003, 32
    %v5006 = vpop.permute.xlu0 %5005
    %v5008 = vmul.f32 %v4990, %v5006
    %5010 = vrot.lane.b32.xlu0 %v5008, 64
    %v5011 = vpop.permute.xlu0 %5010
    %v5012 = vsel %vm388, %v5011, 0
    %5014 = vmatprep.subr.mxu0 0.0
    %5015 = vmatpush1.msra.mxu0 %v3587
    %5016 = vmatprep.subr.mxu0 0.0
    %5017 = vmatpush1.msra.mxu0 %v3588
    %5018 = vmatprep.subr.mxu0 0.0
    %5019 = vmatpush1.msra.mxu0 %v3589
    %5020 = vmatprep.subr.mxu0 0.0
    %5021 = vmatpush1.msra.mxu0 %v3590
    %5022 = vmatprep.subr.mxu0 0.0
    %5023 = vmatpush1.msra.mxu0 0.0
    %5024 = vmatprep.subr.mxu0 0.0
    %5025 = vmatpush1.msra.mxu0 0.0
    %5026 = vmatprep.subr.mxu0 0.0
    %5027 = vmatpush1.msra.mxu0 0.0
    %5028 = vmatprep.subr.mxu0 0.0
    %5029 = vmatpush1.msra.mxu0 0.0
    %5030 = vmatprep.subr.mxu0 0.0
    %5031 = vmatpush1.msra.mxu0 0.0
    %5032 = vmatprep.subr.mxu0 0.0
    %5033 = vmatpush1.msra.mxu0 0.0
    %5034 = vmatprep.subr.mxu0 0.0
    %5035 = vmatpush1.msra.mxu0 0.0
    %5036 = vmatprep.subr.mxu0 0.0
    %5037 = vmatpush1.msra.mxu0 0.0
    %5038 = vmatprep.subr.mxu0 0.0
    %5039 = vmatpush1.msra.mxu0 0.0
    %5040 = vmatprep.subr.mxu0 0.0
    %5041 = vmatpush1.msra.mxu0 0.0
    %5042 = vmatprep.subr.mxu0 0.0
    %5043 = vmatpush1.msra.mxu0 0.0
    %5044 = vmatprep.subr.mxu0 0.0
    %5045 = vmatpush1.msra.mxu0 0.0
    %5046 = vmatprep.subr.mxu0 0.0
    %5047 = vmatpush1.msra.mxu0 0.0
    %5048 = vmatprep.subr.mxu0 0.0
    %5049 = vmatpush1.msra.mxu0 0.0
    %5050 = vmatprep.subr.mxu0 0.0
    %5051 = vmatpush1.msra.mxu0 0.0
    %5052 = vmatprep.subr.mxu0 0.0
    %5053 = vmatpush1.msra.mxu0 0.0
    %5054 = vmatprep.subr.mxu0 0.0
    %5055 = vmatpush1.msra.mxu0 0.0
    %5056 = vmatprep.subr.mxu0 0.0
    %5057 = vmatpush1.msra.mxu0 0.0
    %5058 = vmatprep.subr.mxu0 0.0
    %5059 = vmatpush1.msra.mxu0 0.0
    %5060 = vmatprep.subr.mxu0 0.0
    %5061 = vmatpush1.msra.mxu0 0.0
    %5062 = vmatprep.subr.mxu0 0.0
    %5063 = vmatpush1.msra.mxu0 0.0
    %5064 = vmatprep.subr.mxu0 0.0
    %5065 = vmatpush1.msra.mxu0 0.0
    %5066 = vmatprep.subr.mxu0 0.0
    %5067 = vmatpush1.msra.mxu0 0.0
    %5068 = vmatprep.subr.mxu0 0.0
    %5069 = vmatpush1.msra.mxu0 0.0
    %5070 = vmatprep.subr.mxu0 0.0
    %5071 = vmatpush1.msra.mxu0 0.0
    %5072 = vmatprep.subr.mxu0 0.0
    %5073 = vmatpush1.msra.mxu0 0.0
    %5074 = vmatprep.subr.mxu0 0.0
    %5075 = vmatpush1.msra.mxu0 0.0
    %5076 = vmatprep.subr.mxu0 0.0
    %5077 = vmatpush1.msra.mxu0 0.0
    %5078 = vmatprep.mubr.f32.mxu0 0.0
    %5079 = vmatmul.mubr.f32.gmra.mrb[0].mxu0 %v5012
    %v5080 = vpop.f32.mrb[0].mxu0
    %v5081 = vadd.f32 %v3610, %v5080
    %v5082 = vpop.f32.mrb[0].mxu0
    %5083 = vdwg.mxu0
    %s5084 = scalar_lea.vmem [#allocation20], 4
    %5085 = vst.msk [vmem:[%s5084] sm:$0x3] %vm4110, %v5081
    %s5086 = scalar_lea.vmem %s2, 6
    %v5087 = vld [vmem:[%s5086] sm:$0x3]
    %v5089 = vsel %vm3613, %v5087, 0
    %5091 = vmatprep.subr.mxu0 0.0
    %5092 = vmatpush1.msra.mxu0 %v3619
    %5093 = vmatprep.subr.mxu0 0.0
    %5094 = vmatpush1.msra.mxu0 0.0
    %5095 = vmatprep.subr.mxu0 0.0
    %5096 = vmatpush1.msra.mxu0 0.0
    %5097 = vmatprep.subr.mxu0 0.0
    %5098 = vmatpush1.msra.mxu0 0.0
    %5099 = vmatprep.subr.mxu0 0.0
    %5100 = vmatpush1.msra.mxu0 0.0
    %5101 = vmatprep.subr.mxu0 0.0
    %5102 = vmatpush1.msra.mxu0 0.0
    %5103 = vmatprep.subr.mxu0 0.0
    %5104 = vmatpush1.msra.mxu0 0.0
    %5105 = vmatprep.subr.mxu0 0.0
    %5106 = vmatpush1.msra.mxu0 0.0
    %5107 = vmatprep.subr.mxu0 0.0
    %5108 = vmatpush1.msra.mxu0 0.0
    %5109 = vmatprep.subr.mxu0 0.0
    %5110 = vmatpush1.msra.mxu0 0.0
    %5111 = vmatprep.subr.mxu0 0.0
    %5112 = vmatpush1.msra.mxu0 0.0
    %5113 = vmatprep.subr.mxu0 0.0
    %5114 = vmatpush1.msra.mxu0 0.0
    %5115 = vmatprep.subr.mxu0 0.0
    %5116 = vmatpush1.msra.mxu0 0.0
    %5117 = vmatprep.subr.mxu0 0.0
    %5118 = vmatpush1.msra.mxu0 0.0
    %5119 = vmatprep.subr.mxu0 0.0
    %5120 = vmatpush1.msra.mxu0 0.0
    %5121 = vmatprep.subr.mxu0 0.0
    %5122 = vmatpush1.msra.mxu0 0.0
    %5123 = vmatprep.subr.mxu0 0.0
    %5124 = vmatpush1.msra.mxu0 0.0
    %5125 = vmatprep.subr.mxu0 0.0
    %5126 = vmatpush1.msra.mxu0 0.0
    %5127 = vmatprep.subr.mxu0 0.0
    %5128 = vmatpush1.msra.mxu0 0.0
    %5129 = vmatprep.subr.mxu0 0.0
    %5130 = vmatpush1.msra.mxu0 0.0
    %5131 = vmatprep.subr.mxu0 0.0
    %5132 = vmatpush1.msra.mxu0 0.0
    %5133 = vmatprep.subr.mxu0 0.0
    %5134 = vmatpush1.msra.mxu0 0.0
    %5135 = vmatprep.subr.mxu0 0.0
    %5136 = vmatpush1.msra.mxu0 0.0
    %5137 = vmatprep.subr.mxu0 0.0
    %5138 = vmatpush1.msra.mxu0 0.0
    %5139 = vmatprep.subr.mxu0 0.0
    %5140 = vmatpush1.msra.mxu0 0.0
    %5141 = vmatprep.subr.mxu0 0.0
    %5142 = vmatpush1.msra.mxu0 0.0
    %5143 = vmatprep.subr.mxu0 0.0
    %5144 = vmatpush1.msra.mxu0 0.0
    %5145 = vmatprep.subr.mxu0 0.0
    %5146 = vmatpush1.msra.mxu0 0.0
    %5147 = vmatprep.subr.mxu0 0.0
    %5148 = vmatpush1.msra.mxu0 0.0
    %5149 = vmatprep.subr.mxu0 0.0
    %5150 = vmatpush1.msra.mxu0 0.0
    %5151 = vmatprep.subr.mxu0 0.0
    %5152 = vmatpush1.msra.mxu0 0.0
    %5153 = vmatprep.subr.mxu0 0.0
    %5154 = vmatpush1.msra.mxu0 0.0
    %5155 = vmatprep.mubr.f32.mxu0 0.0
    %5156 = vmatmul.mubr.f32.gmra.mrb[0].mxu0 %v5089
    %v5157 = vpop.f32.mrb[0].mxu0
    %v5158 = vadd.f32 %v3596, %v5157
    %v5159 = vpop.f32.mrb[0].mxu0
    %5160 = vdwg.mxu0
    %v5162 = vsel %vm3691, %v5081, 0
    %5164 = vmatprep.subr.mxu0 0.0
    %5165 = vmatpush1.msra.mxu0 %v3572
    %5166 = vmatprep.subr.mxu0 0.0
    %5167 = vmatpush1.msra.mxu0 %v3696
    %5168 = vmatprep.subr.mxu0 0.0
    %5169 = vmatpush1.msra.mxu0 0.0
    %5170 = vmatprep.subr.mxu0 0.0
    %5171 = vmatpush1.msra.mxu0 0.0
    %5172 = vmatprep.subr.mxu0 0.0
    %5173 = vmatpush1.msra.mxu0 0.0
    %5174 = vmatprep.subr.mxu0 0.0
    %5175 = vmatpush1.msra.mxu0 0.0
    %5176 = vmatprep.subr.mxu0 0.0
    %5177 = vmatpush1.msra.mxu0 0.0
    %5178 = vmatprep.subr.mxu0 0.0
    %5179 = vmatpush1.msra.mxu0 0.0
    %5180 = vmatprep.subr.mxu0 0.0
    %5181 = vmatpush1.msra.mxu0 0.0
    %5182 = vmatprep.subr.mxu0 0.0
    %5183 = vmatpush1.msra.mxu0 0.0
    %5184 = vmatprep.subr.mxu0 0.0
    %5185 = vmatpush1.msra.mxu0 0.0
    %5186 = vmatprep.subr.mxu0 0.0
    %5187 = vmatpush1.msra.mxu0 0.0
    %5188 = vmatprep.subr.mxu0 0.0
    %5189 = vmatpush1.msra.mxu0 0.0
    %5190 = vmatprep.subr.mxu0 0.0
    %5191 = vmatpush1.msra.mxu0 0.0
    %5192 = vmatprep.subr.mxu0 0.0
    %5193 = vmatpush1.msra.mxu0 0.0
    %5194 = vmatprep.subr.mxu0 0.0
    %5195 = vmatpush1.msra.mxu0 0.0
    %5196 = vmatprep.subr.mxu0 0.0
    %5197 = vmatpush1.msra.mxu0 0.0
    %5198 = vmatprep.subr.mxu0 0.0
    %5199 = vmatpush1.msra.mxu0 0.0
    %5200 = vmatprep.subr.mxu0 0.0
    %5201 = vmatpush1.msra.mxu0 0.0
    %5202 = vmatprep.subr.mxu0 0.0
    %5203 = vmatpush1.msra.mxu0 0.0
    %5204 = vmatprep.subr.mxu0 0.0
    %5205 = vmatpush1.msra.mxu0 0.0
    %5206 = vmatprep.subr.mxu0 0.0
    %5207 = vmatpush1.msra.mxu0 0.0
    %5208 = vmatprep.subr.mxu0 0.0
    %5209 = vmatpush1.msra.mxu0 0.0
    %5210 = vmatprep.subr.mxu0 0.0
    %5211 = vmatpush1.msra.mxu0 0.0
    %5212 = vmatprep.subr.mxu0 0.0
    %5213 = vmatpush1.msra.mxu0 0.0
    %5214 = vmatprep.subr.mxu0 0.0
    %5215 = vmatpush1.msra.mxu0 0.0
    %5216 = vmatprep.subr.mxu0 0.0
    %5217 = vmatpush1.msra.mxu0 0.0
    %5218 = vmatprep.subr.mxu0 0.0
    %5219 = vmatpush1.msra.mxu0 0.0
    %5220 = vmatprep.subr.mxu0 0.0
    %5221 = vmatpush1.msra.mxu0 0.0
    %5222 = vmatprep.subr.mxu0 0.0
    %5223 = vmatpush1.msra.mxu0 0.0
    %5224 = vmatprep.subr.mxu0 0.0
    %5225 = vmatpush1.msra.mxu0 0.0
    %5226 = vmatprep.subr.mxu0 0.0
    %5227 = vmatpush1.msra.mxu0 0.0
    %5228 = vmatprep.mubr.f32.mxu0 0.0
    %5229 = vmatmul.mubr.f32.gmra.mrb[0].mxu0 %v5162
    %v5230 = vpop.f32.mrb[0].mxu0
    %v5231 = vadd.f32 0.0, %v5230
    %v5232 = vpop.f32.mrb[0].mxu0
    %5233 = vdwg.mxu0
    %v5234 = vadd.f32 %v5158, %v5231
    %5235 = vmatprep.subr.mxu0 0.0
    %5236 = vmatpush1.msra.mxu0 %v3575
    %5237 = vmatprep.subr.mxu0 0.0
    %5238 = vmatpush1.msra.mxu0 %v3576
    %5239 = vmatprep.subr.mxu0 0.0
    %5240 = vmatpush1.msra.mxu0 %v3577
    %5241 = vmatprep.subr.mxu0 0.0
    %5242 = vmatpush1.msra.mxu0 %v3578
    %5243 = vmatprep.subr.mxu0 0.0
    %5244 = vmatpush1.msra.mxu0 0.0
    %5245 = vmatprep.subr.mxu0 0.0
    %5246 = vmatpush1.msra.mxu0 0.0
    %5247 = vmatprep.subr.mxu0 0.0
    %5248 = vmatpush1.msra.mxu0 0.0
    %5249 = vmatprep.subr.mxu0 0.0
    %5250 = vmatpush1.msra.mxu0 0.0
    %5251 = vmatprep.subr.mxu0 0.0
    %5252 = vmatpush1.msra.mxu0 0.0
    %5253 = vmatprep.subr.mxu0 0.0
    %5254 = vmatpush1.msra.mxu0 0.0
    %5255 = vmatprep.subr.mxu0 0.0
    %5256 = vmatpush1.msra.mxu0 0.0
    %5257 = vmatprep.subr.mxu0 0.0
    %5258 = vmatpush1.msra.mxu0 0.0
    %5259 = vmatprep.subr.mxu0 0.0
    %5260 = vmatpush1.msra.mxu0 0.0
    %5261 = vmatprep.subr.mxu0 0.0
    %5262 = vmatpush1.msra.mxu0 0.0
    %5263 = vmatprep.subr.mxu0 0.0
    %5264 = vmatpush1.msra.mxu0 0.0
    %5265 = vmatprep.subr.mxu0 0.0
    %5266 = vmatpush1.msra.mxu0 0.0
    %5267 = vmatprep.subr.mxu0 0.0
    %5268 = vmatpush1.msra.mxu0 0.0
    %5269 = vmatprep.subr.mxu0 0.0
    %5270 = vmatpush1.msra.mxu0 0.0
    %5271 = vmatprep.subr.mxu0 0.0
    %5272 = vmatpush1.msra.mxu0 0.0
    %5273 = vmatprep.subr.mxu0 0.0
    %5274 = vmatpush1.msra.mxu0 0.0
    %5275 = vmatprep.subr.mxu0 0.0
    %5276 = vmatpush1.msra.mxu0 0.0
    %5277 = vmatprep.subr.mxu0 0.0
    %5278 = vmatpush1.msra.mxu0 0.0
    %5279 = vmatprep.subr.mxu0 0.0
    %5280 = vmatpush1.msra.mxu0 0.0
    %5281 = vmatprep.subr.mxu0 0.0
    %5282 = vmatpush1.msra.mxu0 0.0
    %5283 = vmatprep.subr.mxu0 0.0
    %5284 = vmatpush1.msra.mxu0 0.0
    %5285 = vmatprep.subr.mxu0 0.0
    %5286 = vmatpush1.msra.mxu0 0.0
    %5287 = vmatprep.subr.mxu0 0.0
    %5288 = vmatpush1.msra.mxu0 0.0
    %5289 = vmatprep.subr.mxu0 0.0
    %5290 = vmatpush1.msra.mxu0 0.0
    %5291 = vmatprep.subr.mxu0 0.0
    %5292 = vmatpush1.msra.mxu0 0.0
    %5293 = vmatprep.subr.mxu0 0.0
    %5294 = vmatpush1.msra.mxu0 0.0
    %5295 = vmatprep.subr.mxu0 0.0
    %5296 = vmatpush1.msra.mxu0 0.0
    %5297 = vmatprep.subr.mxu0 0.0
    %5298 = vmatpush1.msra.mxu0 0.0
    %5299 = vmatprep.mubr.f32.mxu0 0.0
    %5300 = vmatmul.mubr.f32.gmra.mrb[0].mxu0 %v4914
    %v5301 = vpop.f32.mrb[0].mxu0
    %v5302 = vadd.f32 0.0, %v5301
    %v5303 = vpop.f32.mrb[0].mxu0
    %5304 = vdwg.mxu0
    %v5305 = vadd.f32 %v5234, %v5302
    %v5306 = vmul.f32 %v5305, 0.5
    %v5307 = vtanh.pop %v5306
    %v5308 = vmul.f32 %v5307, 0.5
    %v5309 = vadd.f32 %v5308, 0.5
    %v5310 = vtanh.pop %v5305
    %v5311 = vmul.f32 %v5309, %v4834
    %5313 = vrot.lane.b32.xlu0 %v5310, 32
    %v5314 = vpop.permute.xlu0 %5313
    %v5316 = vmul.f32 %v5309, %v5314
    %5318 = vrot.lane.b32.xlu0 %v5316, 32
    %v5319 = vpop.permute.xlu0 %5318
    %v5321 = vadd.f32 %v5311, %v5319
    %v5322 = vtanh.pop %v5321
    %5324 = vrot.lane.b32.xlu0 %v5322, 32
    %v5325 = vpop.permute.xlu0 %5324
    %v5327 = vmul.f32 %v5309, %v5325
    %5328 = vmatprep.subr.mxu0 0.0
    %5329 = vmatpush1.msra.mxu0 %v3583
    %5330 = vmatprep.subr.mxu0 0.0
    %5331 = vmatpush1.msra.mxu0 %v3584
    %5332 = vmatprep.subr.mxu0 0.0
    %5333 = vmatpush1.msra.mxu0 %v3585
    %5334 = vmatprep.subr.mxu0 0.0
    %5335 = vmatpush1.msra.mxu0 %v3586
    %5336 = vmatprep.subr.mxu0 0.0
    %5337 = vmatpush1.msra.mxu0 0.0
    %5338 = vmatprep.subr.mxu0 0.0
    %5339 = vmatpush1.msra.mxu0 0.0
    %5340 = vmatprep.subr.mxu0 0.0
    %5341 = vmatpush1.msra.mxu0 0.0
    %5342 = vmatprep.subr.mxu0 0.0
    %5343 = vmatpush1.msra.mxu0 0.0
    %5344 = vmatprep.subr.mxu0 0.0
    %5345 = vmatpush1.msra.mxu0 0.0
    %5346 = vmatprep.subr.mxu0 0.0
    %5347 = vmatpush1.msra.mxu0 0.0
    %5348 = vmatprep.subr.mxu0 0.0
    %5349 = vmatpush1.msra.mxu0 0.0
    %5350 = vmatprep.subr.mxu0 0.0
    %5351 = vmatpush1.msra.mxu0 0.0
    %5352 = vmatprep.subr.mxu0 0.0
    %5353 = vmatpush1.msra.mxu0 0.0
    %5354 = vmatprep.subr.mxu0 0.0
    %5355 = vmatpush1.msra.mxu0 0.0
    %5356 = vmatprep.subr.mxu0 0.0
    %5357 = vmatpush1.msra.mxu0 0.0
    %5358 = vmatprep.subr.mxu0 0.0
    %5359 = vmatpush1.msra.mxu0 0.0
    %5360 = vmatprep.subr.mxu0 0.0
    %5361 = vmatpush1.msra.mxu0 0.0
    %5362 = vmatprep.subr.mxu0 0.0
    %5363 = vmatpush1.msra.mxu0 0.0
    %5364 = vmatprep.subr.mxu0 0.0
    %5365 = vmatpush1.msra.mxu0 0.0
    %5366 = vmatprep.subr.mxu0 0.0
    %5367 = vmatpush1.msra.mxu0 0.0
    %5368 = vmatprep.subr.mxu0 0.0
    %5369 = vmatpush1.msra.mxu0 0.0
    %5370 = vmatprep.subr.mxu0 0.0
    %5371 = vmatpush1.msra.mxu0 0.0
    %5372 = vmatprep.subr.mxu0 0.0
    %5373 = vmatpush1.msra.mxu0 0.0
    %5374 = vmatprep.subr.mxu0 0.0
    %5375 = vmatpush1.msra.mxu0 0.0
    %5376 = vmatprep.subr.mxu0 0.0
    %5377 = vmatpush1.msra.mxu0 0.0
    %5378 = vmatprep.subr.mxu0 0.0
    %5379 = vmatpush1.msra.mxu0 0.0
    %5380 = vmatprep.subr.mxu0 0.0
    %5381 = vmatpush1.msra.mxu0 0.0
    %5382 = vmatprep.subr.mxu0 0.0
    %5383 = vmatpush1.msra.mxu0 0.0
    %5384 = vmatprep.subr.mxu0 0.0
    %5385 = vmatpush1.msra.mxu0 0.0
    %5386 = vmatprep.subr.mxu0 0.0
    %5387 = vmatpush1.msra.mxu0 0.0
    %5388 = vmatprep.subr.mxu0 0.0
    %5389 = vmatpush1.msra.mxu0 0.0
    %5390 = vmatprep.subr.mxu0 0.0
    %5391 = vmatpush1.msra.mxu0 0.0
    %5392 = vmatprep.mubr.f32.mxu0 0.0
    %5393 = vmatmul.mubr.f32.gmra.mrb[0].mxu0 %v5012
    %v5394 = vpop.f32.mrb[0].mxu0
    %v5395 = vadd.f32 0.0, %v5394
    %v5396 = vpop.f32.mrb[0].mxu0
    %5397 = vdwg.mxu0
    %5399 = vrot.lane.b32.xlu0 %v5327, 64
    %v5400 = vpop.permute.xlu0 %5399
    %v5401 = vsel %vm388, %v5400, 0
    %5403 = vmatprep.subr.mxu0 0.0
    %5404 = vmatpush1.msra.mxu0 %v3579
    %5405 = vmatprep.subr.mxu0 0.0
    %5406 = vmatpush1.msra.mxu0 %v3580
    %5407 = vmatprep.subr.mxu0 0.0
    %5408 = vmatpush1.msra.mxu0 %v3581
    %5409 = vmatprep.subr.mxu0 0.0
    %5410 = vmatpush1.msra.mxu0 %v3582
    %5411 = vmatprep.subr.mxu0 0.0
    %5412 = vmatpush1.msra.mxu0 0.0
    %5413 = vmatprep.subr.mxu0 0.0
    %5414 = vmatpush1.msra.mxu0 0.0
    %5415 = vmatprep.subr.mxu0 0.0
    %5416 = vmatpush1.msra.mxu0 0.0
    %5417 = vmatprep.subr.mxu0 0.0
    %5418 = vmatpush1.msra.mxu0 0.0
    %5419 = vmatprep.subr.mxu0 0.0
    %5420 = vmatpush1.msra.mxu0 0.0
    %5421 = vmatprep.subr.mxu0 0.0
    %5422 = vmatpush1.msra.mxu0 0.0
    %5423 = vmatprep.subr.mxu0 0.0
    %5424 = vmatpush1.msra.mxu0 0.0
    %5425 = vmatprep.subr.mxu0 0.0
    %5426 = vmatpush1.msra.mxu0 0.0
    %5427 = vmatprep.subr.mxu0 0.0
    %5428 = vmatpush1.msra.mxu0 0.0
    %5429 = vmatprep.subr.mxu0 0.0
    %5430 = vmatpush1.msra.mxu0 0.0
    %5431 = vmatprep.subr.mxu0 0.0
    %5432 = vmatpush1.msra.mxu0 0.0
    %5433 = vmatprep.subr.mxu0 0.0
    %5434 = vmatpush1.msra.mxu0 0.0
    %5435 = vmatprep.subr.mxu0 0.0
    %5436 = vmatpush1.msra.mxu0 0.0
    %5437 = vmatprep.subr.mxu0 0.0
    %5438 = vmatpush1.msra.mxu0 0.0
    %5439 = vmatprep.subr.mxu0 0.0
    %5440 = vmatpush1.msra.mxu0 0.0
    %5441 = vmatprep.subr.mxu0 0.0
    %5442 = vmatpush1.msra.mxu0 0.0
    %5443 = vmatprep.subr.mxu0 0.0
    %5444 = vmatpush1.msra.mxu0 0.0
    %5445 = vmatprep.subr.mxu0 0.0
    %5446 = vmatpush1.msra.mxu0 0.0
    %5447 = vmatprep.subr.mxu0 0.0
    %5448 = vmatpush1.msra.mxu0 0.0
    %5449 = vmatprep.subr.mxu0 0.0
    %5450 = vmatpush1.msra.mxu0 0.0
    %5451 = vmatprep.subr.mxu0 0.0
    %5452 = vmatpush1.msra.mxu0 0.0
    %5453 = vmatprep.subr.mxu0 0.0
    %5454 = vmatpush1.msra.mxu0 0.0
    %5455 = vmatprep.subr.mxu0 0.0
    %5456 = vmatpush1.msra.mxu0 0.0
    %5457 = vmatprep.subr.mxu0 0.0
    %5458 = vmatpush1.msra.mxu0 0.0
    %5459 = vmatprep.subr.mxu0 0.0
    %5460 = vmatpush1.msra.mxu0 0.0
    %5461 = vmatprep.subr.mxu0 0.0
    %5462 = vmatpush1.msra.mxu0 0.0
    %5463 = vmatprep.subr.mxu0 0.0
    %5464 = vmatpush1.msra.mxu0 0.0
    %5465 = vmatprep.subr.mxu0 0.0
    %5466 = vmatpush1.msra.mxu0 0.0
    %5467 = vmatprep.mubr.f32.mxu0 0.0
    %5468 = vmatmul.mubr.f32.gmra.mrb[0].mxu0 %v5401
    %v5469 = vpop.f32.mrb[0].mxu0
    %v5470 = vadd.f32 %v5395, %v5469
    %v5471 = vpop.f32.mrb[0].mxu0
    %5472 = vdwg.mxu0
    %v5473 = vadd.f32 %v5470, %v3603
    %v5474 = vmul.f32 %v5473, 0.5
    %v5475 = vtanh.pop %v5474
    %v5476 = vmul.f32 %v5475, 0.5
    %v5477 = vadd.f32 %v5476, 0.5
    %v5478 = vtanh.pop %v5473
    %v5479 = vmul.f32 %v5477, %v5002
    %5481 = vrot.lane.b32.xlu0 %v5478, 32
    %v5482 = vpop.permute.xlu0 %5481
    %v5484 = vmul.f32 %v5477, %v5482
    %5486 = vrot.lane.b32.xlu0 %v5484, 32
    %v5487 = vpop.permute.xlu0 %5486
    %v5489 = vadd.f32 %v5479, %v5487
    %v5490 = vtanh.pop %v5489
    %5492 = vrot.lane.b32.xlu0 %v5490, 32
    %v5493 = vpop.permute.xlu0 %5492
    %v5495 = vmul.f32 %v5477, %v5493
    %5497 = vrot.lane.b32.xlu0 %v5495, 64
    %v5498 = vpop.permute.xlu0 %5497
    %v5499 = vsel %vm388, %v5498, 0
    %5501 = vmatprep.subr.mxu0 0.0
    %5502 = vmatpush1.msra.mxu0 %v3587
    %5503 = vmatprep.subr.mxu0 0.0
    %5504 = vmatpush1.msra.mxu0 %v3588
    %5505 = vmatprep.subr.mxu0 0.0
    %5506 = vmatpush1.msra.mxu0 %v3589
    %5507 = vmatprep.subr.mxu0 0.0
    %5508 = vmatpush1.msra.mxu0 %v3590
    %5509 = vmatprep.subr.mxu0 0.0
    %5510 = vmatpush1.msra.mxu0 0.0
    %5511 = vmatprep.subr.mxu0 0.0
    %5512 = vmatpush1.msra.mxu0 0.0
    %5513 = vmatprep.subr.mxu0 0.0
    %5514 = vmatpush1.msra.mxu0 0.0
    %5515 = vmatprep.subr.mxu0 0.0
    %5516 = vmatpush1.msra.mxu0 0.0
    %5517 = vmatprep.subr.mxu0 0.0
    %5518 = vmatpush1.msra.mxu0 0.0
    %5519 = vmatprep.subr.mxu0 0.0
    %5520 = vmatpush1.msra.mxu0 0.0
    %5521 = vmatprep.subr.mxu0 0.0
    %5522 = vmatpush1.msra.mxu0 0.0
    %5523 = vmatprep.subr.mxu0 0.0
    %5524 = vmatpush1.msra.mxu0 0.0
    %5525 = vmatprep.subr.mxu0 0.0
    %5526 = vmatpush1.msra.mxu0 0.0
    %5527 = vmatprep.subr.mxu0 0.0
    %5528 = vmatpush1.msra.mxu0 0.0
    %5529 = vmatprep.subr.mxu0 0.0
    %5530 = vmatpush1.msra.mxu0 0.0
    %5531 = vmatprep.subr.mxu0 0.0
    %5532 = vmatpush1.msra.mxu0 0.0
    %5533 = vmatprep.subr.mxu0 0.0
    %5534 = vmatpush1.msra.mxu0 0.0
    %5535 = vmatprep.subr.mxu0 0.0
    %5536 = vmatpush1.msra.mxu0 0.0
    %5537 = vmatprep.subr.mxu0 0.0
    %5538 = vmatpush1.msra.mxu0 0.0
    %5539 = vmatprep.subr.mxu0 0.0
    %5540 = vmatpush1.msra.mxu0 0.0
    %5541 = vmatprep.subr.mxu0 0.0
    %5542 = vmatpush1.msra.mxu0 0.0
    %5543 = vmatprep.subr.mxu0 0.0
    %5544 = vmatpush1.msra.mxu0 0.0
    %5545 = vmatprep.subr.mxu0 0.0
    %5546 = vmatpush1.msra.mxu0 0.0
    %5547 = vmatprep.subr.mxu0 0.0
    %5548 = vmatpush1.msra.mxu0 0.0
    %5549 = vmatprep.subr.mxu0 0.0
    %5550 = vmatpush1.msra.mxu0 0.0
    %5551 = vmatprep.subr.mxu0 0.0
    %5552 = vmatpush1.msra.mxu0 0.0
    %5553 = vmatprep.subr.mxu0 0.0
    %5554 = vmatpush1.msra.mxu0 0.0
    %5555 = vmatprep.subr.mxu0 0.0
    %5556 = vmatpush1.msra.mxu0 0.0
    %5557 = vmatprep.subr.mxu0 0.0
    %5558 = vmatpush1.msra.mxu0 0.0
    %5559 = vmatprep.subr.mxu0 0.0
    %5560 = vmatpush1.msra.mxu0 0.0
    %5561 = vmatprep.subr.mxu0 0.0
    %5562 = vmatpush1.msra.mxu0 0.0
    %5563 = vmatprep.subr.mxu0 0.0
    %5564 = vmatpush1.msra.mxu0 0.0
    %5565 = vmatprep.mubr.f32.mxu0 0.0
    %5566 = vmatmul.mubr.f32.gmra.mrb[0].mxu0 %v5499
    %v5567 = vpop.f32.mrb[0].mxu0
    %v5568 = vadd.f32 %v3610, %v5567
    %v5569 = vpop.f32.mrb[0].mxu0
    %5570 = vdwg.mxu0
    %s5571 = scalar_lea.vmem [#allocation20], 6
    %5572 = vst.msk [vmem:[%s5571] sm:$0x3] %vm4110, %v5568
    %s5573 = scalar_lea.vmem %s2, 8
    %v5574 = vld [vmem:[%s5573] sm:$0x3]
    %v5576 = vsel %vm3613, %v5574, 0
    %5578 = vmatprep.subr.mxu0 0.0
    %5579 = vmatpush1.msra.mxu0 %v3619
    %5580 = vmatprep.subr.mxu0 0.0
    %5581 = vmatpush1.msra.mxu0 0.0
    %5582 = vmatprep.subr.mxu0 0.0
    %5583 = vmatpush1.msra.mxu0 0.0
    %5584 = vmatprep.subr.mxu0 0.0
    %5585 = vmatpush1.msra.mxu0 0.0
    %5586 = vmatprep.subr.mxu0 0.0
    %5587 = vmatpush1.msra.mxu0 0.0
    %5588 = vmatprep.subr.mxu0 0.0
    %5589 = vmatpush1.msra.mxu0 0.0
    %5590 = vmatprep.subr.mxu0 0.0
    %5591 = vmatpush1.msra.mxu0 0.0
    %5592 = vmatprep.subr.mxu0 0.0
    %5593 = vmatpush1.msra.mxu0 0.0
    %5594 = vmatprep.subr.mxu0 0.0
    %5595 = vmatpush1.msra.mxu0 0.0
    %5596 = vmatprep.subr.mxu0 0.0
    %5597 = vmatpush1.msra.mxu0 0.0
    %5598 = vmatprep.subr.mxu0 0.0
    %5599 = vmatpush1.msra.mxu0 0.0
    %5600 = vmatprep.subr.mxu0 0.0
    %5601 = vmatpush1.msra.mxu0 0.0
    %5602 = vmatprep.subr.mxu0 0.0
    %5603 = vmatpush1.msra.mxu0 0.0
    %5604 = vmatprep.subr.mxu0 0.0
    %5605 = vmatpush1.msra.mxu0 0.0
    %5606 = vmatprep.subr.mxu0 0.0
    %5607 = vmatpush1.msra.mxu0 0.0
    %5608 = vmatprep.subr.mxu0 0.0
    %5609 = vmatpush1.msra.mxu0 0.0
    %5610 = vmatprep.subr.mxu0 0.0
    %5611 = vmatpush1.msra.mxu0 0.0
    %5612 = vmatprep.subr.mxu0 0.0
    %5613 = vmatpush1.msra.mxu0 0.0
    %5614 = vmatprep.subr.mxu0 0.0
    %5615 = vmatpush1.msra.mxu0 0.0
    %5616 = vmatprep.subr.mxu0 0.0
    %5617 = vmatpush1.msra.mxu0 0.0
    %5618 = vmatprep.subr.mxu0 0.0
    %5619 = vmatpush1.msra.mxu0 0.0
    %5620 = vmatprep.subr.mxu0 0.0
    %5621 = vmatpush1.msra.mxu0 0.0
    %5622 = vmatprep.subr.mxu0 0.0
    %5623 = vmatpush1.msra.mxu0 0.0
    %5624 = vmatprep.subr.mxu0 0.0
    %5625 = vmatpush1.msra.mxu0 0.0
    %5626 = vmatprep.subr.mxu0 0.0
    %5627 = vmatpush1.msra.mxu0 0.0
    %5628 = vmatprep.subr.mxu0 0.0
    %5629 = vmatpush1.msra.mxu0 0.0
    %5630 = vmatprep.subr.mxu0 0.0
    %5631 = vmatpush1.msra.mxu0 0.0
    %5632 = vmatprep.subr.mxu0 0.0
    %5633 = vmatpush1.msra.mxu0 0.0
    %5634 = vmatprep.subr.mxu0 0.0
    %5635 = vmatpush1.msra.mxu0 0.0
    %5636 = vmatprep.subr.mxu0 0.0
    %5637 = vmatpush1.msra.mxu0 0.0
    %5638 = vmatprep.subr.mxu0 0.0
    %5639 = vmatpush1.msra.mxu0 0.0
    %5640 = vmatprep.subr.mxu0 0.0
    %5641 = vmatpush1.msra.mxu0 0.0
    %5642 = vmatprep.mubr.f32.mxu0 0.0
    %5643 = vmatmul.mubr.f32.gmra.mrb[0].mxu0 %v5576
    %v5644 = vpop.f32.mrb[0].mxu0
    %v5645 = vadd.f32 %v3596, %v5644
    %v5646 = vpop.f32.mrb[0].mxu0
    %5647 = vdwg.mxu0
    %v5649 = vsel %vm3691, %v5568, 0
    %5651 = vmatprep.subr.mxu0 0.0
    %5652 = vmatpush1.msra.mxu0 %v3572
    %5653 = vmatprep.subr.mxu0 0.0
    %5654 = vmatpush1.msra.mxu0 %v3696
    %5655 = vmatprep.subr.mxu0 0.0
    %5656 = vmatpush1.msra.mxu0 0.0
    %5657 = vmatprep.subr.mxu0 0.0
    %5658 = vmatpush1.msra.mxu0 0.0
    %5659 = vmatprep.subr.mxu0 0.0
    %5660 = vmatpush1.msra.mxu0 0.0
    %5661 = vmatprep.subr.mxu0 0.0
    %5662 = vmatpush1.msra.mxu0 0.0
    %5663 = vmatprep.subr.mxu0 0.0
    %5664 = vmatpush1.msra.mxu0 0.0
    %5665 = vmatprep.subr.mxu0 0.0
    %5666 = vmatpush1.msra.mxu0 0.0
    %5667 = vmatprep.subr.mxu0 0.0
    %5668 = vmatpush1.msra.mxu0 0.0
    %5669 = vmatprep.subr.mxu0 0.0
    %5670 = vmatpush1.msra.mxu0 0.0
    %5671 = vmatprep.subr.mxu0 0.0
    %5672 = vmatpush1.msra.mxu0 0.0
    %5673 = vmatprep.subr.mxu0 0.0
    %5674 = vmatpush1.msra.mxu0 0.0
    %5675 = vmatprep.subr.mxu0 0.0
    %5676 = vmatpush1.msra.mxu0 0.0
    %5677 = vmatprep.subr.mxu0 0.0
    %5678 = vmatpush1.msra.mxu0 0.0
    %5679 = vmatprep.subr.mxu0 0.0
    %5680 = vmatpush1.msra.mxu0 0.0
    %5681 = vmatprep.subr.mxu0 0.0
    %5682 = vmatpush1.msra.mxu0 0.0
    %5683 = vmatprep.subr.mxu0 0.0
    %5684 = vmatpush1.msra.mxu0 0.0
    %5685 = vmatprep.subr.mxu0 0.0
    %5686 = vmatpush1.msra.mxu0 0.0
    %5687 = vmatprep.subr.mxu0 0.0
    %5688 = vmatpush1.msra.mxu0 0.0
    %5689 = vmatprep.subr.mxu0 0.0
    %5690 = vmatpush1.msra.mxu0 0.0
    %5691 = vmatprep.subr.mxu0 0.0
    %5692 = vmatpush1.msra.mxu0 0.0
    %5693 = vmatprep.subr.mxu0 0.0
    %5694 = vmatpush1.msra.mxu0 0.0
    %5695 = vmatprep.subr.mxu0 0.0
    %5696 = vmatpush1.msra.mxu0 0.0
    %5697 = vmatprep.subr.mxu0 0.0
    %5698 = vmatpush1.msra.mxu0 0.0
    %5699 = vmatprep.subr.mxu0 0.0
    %5700 = vmatpush1.msra.mxu0 0.0
    %5701 = vmatprep.subr.mxu0 0.0
    %5702 = vmatpush1.msra.mxu0 0.0
    %5703 = vmatprep.subr.mxu0 0.0
    %5704 = vmatpush1.msra.mxu0 0.0
    %5705 = vmatprep.subr.mxu0 0.0
    %5706 = vmatpush1.msra.mxu0 0.0
    %5707 = vmatprep.subr.mxu0 0.0
    %5708 = vmatpush1.msra.mxu0 0.0
    %5709 = vmatprep.subr.mxu0 0.0
    %5710 = vmatpush1.msra.mxu0 0.0
    %5711 = vmatprep.subr.mxu0 0.0
    %5712 = vmatpush1.msra.mxu0 0.0
    %5713 = vmatprep.subr.mxu0 0.0
    %5714 = vmatpush1.msra.mxu0 0.0
    %5715 = vmatprep.mubr.f32.mxu0 0.0
    %5716 = vmatmul.mubr.f32.gmra.mrb[0].mxu0 %v5649
    %v5717 = vpop.f32.mrb[0].mxu0
    %v5718 = vadd.f32 0.0, %v5717
    %v5719 = vpop.f32.mrb[0].mxu0
    %5720 = vdwg.mxu0
    %v5721 = vadd.f32 %v5645, %v5718
    %5722 = vmatprep.subr.mxu0 0.0
    %5723 = vmatpush1.msra.mxu0 %v3575
    %5724 = vmatprep.subr.mxu0 0.0
    %5725 = vmatpush1.msra.mxu0 %v3576
    %5726 = vmatprep.subr.mxu0 0.0
    %5727 = vmatpush1.msra.mxu0 %v3577
    %5728 = vmatprep.subr.mxu0 0.0
    %5729 = vmatpush1.msra.mxu0 %v3578
    %5730 = vmatprep.subr.mxu0 0.0
    %5731 = vmatpush1.msra.mxu0 0.0
    %5732 = vmatprep.subr.mxu0 0.0
    %5733 = vmatpush1.msra.mxu0 0.0
    %5734 = vmatprep.subr.mxu0 0.0
    %5735 = vmatpush1.msra.mxu0 0.0
    %5736 = vmatprep.subr.mxu0 0.0
    %5737 = vmatpush1.msra.mxu0 0.0
    %5738 = vmatprep.subr.mxu0 0.0
    %5739 = vmatpush1.msra.mxu0 0.0
    %5740 = vmatprep.subr.mxu0 0.0
    %5741 = vmatpush1.msra.mxu0 0.0
    %5742 = vmatprep.subr.mxu0 0.0
    %5743 = vmatpush1.msra.mxu0 0.0
    %5744 = vmatprep.subr.mxu0 0.0
    %5745 = vmatpush1.msra.mxu0 0.0
    %5746 = vmatprep.subr.mxu0 0.0
    %5747 = vmatpush1.msra.mxu0 0.0
    %5748 = vmatprep.subr.mxu0 0.0
    %5749 = vmatpush1.msra.mxu0 0.0
    %5750 = vmatprep.subr.mxu0 0.0
    %5751 = vmatpush1.msra.mxu0 0.0
    %5752 = vmatprep.subr.mxu0 0.0
    %5753 = vmatpush1.msra.mxu0 0.0
    %5754 = vmatprep.subr.mxu0 0.0
    %5755 = vmatpush1.msra.mxu0 0.0
    %5756 = vmatprep.subr.mxu0 0.0
    %5757 = vmatpush1.msra.mxu0 0.0
    %5758 = vmatprep.subr.mxu0 0.0
    %5759 = vmatpush1.msra.mxu0 0.0
    %5760 = vmatprep.subr.mxu0 0.0
    %5761 = vmatpush1.msra.mxu0 0.0
    %5762 = vmatprep.subr.mxu0 0.0
    %5763 = vmatpush1.msra.mxu0 0.0
    %5764 = vmatprep.subr.mxu0 0.0
    %5765 = vmatpush1.msra.mxu0 0.0
    %5766 = vmatprep.subr.mxu0 0.0
    %5767 = vmatpush1.msra.mxu0 0.0
    %5768 = vmatprep.subr.mxu0 0.0
    %5769 = vmatpush1.msra.mxu0 0.0
    %5770 = vmatprep.subr.mxu0 0.0
    %5771 = vmatpush1.msra.mxu0 0.0
    %5772 = vmatprep.subr.mxu0 0.0
    %5773 = vmatpush1.msra.mxu0 0.0
    %5774 = vmatprep.subr.mxu0 0.0
    %5775 = vmatpush1.msra.mxu0 0.0
    %5776 = vmatprep.subr.mxu0 0.0
    %5777 = vmatpush1.msra.mxu0 0.0
    %5778 = vmatprep.subr.mxu0 0.0
    %5779 = vmatpush1.msra.mxu0 0.0
    %5780 = vmatprep.subr.mxu0 0.0
    %5781 = vmatpush1.msra.mxu0 0.0
    %5782 = vmatprep.subr.mxu0 0.0
    %5783 = vmatpush1.msra.mxu0 0.0
    %5784 = vmatprep.subr.mxu0 0.0
    %5785 = vmatpush1.msra.mxu0 0.0
    %5786 = vmatprep.mubr.f32.mxu0 0.0
    %5787 = vmatmul.mubr.f32.gmra.mrb[0].mxu0 %v5401
    %v5788 = vpop.f32.mrb[0].mxu0
    %v5789 = vadd.f32 0.0, %v5788
    %v5790 = vpop.f32.mrb[0].mxu0
    %5791 = vdwg.mxu0
    %v5792 = vadd.f32 %v5721, %v5789
    %v5793 = vmul.f32 %v5792, 0.5
    %v5794 = vtanh.pop %v5793
    %v5795 = vmul.f32 %v5794, 0.5
    %v5796 = vadd.f32 %v5795, 0.5
    %v5797 = vtanh.pop %v5792
    %v5798 = vmul.f32 %v5796, %v5321
    %5800 = vrot.lane.b32.xlu0 %v5797, 32
    %v5801 = vpop.permute.xlu0 %5800
    %v5803 = vmul.f32 %v5796, %v5801
    %5805 = vrot.lane.b32.xlu0 %v5803, 32
    %v5806 = vpop.permute.xlu0 %5805
    %v5808 = vadd.f32 %v5798, %v5806
    %v5809 = vtanh.pop %v5808
    %5811 = vrot.lane.b32.xlu0 %v5809, 32
    %v5812 = vpop.permute.xlu0 %5811
    %v5814 = vmul.f32 %v5796, %v5812
    %5815 = vmatprep.subr.mxu0 0.0
    %5816 = vmatpush1.msra.mxu0 %v3583
    %5817 = vmatprep.subr.mxu0 0.0
    %5818 = vmatpush1.msra.mxu0 %v3584
    %5819 = vmatprep.subr.mxu0 0.0
    %5820 = vmatpush1.msra.mxu0 %v3585
    %5821 = vmatprep.subr.mxu0 0.0
    %5822 = vmatpush1.msra.mxu0 %v3586
    %5823 = vmatprep.subr.mxu0 0.0
    %5824 = vmatpush1.msra.mxu0 0.0
    %5825 = vmatprep.subr.mxu0 0.0
    %5826 = vmatpush1.msra.mxu0 0.0
    %5827 = vmatprep.subr.mxu0 0.0
    %5828 = vmatpush1.msra.mxu0 0.0
    %5829 = vmatprep.subr.mxu0 0.0
    %5830 = vmatpush1.msra.mxu0 0.0
    %5831 = vmatprep.subr.mxu0 0.0
    %5832 = vmatpush1.msra.mxu0 0.0
    %5833 = vmatprep.subr.mxu0 0.0
    %5834 = vmatpush1.msra.mxu0 0.0
    %5835 = vmatprep.subr.mxu0 0.0
    %5836 = vmatpush1.msra.mxu0 0.0
    %5837 = vmatprep.subr.mxu0 0.0
    %5838 = vmatpush1.msra.mxu0 0.0
    %5839 = vmatprep.subr.mxu0 0.0
    %5840 = vmatpush1.msra.mxu0 0.0
    %5841 = vmatprep.subr.mxu0 0.0
    %5842 = vmatpush1.msra.mxu0 0.0
    %5843 = vmatprep.subr.mxu0 0.0
    %5844 = vmatpush1.msra.mxu0 0.0
    %5845 = vmatprep.subr.mxu0 0.0
    %5846 = vmatpush1.msra.mxu0 0.0
    %5847 = vmatprep.subr.mxu0 0.0
    %5848 = vmatpush1.msra.mxu0 0.0
    %5849 = vmatprep.subr.mxu0 0.0
    %5850 = vmatpush1.msra.mxu0 0.0
    %5851 = vmatprep.subr.mxu0 0.0
    %5852 = vmatpush1.msra.mxu0 0.0
    %5853 = vmatprep.subr.mxu0 0.0
    %5854 = vmatpush1.msra.mxu0 0.0
    %5855 = vmatprep.subr.mxu0 0.0
    %5856 = vmatpush1.msra.mxu0 0.0
    %5857 = vmatprep.subr.mxu0 0.0
    %5858 = vmatpush1.msra.mxu0 0.0
    %5859 = vmatprep.subr.mxu0 0.0
    %5860 = vmatpush1.msra.mxu0 0.0
    %5861 = vmatprep.subr.mxu0 0.0
    %5862 = vmatpush1.msra.mxu0 0.0
    %5863 = vmatprep.subr.mxu0 0.0
    %5864 = vmatpush1.msra.mxu0 0.0
    %5865 = vmatprep.subr.mxu0 0.0
    %5866 = vmatpush1.msra.mxu0 0.0
    %5867 = vmatprep.subr.mxu0 0.0
    %5868 = vmatpush1.msra.mxu0 0.0
    %5869 = vmatprep.subr.mxu0 0.0
    %5870 = vmatpush1.msra.mxu0 0.0
    %5871 = vmatprep.subr.mxu0 0.0
    %5872 = vmatpush1.msra.mxu0 0.0
    %5873 = vmatprep.subr.mxu0 0.0
    %5874 = vmatpush1.msra.mxu0 0.0
    %5875 = vmatprep.subr.mxu0 0.0
    %5876 = vmatpush1.msra.mxu0 0.0
    %5877 = vmatprep.subr.mxu0 0.0
    %5878 = vmatpush1.msra.mxu0 0.0
    %5879 = vmatprep.mubr.f32.mxu0 0.0
    %5880 = vmatmul.mubr.f32.gmra.mrb[0].mxu0 %v5499
    %v5881 = vpop.f32.mrb[0].mxu0
    %v5882 = vadd.f32 0.0, %v5881
    %v5883 = vpop.f32.mrb[0].mxu0
    %5884 = vdwg.mxu0
    %5886 = vrot.lane.b32.xlu0 %v5814, 64
    %v5887 = vpop.permute.xlu0 %5886
    %v5888 = vsel %vm388, %v5887, 0
    %5890 = vmatprep.subr.mxu0 0.0
    %5891 = vmatpush1.msra.mxu0 %v3579
    %5892 = vmatprep.subr.mxu0 0.0
    %5893 = vmatpush1.msra.mxu0 %v3580
    %5894 = vmatprep.subr.mxu0 0.0
    %5895 = vmatpush1.msra.mxu0 %v3581
    %5896 = vmatprep.subr.mxu0 0.0
    %5897 = vmatpush1.msra.mxu0 %v3582
    %5898 = vmatprep.subr.mxu0 0.0
    %5899 = vmatpush1.msra.mxu0 0.0
    %5900 = vmatprep.subr.mxu0 0.0
    %5901 = vmatpush1.msra.mxu0 0.0
    %5902 = vmatprep.subr.mxu0 0.0
    %5903 = vmatpush1.msra.mxu0 0.0
    %5904 = vmatprep.subr.mxu0 0.0
    %5905 = vmatpush1.msra.mxu0 0.0
    %5906 = vmatprep.subr.mxu0 0.0
    %5907 = vmatpush1.msra.mxu0 0.0
    %5908 = vmatprep.subr.mxu0 0.0
    %5909 = vmatpush1.msra.mxu0 0.0
    %5910 = vmatprep.subr.mxu0 0.0
    %5911 = vmatpush1.msra.mxu0 0.0
    %5912 = vmatprep.subr.mxu0 0.0
    %5913 = vmatpush1.msra.mxu0 0.0
    %5914 = vmatprep.subr.mxu0 0.0
    %5915 = vmatpush1.msra.mxu0 0.0
    %5916 = vmatprep.subr.mxu0 0.0
    %5917 = vmatpush1.msra.mxu0 0.0
    %5918 = vmatprep.subr.mxu0 0.0
    %5919 = vmatpush1.msra.mxu0 0.0
    %5920 = vmatprep.subr.mxu0 0.0
    %5921 = vmatpush1.msra.mxu0 0.0
    %5922 = vmatprep.subr.mxu0 0.0
    %5923 = vmatpush1.msra.mxu0 0.0
    %5924 = vmatprep.subr.mxu0 0.0
    %5925 = vmatpush1.msra.mxu0 0.0
    %5926 = vmatprep.subr.mxu0 0.0
    %5927 = vmatpush1.msra.mxu0 0.0
    %5928 = vmatprep.subr.mxu0 0.0
    %5929 = vmatpush1.msra.mxu0 0.0
    %5930 = vmatprep.subr.mxu0 0.0
    %5931 = vmatpush1.msra.mxu0 0.0
    %5932 = vmatprep.subr.mxu0 0.0
    %5933 = vmatpush1.msra.mxu0 0.0
    %5934 = vmatprep.subr.mxu0 0.0
    %5935 = vmatpush1.msra.mxu0 0.0
    %5936 = vmatprep.subr.mxu0 0.0
    %5937 = vmatpush1.msra.mxu0 0.0
    %5938 = vmatprep.subr.mxu0 0.0
    %5939 = vmatpush1.msra.mxu0 0.0
    %5940 = vmatprep.subr.mxu0 0.0
    %5941 = vmatpush1.msra.mxu0 0.0
    %5942 = vmatprep.subr.mxu0 0.0
    %5943 = vmatpush1.msra.mxu0 0.0
    %5944 = vmatprep.subr.mxu0 0.0
    %5945 = vmatpush1.msra.mxu0 0.0
    %5946 = vmatprep.subr.mxu0 0.0
    %5947 = vmatpush1.msra.mxu0 0.0
    %5948 = vmatprep.subr.mxu0 0.0
    %5949 = vmatpush1.msra.mxu0 0.0
    %5950 = vmatprep.subr.mxu0 0.0
    %5951 = vmatpush1.msra.mxu0 0.0
    %5952 = vmatprep.subr.mxu0 0.0
    %5953 = vmatpush1.msra.mxu0 0.0
    %5954 = vmatprep.mubr.f32.mxu0 0.0
    %5955 = vmatmul.mubr.f32.gmra.mrb[0].mxu0 %v5888
    %v5956 = vpop.f32.mrb[0].mxu0
    %v5957 = vadd.f32 %v5882, %v5956
    %v5958 = vpop.f32.mrb[0].mxu0
    %5959 = vdwg.mxu0
    %v5960 = vadd.f32 %v5957, %v3603
    %v5961 = vmul.f32 %v5960, 0.5
    %v5962 = vtanh.pop %v5961
    %v5963 = vmul.f32 %v5962, 0.5
    %v5964 = vadd.f32 %v5963, 0.5
    %v5965 = vtanh.pop %v5960
    %v5966 = vmul.f32 %v5964, %v5489
    %5968 = vrot.lane.b32.xlu0 %v5965, 32
    %v5969 = vpop.permute.xlu0 %5968
    %v5971 = vmul.f32 %v5964, %v5969
    %5973 = vrot.lane.b32.xlu0 %v5971, 32
    %v5974 = vpop.permute.xlu0 %5973
    %v5976 = vadd.f32 %v5966, %v5974
    %v5977 = vtanh.pop %v5976
    %5979 = vrot.lane.b32.xlu0 %v5977, 32
    %v5980 = vpop.permute.xlu0 %5979
    %v5982 = vmul.f32 %v5964, %v5980
    %5984 = vrot.lane.b32.xlu0 %v5982, 64
    %v5985 = vpop.permute.xlu0 %5984
    %v5986 = vsel %vm388, %v5985, 0
    %5988 = vmatprep.subr.mxu0 0.0
    %5989 = vmatpush1.msra.mxu0 %v3587
    %5990 = vmatprep.subr.mxu0 0.0
    %5991 = vmatpush1.msra.mxu0 %v3588
    %5992 = vmatprep.subr.mxu0 0.0
    %5993 = vmatpush1.msra.mxu0 %v3589
    %5994 = vmatprep.subr.mxu0 0.0
    %5995 = vmatpush1.msra.mxu0 %v3590
    %5996 = vmatprep.subr.mxu0 0.0
    %5997 = vmatpush1.msra.mxu0 0.0
    %5998 = vmatprep.subr.mxu0 0.0
    %5999 = vmatpush1.msra.mxu0 0.0
    %6000 = vmatprep.subr.mxu0 0.0
    %6001 = vmatpush1.msra.mxu0 0.0
    %6002 = vmatprep.subr.mxu0 0.0
    %6003 = vmatpush1.msra.mxu0 0.0
    %6004 = vmatprep.subr.mxu0 0.0
    %6005 = vmatpush1.msra.mxu0 0.0
    %6006 = vmatprep.subr.mxu0 0.0
    %6007 = vmatpush1.msra.mxu0 0.0
    %6008 = vmatprep.subr.mxu0 0.0
    %6009 = vmatpush1.msra.mxu0 0.0
    %6010 = vmatprep.subr.mxu0 0.0
    %6011 = vmatpush1.msra.mxu0 0.0
    %6012 = vmatprep.subr.mxu0 0.0
    %6013 = vmatpush1.msra.mxu0 0.0
    %6014 = vmatprep.subr.mxu0 0.0
    %6015 = vmatpush1.msra.mxu0 0.0
    %6016 = vmatprep.subr.mxu0 0.0
    %6017 = vmatpush1.msra.mxu0 0.0
    %6018 = vmatprep.subr.mxu0 0.0
    %6019 = vmatpush1.msra.mxu0 0.0
    %6020 = vmatprep.subr.mxu0 0.0
    %6021 = vmatpush1.msra.mxu0 0.0
    %6022 = vmatprep.subr.mxu0 0.0
    %6023 = vmatpush1.msra.mxu0 0.0
    %6024 = vmatprep.subr.mxu0 0.0
    %6025 = vmatpush1.msra.mxu0 0.0
    %6026 = vmatprep.subr.mxu0 0.0
    %6027 = vmatpush1.msra.mxu0 0.0
    %6028 = vmatprep.subr.mxu0 0.0
    %6029 = vmatpush1.msra.mxu0 0.0
    %6030 = vmatprep.subr.mxu0 0.0
    %6031 = vmatpush1.msra.mxu0 0.0
    %6032 = vmatprep.subr.mxu0 0.0
    %6033 = vmatpush1.msra.mxu0 0.0
    %6034 = vmatprep.subr.mxu0 0.0
    %6035 = vmatpush1.msra.mxu0 0.0
    %6036 = vmatprep.subr.mxu0 0.0
    %6037 = vmatpush1.msra.mxu0 0.0
    %6038 = vmatprep.subr.mxu0 0.0
    %6039 = vmatpush1.msra.mxu0 0.0
    %6040 = vmatprep.subr.mxu0 0.0
    %6041 = vmatpush1.msra.mxu0 0.0
    %6042 = vmatprep.subr.mxu0 0.0
    %6043 = vmatpush1.msra.mxu0 0.0
    %6044 = vmatprep.subr.mxu0 0.0
    %6045 = vmatpush1.msra.mxu0 0.0
    %6046 = vmatprep.subr.mxu0 0.0
    %6047 = vmatpush1.msra.mxu0 0.0
    %6048 = vmatprep.subr.mxu0 0.0
    %6049 = vmatpush1.msra.mxu0 0.0
    %6050 = vmatprep.subr.mxu0 0.0
    %6051 = vmatpush1.msra.mxu0 0.0
    %6052 = vmatprep.mubr.f32.mxu0 0.0
    %6053 = vmatmul.mubr.f32.gmra.mrb[0].mxu0 %v5986
    %v6054 = vpop.f32.mrb[0].mxu0
    %v6055 = vadd.f32 %v3610, %v6054
    %v6056 = vpop.f32.mrb[0].mxu0
    %6057 = vdwg.mxu0
    %s6058 = scalar_lea.vmem [#allocation20], 8
    %6059 = vst.msk [vmem:[%s6058] sm:$0x3] %vm4110, %v6055
    // Predicated region
    $region122: #{tpu_custom_call.1} parent=1 // pred_check
      _
    $region123: #{tpu_custom_call.1} parent=1 // pred_check_branch
      %6061 = sbr.rel (0) target = $region125
    $region124: #{tpu_custom_call.1} parent=1 // pred_region
      %s6063 = ssub.s32 160, 160
      %6064 = vsyncadd [#allocation4], %s6063
      %s6065 = sshll.u32 [#allocation20], 4
      %s6066 = int_to_ptr.vmem [resolvable:$true] %s6065
      %6071 = dma.vmem_to_hbm [thread:$0]  %s6066, 160, %s19, [#allocation4], 32, 32, 2
    $region125: #{tpu_custom_call.1} parent=1 // pred_fallthru
      _
    // Predicated region
    $region126: #{tpu_custom_call.1} parent=1 // pred_check
      _
    $region127: #{tpu_custom_call.1} parent=1 // pred_check_branch
      %6073 = sbr.rel (0) target = $region129
    $region128: #{tpu_custom_call.1} parent=1 // pred_region
      %6074 = dma.done [#allocation4], 160
    $region129: #{tpu_custom_call.1} parent=1 // pred_fallthru
      _
    %6075 = vsyncpa [#allocation3], 1
    %6076 = vsyncpa [#allocation6], 1
    %6077 = vsyncpa [#allocation9], 1
    %6078 = vsyncpa [#allocation12], 1
    %6079 = vsyncpa [#allocation15], 1
    %6080 = vsyncpa [#allocation18], 1
    %6081 = vsyncpa [#allocation4], 1

</llo_original>
